<compile_context>
chip_gen: v7x
topology: tpu7x:2x2x1
jax: 0.10.0
libtpu: 0.0.40
codegen_flags: <defaults>
</compile_context>

<pallas_src>
import functools

import numpy as np
import jax
import jax.numpy as jnp
from jax.experimental import pallas as pl
from jax.experimental.pallas import tpu as pltpu


def _inception_kernel(x_ref, w1_ref, s1_ref, b1_ref, w2_ref, s2_ref, b2_ref,
                      o_ref, slab_ref, *, H, W, F, BT):
    """One grid step = BT images; rows = image rows, width folded into lanes.

    x_ref : (BT*H, W*Cin)    input, [x, c] folded into lanes (f32)
    w1_ref: (W*Cin, 4*W*F)   four 1x1 convs fused, block-diagonal over x (f32)
    s1/b1 : (1, 4*W*F)       folded BN scale / bias after the 1x1 convs
    w2_ref: (3, 9*W*F, W*F)  per dilated path: 9 taps, block-diag over x (bf16)
    s2/b2 : (3, W*F)         folded BN scale / bias after the 3x3 convs
    o_ref : (BT*H, 4*W*F)    [path, x, f] folded output (lane-dense stores)
    slab  : (BT*H, 9*W*F)    bf16 VMEM scratch tap slab fed to the MXU
    """
    R = BT * H                      # rows handled this step
    L = W * F                       # lanes per path (one full image row)

    # ---- all four 1x1 convs in ONE matmul, output already lane-folded -------
    h = jnp.dot(x_ref[...], w1_ref[...], preferred_element_type=jnp.float32)
    h = jnp.maximum(h * s1_ref[...] + b1_ref[...], 0.0)          # (R, 4L) f32

    # path 1: 1x1 -> BN -> ReLU only; 128-aligned, unmasked lane-dense store
    o_ref[:, 0:L] = h[:, 0:L].astype(o_ref.dtype)

    zrows = jnp.zeros((8, L), jnp.float32)    # 8-aligned top/bottom zero rows
    if BT > 1:                                # only needed for multi-image blocks
        ypix = jax.lax.broadcasted_iota(jnp.int32, (R, 1), 0) % H

    for pi in (1, 2, 3):                      # paths 2..4, dilation d = pi
        d = pi
        hp = h[:, pi * L:(pi + 1) * L]        # (R, L), 128-aligned lane slice

        for kx, dx in enumerate((-d, 0, d)):
            # dx shift along lanes with zero fill: handles left/right borders
            # with no mask at all.
            if dx == 0:
                col = hp
            elif dx > 0:
                col = jnp.concatenate(
                    [hp[:, dx * F:], jnp.zeros((R, dx * F), jnp.float32)],
                    axis=1)
            else:
                col = jnp.concatenate(
                    [jnp.zeros((R, -dx * F), jnp.float32), hp[:, :L + dx * F]],
                    axis=1)

            # dy shift via zero-padded row slices (pad rows are 8-aligned).
            padded = jnp.concatenate([zrows, col, zrows], axis=0)  # (R+16, L)
            for ky, dy in enumerate((-d, 0, d)):
                tap = padded[8 + dy:8 + dy + R, :]
                if BT > 1:     # keep images inside one block isolated
                    tap = jnp.where((ypix + dy >= 0) & (ypix + dy < H),
                                    tap, 0.0)
                t = ky * 3 + kx
                # lane-slice store into the bf16 tap slab (no live-tap pileup)
                slab_ref[:, t * L:(t + 1) * L] = tap.astype(slab_ref.dtype)

        # ONE bf16 MXU matmul per dilated path: (R, 9L) @ (9L, L), f32 accum.
        y = jnp.dot(slab_ref[...], w2_ref[pi - 1],
                    preferred_element_type=jnp.float32)            # (R, L) f32
        y = jnp.maximum(y * s2_ref[pi - 1:pi, :] + b2_ref[pi - 1:pi, :], 0.0)
        o_ref[:, pi * L:(pi + 1) * L] = y.astype(o_ref.dtype)


def mix2_inception_block_a(x_nchw, params, *, images_per_step=1):
    """x_nchw: (N, Cin, H, W) float32  ->  (N, 4*F, H, W) float32.

    images_per_step (BT): v5e/v6e (single TensorCore) -> BT = N amortizes the
    per-step overhead; v7x (two TensorCores) -> keep grid extent N // BT a
    multiple of 2 so both cores get work (default BT = 1 satisfies this).
    """
    N, Cin, H, W = x_nchw.shape
    F = params["w1"].shape[-1]
    BT = images_per_step
    assert N % BT == 0, "batch must be divisible by images_per_step"
    R = BT * H

    # ---- layout glue: NCHW -> (N*H, W*Cin) rows, width folded into lanes ----
    x = jnp.transpose(x_nchw, (0, 2, 3, 1)).reshape(N * H, W * Cin)

    # ---- fold weights / BN into lane-folded, block-diagonal-over-x slabs ----
    # (In production these would be precomputed once outside the forward.)
    eye_f32 = jnp.eye(W, dtype=jnp.float32)
    w1bd = jnp.einsum("pcf,xy->xcpyf", params["w1"].astype(jnp.float32),
                      eye_f32).reshape(W * Cin, 4 * W * F)
    s1t = jnp.broadcast_to(params["s1"][:, None, :], (4, W, F)).reshape(1, 4 * W * F)
    b1t = jnp.broadcast_to(params["b1"][:, None, :], (4, W, F)).reshape(1, 4 * W * F)

    eye_bf16 = jnp.eye(W, dtype=jnp.bfloat16)
    w2r = params["w2"].astype(jnp.bfloat16).reshape(3, 9, F, F)    # [p,t,ci,co]
    w2bd = jnp.einsum("ptij,xy->ptxiyj", w2r,
                      eye_bf16).reshape(3, 9 * W * F, W * F)
    s2t = jnp.broadcast_to(params["s2"][:, None, :], (3, W, F)).reshape(3, W * F)
    b2t = jnp.broadcast_to(params["b2"][:, None, :], (3, W, F)).reshape(3, W * F)

    kernel = functools.partial(_inception_kernel, H=H, W=W, F=F, BT=BT)

    out_flat = pl.pallas_call(
        kernel,
        grid=(N // BT,),
        in_specs=[
            pl.BlockSpec((R, W * Cin), lambda n: (n, 0)),
            pl.BlockSpec((W * Cin, 4 * W * F), lambda n: (0, 0)),
            pl.BlockSpec((1, 4 * W * F), lambda n: (0, 0)),
            pl.BlockSpec((1, 4 * W * F), lambda n: (0, 0)),
            pl.BlockSpec((3, 9 * W * F, W * F), lambda n: (0, 0, 0)),
            pl.BlockSpec((3, W * F), lambda n: (0, 0)),
            pl.BlockSpec((3, W * F), lambda n: (0, 0)),
        ],
        out_specs=pl.BlockSpec((R, 4 * W * F), lambda n: (n, 0)),
        out_shape=jax.ShapeDtypeStruct((N * H, 4 * W * F), jnp.float32),
        scratch_shapes=[pltpu.VMEM((R, 9 * W * F), jnp.bfloat16)],
        compiler_params=pltpu.CompilerParams(
            dimension_semantics=("parallel",),          # both TCs on v7x
            vmem_limit_bytes=32 * 1024 * 1024),         # safe on v5e/v6e/v7x
    )(x, w1bd, s1t, b1t, w2bd, s2t, b2t)

    # (N*H, [path, x, f]) -> NCHW with channels = [p1 F, p2 F, p3 F, p4 F]
    out = out_flat.reshape(N, H, 4, W, F).transpose(0, 2, 4, 1, 3)
    return out.reshape(N, 4 * F, H, W)


def init_params(key, in_channels, filters=16, eps=1e-5):
    ks = jax.random.split(key, 10)
    # conv weights: w1[p, ci, co] (1x1), w2[p, ky, kx, ci, co] (3x3)
    w1 = jax.random.normal(ks[0], (4, in_channels, filters), jnp.float32) / np.sqrt(in_channels)
    w2 = jax.random.normal(ks[1], (3, 3, 3, filters, filters), jnp.float32) / np.sqrt(9.0 * filters)
    # BatchNorm parameters (eval mode), folded into scale/bias
    g1 = 1.0 + 0.1 * jax.random.normal(ks[2], (4, filters), jnp.float32)
    be1 = 0.1 * jax.random.normal(ks[3], (4, filters), jnp.float32)
    m1 = 0.1 * jax.random.normal(ks[4], (4, filters), jnp.float32)
    v1 = 0.5 + jax.random.uniform(ks[5], (4, filters), dtype=jnp.float32)
    g2 = 1.0 + 0.1 * jax.random.normal(ks[6], (3, filters), jnp.float32)
    be2 = 0.1 * jax.random.normal(ks[7], (3, filters), jnp.float32)
    m2 = 0.1 * jax.random.normal(ks[8], (3, filters), jnp.float32)
    v2 = 0.5 + jax.random.uniform(ks[9], (3, filters), dtype=jnp.float32)
    s1 = g1 / jnp.sqrt(v1 + eps)
    b1 = be1 - m1 * s1
    s2 = g2 / jnp.sqrt(v2 + eps)
    b2 = be2 - m2 * s2
    return dict(w1=w1, w2=w2, s1=s1, b1=b1, s2=s2, b2=b2)


def reference_nchw(x_nchw, params):
    """Pure-JAX f32 reference (NHWC convs via lax), returns NCHW."""
    x = jnp.transpose(x_nchw, (0, 2, 3, 1))
    w1, w2 = params["w1"], params["w2"]
    s1, b1, s2, b2 = params["s1"], params["b1"], params["s2"], params["b2"]
    outs = []
    for p in range(4):
        h = jnp.einsum("nhwc,cf->nhwf", x, w1[p])
        h = jnp.maximum(h * s1[p] + b1[p], 0.0)
        if p == 0:
            outs.append(h)
        else:
            d = p
            y = jax.lax.conv_general_dilated(
                h, w2[p - 1], window_strides=(1, 1),
                padding=((d, d), (d, d)), rhs_dilation=(d, d),
                dimension_numbers=("NHWC", "HWIO", "NHWC"))
            outs.append(jnp.maximum(y * s2[p - 1] + b2[p - 1], 0.0))
    out = jnp.concatenate(outs, axis=-1)
    return jnp.transpose(out, (0, 3, 1, 2))


if __name__ == "__main__":
    key = jax.random.PRNGKey(0)
    kx_, kp_ = jax.random.split(key)

    in_channels, filters = 4, 16
    N, H, W = 2, 16, 16

    x_nchw = jax.random.normal(kx_, (N, in_channels, H, W), jnp.float32)
    params = init_params(kp_, in_channels, filters)

    out = mix2_inception_block_a(x_nchw, params)
    out = jax.block_until_ready(out)

    assert out.shape == (N, 4 * filters, H, W), out.shape
    ref = reference_nchw(x_nchw, params)
    # Dilated-path MXU operands are bf16 (f32 accumulation) -> loosened
    # tolerance vs. the pure-f32 reference, as flagged in the perf review.
    np.testing.assert_allclose(np.asarray(out), np.asarray(ref),
                               rtol=2e-2, atol=5e-2)
    print("KERNEL_OK")
</pallas_src>

<mosaic_0001>
module attributes {stable_mosaic.version = 11 : i64} {
  func.func @_inception_kernel(%arg0: i32, %arg1: memref<16x64xf32, #tpu.memory_space<vmem>>, %arg2: memref<64x1024xf32, #tpu.memory_space<vmem>>, %arg3: memref<1x1024xf32, #tpu.memory_space<vmem>>, %arg4: memref<1x1024xf32, #tpu.memory_space<vmem>>, %arg5: memref<3x2304x256xbf16, #tpu.memory_space<vmem>>, %arg6: memref<3x256xf32, #tpu.memory_space<vmem>>, %arg7: memref<3x256xf32, #tpu.memory_space<vmem>>, %arg8: memref<16x1024xf32, #tpu.memory_space<vmem>>, %arg9: memref<16x2304xbf16, #tpu.memory_space<vmem>>) attributes {dimension_semantics = [#tpu.dimension_semantics<parallel>], iteration_bounds = array<i64: 2>, scalar_prefetch = 0 : i64, scratch_operands = 1 : i64, tpu.core_type = #tpu.core_type<tc>, window_params = [{transform_indices = @transform_0, window_bounds = array<i64: 16, 64>}, {pipeline_mode = #tpu.pipeline_mode<synchronous>, transform_indices = @transform_1, window_bounds = array<i64: 64, 1024>}, {pipeline_mode = #tpu.pipeline_mode<synchronous>, transform_indices = @transform_2, window_bounds = array<i64: 1, 1024>}, {pipeline_mode = #tpu.pipeline_mode<synchronous>, transform_indices = @transform_3, window_bounds = array<i64: 1, 1024>}, {pipeline_mode = #tpu.pipeline_mode<synchronous>, transform_indices = @transform_4, window_bounds = array<i64: 3, 2304, 256>}, {pipeline_mode = #tpu.pipeline_mode<synchronous>, transform_indices = @transform_5, window_bounds = array<i64: 3, 256>}, {pipeline_mode = #tpu.pipeline_mode<synchronous>, transform_indices = @transform_6, window_bounds = array<i64: 3, 256>}, {transform_indices = @transform_7, window_bounds = array<i64: 16, 1024>}]} {
    %c0 = arith.constant 0 : index
    %c0_0 = arith.constant 0 : index
    %0 = vector.load %arg1[%c0, %c0_0] : memref<16x64xf32, #tpu.memory_space<vmem>>, vector<16x64xf32>
    %c0_1 = arith.constant 0 : index
    %c0_2 = arith.constant 0 : index
    %1 = vector.load %arg2[%c0_1, %c0_2] : memref<64x1024xf32, #tpu.memory_space<vmem>>, vector<64x1024xf32>
    %cst = arith.constant dense<0.000000e+00> : vector<16x1024xf32>
    %2 = tpu.matmul %0, %1, %cst {dimension_numbers = #tpu.dot_dimension_numbers<[1], [0], [0], [1], [0, 0, 1, 1], [], []>} : vector<16x64xf32>, vector<64x1024xf32>, vector<16x1024xf32> -> vector<16x1024xf32>
    %c0_3 = arith.constant 0 : index
    %c0_4 = arith.constant 0 : index
    %3 = vector.load %arg3[%c0_3, %c0_4] : memref<1x1024xf32, #tpu.memory_space<vmem>>, vector<1x1024xf32>
    %4 = vector.broadcast %3 : vector<1x1024xf32> to vector<16x1024xf32>
    %5 = arith.mulf %2, %4 : vector<16x1024xf32>
    %c0_5 = arith.constant 0 : index
    %c0_6 = arith.constant 0 : index
    %6 = vector.load %arg4[%c0_5, %c0_6] : memref<1x1024xf32, #tpu.memory_space<vmem>>, vector<1x1024xf32>
    %7 = vector.broadcast %6 : vector<1x1024xf32> to vector<16x1024xf32>
    %8 = arith.addf %5, %7 : vector<16x1024xf32>
    %cst_7 = arith.constant 0.000000e+00 : f32
    %9 = vector.broadcast %cst_7 : f32 to vector<16x1024xf32>
    %10 = arith.maximumf %8, %9 : vector<16x1024xf32>
    %11 = vector.extract_strided_slice %10 {offsets = [0, 0], sizes = [16, 256], strides = [1, 1]} : vector<16x1024xf32> to vector<16x256xf32>
    %c0_8 = arith.constant 0 : index
    %c0_9 = arith.constant 0 : index
    %12 = vector.load %arg8[%c0_8, %c0_9] : memref<16x1024xf32, #tpu.memory_space<vmem>>, vector<16x256xf32>
    tpu.vector_store %arg8[%c0_8, %c0_9], %11 {strides = array<i32>} : memref<16x1024xf32, #tpu.memory_space<vmem>>, vector<16x256xf32>,
    %cst_10 = arith.constant 0.000000e+00 : f32
    %13 = vector.broadcast %cst_10 : f32 to vector<8x256xf32>
    %14 = vector.extract_strided_slice %10 {offsets = [0, 256], sizes = [16, 256], strides = [1, 1]} : vector<16x1024xf32> to vector<16x256xf32>
    %cst_11 = arith.constant 0.000000e+00 : f32
    %15 = vector.broadcast %cst_11 : f32 to vector<16x16xf32>
    %16 = vector.extract_strided_slice %14 {offsets = [0, 0], sizes = [16, 240], strides = [1, 1]} : vector<16x256xf32> to vector<16x240xf32>
    %17 = tpu.concatenate %15, %16 in 1 : vector<16x16xf32>, vector<16x240xf32> -> vector<16x256xf32>
    %18 = tpu.concatenate %13, %17, %13 in 0 : vector<8x256xf32>, vector<16x256xf32>, vector<8x256xf32> -> vector<32x256xf32>
    %19 = vector.extract_strided_slice %18 {offsets = [7, 0], sizes = [16, 256], strides = [1, 1]} : vector<32x256xf32> to vector<16x256xf32>
    %20 = arith.truncf %19 : vector<16x256xf32> to vector<16x256xbf16>
    %c0_12 = arith.constant 0 : index
    %c0_13 = arith.constant 0 : index
    %21 = vector.load %arg9[%c0_12, %c0_13] : memref<16x2304xbf16, #tpu.memory_space<vmem>>, vector<16x256xbf16>
    tpu.vector_store %arg9[%c0_12, %c0_13], %20 {strides = array<i32>} : memref<16x2304xbf16, #tpu.memory_space<vmem>>, vector<16x256xbf16>,
    %22 = vector.extract_strided_slice %18 {offsets = [8, 0], sizes = [16, 256], strides = [1, 1]} : vector<32x256xf32> to vector<16x256xf32>
    %23 = arith.truncf %22 : vector<16x256xf32> to vector<16x256xbf16>
    %c0_14 = arith.constant 0 : index
    %c768 = arith.constant 768 : index
    %24 = vector.load %arg9[%c0_14, %c768] : memref<16x2304xbf16, #tpu.memory_space<vmem>>, vector<16x256xbf16>
    tpu.vector_store %arg9[%c0_14, %c768], %23 {strides = array<i32>} : memref<16x2304xbf16, #tpu.memory_space<vmem>>, vector<16x256xbf16>,
    %25 = vector.extract_strided_slice %18 {offsets = [9, 0], sizes = [16, 256], strides = [1, 1]} : vector<32x256xf32> to vector<16x256xf32>
    %26 = arith.truncf %25 : vector<16x256xf32> to vector<16x256xbf16>
    %c0_15 = arith.constant 0 : index
    %c1536 = arith.constant 1536 : index
    %27 = vector.load %arg9[%c0_15, %c1536] : memref<16x2304xbf16, #tpu.memory_space<vmem>>, vector<16x256xbf16>
    tpu.vector_store %arg9[%c0_15, %c1536], %26 {strides = array<i32>} : memref<16x2304xbf16, #tpu.memory_space<vmem>>, vector<16x256xbf16>,
    %28 = tpu.concatenate %13, %14, %13 in 0 : vector<8x256xf32>, vector<16x256xf32>, vector<8x256xf32> -> vector<32x256xf32>
    %29 = vector.extract_strided_slice %28 {offsets = [7, 0], sizes = [16, 256], strides = [1, 1]} : vector<32x256xf32> to vector<16x256xf32>
    %30 = arith.truncf %29 : vector<16x256xf32> to vector<16x256xbf16>
    %c0_16 = arith.constant 0 : index
    %c256 = arith.constant 256 : index
    %31 = vector.load %arg9[%c0_16, %c256] : memref<16x2304xbf16, #tpu.memory_space<vmem>>, vector<16x256xbf16>
    tpu.vector_store %arg9[%c0_16, %c256], %30 {strides = array<i32>} : memref<16x2304xbf16, #tpu.memory_space<vmem>>, vector<16x256xbf16>,
    %32 = vector.extract_strided_slice %28 {offsets = [8, 0], sizes = [16, 256], strides = [1, 1]} : vector<32x256xf32> to vector<16x256xf32>
    %33 = arith.truncf %32 : vector<16x256xf32> to vector<16x256xbf16>
    %c0_17 = arith.constant 0 : index
    %c1024 = arith.constant 1024 : index
    %34 = vector.load %arg9[%c0_17, %c1024] : memref<16x2304xbf16, #tpu.memory_space<vmem>>, vector<16x256xbf16>
    tpu.vector_store %arg9[%c0_17, %c1024], %33 {strides = array<i32>} : memref<16x2304xbf16, #tpu.memory_space<vmem>>, vector<16x256xbf16>,
    %35 = vector.extract_strided_slice %28 {offsets = [9, 0], sizes = [16, 256], strides = [1, 1]} : vector<32x256xf32> to vector<16x256xf32>
    %36 = arith.truncf %35 : vector<16x256xf32> to vector<16x256xbf16>
    %c0_18 = arith.constant 0 : index
    %c1792 = arith.constant 1792 : index
    %37 = vector.load %arg9[%c0_18, %c1792] : memref<16x2304xbf16, #tpu.memory_space<vmem>>, vector<16x256xbf16>
    tpu.vector_store %arg9[%c0_18, %c1792], %36 {strides = array<i32>} : memref<16x2304xbf16, #tpu.memory_space<vmem>>, vector<16x256xbf16>,
    %38 = vector.extract_strided_slice %14 {offsets = [0, 16], sizes = [16, 240], strides = [1, 1]} : vector<16x256xf32> to vector<16x240xf32>
    %cst_19 = arith.constant 0.000000e+00 : f32
    %39 = vector.broadcast %cst_19 : f32 to vector<16x16xf32>
    %40 = tpu.concatenate %38, %39 in 1 : vector<16x240xf32>, vector<16x16xf32> -> vector<16x256xf32>
    %41 = tpu.concatenate %13, %40, %13 in 0 : vector<8x256xf32>, vector<16x256xf32>, vector<8x256xf32> -> vector<32x256xf32>
    %42 = vector.extract_strided_slice %41 {offsets = [7, 0], sizes = [16, 256], strides = [1, 1]} : vector<32x256xf32> to vector<16x256xf32>
    %43 = arith.truncf %42 : vector<16x256xf32> to vector<16x256xbf16>
    %c0_20 = arith.constant 0 : index
    %c512 = arith.constant 512 : index
    %44 = vector.load %arg9[%c0_20, %c512] : memref<16x2304xbf16, #tpu.memory_space<vmem>>, vector<16x256xbf16>
    tpu.vector_store %arg9[%c0_20, %c512], %43 {strides = array<i32>} : memref<16x2304xbf16, #tpu.memory_space<vmem>>, vector<16x256xbf16>,
    %45 = vector.extract_strided_slice %41 {offsets = [8, 0], sizes = [16, 256], strides = [1, 1]} : vector<32x256xf32> to vector<16x256xf32>
    %46 = arith.truncf %45 : vector<16x256xf32> to vector<16x256xbf16>
    %c0_21 = arith.constant 0 : index
    %c1280 = arith.constant 1280 : index
    %47 = vector.load %arg9[%c0_21, %c1280] : memref<16x2304xbf16, #tpu.memory_space<vmem>>, vector<16x256xbf16>
    tpu.vector_store %arg9[%c0_21, %c1280], %46 {strides = array<i32>} : memref<16x2304xbf16, #tpu.memory_space<vmem>>, vector<16x256xbf16>,
    %48 = vector.extract_strided_slice %41 {offsets = [9, 0], sizes = [16, 256], strides = [1, 1]} : vector<32x256xf32> to vector<16x256xf32>
    %49 = arith.truncf %48 : vector<16x256xf32> to vector<16x256xbf16>
    %c0_22 = arith.constant 0 : index
    %c2048 = arith.constant 2048 : index
    %50 = vector.load %arg9[%c0_22, %c2048] : memref<16x2304xbf16, #tpu.memory_space<vmem>>, vector<16x256xbf16>
    tpu.vector_store %arg9[%c0_22, %c2048], %49 {strides = array<i32>} : memref<16x2304xbf16, #tpu.memory_space<vmem>>, vector<16x256xbf16>,
    %c0_23 = arith.constant 0 : index
    %c0_24 = arith.constant 0 : index
    %51 = vector.load %arg9[%c0_23, %c0_24] : memref<16x2304xbf16, #tpu.memory_space<vmem>>, vector<16x2304xbf16>
    %c0_25 = arith.constant 0 : index
    %c0_26 = arith.constant 0 : index
    %c0_27 = arith.constant 0 : index
    %52 = vector.load %arg5[%c0_25, %c0_26, %c0_27] : memref<3x2304x256xbf16, #tpu.memory_space<vmem>>, vector<1x2304x256xbf16>
    %53 = vector.shape_cast %52 : vector<1x2304x256xbf16> to vector<2304x256xbf16>
    %cst_28 = arith.constant dense<0.000000e+00> : vector<16x256xf32>
    %54 = tpu.matmul %51, %53, %cst_28 {dimension_numbers = #tpu.dot_dimension_numbers<[1], [0], [0], [1], [0, 0, 1, 1], [], []>} : vector<16x2304xbf16>, vector<2304x256xbf16>, vector<16x256xf32> -> vector<16x256xf32>
    %c0_29 = arith.constant 0 : index
    %c0_30 = arith.constant 0 : index
    %55 = vector.load %arg6[%c0_29, %c0_30] : memref<3x256xf32, #tpu.memory_space<vmem>>, vector<1x256xf32>
    %56 = vector.broadcast %55 : vector<1x256xf32> to vector<16x256xf32>
    %57 = arith.mulf %54, %56 : vector<16x256xf32>
    %c0_31 = arith.constant 0 : index
    %c0_32 = arith.constant 0 : index
    %58 = vector.load %arg7[%c0_31, %c0_32] : memref<3x256xf32, #tpu.memory_space<vmem>>, vector<1x256xf32>
    %59 = vector.broadcast %58 : vector<1x256xf32> to vector<16x256xf32>
    %60 = arith.addf %57, %59 : vector<16x256xf32>
    %cst_33 = arith.constant 0.000000e+00 : f32
    %61 = vector.broadcast %cst_33 : f32 to vector<16x256xf32>
    %62 = arith.maximumf %60, %61 : vector<16x256xf32>
    %c0_34 = arith.constant 0 : index
    %c256_35 = arith.constant 256 : index
    %63 = vector.load %arg8[%c0_34, %c256_35] : memref<16x1024xf32, #tpu.memory_space<vmem>>, vector<16x256xf32>
    tpu.vector_store %arg8[%c0_34, %c256_35], %62 {strides = array<i32>} : memref<16x1024xf32, #tpu.memory_space<vmem>>, vector<16x256xf32>,
    %64 = vector.extract_strided_slice %10 {offsets = [0, 512], sizes = [16, 256], strides = [1, 1]} : vector<16x1024xf32> to vector<16x256xf32>
    %cst_36 = arith.constant 0.000000e+00 : f32
    %65 = vector.broadcast %cst_36 : f32 to vector<16x32xf32>
    %66 = vector.extract_strided_slice %64 {offsets = [0, 0], sizes = [16, 224], strides = [1, 1]} : vector<16x256xf32> to vector<16x224xf32>
    %67 = tpu.concatenate %65, %66 in 1 : vector<16x32xf32>, vector<16x224xf32> -> vector<16x256xf32>
    %68 = tpu.concatenate %13, %67, %13 in 0 : vector<8x256xf32>, vector<16x256xf32>, vector<8x256xf32> -> vector<32x256xf32>
    %69 = vector.extract_strided_slice %68 {offsets = [6, 0], sizes = [16, 256], strides = [1, 1]} : vector<32x256xf32> to vector<16x256xf32>
    %70 = arith.truncf %69 : vector<16x256xf32> to vector<16x256xbf16>
    %c0_37 = arith.constant 0 : index
    %c0_38 = arith.constant 0 : index
    %71 = vector.load %arg9[%c0_37, %c0_38] : memref<16x2304xbf16, #tpu.memory_space<vmem>>, vector<16x256xbf16>
    tpu.vector_store %arg9[%c0_37, %c0_38], %70 {strides = array<i32>} : memref<16x2304xbf16, #tpu.memory_space<vmem>>, vector<16x256xbf16>,
    %72 = vector.extract_strided_slice %68 {offsets = [8, 0], sizes = [16, 256], strides = [1, 1]} : vector<32x256xf32> to vector<16x256xf32>
    %73 = arith.truncf %72 : vector<16x256xf32> to vector<16x256xbf16>
    %c0_39 = arith.constant 0 : index
    %c768_40 = arith.constant 768 : index
    %74 = vector.load %arg9[%c0_39, %c768_40] : memref<16x2304xbf16, #tpu.memory_space<vmem>>, vector<16x256xbf16>
    tpu.vector_store %arg9[%c0_39, %c768_40], %73 {strides = array<i32>} : memref<16x2304xbf16, #tpu.memory_space<vmem>>, vector<16x256xbf16>,
    %75 = vector.extract_strided_slice %68 {offsets = [10, 0], sizes = [16, 256], strides = [1, 1]} : vector<32x256xf32> to vector<16x256xf32>
    %76 = arith.truncf %75 : vector<16x256xf32> to vector<16x256xbf16>
    %c0_41 = arith.constant 0 : index
    %c1536_42 = arith.constant 1536 : index
    %77 = vector.load %arg9[%c0_41, %c1536_42] : memref<16x2304xbf16, #tpu.memory_space<vmem>>, vector<16x256xbf16>
    tpu.vector_store %arg9[%c0_41, %c1536_42], %76 {strides = array<i32>} : memref<16x2304xbf16, #tpu.memory_space<vmem>>, vector<16x256xbf16>,
    %78 = tpu.concatenate %13, %64, %13 in 0 : vector<8x256xf32>, vector<16x256xf32>, vector<8x256xf32> -> vector<32x256xf32>
    %79 = vector.extract_strided_slice %78 {offsets = [6, 0], sizes = [16, 256], strides = [1, 1]} : vector<32x256xf32> to vector<16x256xf32>
    %80 = arith.truncf %79 : vector<16x256xf32> to vector<16x256xbf16>
    %c0_43 = arith.constant 0 : index
    %c256_44 = arith.constant 256 : index
    %81 = vector.load %arg9[%c0_43, %c256_44] : memref<16x2304xbf16, #tpu.memory_space<vmem>>, vector<16x256xbf16>
    tpu.vector_store %arg9[%c0_43, %c256_44], %80 {strides = array<i32>} : memref<16x2304xbf16, #tpu.memory_space<vmem>>, vector<16x256xbf16>,
    %82 = vector.extract_strided_slice %78 {offsets = [8, 0], sizes = [16, 256], strides = [1, 1]} : vector<32x256xf32> to vector<16x256xf32>
    %83 = arith.truncf %82 : vector<16x256xf32> to vector<16x256xbf16>
    %c0_45 = arith.constant 0 : index
    %c1024_46 = arith.constant 1024 : index
    %84 = vector.load %arg9[%c0_45, %c1024_46] : memref<16x2304xbf16, #tpu.memory_space<vmem>>, vector<16x256xbf16>
    tpu.vector_store %arg9[%c0_45, %c1024_46], %83 {strides = array<i32>} : memref<16x2304xbf16, #tpu.memory_space<vmem>>, vector<16x256xbf16>,
    %85 = vector.extract_strided_slice %78 {offsets = [10, 0], sizes = [16, 256], strides = [1, 1]} : vector<32x256xf32> to vector<16x256xf32>
    %86 = arith.truncf %85 : vector<16x256xf32> to vector<16x256xbf16>
    %c0_47 = arith.constant 0 : index
    %c1792_48 = arith.constant 1792 : index
    %87 = vector.load %arg9[%c0_47, %c1792_48] : memref<16x2304xbf16, #tpu.memory_space<vmem>>, vector<16x256xbf16>
    tpu.vector_store %arg9[%c0_47, %c1792_48], %86 {strides = array<i32>} : memref<16x2304xbf16, #tpu.memory_space<vmem>>, vector<16x256xbf16>,
    %88 = vector.extract_strided_slice %64 {offsets = [0, 32], sizes = [16, 224], strides = [1, 1]} : vector<16x256xf32> to vector<16x224xf32>
    %cst_49 = arith.constant 0.000000e+00 : f32
    %89 = vector.broadcast %cst_49 : f32 to vector<16x32xf32>
    %90 = tpu.concatenate %88, %89 in 1 : vector<16x224xf32>, vector<16x32xf32> -> vector<16x256xf32>
    %91 = tpu.concatenate %13, %90, %13 in 0 : vector<8x256xf32>, vector<16x256xf32>, vector<8x256xf32> -> vector<32x256xf32>
    %92 = vector.extract_strided_slice %91 {offsets = [6, 0], sizes = [16, 256], strides = [1, 1]} : vector<32x256xf32> to vector<16x256xf32>
    %93 = arith.truncf %92 : vector<16x256xf32> to vector<16x256xbf16>
    %c0_50 = arith.constant 0 : index
    %c512_51 = arith.constant 512 : index
    %94 = vector.load %arg9[%c0_50, %c512_51] : memref<16x2304xbf16, #tpu.memory_space<vmem>>, vector<16x256xbf16>
    tpu.vector_store %arg9[%c0_50, %c512_51], %93 {strides = array<i32>} : memref<16x2304xbf16, #tpu.memory_space<vmem>>, vector<16x256xbf16>,
    %95 = vector.extract_strided_slice %91 {offsets = [8, 0], sizes = [16, 256], strides = [1, 1]} : vector<32x256xf32> to vector<16x256xf32>
    %96 = arith.truncf %95 : vector<16x256xf32> to vector<16x256xbf16>
    %c0_52 = arith.constant 0 : index
    %c1280_53 = arith.constant 1280 : index
    %97 = vector.load %arg9[%c0_52, %c1280_53] : memref<16x2304xbf16, #tpu.memory_space<vmem>>, vector<16x256xbf16>
    tpu.vector_store %arg9[%c0_52, %c1280_53], %96 {strides = array<i32>} : memref<16x2304xbf16, #tpu.memory_space<vmem>>, vector<16x256xbf16>,
    %98 = vector.extract_strided_slice %91 {offsets = [10, 0], sizes = [16, 256], strides = [1, 1]} : vector<32x256xf32> to vector<16x256xf32>
    %99 = arith.truncf %98 : vector<16x256xf32> to vector<16x256xbf16>
    %c0_54 = arith.constant 0 : index
    %c2048_55 = arith.constant 2048 : index
    %100 = vector.load %arg9[%c0_54, %c2048_55] : memref<16x2304xbf16, #tpu.memory_space<vmem>>, vector<16x256xbf16>
    tpu.vector_store %arg9[%c0_54, %c2048_55], %99 {strides = array<i32>} : memref<16x2304xbf16, #tpu.memory_space<vmem>>, vector<16x256xbf16>,
    %c0_56 = arith.constant 0 : index
    %c0_57 = arith.constant 0 : index
    %101 = vector.load %arg9[%c0_56, %c0_57] : memref<16x2304xbf16, #tpu.memory_space<vmem>>, vector<16x2304xbf16>
    %c1 = arith.constant 1 : index
    %c0_58 = arith.constant 0 : index
    %c0_59 = arith.constant 0 : index
    %102 = vector.load %arg5[%c1, %c0_58, %c0_59] : memref<3x2304x256xbf16, #tpu.memory_space<vmem>>, vector<1x2304x256xbf16>
    %103 = vector.shape_cast %102 : vector<1x2304x256xbf16> to vector<2304x256xbf16>
    %cst_60 = arith.constant dense<0.000000e+00> : vector<16x256xf32>
    %104 = tpu.matmul %101, %103, %cst_60 {dimension_numbers = #tpu.dot_dimension_numbers<[1], [0], [0], [1], [0, 0, 1, 1], [], []>} : vector<16x2304xbf16>, vector<2304x256xbf16>, vector<16x256xf32> -> vector<16x256xf32>
    %c1_61 = arith.constant 1 : index
    %c0_62 = arith.constant 0 : index
    %105 = vector.load %arg6[%c1_61, %c0_62] : memref<3x256xf32, #tpu.memory_space<vmem>>, vector<1x256xf32>
    %106 = vector.broadcast %105 : vector<1x256xf32> to vector<16x256xf32>
    %107 = arith.mulf %104, %106 : vector<16x256xf32>
    %c1_63 = arith.constant 1 : index
    %c0_64 = arith.constant 0 : index
    %108 = vector.load %arg7[%c1_63, %c0_64] : memref<3x256xf32, #tpu.memory_space<vmem>>, vector<1x256xf32>
    %109 = vector.broadcast %108 : vector<1x256xf32> to vector<16x256xf32>
    %110 = arith.addf %107, %109 : vector<16x256xf32>
    %cst_65 = arith.constant 0.000000e+00 : f32
    %111 = vector.broadcast %cst_65 : f32 to vector<16x256xf32>
    %112 = arith.maximumf %110, %111 : vector<16x256xf32>
    %c0_66 = arith.constant 0 : index
    %c512_67 = arith.constant 512 : index
    %113 = vector.load %arg8[%c0_66, %c512_67] : memref<16x1024xf32, #tpu.memory_space<vmem>>, vector<16x256xf32>
    tpu.vector_store %arg8[%c0_66, %c512_67], %112 {strides = array<i32>} : memref<16x1024xf32, #tpu.memory_space<vmem>>, vector<16x256xf32>,
    %114 = vector.extract_strided_slice %10 {offsets = [0, 768], sizes = [16, 256], strides = [1, 1]} : vector<16x1024xf32> to vector<16x256xf32>
    %cst_68 = arith.constant 0.000000e+00 : f32
    %115 = vector.broadcast %cst_68 : f32 to vector<16x48xf32>
    %116 = vector.extract_strided_slice %114 {offsets = [0, 0], sizes = [16, 208], strides = [1, 1]} : vector<16x256xf32> to vector<16x208xf32>
    %117 = tpu.concatenate %115, %116 in 1 : vector<16x48xf32>, vector<16x208xf32> -> vector<16x256xf32>
    %118 = tpu.concatenate %13, %117, %13 in 0 : vector<8x256xf32>, vector<16x256xf32>, vector<8x256xf32> -> vector<32x256xf32>
    %119 = vector.extract_strided_slice %118 {offsets = [5, 0], sizes = [16, 256], strides = [1, 1]} : vector<32x256xf32> to vector<16x256xf32>
    %120 = arith.truncf %119 : vector<16x256xf32> to vector<16x256xbf16>
    %c0_69 = arith.constant 0 : index
    %c0_70 = arith.constant 0 : index
    %121 = vector.load %arg9[%c0_69, %c0_70] : memref<16x2304xbf16, #tpu.memory_space<vmem>>, vector<16x256xbf16>
    tpu.vector_store %arg9[%c0_69, %c0_70], %120 {strides = array<i32>} : memref<16x2304xbf16, #tpu.memory_space<vmem>>, vector<16x256xbf16>,
    %122 = vector.extract_strided_slice %118 {offsets = [8, 0], sizes = [16, 256], strides = [1, 1]} : vector<32x256xf32> to vector<16x256xf32>
    %123 = arith.truncf %122 : vector<16x256xf32> to vector<16x256xbf16>
    %c0_71 = arith.constant 0 : index
    %c768_72 = arith.constant 768 : index
    %124 = vector.load %arg9[%c0_71, %c768_72] : memref<16x2304xbf16, #tpu.memory_space<vmem>>, vector<16x256xbf16>
    tpu.vector_store %arg9[%c0_71, %c768_72], %123 {strides = array<i32>} : memref<16x2304xbf16, #tpu.memory_space<vmem>>, vector<16x256xbf16>,
    %125 = vector.extract_strided_slice %118 {offsets = [11, 0], sizes = [16, 256], strides = [1, 1]} : vector<32x256xf32> to vector<16x256xf32>
    %126 = arith.truncf %125 : vector<16x256xf32> to vector<16x256xbf16>
    %c0_73 = arith.constant 0 : index
    %c1536_74 = arith.constant 1536 : index
    %127 = vector.load %arg9[%c0_73, %c1536_74] : memref<16x2304xbf16, #tpu.memory_space<vmem>>, vector<16x256xbf16>
    tpu.vector_store %arg9[%c0_73, %c1536_74], %126 {strides = array<i32>} : memref<16x2304xbf16, #tpu.memory_space<vmem>>, vector<16x256xbf16>,
    %128 = tpu.concatenate %13, %114, %13 in 0 : vector<8x256xf32>, vector<16x256xf32>, vector<8x256xf32> -> vector<32x256xf32>
    %129 = vector.extract_strided_slice %128 {offsets = [5, 0], sizes = [16, 256], strides = [1, 1]} : vector<32x256xf32> to vector<16x256xf32>
    %130 = arith.truncf %129 : vector<16x256xf32> to vector<16x256xbf16>
    %c0_75 = arith.constant 0 : index
    %c256_76 = arith.constant 256 : index
    %131 = vector.load %arg9[%c0_75, %c256_76] : memref<16x2304xbf16, #tpu.memory_space<vmem>>, vector<16x256xbf16>
    tpu.vector_store %arg9[%c0_75, %c256_76], %130 {strides = array<i32>} : memref<16x2304xbf16, #tpu.memory_space<vmem>>, vector<16x256xbf16>,
    %132 = vector.extract_strided_slice %128 {offsets = [8, 0], sizes = [16, 256], strides = [1, 1]} : vector<32x256xf32> to vector<16x256xf32>
    %133 = arith.truncf %132 : vector<16x256xf32> to vector<16x256xbf16>
    %c0_77 = arith.constant 0 : index
    %c1024_78 = arith.constant 1024 : index
    %134 = vector.load %arg9[%c0_77, %c1024_78] : memref<16x2304xbf16, #tpu.memory_space<vmem>>, vector<16x256xbf16>
    tpu.vector_store %arg9[%c0_77, %c1024_78], %133 {strides = array<i32>} : memref<16x2304xbf16, #tpu.memory_space<vmem>>, vector<16x256xbf16>,
    %135 = vector.extract_strided_slice %128 {offsets = [11, 0], sizes = [16, 256], strides = [1, 1]} : vector<32x256xf32> to vector<16x256xf32>
    %136 = arith.truncf %135 : vector<16x256xf32> to vector<16x256xbf16>
    %c0_79 = arith.constant 0 : index
    %c1792_80 = arith.constant 1792 : index
    %137 = vector.load %arg9[%c0_79, %c1792_80] : memref<16x2304xbf16, #tpu.memory_space<vmem>>, vector<16x256xbf16>
    tpu.vector_store %arg9[%c0_79, %c1792_80], %136 {strides = array<i32>} : memref<16x2304xbf16, #tpu.memory_space<vmem>>, vector<16x256xbf16>,
    %138 = vector.extract_strided_slice %114 {offsets = [0, 48], sizes = [16, 208], strides = [1, 1]} : vector<16x256xf32> to vector<16x208xf32>
    %cst_81 = arith.constant 0.000000e+00 : f32
    %139 = vector.broadcast %cst_81 : f32 to vector<16x48xf32>
    %140 = tpu.concatenate %138, %139 in 1 : vector<16x208xf32>, vector<16x48xf32> -> vector<16x256xf32>
    %141 = tpu.concatenate %13, %140, %13 in 0 : vector<8x256xf32>, vector<16x256xf32>, vector<8x256xf32> -> vector<32x256xf32>
    %142 = vector.extract_strided_slice %141 {offsets = [5, 0], sizes = [16, 256], strides = [1, 1]} : vector<32x256xf32> to vector<16x256xf32>
    %143 = arith.truncf %142 : vector<16x256xf32> to vector<16x256xbf16>
    %c0_82 = arith.constant 0 : index
    %c512_83 = arith.constant 512 : index
    %144 = vector.load %arg9[%c0_82, %c512_83] : memref<16x2304xbf16, #tpu.memory_space<vmem>>, vector<16x256xbf16>
    tpu.vector_store %arg9[%c0_82, %c512_83], %143 {strides = array<i32>} : memref<16x2304xbf16, #tpu.memory_space<vmem>>, vector<16x256xbf16>,
    %145 = vector.extract_strided_slice %141 {offsets = [8, 0], sizes = [16, 256], strides = [1, 1]} : vector<32x256xf32> to vector<16x256xf32>
    %146 = arith.truncf %145 : vector<16x256xf32> to vector<16x256xbf16>
    %c0_84 = arith.constant 0 : index
    %c1280_85 = arith.constant 1280 : index
    %147 = vector.load %arg9[%c0_84, %c1280_85] : memref<16x2304xbf16, #tpu.memory_space<vmem>>, vector<16x256xbf16>
    tpu.vector_store %arg9[%c0_84, %c1280_85], %146 {strides = array<i32>} : memref<16x2304xbf16, #tpu.memory_space<vmem>>, vector<16x256xbf16>,
    %148 = vector.extract_strided_slice %141 {offsets = [11, 0], sizes = [16, 256], strides = [1, 1]} : vector<32x256xf32> to vector<16x256xf32>
    %149 = arith.truncf %148 : vector<16x256xf32> to vector<16x256xbf16>
    %c0_86 = arith.constant 0 : index
    %c2048_87 = arith.constant 2048 : index
    %150 = vector.load %arg9[%c0_86, %c2048_87] : memref<16x2304xbf16, #tpu.memory_space<vmem>>, vector<16x256xbf16>
    tpu.vector_store %arg9[%c0_86, %c2048_87], %149 {strides = array<i32>} : memref<16x2304xbf16, #tpu.memory_space<vmem>>, vector<16x256xbf16>,
    %c0_88 = arith.constant 0 : index
    %c0_89 = arith.constant 0 : index
    %151 = vector.load %arg9[%c0_88, %c0_89] : memref<16x2304xbf16, #tpu.memory_space<vmem>>, vector<16x2304xbf16>
    %c2 = arith.constant 2 : index
    %c0_90 = arith.constant 0 : index
    %c0_91 = arith.constant 0 : index
    %152 = vector.load %arg5[%c2, %c0_90, %c0_91] : memref<3x2304x256xbf16, #tpu.memory_space<vmem>>, vector<1x2304x256xbf16>
    %153 = vector.shape_cast %152 : vector<1x2304x256xbf16> to vector<2304x256xbf16>
    %cst_92 = arith.constant dense<0.000000e+00> : vector<16x256xf32>
    %154 = tpu.matmul %151, %153, %cst_92 {dimension_numbers = #tpu.dot_dimension_numbers<[1], [0], [0], [1], [0, 0, 1, 1], [], []>} : vector<16x2304xbf16>, vector<2304x256xbf16>, vector<16x256xf32> -> vector<16x256xf32>
    %c2_93 = arith.constant 2 : index
    %c0_94 = arith.constant 0 : index
    %155 = vector.load %arg6[%c2_93, %c0_94] : memref<3x256xf32, #tpu.memory_space<vmem>>, vector<1x256xf32>
    %156 = vector.broadcast %155 : vector<1x256xf32> to vector<16x256xf32>
    %157 = arith.mulf %154, %156 : vector<16x256xf32>
    %c2_95 = arith.constant 2 : index
    %c0_96 = arith.constant 0 : index
    %158 = vector.load %arg7[%c2_95, %c0_96] : memref<3x256xf32, #tpu.memory_space<vmem>>, vector<1x256xf32>
    %159 = vector.broadcast %158 : vector<1x256xf32> to vector<16x256xf32>
    %160 = arith.addf %157, %159 : vector<16x256xf32>
    %cst_97 = arith.constant 0.000000e+00 : f32
    %161 = vector.broadcast %cst_97 : f32 to vector<16x256xf32>
    %162 = arith.maximumf %160, %161 : vector<16x256xf32>
    %c0_98 = arith.constant 0 : index
    %c768_99 = arith.constant 768 : index
    %163 = vector.load %arg8[%c0_98, %c768_99] : memref<16x1024xf32, #tpu.memory_space<vmem>>, vector<16x256xf32>
    tpu.vector_store %arg8[%c0_98, %c768_99], %162 {strides = array<i32>} : memref<16x1024xf32, #tpu.memory_space<vmem>>, vector<16x256xf32>,
    return
  }
  func.func @transform_0(%arg0: i32) -> (i32, i32) {
    %c0_i32 = arith.constant 0 : i32
    %c0_i32_0 = arith.constant 0 : i32
    return %arg0, %c0_i32 : i32, i32
  }
  func.func @transform_1(%arg0: i32) -> (i32, i32) {
    %c0_i32 = arith.constant 0 : i32
    %c0_i32_0 = arith.constant 0 : i32
    %c0_i32_1 = arith.constant 0 : i32
    return %c0_i32, %c0_i32_0 : i32, i32
  }
  func.func @transform_2(%arg0: i32) -> (i32, i32) {
    %c0_i32 = arith.constant 0 : i32
    %c0_i32_0 = arith.constant 0 : i32
    %c0_i32_1 = arith.constant 0 : i32
    return %c0_i32, %c0_i32_0 : i32, i32
  }
  func.func @transform_3(%arg0: i32) -> (i32, i32) {
    %c0_i32 = arith.constant 0 : i32
    %c0_i32_0 = arith.constant 0 : i32
    %c0_i32_1 = arith.constant 0 : i32
    return %c0_i32, %c0_i32_0 : i32, i32
  }
  func.func @transform_4(%arg0: i32) -> (i32, i32, i32) {
    %c0_i32 = arith.constant 0 : i32
    %c0_i32_0 = arith.constant 0 : i32
    %c0_i32_1 = arith.constant 0 : i32
    %c0_i32_2 = arith.constant 0 : i32
    return %c0_i32, %c0_i32_0, %c0_i32_1 : i32, i32, i32
  }
  func.func @transform_5(%arg0: i32) -> (i32, i32) {
    %c0_i32 = arith.constant 0 : i32
    %c0_i32_0 = arith.constant 0 : i32
    %c0_i32_1 = arith.constant 0 : i32
    return %c0_i32, %c0_i32_0 : i32, i32
  }
  func.func @transform_6(%arg0: i32) -> (i32, i32) {
    %c0_i32 = arith.constant 0 : i32
    %c0_i32_0 = arith.constant 0 : i32
    %c0_i32_1 = arith.constant 0 : i32
    return %c0_i32, %c0_i32_0 : i32, i32
  }
  func.func @transform_7(%arg0: i32) -> (i32, i32) {
    %c0_i32 = arith.constant 0 : i32
    %c0_i32_0 = arith.constant 0 : i32
    return %arg0, %c0_i32 : i32, i32
  }
}

</mosaic_0001>

<llo_original>
// kernel: tpu_custom_call.1
$region0: #{tpu_custom_call.1}
  #allocation0 [shape = 'u32[]', space=smem, size = 0x4, offset = 0x4, fixed_abs, tag = 'smem constant byte address 0x4 - core index']
  #allocation1 [shape = 'u32[144,128]{1,0:T(1,128)}', space=vmem, size = 0x12000, scoped, tag = 'internal scratch']
  #allocation2 [shape = 'bf16[16,2304]{1,0:T(16,128)(2,1)}', space=vmem, size = 0x12000, scoped, tag = 'scratch operand']
  %s0 = inlined_call_operand.hbm [shape: f32[32,64], index: 0, kind: input, shape index: {}]
  %s1 = inlined_call_operand.hbm [shape: f32[64,1024], index: 1, kind: input, shape index: {}]
  %s2 = inlined_call_operand.hbm [shape: f32[1,1024], index: 2, kind: input, shape index: {}]
  %s3 = inlined_call_operand.hbm [shape: f32[1,1024], index: 3, kind: input, shape index: {}]
  %s4 = inlined_call_operand.hbm [shape: bf16[3,2304,256], index: 4, kind: input, shape index: {}]
  %s5 = inlined_call_operand.hbm [shape: f32[3,256], index: 5, kind: input, shape index: {}]
  %s6 = inlined_call_operand.hbm [shape: f32[3,256], index: 6, kind: input, shape index: {}]
  %s7 = inlined_call_operand.hbm [shape: f32[32,1024], index: 7, kind: output, shape index: {}]
  %s8 = sld [smem:[#allocation0]]
  $region89: #{tpu_custom_call.1} parent=0
    _
  %s10 = ssub.s32 1, %s8
  %s11 = scalar_select 0, %s10, %s8
  $region1: #{tpu_custom_call.1} parent=0
    #allocation3 [shape = 'u8[16384]{0}', space=vmem, size = 0x4000, scoped, tag = 'input window, operand 0']
    #allocation4 [shape = 's32[2]{0}', space=sflag, size = 0x8, scoped, tag = 'scoped memory for tpu_custom_call.1']
    #allocation5 [shape = 's32[2]{0}', space=sflag, size = 0x8, scoped, tag = 'scoped memory for tpu_custom_call.1']
    #allocation6 [shape = 'u8[262144]{0}', space=vmem, size = 0x40000, scoped, tag = 'input window, operand 1, single buffered']
    #allocation7 [shape = 's32[1]{0}', space=sflag, size = 0x4, scoped, tag = 'scoped memory for tpu_custom_call.1']
    #allocation8 [shape = 'u8[4096]{0}', space=vmem, size = 0x1000, scoped, tag = 'input window, operand 2, single buffered']
    #allocation9 [shape = 'u8[4096]{0}', space=vmem, size = 0x1000, scoped, tag = 'input window, operand 3, single buffered']
    #allocation10 [shape = 's32[1]{0}', space=sflag, size = 0x4, scoped, tag = 'scoped memory for tpu_custom_call.1']
    #allocation11 [shape = 'u8[3538944]{0}', space=vmem, size = 0x360000, scoped, tag = 'input window, operand 4, single buffered']
    #allocation12 [shape = 'u8[4096]{0}', space=vmem, size = 0x1000, scoped, tag = 'input window, operand 5, single buffered']
    #allocation13 [shape = 's32[1]{0}', space=sflag, size = 0x4, scoped, tag = 'scoped memory for tpu_custom_call.1']
    #allocation14 [shape = 'u8[4096]{0}', space=vmem, size = 0x1000, scoped, tag = 'input window, operand 6, single buffered']
    #allocation15 [shape = 'u8[131072]{0}', space=vmem, size = 0x20000, scoped, tag = 'output window, operand 0']
    %12 = vsyncpa [#allocation4], 0
    %s13 = scalar_lea.sflag [#allocation4], 1
    %14 = vsyncpa %s13, 0
    %15 = vsyncpa [#allocation7], 0
    %16 = vsyncpa [#allocation10], 0
    %17 = vsyncpa [#allocation13], 0
    %18 = vsyncpa [#allocation5], 0
    %s19 = scalar_lea.sflag [#allocation5], 1
    %20 = vsyncpa %s19, 0
    loop: start=0, step=1, limit=4
    $region2: #{tpu_custom_call.1} parent=1 // loop_pre_header
      _
    $region3: #{tpu_custom_call.1} parent=1 // loop_header
      %s22 = sphi 0, %s26
      %p23 = scmp.ge.s32.totalorder %s22, 4
      %s32 = sphi 0, %s34
      %s35 = sphi 0, %s32
      %s36 = sphi 0, %s35
      %s52 = sphi 0, %s36
      %s56 = sphi 0, %s56
      %s58 = sphi 0, %s56
      %s59 = sphi 0, %s58
      %s73 = sphi 0, %s59
      %s77 = sphi 0, %s77
      %s79 = sphi 0, %s77
      %s80 = sphi 0, %s79
      %s94 = sphi 0, %s80
      %s98 = sphi 0, %s98
      %s100 = sphi 0, %s98
      %s101 = sphi 0, %s100
      %s115 = sphi 0, %s101
      %s119 = sphi 0, %s119
      %s121 = sphi 0, %s119
      %s122 = sphi 0, %s121
      %s136 = sphi 0, %s122
      %s140 = sphi 0, %s140
      %s142 = sphi 0, %s140
      %s143 = sphi 0, %s142
      %s157 = sphi 0, %s143
      %s161 = sphi 0, %s161
      %s163 = sphi 0, %s161
      %s164 = sphi 0, %s163
      %s178 = sphi 0, %s164
      %s184 = sphi 0, %s186
      %s187 = sphi 0, %s184
      %s188 = sphi 0, %s187
      %s204 = sphi 0, %s188
    $region4: #{tpu_custom_call.1} parent=1 // loop_header_branch
      %25 = sbr.rel (%p23) target = $region8
    $region5: #{tpu_custom_call.1} parent=1 // loop_body
      %s27 = ssub.s32 %s22, 1
      %s28 = ssub.s32 %s22, 2
      %s29 = sadd.s32 %s22, 1
      %s30 = ssub.s32 %s22, %s29
      %p31 = scmp.eq.s32.totalorder %s30, 0
      %s33 = sadd.s32 %s32, 1
      %s34 = scalar_select %p31, %s32, %s33
      %p37 = pneg %p31
      %p38 = scmp.eq.s32.totalorder %s22, 1
      %p39 = por %p37, %p38
      %p40 = scmp.ne.s32.totalorder %s32, %s35
      %p41 = scmp.eq.s32.totalorder %s22, 0
      %p42 = por %p40, %p41
      %p43 = scmp.ne.s32.totalorder %s32, %s35
      %p44 = scmp.eq.s32.totalorder %s27, 1
      %p45 = por %p43, %p44
      %p46 = scmp.ne.s32.totalorder %s35, %s36
      %p47 = scmp.eq.s32.totalorder %s27, 0
      %p48 = por %p46, %p47
      %p49 = scmp.ne.s32.totalorder %s35, %s36
      %p50 = scmp.eq.s32.totalorder %s28, 1
      %p51 = por %p49, %p50
      %p53 = scmp.ne.s32.totalorder %s36, %s52
      %p54 = scmp.eq.s32.totalorder %s28, 0
      %p55 = por %p53, %p54
      %s57 = sadd.s32 %s56, 1
      %p60 = scmp.eq.s32.totalorder %s22, 1
      %p61 = scmp.ne.s32.totalorder %s56, %s58
      %p62 = scmp.eq.s32.totalorder %s22, 0
      %p63 = por %p61, %p62
      %p64 = scmp.ne.s32.totalorder %s56, %s58
      %p65 = scmp.eq.s32.totalorder %s27, 1
      %p66 = por %p64, %p65
      %p67 = scmp.ne.s32.totalorder %s58, %s59
      %p68 = scmp.eq.s32.totalorder %s27, 0
      %p69 = por %p67, %p68
      %p70 = scmp.ne.s32.totalorder %s58, %s59
      %p71 = scmp.eq.s32.totalorder %s28, 1
      %p72 = por %p70, %p71
      %p74 = scmp.ne.s32.totalorder %s59, %s73
      %p75 = scmp.eq.s32.totalorder %s28, 0
      %p76 = por %p74, %p75
      %s78 = sadd.s32 %s77, 1
      %p81 = scmp.eq.s32.totalorder %s22, 1
      %p82 = scmp.ne.s32.totalorder %s77, %s79
      %p83 = scmp.eq.s32.totalorder %s22, 0
      %p84 = por %p82, %p83
      %p85 = scmp.ne.s32.totalorder %s77, %s79
      %p86 = scmp.eq.s32.totalorder %s27, 1
      %p87 = por %p85, %p86
      %p88 = scmp.ne.s32.totalorder %s79, %s80
      %p89 = scmp.eq.s32.totalorder %s27, 0
      %p90 = por %p88, %p89
      %p91 = scmp.ne.s32.totalorder %s79, %s80
      %p92 = scmp.eq.s32.totalorder %s28, 1
      %p93 = por %p91, %p92
      %p95 = scmp.ne.s32.totalorder %s80, %s94
      %p96 = scmp.eq.s32.totalorder %s28, 0
      %p97 = por %p95, %p96
      %s99 = sadd.s32 %s98, 1
      %p102 = scmp.eq.s32.totalorder %s22, 1
      %p103 = scmp.ne.s32.totalorder %s98, %s100
      %p104 = scmp.eq.s32.totalorder %s22, 0
      %p105 = por %p103, %p104
      %p106 = scmp.ne.s32.totalorder %s98, %s100
      %p107 = scmp.eq.s32.totalorder %s27, 1
      %p108 = por %p106, %p107
      %p109 = scmp.ne.s32.totalorder %s100, %s101
      %p110 = scmp.eq.s32.totalorder %s27, 0
      %p111 = por %p109, %p110
      %p112 = scmp.ne.s32.totalorder %s100, %s101
      %p113 = scmp.eq.s32.totalorder %s28, 1
      %p114 = por %p112, %p113
      %p116 = scmp.ne.s32.totalorder %s101, %s115
      %p117 = scmp.eq.s32.totalorder %s28, 0
      %p118 = por %p116, %p117
      %s120 = sadd.s32 %s119, 1
      %p123 = scmp.eq.s32.totalorder %s22, 1
      %p124 = scmp.ne.s32.totalorder %s119, %s121
      %p125 = scmp.eq.s32.totalorder %s22, 0
      %p126 = por %p124, %p125
      %p127 = scmp.ne.s32.totalorder %s119, %s121
      %p128 = scmp.eq.s32.totalorder %s27, 1
      %p129 = por %p127, %p128
      %p130 = scmp.ne.s32.totalorder %s121, %s122
      %p131 = scmp.eq.s32.totalorder %s27, 0
      %p132 = por %p130, %p131
      %p133 = scmp.ne.s32.totalorder %s121, %s122
      %p134 = scmp.eq.s32.totalorder %s28, 1
      %p135 = por %p133, %p134
      %p137 = scmp.ne.s32.totalorder %s122, %s136
      %p138 = scmp.eq.s32.totalorder %s28, 0
      %p139 = por %p137, %p138
      %s141 = sadd.s32 %s140, 1
      %p144 = scmp.eq.s32.totalorder %s22, 1
      %p145 = scmp.ne.s32.totalorder %s140, %s142
      %p146 = scmp.eq.s32.totalorder %s22, 0
      %p147 = por %p145, %p146
      %p148 = scmp.ne.s32.totalorder %s140, %s142
      %p149 = scmp.eq.s32.totalorder %s27, 1
      %p150 = por %p148, %p149
      %p151 = scmp.ne.s32.totalorder %s142, %s143
      %p152 = scmp.eq.s32.totalorder %s27, 0
      %p153 = por %p151, %p152
      %p154 = scmp.ne.s32.totalorder %s142, %s143
      %p155 = scmp.eq.s32.totalorder %s28, 1
      %p156 = por %p154, %p155
      %p158 = scmp.ne.s32.totalorder %s143, %s157
      %p159 = scmp.eq.s32.totalorder %s28, 0
      %p160 = por %p158, %p159
      %s162 = sadd.s32 %s161, 1
      %p165 = scmp.eq.s32.totalorder %s22, 1
      %p166 = scmp.ne.s32.totalorder %s161, %s163
      %p167 = scmp.eq.s32.totalorder %s22, 0
      %p168 = por %p166, %p167
      %p169 = scmp.ne.s32.totalorder %s161, %s163
      %p170 = scmp.eq.s32.totalorder %s27, 1
      %p171 = por %p169, %p170
      %p172 = scmp.ne.s32.totalorder %s163, %s164
      %p173 = scmp.eq.s32.totalorder %s27, 0
      %p174 = por %p172, %p173
      %p175 = scmp.ne.s32.totalorder %s163, %s164
      %p176 = scmp.eq.s32.totalorder %s28, 1
      %p177 = por %p175, %p176
      %p179 = scmp.ne.s32.totalorder %s164, %s178
      %p180 = scmp.eq.s32.totalorder %s28, 0
      %p181 = por %p179, %p180
      %s182 = ssub.s32 %s22, %s29
      %p183 = scmp.eq.s32.totalorder %s182, 0
      %s185 = sadd.s32 %s184, 1
      %s186 = scalar_select %p183, %s184, %s185
      %p189 = pneg %p183
      %p190 = scmp.eq.s32.totalorder %s22, 1
      %p191 = por %p189, %p190
      %p192 = scmp.ne.s32.totalorder %s184, %s187
      %p193 = scmp.eq.s32.totalorder %s22, 0
      %p194 = por %p192, %p193
      %p195 = scmp.ne.s32.totalorder %s184, %s187
      %p196 = scmp.eq.s32.totalorder %s27, 1
      %p197 = por %p195, %p196
      %p198 = scmp.ne.s32.totalorder %s187, %s188
      %p199 = scmp.eq.s32.totalorder %s27, 0
      %p200 = por %p198, %p199
      %p201 = scmp.ne.s32.totalorder %s187, %s188
      %p202 = scmp.eq.s32.totalorder %s28, 1
      %p203 = por %p201, %p202
      %p205 = scmp.ne.s32.totalorder %s188, %s204
      %p206 = scmp.eq.s32.totalorder %s28, 0
      %p207 = por %p205, %p206
      %p208 = scmp.le.s32.totalorder 1, %s22
      %p209 = scmp.lt.s32.totalorder %s22, 3
      %p210 = pnand %p208, %p209
      %p211 = pneg %p210
      // Predicated region
      $region9: #{tpu_custom_call.1} parent=5 // pred_check
        _
      $region10: #{tpu_custom_call.1} parent=5 // pred_check_branch
        %213 = sbr.rel (%p210) target = $region12
      $region11: #{tpu_custom_call.1} parent=5 // pred_region
        %s214 = ssub.s32 %s22, 1
        // Predicated region
        $region13: #{tpu_custom_call.1} parent=11 // pred_check
          %p215 = pneg %p69
        $region14: #{tpu_custom_call.1} parent=11 // pred_check_branch
          %217 = sbr.rel (%p215) target = $region16
        $region15: #{tpu_custom_call.1} parent=11 // pred_region
          %s219 = ssub.s32 8192, 8192
          %220 = vsyncadd [#allocation7], %s219
          %s221 = sshll.u32 [#allocation6], 4
          %s222 = int_to_ptr.vmem [resolvable:$true] %s221
          %227 = dma.hbm_to_vmem [thread:$0]  %s1, 8192, %s222, [#allocation7], 1024, 1024, 64
        $region16: #{tpu_custom_call.1} parent=11 // pred_fallthru
          _
        // Predicated region
        $region17: #{tpu_custom_call.1} parent=11 // pred_check
          %p228 = pneg %p90
        $region18: #{tpu_custom_call.1} parent=11 // pred_check_branch
          %230 = sbr.rel (%p228) target = $region20
        $region19: #{tpu_custom_call.1} parent=11 // pred_region
          %s232 = ssub.s32 128, 128
          %233 = vsyncadd [#allocation7], %s232
          %s235 = sshll.u32 [#allocation8], 4
          %s236 = int_to_ptr.vmem [resolvable:$true] %s235
          %238 = dma.hbm_to_vmem [thread:$0]  %s2, 128, %s236, [#allocation7]
        $region20: #{tpu_custom_call.1} parent=11 // pred_fallthru
          _
        // Predicated region
        $region21: #{tpu_custom_call.1} parent=11 // pred_check
          %p239 = pneg %p111
        $region22: #{tpu_custom_call.1} parent=11 // pred_check_branch
          %241 = sbr.rel (%p239) target = $region24
        $region23: #{tpu_custom_call.1} parent=11 // pred_region
          %s243 = ssub.s32 128, 128
          %244 = vsyncadd [#allocation10], %s243
          %s246 = sshll.u32 [#allocation9], 4
          %s247 = int_to_ptr.vmem [resolvable:$true] %s246
          %249 = dma.hbm_to_vmem [thread:$0]  %s3, 128, %s247, [#allocation10]
        $region24: #{tpu_custom_call.1} parent=11 // pred_fallthru
          _
        // Predicated region
        $region25: #{tpu_custom_call.1} parent=11 // pred_check
          %p250 = pneg %p132
        $region26: #{tpu_custom_call.1} parent=11 // pred_check_branch
          %252 = sbr.rel (%p250) target = $region28
        $region27: #{tpu_custom_call.1} parent=11 // pred_region
          %s254 = ssub.s32 110592, 110592
          %255 = vsyncadd [#allocation10], %s254
          %s256 = sshll.u32 [#allocation11], 4
          %s257 = int_to_ptr.vmem [resolvable:$true] %s256
          %262 = dma.hbm_to_vmem [thread:$0]  %s4, 110592, %s257, [#allocation10], 128, 128, 8
        $region28: #{tpu_custom_call.1} parent=11 // pred_fallthru
          _
        // Predicated region
        $region29: #{tpu_custom_call.1} parent=11 // pred_check
          %p263 = pneg %p153
        $region30: #{tpu_custom_call.1} parent=11 // pred_check_branch
          %265 = sbr.rel (%p263) target = $region32
        $region31: #{tpu_custom_call.1} parent=11 // pred_region
          %s267 = ssub.s32 128, 128
          %268 = vsyncadd [#allocation13], %s267
          %s270 = sshll.u32 [#allocation12], 4
          %s271 = int_to_ptr.vmem [resolvable:$true] %s270
          %273 = dma.hbm_to_vmem [thread:$0]  %s5, 128, %s271, [#allocation13]
        $region32: #{tpu_custom_call.1} parent=11 // pred_fallthru
          _
        // Predicated region
        $region33: #{tpu_custom_call.1} parent=11 // pred_check
          %p274 = pneg %p174
        $region34: #{tpu_custom_call.1} parent=11 // pred_check_branch
          %276 = sbr.rel (%p274) target = $region36
        $region35: #{tpu_custom_call.1} parent=11 // pred_region
          %s278 = ssub.s32 128, 128
          %279 = vsyncadd [#allocation13], %s278
          %s281 = sshll.u32 [#allocation14], 4
          %s282 = int_to_ptr.vmem [resolvable:$true] %s281
          %284 = dma.hbm_to_vmem [thread:$0]  %s6, 128, %s282, [#allocation13]
        $region36: #{tpu_custom_call.1} parent=11 // pred_fallthru
          _
      $region12: #{tpu_custom_call.1} parent=5 // pred_fallthru
        _
      %p285 = scmp.lt.s32.totalorder %s22, 2
      // Predicated region
      $region37: #{tpu_custom_call.1} parent=5 // pred_check
        %p286 = pneg %p285
      $region38: #{tpu_custom_call.1} parent=5 // pred_check_branch
        %288 = sbr.rel (%p286) target = $region40
      $region39: #{tpu_custom_call.1} parent=5 // pred_region
        // Predicated region
        $region41: #{tpu_custom_call.1} parent=39 // pred_check
          %p289 = pneg %p42
        $region42: #{tpu_custom_call.1} parent=39 // pred_check_branch
          %291 = sbr.rel (%p289) target = $region44
        $region43: #{tpu_custom_call.1} parent=39 // pred_region
          %s292 = sand.u32 %s32, 1
          %s293 = scalar_lea.sflag [#allocation4], %s292
          %s294 = sand.u32 %s32, 1
          %s295 = smul.addr %s294, 16
          %s296 = scalar_lea.vmem [#allocation3], %s295
          %s297 = smul.u32 2, %s22
          %s299 = ssub.s32 256, 256
          %300 = vsyncadd %s293, %s299
          %s301 = smul.addr %s297, 128
          %s302 = scalar_lea.hbm %s0, %s301
          %s303 = sshll.u32 %s296, 4
          %s304 = int_to_ptr.vmem [resolvable:$true] %s303
          %309 = dma.hbm_to_vmem [thread:$0]  %s302, 256, %s304, %s293, 128, 128, 8
        $region44: #{tpu_custom_call.1} parent=39 // pred_fallthru
          _
      $region40: #{tpu_custom_call.1} parent=5 // pred_fallthru
        _
      %p310 = scmp.le.s32.totalorder 1, %s22
      %p311 = scmp.lt.s32.totalorder %s22, 3
      %p312 = pnand %p310, %p311
      %p313 = pneg %p312
      // Predicated region
      $region45: #{tpu_custom_call.1} parent=5 // pred_check
        _
      $region46: #{tpu_custom_call.1} parent=5 // pred_check_branch
        %315 = sbr.rel (%p312) target = $region48
      $region47: #{tpu_custom_call.1} parent=5 // pred_region
        %s316 = ssub.s32 %s22, 1
        %s317 = sand.u32 %s35, 1
        %s318 = scalar_lea.sflag [#allocation4], %s317
        %s319 = sand.u32 %s35, 1
        %s320 = smul.addr %s319, 16
        %s321 = scalar_lea.vmem [#allocation3], %s320
        // Predicated region
        $region49: #{tpu_custom_call.1} parent=47 // pred_check
          %p322 = pneg %p48
        $region50: #{tpu_custom_call.1} parent=47 // pred_check_branch
          %324 = sbr.rel (%p322) target = $region52
        $region51: #{tpu_custom_call.1} parent=47 // pred_region
          %325 = dma.done %s318, 256
        $region52: #{tpu_custom_call.1} parent=47 // pred_fallthru
          _
        // Predicated region
        $region53: #{tpu_custom_call.1} parent=47 // pred_check
          %p326 = pneg %p69
        $region54: #{tpu_custom_call.1} parent=47 // pred_check_branch
          %328 = sbr.rel (%p326) target = $region56
        $region55: #{tpu_custom_call.1} parent=47 // pred_region
          %329 = dma.done [#allocation7], 8192
        $region56: #{tpu_custom_call.1} parent=47 // pred_fallthru
          _
        // Predicated region
        $region57: #{tpu_custom_call.1} parent=47 // pred_check
          %p330 = pneg %p90
        $region58: #{tpu_custom_call.1} parent=47 // pred_check_branch
          %332 = sbr.rel (%p330) target = $region60
        $region59: #{tpu_custom_call.1} parent=47 // pred_region
          %333 = dma.done [#allocation7], 128
        $region60: #{tpu_custom_call.1} parent=47 // pred_fallthru
          _
        // Predicated region
        $region61: #{tpu_custom_call.1} parent=47 // pred_check
          %p334 = pneg %p111
        $region62: #{tpu_custom_call.1} parent=47 // pred_check_branch
          %336 = sbr.rel (%p334) target = $region64
        $region63: #{tpu_custom_call.1} parent=47 // pred_region
          %337 = dma.done [#allocation10], 128
        $region64: #{tpu_custom_call.1} parent=47 // pred_fallthru
          _
        // Predicated region
        $region65: #{tpu_custom_call.1} parent=47 // pred_check
          %p338 = pneg %p132
        $region66: #{tpu_custom_call.1} parent=47 // pred_check_branch
          %340 = sbr.rel (%p338) target = $region68
        $region67: #{tpu_custom_call.1} parent=47 // pred_region
          %341 = dma.done [#allocation10], 110592
        $region68: #{tpu_custom_call.1} parent=47 // pred_fallthru
          _
        // Predicated region
        $region69: #{tpu_custom_call.1} parent=47 // pred_check
          %p342 = pneg %p153
        $region70: #{tpu_custom_call.1} parent=47 // pred_check_branch
          %344 = sbr.rel (%p342) target = $region72
        $region71: #{tpu_custom_call.1} parent=47 // pred_region
          %345 = dma.done [#allocation13], 128
        $region72: #{tpu_custom_call.1} parent=47 // pred_fallthru
          _
        // Predicated region
        $region73: #{tpu_custom_call.1} parent=47 // pred_check
          %p346 = pneg %p174
        $region74: #{tpu_custom_call.1} parent=47 // pred_check_branch
          %348 = sbr.rel (%p346) target = $region76
        $region75: #{tpu_custom_call.1} parent=47 // pred_region
          %349 = dma.done [#allocation13], 128
        $region76: #{tpu_custom_call.1} parent=47 // pred_fallthru
          _
        %s350 = sand.u32 %s35, 1
        %s351 = scalar_lea.sflag [#allocation4], %s350
        %s352 = sand.u32 %s35, 1
        %s353 = smul.addr %s352, 16
        %s354 = scalar_lea.vmem [#allocation3], %s353
        %p355 = pneg %p48
        %p356 = pneg %p45
        %p357 = pneg %p69
        %p358 = pneg %p66
        %p359 = pneg %p90
        %p360 = pneg %p87
        %p361 = pneg %p111
        %p362 = pneg %p108
        %p363 = pneg %p132
        %p364 = pneg %p129
        %p365 = pneg %p153
        %p366 = pneg %p150
        %p367 = pneg %p174
        %p368 = pneg %p171
        %p369 = pneg %p200
        %p370 = pneg %p197
        %s371 = sand.u32 %s187, 1
        %s372 = scalar_lea.sflag [#allocation5], %s371
        %s373 = sand.u32 %s187, 1
        %s374 = smul.addr %s373, 128
        %s375 = scalar_lea.vmem [#allocation15], %s374
        %s376 = smul.u32 2, %s27
        %s377 = smul.u32 2, %s27
        %v378 = vld [vmem:[%s321] sm:$0xff]
        %v379 = vld [vmem:[%s321 + $0x8] sm:$0xff]
        %v380 = vld [vmem:[#allocation6] sm:$0xff]
        %v381 = vld [vmem:[#allocation6 + $0x8] sm:$0xff]
        %v382 = vld [vmem:[#allocation6 + $0x10] sm:$0xff]
        %v383 = vld [vmem:[#allocation6 + $0x18] sm:$0xff]
        %v384 = vld [vmem:[#allocation6 + $0x20] sm:$0xff]
        %v385 = vld [vmem:[#allocation6 + $0x28] sm:$0xff]
        %v386 = vld [vmem:[#allocation6 + $0x30] sm:$0xff]
        %v387 = vld [vmem:[#allocation6 + $0x38] sm:$0xff]
        %v388 = vld [vmem:[#allocation6 + $0x40] sm:$0xff]
        %v389 = vld [vmem:[#allocation6 + $0x48] sm:$0xff]
        %v390 = vld [vmem:[#allocation6 + $0x50] sm:$0xff]
        %v391 = vld [vmem:[#allocation6 + $0x58] sm:$0xff]
        %v392 = vld [vmem:[#allocation6 + $0x60] sm:$0xff]
        %v393 = vld [vmem:[#allocation6 + $0x68] sm:$0xff]
        %v394 = vld [vmem:[#allocation6 + $0x70] sm:$0xff]
        %v395 = vld [vmem:[#allocation6 + $0x78] sm:$0xff]
        %v396 = vld [vmem:[#allocation6 + $0x80] sm:$0xff]
        %v397 = vld [vmem:[#allocation6 + $0x88] sm:$0xff]
        %v398 = vld [vmem:[#allocation6 + $0x90] sm:$0xff]
        %v399 = vld [vmem:[#allocation6 + $0x98] sm:$0xff]
        %v400 = vld [vmem:[#allocation6 + $0xa0] sm:$0xff]
        %v401 = vld [vmem:[#allocation6 + $0xa8] sm:$0xff]
        %v402 = vld [vmem:[#allocation6 + $0xb0] sm:$0xff]
        %v403 = vld [vmem:[#allocation6 + $0xb8] sm:$0xff]
        %v404 = vld [vmem:[#allocation6 + $0xc0] sm:$0xff]
        %v405 = vld [vmem:[#allocation6 + $0xc8] sm:$0xff]
        %v406 = vld [vmem:[#allocation6 + $0xd0] sm:$0xff]
        %v407 = vld [vmem:[#allocation6 + $0xd8] sm:$0xff]
        %v408 = vld [vmem:[#allocation6 + $0xe0] sm:$0xff]
        %v409 = vld [vmem:[#allocation6 + $0xe8] sm:$0xff]
        %v410 = vld [vmem:[#allocation6 + $0xf0] sm:$0xff]
        %v411 = vld [vmem:[#allocation6 + $0xf8] sm:$0xff]
        %v412 = vld [vmem:[#allocation6 + $0x100] sm:$0xff]
        %v413 = vld [vmem:[#allocation6 + $0x108] sm:$0xff]
        %v414 = vld [vmem:[#allocation6 + $0x110] sm:$0xff]
        %v415 = vld [vmem:[#allocation6 + $0x118] sm:$0xff]
        %v416 = vld [vmem:[#allocation6 + $0x120] sm:$0xff]
        %v417 = vld [vmem:[#allocation6 + $0x128] sm:$0xff]
        %v418 = vld [vmem:[#allocation6 + $0x130] sm:$0xff]
        %v419 = vld [vmem:[#allocation6 + $0x138] sm:$0xff]
        %v420 = vld [vmem:[#allocation6 + $0x140] sm:$0xff]
        %v421 = vld [vmem:[#allocation6 + $0x148] sm:$0xff]
        %v422 = vld [vmem:[#allocation6 + $0x150] sm:$0xff]
        %v423 = vld [vmem:[#allocation6 + $0x158] sm:$0xff]
        %v424 = vld [vmem:[#allocation6 + $0x160] sm:$0xff]
        %v425 = vld [vmem:[#allocation6 + $0x168] sm:$0xff]
        %v426 = vld [vmem:[#allocation6 + $0x170] sm:$0xff]
        %v427 = vld [vmem:[#allocation6 + $0x178] sm:$0xff]
        %v428 = vld [vmem:[#allocation6 + $0x180] sm:$0xff]
        %v429 = vld [vmem:[#allocation6 + $0x188] sm:$0xff]
        %v430 = vld [vmem:[#allocation6 + $0x190] sm:$0xff]
        %v431 = vld [vmem:[#allocation6 + $0x198] sm:$0xff]
        %v432 = vld [vmem:[#allocation6 + $0x1a0] sm:$0xff]
        %v433 = vld [vmem:[#allocation6 + $0x1a8] sm:$0xff]
        %v434 = vld [vmem:[#allocation6 + $0x1b0] sm:$0xff]
        %v435 = vld [vmem:[#allocation6 + $0x1b8] sm:$0xff]
        %v436 = vld [vmem:[#allocation6 + $0x1c0] sm:$0xff]
        %v437 = vld [vmem:[#allocation6 + $0x1c8] sm:$0xff]
        %v438 = vld [vmem:[#allocation6 + $0x1d0] sm:$0xff]
        %v439 = vld [vmem:[#allocation6 + $0x1d8] sm:$0xff]
        %v440 = vld [vmem:[#allocation6 + $0x1e0] sm:$0xff]
        %v441 = vld [vmem:[#allocation6 + $0x1e8] sm:$0xff]
        %v442 = vld [vmem:[#allocation6 + $0x1f0] sm:$0xff]
        %v443 = vld [vmem:[#allocation6 + $0x1f8] sm:$0xff]
        %vm444 = vcmask 523264
        %v446 = vsel %vm444, %v378, 0
        %v449 = vsel %vm444, %v379, 0
        %451 = vmatprep.subr.mxu0 %v381
        %452 = vmatpush1.msra.mxu0 %v380
        %453 = vmatprep.subr.mxu0 %v389
        %454 = vmatpush1.msra.mxu0 %v388
        %455 = vmatprep.subr.mxu0 %v397
        %456 = vmatpush1.msra.mxu0 %v396
        %457 = vmatprep.subr.mxu0 %v405
        %458 = vmatpush1.msra.mxu0 %v404
        %459 = vmatprep.subr.mxu0 %v413
        %460 = vmatpush1.msra.mxu0 %v412
        %461 = vmatprep.subr.mxu0 %v421
        %462 = vmatpush1.msra.mxu0 %v420
        %463 = vmatprep.subr.mxu0 %v429
        %464 = vmatpush1.msra.mxu0 %v428
        %465 = vmatprep.subr.mxu0 %v437
        %466 = vmatpush1.msra.mxu0 %v436
        %467 = vmatprep.subr.mxu0 0.0
        %468 = vmatpush1.msra.mxu0 0.0
        %469 = vmatprep.subr.mxu0 0.0
        %470 = vmatpush1.msra.mxu0 0.0
        %471 = vmatprep.subr.mxu0 0.0
        %472 = vmatpush1.msra.mxu0 0.0
        %473 = vmatprep.subr.mxu0 0.0
        %474 = vmatpush1.msra.mxu0 0.0
        %475 = vmatprep.subr.mxu0 0.0
        %476 = vmatpush1.msra.mxu0 0.0
        %477 = vmatprep.subr.mxu0 0.0
        %478 = vmatpush1.msra.mxu0 0.0
        %479 = vmatprep.subr.mxu0 0.0
        %480 = vmatpush1.msra.mxu0 0.0
        %481 = vmatprep.subr.mxu0 0.0
        %482 = vmatpush1.msra.mxu0 0.0
        %483 = vmatprep.subr.mxu0 0.0
        %484 = vmatpush1.msra.mxu0 0.0
        %485 = vmatprep.subr.mxu0 0.0
        %486 = vmatpush1.msra.mxu0 0.0
        %487 = vmatprep.subr.mxu0 0.0
        %488 = vmatpush1.msra.mxu0 0.0
        %489 = vmatprep.subr.mxu0 0.0
        %490 = vmatpush1.msra.mxu0 0.0
        %491 = vmatprep.subr.mxu0 0.0
        %492 = vmatpush1.msra.mxu0 0.0
        %493 = vmatprep.subr.mxu0 0.0
        %494 = vmatpush1.msra.mxu0 0.0
        %495 = vmatprep.subr.mxu0 0.0
        %496 = vmatpush1.msra.mxu0 0.0
        %497 = vmatprep.subr.mxu0 0.0
        %498 = vmatpush1.msra.mxu0 0.0
        %499 = vmatprep.subr.mxu0 0.0
        %500 = vmatpush1.msra.mxu0 0.0
        %501 = vmatprep.subr.mxu0 0.0
        %502 = vmatpush1.msra.mxu0 0.0
        %503 = vmatprep.subr.mxu0 0.0
        %504 = vmatpush1.msra.mxu0 0.0
        %505 = vmatprep.subr.mxu0 0.0
        %506 = vmatpush1.msra.mxu0 0.0
        %507 = vmatprep.subr.mxu0 0.0
        %508 = vmatpush1.msra.mxu0 0.0
        %509 = vmatprep.subr.mxu0 0.0
        %510 = vmatpush1.msra.mxu0 0.0
        %511 = vmatprep.subr.mxu0 0.0
        %512 = vmatpush1.msra.mxu0 0.0
        %513 = vmatprep.subr.mxu0 0.0
        %514 = vmatpush1.msra.mxu0 0.0
        %515 = vmatprep.mubr.f32.mxu0 0.0
        %516 = vmatmul.mubr.f32.gmra.mrb[0].mxu0 %v446
        %v517 = vpop.f32.mrb[0].mxu0
        %v518 = vadd.f32 0.0, %v517
        %v519 = vpop.f32.mrb[0].mxu0
        %v520 = vadd.f32 0.0, %v519
        %521 = vmatprep.mubr.f32.mxu0 0.0
        %522 = vmatmul.mubr.f32.gmra.mrb[0].mxu0 %v449
        %v523 = vpop.f32.mrb[0].mxu0
        %v524 = vadd.f32 0.0, %v523
        %v525 = vpop.f32.mrb[0].mxu0
        %v526 = vadd.f32 0.0, %v525
        %527 = vdwg.mxu0
        %528 = vmatprep.subr.mxu0 %v383
        %529 = vmatpush1.msra.mxu0 %v382
        %530 = vmatprep.subr.mxu0 %v391
        %531 = vmatpush1.msra.mxu0 %v390
        %532 = vmatprep.subr.mxu0 %v399
        %533 = vmatpush1.msra.mxu0 %v398
        %534 = vmatprep.subr.mxu0 %v407
        %535 = vmatpush1.msra.mxu0 %v406
        %536 = vmatprep.subr.mxu0 %v415
        %537 = vmatpush1.msra.mxu0 %v414
        %538 = vmatprep.subr.mxu0 %v423
        %539 = vmatpush1.msra.mxu0 %v422
        %540 = vmatprep.subr.mxu0 %v431
        %541 = vmatpush1.msra.mxu0 %v430
        %542 = vmatprep.subr.mxu0 %v439
        %543 = vmatpush1.msra.mxu0 %v438
        %544 = vmatprep.subr.mxu0 0.0
        %545 = vmatpush1.msra.mxu0 0.0
        %546 = vmatprep.subr.mxu0 0.0
        %547 = vmatpush1.msra.mxu0 0.0
        %548 = vmatprep.subr.mxu0 0.0
        %549 = vmatpush1.msra.mxu0 0.0
        %550 = vmatprep.subr.mxu0 0.0
        %551 = vmatpush1.msra.mxu0 0.0
        %552 = vmatprep.subr.mxu0 0.0
        %553 = vmatpush1.msra.mxu0 0.0
        %554 = vmatprep.subr.mxu0 0.0
        %555 = vmatpush1.msra.mxu0 0.0
        %556 = vmatprep.subr.mxu0 0.0
        %557 = vmatpush1.msra.mxu0 0.0
        %558 = vmatprep.subr.mxu0 0.0
        %559 = vmatpush1.msra.mxu0 0.0
        %560 = vmatprep.subr.mxu0 0.0
        %561 = vmatpush1.msra.mxu0 0.0
        %562 = vmatprep.subr.mxu0 0.0
        %563 = vmatpush1.msra.mxu0 0.0
        %564 = vmatprep.subr.mxu0 0.0
        %565 = vmatpush1.msra.mxu0 0.0
        %566 = vmatprep.subr.mxu0 0.0
        %567 = vmatpush1.msra.mxu0 0.0
        %568 = vmatprep.subr.mxu0 0.0
        %569 = vmatpush1.msra.mxu0 0.0
        %570 = vmatprep.subr.mxu0 0.0
        %571 = vmatpush1.msra.mxu0 0.0
        %572 = vmatprep.subr.mxu0 0.0
        %573 = vmatpush1.msra.mxu0 0.0
        %574 = vmatprep.subr.mxu0 0.0
        %575 = vmatpush1.msra.mxu0 0.0
        %576 = vmatprep.subr.mxu0 0.0
        %577 = vmatpush1.msra.mxu0 0.0
        %578 = vmatprep.subr.mxu0 0.0
        %579 = vmatpush1.msra.mxu0 0.0
        %580 = vmatprep.subr.mxu0 0.0
        %581 = vmatpush1.msra.mxu0 0.0
        %582 = vmatprep.subr.mxu0 0.0
        %583 = vmatpush1.msra.mxu0 0.0
        %584 = vmatprep.subr.mxu0 0.0
        %585 = vmatpush1.msra.mxu0 0.0
        %586 = vmatprep.subr.mxu0 0.0
        %587 = vmatpush1.msra.mxu0 0.0
        %588 = vmatprep.subr.mxu0 0.0
        %589 = vmatpush1.msra.mxu0 0.0
        %590 = vmatprep.subr.mxu0 0.0
        %591 = vmatpush1.msra.mxu0 0.0
        %592 = vmatprep.mubr.f32.mxu0 0.0
        %593 = vmatmul.mubr.f32.gmra.mrb[0].mxu0 %v446
        %v594 = vpop.f32.mrb[0].mxu0
        %v595 = vadd.f32 0.0, %v594
        %v596 = vpop.f32.mrb[0].mxu0
        %v597 = vadd.f32 0.0, %v596
        %598 = vmatprep.mubr.f32.mxu0 0.0
        %599 = vmatmul.mubr.f32.gmra.mrb[0].mxu0 %v449
        %v600 = vpop.f32.mrb[0].mxu0
        %v601 = vadd.f32 0.0, %v600
        %v602 = vpop.f32.mrb[0].mxu0
        %v603 = vadd.f32 0.0, %v602
        %604 = vdwg.mxu0
        %605 = vmatprep.subr.mxu0 %v385
        %606 = vmatpush1.msra.mxu0 %v384
        %607 = vmatprep.subr.mxu0 %v393
        %608 = vmatpush1.msra.mxu0 %v392
        %609 = vmatprep.subr.mxu0 %v401
        %610 = vmatpush1.msra.mxu0 %v400
        %611 = vmatprep.subr.mxu0 %v409
        %612 = vmatpush1.msra.mxu0 %v408
        %613 = vmatprep.subr.mxu0 %v417
        %614 = vmatpush1.msra.mxu0 %v416
        %615 = vmatprep.subr.mxu0 %v425
        %616 = vmatpush1.msra.mxu0 %v424
        %617 = vmatprep.subr.mxu0 %v433
        %618 = vmatpush1.msra.mxu0 %v432
        %619 = vmatprep.subr.mxu0 %v441
        %620 = vmatpush1.msra.mxu0 %v440
        %621 = vmatprep.subr.mxu0 0.0
        %622 = vmatpush1.msra.mxu0 0.0
        %623 = vmatprep.subr.mxu0 0.0
        %624 = vmatpush1.msra.mxu0 0.0
        %625 = vmatprep.subr.mxu0 0.0
        %626 = vmatpush1.msra.mxu0 0.0
        %627 = vmatprep.subr.mxu0 0.0
        %628 = vmatpush1.msra.mxu0 0.0
        %629 = vmatprep.subr.mxu0 0.0
        %630 = vmatpush1.msra.mxu0 0.0
        %631 = vmatprep.subr.mxu0 0.0
        %632 = vmatpush1.msra.mxu0 0.0
        %633 = vmatprep.subr.mxu0 0.0
        %634 = vmatpush1.msra.mxu0 0.0
        %635 = vmatprep.subr.mxu0 0.0
        %636 = vmatpush1.msra.mxu0 0.0
        %637 = vmatprep.subr.mxu0 0.0
        %638 = vmatpush1.msra.mxu0 0.0
        %639 = vmatprep.subr.mxu0 0.0
        %640 = vmatpush1.msra.mxu0 0.0
        %641 = vmatprep.subr.mxu0 0.0
        %642 = vmatpush1.msra.mxu0 0.0
        %643 = vmatprep.subr.mxu0 0.0
        %644 = vmatpush1.msra.mxu0 0.0
        %645 = vmatprep.subr.mxu0 0.0
        %646 = vmatpush1.msra.mxu0 0.0
        %647 = vmatprep.subr.mxu0 0.0
        %648 = vmatpush1.msra.mxu0 0.0
        %649 = vmatprep.subr.mxu0 0.0
        %650 = vmatpush1.msra.mxu0 0.0
        %651 = vmatprep.subr.mxu0 0.0
        %652 = vmatpush1.msra.mxu0 0.0
        %653 = vmatprep.subr.mxu0 0.0
        %654 = vmatpush1.msra.mxu0 0.0
        %655 = vmatprep.subr.mxu0 0.0
        %656 = vmatpush1.msra.mxu0 0.0
        %657 = vmatprep.subr.mxu0 0.0
        %658 = vmatpush1.msra.mxu0 0.0
        %659 = vmatprep.subr.mxu0 0.0
        %660 = vmatpush1.msra.mxu0 0.0
        %661 = vmatprep.subr.mxu0 0.0
        %662 = vmatpush1.msra.mxu0 0.0
        %663 = vmatprep.subr.mxu0 0.0
        %664 = vmatpush1.msra.mxu0 0.0
        %665 = vmatprep.subr.mxu0 0.0
        %666 = vmatpush1.msra.mxu0 0.0
        %667 = vmatprep.subr.mxu0 0.0
        %668 = vmatpush1.msra.mxu0 0.0
        %669 = vmatprep.mubr.f32.mxu0 0.0
        %670 = vmatmul.mubr.f32.gmra.mrb[0].mxu0 %v446
        %v671 = vpop.f32.mrb[0].mxu0
        %v672 = vadd.f32 0.0, %v671
        %v673 = vpop.f32.mrb[0].mxu0
        %v674 = vadd.f32 0.0, %v673
        %675 = vmatprep.mubr.f32.mxu0 0.0
        %676 = vmatmul.mubr.f32.gmra.mrb[0].mxu0 %v449
        %v677 = vpop.f32.mrb[0].mxu0
        %v678 = vadd.f32 0.0, %v677
        %v679 = vpop.f32.mrb[0].mxu0
        %v680 = vadd.f32 0.0, %v679
        %681 = vdwg.mxu0
        %682 = vmatprep.subr.mxu0 %v387
        %683 = vmatpush1.msra.mxu0 %v386
        %684 = vmatprep.subr.mxu0 %v395
        %685 = vmatpush1.msra.mxu0 %v394
        %686 = vmatprep.subr.mxu0 %v403
        %687 = vmatpush1.msra.mxu0 %v402
        %688 = vmatprep.subr.mxu0 %v411
        %689 = vmatpush1.msra.mxu0 %v410
        %690 = vmatprep.subr.mxu0 %v419
        %691 = vmatpush1.msra.mxu0 %v418
        %692 = vmatprep.subr.mxu0 %v427
        %693 = vmatpush1.msra.mxu0 %v426
        %694 = vmatprep.subr.mxu0 %v435
        %695 = vmatpush1.msra.mxu0 %v434
        %696 = vmatprep.subr.mxu0 %v443
        %697 = vmatpush1.msra.mxu0 %v442
        %698 = vmatprep.subr.mxu0 0.0
        %699 = vmatpush1.msra.mxu0 0.0
        %700 = vmatprep.subr.mxu0 0.0
        %701 = vmatpush1.msra.mxu0 0.0
        %702 = vmatprep.subr.mxu0 0.0
        %703 = vmatpush1.msra.mxu0 0.0
        %704 = vmatprep.subr.mxu0 0.0
        %705 = vmatpush1.msra.mxu0 0.0
        %706 = vmatprep.subr.mxu0 0.0
        %707 = vmatpush1.msra.mxu0 0.0
        %708 = vmatprep.subr.mxu0 0.0
        %709 = vmatpush1.msra.mxu0 0.0
        %710 = vmatprep.subr.mxu0 0.0
        %711 = vmatpush1.msra.mxu0 0.0
        %712 = vmatprep.subr.mxu0 0.0
        %713 = vmatpush1.msra.mxu0 0.0
        %714 = vmatprep.subr.mxu0 0.0
        %715 = vmatpush1.msra.mxu0 0.0
        %716 = vmatprep.subr.mxu0 0.0
        %717 = vmatpush1.msra.mxu0 0.0
        %718 = vmatprep.subr.mxu0 0.0
        %719 = vmatpush1.msra.mxu0 0.0
        %720 = vmatprep.subr.mxu0 0.0
        %721 = vmatpush1.msra.mxu0 0.0
        %722 = vmatprep.subr.mxu0 0.0
        %723 = vmatpush1.msra.mxu0 0.0
        %724 = vmatprep.subr.mxu0 0.0
        %725 = vmatpush1.msra.mxu0 0.0
        %726 = vmatprep.subr.mxu0 0.0
        %727 = vmatpush1.msra.mxu0 0.0
        %728 = vmatprep.subr.mxu0 0.0
        %729 = vmatpush1.msra.mxu0 0.0
        %730 = vmatprep.subr.mxu0 0.0
        %731 = vmatpush1.msra.mxu0 0.0
        %732 = vmatprep.subr.mxu0 0.0
        %733 = vmatpush1.msra.mxu0 0.0
        %734 = vmatprep.subr.mxu0 0.0
        %735 = vmatpush1.msra.mxu0 0.0
        %736 = vmatprep.subr.mxu0 0.0
        %737 = vmatpush1.msra.mxu0 0.0
        %738 = vmatprep.subr.mxu0 0.0
        %739 = vmatpush1.msra.mxu0 0.0
        %740 = vmatprep.subr.mxu0 0.0
        %741 = vmatpush1.msra.mxu0 0.0
        %742 = vmatprep.subr.mxu0 0.0
        %743 = vmatpush1.msra.mxu0 0.0
        %744 = vmatprep.subr.mxu0 0.0
        %745 = vmatpush1.msra.mxu0 0.0
        %746 = vmatprep.mubr.f32.mxu0 0.0
        %747 = vmatmul.mubr.f32.gmra.mrb[0].mxu0 %v446
        %v748 = vpop.f32.mrb[0].mxu0
        %v749 = vadd.f32 0.0, %v748
        %v750 = vpop.f32.mrb[0].mxu0
        %v751 = vadd.f32 0.0, %v750
        %752 = vmatprep.mubr.f32.mxu0 0.0
        %753 = vmatmul.mubr.f32.gmra.mrb[0].mxu0 %v449
        %v754 = vpop.f32.mrb[0].mxu0
        %v755 = vadd.f32 0.0, %v754
        %v756 = vpop.f32.mrb[0].mxu0
        %v757 = vadd.f32 0.0, %v756
        %758 = vdwg.mxu0
        %v759 = vld [vmem:[#allocation8] sm:$0xff]
        %v761 = vlaneseq
        %v762 = vshrl.u32 %v761, 7
        %v763 = vsub.s32 0, %v762
        %v764 = vrot.slane %v759, %v763
        %v765 = vlaneseq
        %v766 = vshrl.u32 %v765, 7
        %v767 = vsub.s32 1, %v766
        %v768 = vrot.slane %v759, %v767
        %v769 = vlaneseq
        %v770 = vshrl.u32 %v769, 7
        %v771 = vsub.s32 2, %v770
        %v772 = vrot.slane %v759, %v771
        %v773 = vlaneseq
        %v774 = vshrl.u32 %v773, 7
        %v775 = vsub.s32 3, %v774
        %v776 = vrot.slane %v759, %v775
        %v777 = vlaneseq
        %v778 = vshrl.u32 %v777, 7
        %v779 = vsub.s32 4, %v778
        %v780 = vrot.slane %v759, %v779
        %v781 = vlaneseq
        %v782 = vshrl.u32 %v781, 7
        %v783 = vsub.s32 5, %v782
        %v784 = vrot.slane %v759, %v783
        %v785 = vlaneseq
        %v786 = vshrl.u32 %v785, 7
        %v787 = vsub.s32 6, %v786
        %v788 = vrot.slane %v759, %v787
        %v789 = vlaneseq
        %v790 = vshrl.u32 %v789, 7
        %v791 = vsub.s32 7, %v790
        %v792 = vrot.slane %v759, %v791
        %v801 = vmul.f32 %v518, %v764
        %v802 = vmul.f32 %v520, %v768
        %v803 = vmul.f32 %v595, %v772
        %v804 = vmul.f32 %v597, %v776
        %v805 = vmul.f32 %v672, %v780
        %v806 = vmul.f32 %v674, %v784
        %v807 = vmul.f32 %v749, %v788
        %v808 = vmul.f32 %v751, %v792
        %v809 = vmul.f32 %v524, %v764
        %v810 = vmul.f32 %v526, %v768
        %v811 = vmul.f32 %v601, %v772
        %v812 = vmul.f32 %v603, %v776
        %v813 = vmul.f32 %v678, %v780
        %v814 = vmul.f32 %v680, %v784
        %v815 = vmul.f32 %v755, %v788
        %v816 = vmul.f32 %v757, %v792
        %v817 = vld [vmem:[#allocation9] sm:$0xff]
        %v819 = vlaneseq
        %v820 = vshrl.u32 %v819, 7
        %v821 = vsub.s32 0, %v820
        %v822 = vrot.slane %v817, %v821
        %v823 = vlaneseq
        %v824 = vshrl.u32 %v823, 7
        %v825 = vsub.s32 1, %v824
        %v826 = vrot.slane %v817, %v825
        %v827 = vlaneseq
        %v828 = vshrl.u32 %v827, 7
        %v829 = vsub.s32 2, %v828
        %v830 = vrot.slane %v817, %v829
        %v831 = vlaneseq
        %v832 = vshrl.u32 %v831, 7
        %v833 = vsub.s32 3, %v832
        %v834 = vrot.slane %v817, %v833
        %v835 = vlaneseq
        %v836 = vshrl.u32 %v835, 7
        %v837 = vsub.s32 4, %v836
        %v838 = vrot.slane %v817, %v837
        %v839 = vlaneseq
        %v840 = vshrl.u32 %v839, 7
        %v841 = vsub.s32 5, %v840
        %v842 = vrot.slane %v817, %v841
        %v843 = vlaneseq
        %v844 = vshrl.u32 %v843, 7
        %v845 = vsub.s32 6, %v844
        %v846 = vrot.slane %v817, %v845
        %v847 = vlaneseq
        %v848 = vshrl.u32 %v847, 7
        %v849 = vsub.s32 7, %v848
        %v850 = vrot.slane %v817, %v849
        %v859 = vadd.f32 %v801, %v822
        %v860 = vadd.f32 %v802, %v826
        %v861 = vadd.f32 %v803, %v830
        %v862 = vadd.f32 %v804, %v834
        %v863 = vadd.f32 %v805, %v838
        %v864 = vadd.f32 %v806, %v842
        %v865 = vadd.f32 %v807, %v846
        %v866 = vadd.f32 %v808, %v850
        %v867 = vadd.f32 %v809, %v822
        %v868 = vadd.f32 %v810, %v826
        %v869 = vadd.f32 %v811, %v830
        %v870 = vadd.f32 %v812, %v834
        %v871 = vadd.f32 %v813, %v838
        %v872 = vadd.f32 %v814, %v842
        %v873 = vadd.f32 %v815, %v846
        %v874 = vadd.f32 %v816, %v850
        %v875 = vmax.f32 %v859, 0.0
        %v876 = vmax.f32 %v860, 0.0
        %v877 = vmax.f32 %v861, 0.0
        %v878 = vmax.f32 %v862, 0.0
        %v879 = vmax.f32 %v863, 0.0
        %v880 = vmax.f32 %v864, 0.0
        %v881 = vmax.f32 %v865, 0.0
        %v882 = vmax.f32 %v866, 0.0
        %v883 = vmax.f32 %v867, 0.0
        %v884 = vmax.f32 %v868, 0.0
        %v885 = vmax.f32 %v869, 0.0
        %v886 = vmax.f32 %v870, 0.0
        %v887 = vmax.f32 %v871, 0.0
        %v888 = vmax.f32 %v872, 0.0
        %v889 = vmax.f32 %v873, 0.0
        %v890 = vmax.f32 %v874, 0.0
        %891 = vst [vmem:[%s375] sm:$0xff] %v875
        %892 = vst [vmem:[%s375 + $0x8] sm:$0xff] %v876
        %893 = vst [vmem:[%s375 + $0x40] sm:$0xff] %v883
        %894 = vst [vmem:[%s375 + $0x48] sm:$0xff] %v884
        %899 = vrot.lane.b32.xlu0 %v877, 16
        %v900 = vpop.permute.xlu0 %899
        %901 = vrot.lane.b32.xlu0 %v878, 16
        %v902 = vpop.permute.xlu0 %901
        %903 = vrot.lane.b32.xlu0 %v885, 16
        %v904 = vpop.permute.xlu0 %903
        %905 = vrot.lane.b32.xlu0 %v886, 16
        %v906 = vpop.permute.xlu0 %905
        %vm907 = vcmask 130048
        %v908 = vsel %vm907, %v900, %v902
        %v909 = vsel %vm907, %v904, %v906
        %v914 = vsel %vm907, 0.0, %v900
        %v915 = vsel %vm907, 0.0, %v904
        %v916 = vpack.c.bf16 %v914, 0.0
        %v917 = vpack.c.bf16 %v908, 0.0
        %v918 = vpack.c.bf16 %v915, %v915
        %v919 = vpack.c.bf16 %v909, %v909
        %vm920 = vsmask.f32 4352
        %v922 = vshrl.u32 %v916, 16
        %v924 = vrot.slane %v922, 3
        %v925 = vshll.u32 %v916, 16
        %v927 = vrot.slane %v925, 4
        %v928 = vor.u32 %v924, %v927
        %v930 = vshrl.u32 %v918, 16
        %v932 = vrot.slane %v930, 3
        %v933 = vshll.u32 %v918, 16
        %v935 = vrot.slane %v933, 4
        %v936 = vor.u32 %v932, %v935
        %v937 = vsel %vm920, %v928, %v936
        %v939 = vshrl.u32 %v917, 16
        %v941 = vrot.slane %v939, 3
        %v942 = vshll.u32 %v917, 16
        %v944 = vrot.slane %v942, 4
        %v945 = vor.u32 %v941, %v944
        %v947 = vshrl.u32 %v919, 16
        %v949 = vrot.slane %v947, 3
        %v950 = vshll.u32 %v919, 16
        %v952 = vrot.slane %v950, 4
        %v953 = vor.u32 %v949, %v952
        %v954 = vsel %vm920, %v945, %v953
        %957 = vst [vmem:[#allocation2] sm:$0xff] %v937
        %958 = vst [vmem:[#allocation2 + $0x8] sm:$0xff] %v954
        %v959 = vpack.c.bf16 %v915, %v914
        %v960 = vpack.c.bf16 %v909, %v908
        %961 = vst [vmem:[#allocation2 + $0x30] sm:$0xff] %v959
        %962 = vst [vmem:[#allocation2 + $0x38] sm:$0xff] %v960
        %v963 = vpack.c.bf16 0.0, 0.0
        %vm964 = vsmask.f32 7424
        %v966 = vshrl.u32 %v959, 16
        %v968 = vshll.u32 %v959, 16
        %v970 = vrot.slane %v968, 1
        %v971 = vor.u32 %v966, %v970
        %v973 = vshll.u32 %v963, 16
        %v975 = vrot.slane %v973, 1
        %v976 = vsel %vm964, %v971, %v975
        %v978 = vshrl.u32 %v960, 16
        %v980 = vshll.u32 %v960, 16
        %v982 = vrot.slane %v980, 1
        %v983 = vor.u32 %v978, %v982
        %v984 = vsel %vm964, %v983, %v975
        %987 = vst [vmem:[#allocation2 + $0x60] sm:$0xff] %v976
        %988 = vst [vmem:[#allocation2 + $0x68] sm:$0xff] %v984
        %v989 = vpack.c.bf16 %v877, 0.0
        %v990 = vpack.c.bf16 %v878, 0.0
        %v991 = vpack.c.bf16 %v885, %v885
        %v992 = vpack.c.bf16 %v886, %v886
        %v994 = vshrl.u32 %v989, 16
        %v996 = vrot.slane %v994, 3
        %v997 = vshll.u32 %v989, 16
        %v999 = vrot.slane %v997, 4
        %v1000 = vor.u32 %v996, %v999
        %v1002 = vshrl.u32 %v991, 16
        %v1004 = vrot.slane %v1002, 3
        %v1005 = vshll.u32 %v991, 16
        %v1007 = vrot.slane %v1005, 4
        %v1008 = vor.u32 %v1004, %v1007
        %v1009 = vsel %vm920, %v1000, %v1008
        %v1011 = vshrl.u32 %v990, 16
        %v1013 = vrot.slane %v1011, 3
        %v1014 = vshll.u32 %v990, 16
        %v1016 = vrot.slane %v1014, 4
        %v1017 = vor.u32 %v1013, %v1016
        %v1019 = vshrl.u32 %v992, 16
        %v1021 = vrot.slane %v1019, 3
        %v1022 = vshll.u32 %v992, 16
        %v1024 = vrot.slane %v1022, 4
        %v1025 = vor.u32 %v1021, %v1024
        %v1026 = vsel %vm920, %v1017, %v1025
        %1029 = vst [vmem:[#allocation2 + $0x10] sm:$0xff] %v1009
        %1030 = vst [vmem:[#allocation2 + $0x18] sm:$0xff] %v1026
        %v1031 = vpack.c.bf16 %v885, %v877
        %v1032 = vpack.c.bf16 %v886, %v878
        %1033 = vst [vmem:[#allocation2 + $0x40] sm:$0xff] %v1031
        %1034 = vst [vmem:[#allocation2 + $0x48] sm:$0xff] %v1032
        %v1036 = vshrl.u32 %v1031, 16
        %v1038 = vshll.u32 %v1031, 16
        %v1040 = vrot.slane %v1038, 1
        %v1041 = vor.u32 %v1036, %v1040
        %v1042 = vsel %vm964, %v1041, %v975
        %v1044 = vshrl.u32 %v1032, 16
        %v1046 = vshll.u32 %v1032, 16
        %v1048 = vrot.slane %v1046, 1
        %v1049 = vor.u32 %v1044, %v1048
        %v1050 = vsel %vm964, %v1049, %v975
        %1053 = vst [vmem:[#allocation2 + $0x70] sm:$0xff] %v1042
        %1054 = vst [vmem:[#allocation2 + $0x78] sm:$0xff] %v1050
        %1055 = vrot.lane.b32.xlu0 %v877, 112
        %v1056 = vpop.permute.xlu0 %1055
        %1057 = vrot.lane.b32.xlu0 %v878, 112
        %v1058 = vpop.permute.xlu0 %1057
        %1059 = vrot.lane.b32.xlu0 %v885, 112
        %v1060 = vpop.permute.xlu0 %1059
        %1061 = vrot.lane.b32.xlu0 %v886, 112
        %v1062 = vpop.permute.xlu0 %1061
        %vm1063 = vcmask 916480
        %v1064 = vsel %vm1063, %v1056, %v1058
        %v1065 = vsel %vm1063, %v1060, %v1062
        %v1070 = vsel %vm1063, %v1058, 0.0
        %v1071 = vsel %vm1063, %v1062, 0.0
        %v1072 = vpack.c.bf16 %v1064, 0.0
        %v1073 = vpack.c.bf16 %v1070, 0.0
        %v1074 = vpack.c.bf16 %v1065, %v1065
        %v1075 = vpack.c.bf16 %v1071, %v1071
        %v1077 = vshrl.u32 %v1072, 16
        %v1079 = vrot.slane %v1077, 3
        %v1080 = vshll.u32 %v1072, 16
        %v1082 = vrot.slane %v1080, 4
        %v1083 = vor.u32 %v1079, %v1082
        %v1085 = vshrl.u32 %v1074, 16
        %v1087 = vrot.slane %v1085, 3
        %v1088 = vshll.u32 %v1074, 16
        %v1090 = vrot.slane %v1088, 4
        %v1091 = vor.u32 %v1087, %v1090
        %v1092 = vsel %vm920, %v1083, %v1091
        %v1094 = vshrl.u32 %v1073, 16
        %v1096 = vrot.slane %v1094, 3
        %v1097 = vshll.u32 %v1073, 16
        %v1099 = vrot.slane %v1097, 4
        %v1100 = vor.u32 %v1096, %v1099
        %v1102 = vshrl.u32 %v1075, 16
        %v1104 = vrot.slane %v1102, 3
        %v1105 = vshll.u32 %v1075, 16
        %v1107 = vrot.slane %v1105, 4
        %v1108 = vor.u32 %v1104, %v1107
        %v1109 = vsel %vm920, %v1100, %v1108
        %1112 = vst [vmem:[#allocation2 + $0x20] sm:$0xff] %v1092
        %1113 = vst [vmem:[#allocation2 + $0x28] sm:$0xff] %v1109
        %v1114 = vpack.c.bf16 %v1065, %v1064
        %v1115 = vpack.c.bf16 %v1071, %v1070
        %1116 = vst [vmem:[#allocation2 + $0x50] sm:$0xff] %v1114
        %1117 = vst [vmem:[#allocation2 + $0x58] sm:$0xff] %v1115
        %v1119 = vshrl.u32 %v1114, 16
        %v1121 = vshll.u32 %v1114, 16
        %v1123 = vrot.slane %v1121, 1
        %v1124 = vor.u32 %v1119, %v1123
        %v1125 = vsel %vm964, %v1124, %v975
        %v1127 = vshrl.u32 %v1115, 16
        %v1129 = vshll.u32 %v1115, 16
        %v1131 = vrot.slane %v1129, 1
        %v1132 = vor.u32 %v1127, %v1131
        %v1133 = vsel %vm964, %v1132, %v975
        %1136 = vst [vmem:[#allocation2 + $0x80] sm:$0xff] %v1125
        %1137 = vst [vmem:[#allocation2 + $0x88] sm:$0xff] %v1133
        %v1138 = vld [vmem:[#allocation2] sm:$0xff]
        %v1139 = vld [vmem:[#allocation2 + $0x8] sm:$0xff]
        %v1140 = vld [vmem:[#allocation2 + $0x10] sm:$0xff]
        %v1141 = vld [vmem:[#allocation2 + $0x18] sm:$0xff]
        %v1142 = vld [vmem:[#allocation2 + $0x20] sm:$0xff]
        %v1143 = vld [vmem:[#allocation2 + $0x28] sm:$0xff]
        %v1144 = vld [vmem:[#allocation2 + $0x30] sm:$0xff]
        %v1145 = vld [vmem:[#allocation2 + $0x38] sm:$0xff]
        %v1146 = vld [vmem:[#allocation2 + $0x40] sm:$0xff]
        %v1147 = vld [vmem:[#allocation2 + $0x48] sm:$0xff]
        %v1148 = vld [vmem:[#allocation2 + $0x50] sm:$0xff]
        %v1149 = vld [vmem:[#allocation2 + $0x58] sm:$0xff]
        %v1150 = vld [vmem:[#allocation2 + $0x60] sm:$0xff]
        %v1151 = vld [vmem:[#allocation2 + $0x68] sm:$0xff]
        %v1152 = vld [vmem:[#allocation2 + $0x70] sm:$0xff]
        %v1153 = vld [vmem:[#allocation2 + $0x78] sm:$0xff]
        %v1154 = vld [vmem:[#allocation2 + $0x80] sm:$0xff]
        %v1155 = vld [vmem:[#allocation2 + $0x88] sm:$0xff]
        %v1156 = vld [vmem:[#allocation11] sm:$0xff]
        %v1157 = vld [vmem:[#allocation11 + $0x8] sm:$0xff]
        %v1158 = vld [vmem:[#allocation11 + $0x10] sm:$0xff]
        %v1159 = vld [vmem:[#allocation11 + $0x18] sm:$0xff]
        %v1160 = vld [vmem:[#allocation11 + $0x20] sm:$0xff]
        %v1161 = vld [vmem:[#allocation11 + $0x28] sm:$0xff]
        %v1162 = vld [vmem:[#allocation11 + $0x30] sm:$0xff]
        %v1163 = vld [vmem:[#allocation11 + $0x38] sm:$0xff]
        %v1164 = vld [vmem:[#allocation11 + $0x40] sm:$0xff]
        %v1165 = vld [vmem:[#allocation11 + $0x48] sm:$0xff]
        %v1166 = vld [vmem:[#allocation11 + $0x50] sm:$0xff]
        %v1167 = vld [vmem:[#allocation11 + $0x58] sm:$0xff]
        %v1168 = vld [vmem:[#allocation11 + $0x60] sm:$0xff]
        %v1169 = vld [vmem:[#allocation11 + $0x68] sm:$0xff]
        %v1170 = vld [vmem:[#allocation11 + $0x70] sm:$0xff]
        %v1171 = vld [vmem:[#allocation11 + $0x78] sm:$0xff]
        %v1172 = vld [vmem:[#allocation11 + $0x80] sm:$0xff]
        %v1173 = vld [vmem:[#allocation11 + $0x88] sm:$0xff]
        %v1174 = vld [vmem:[#allocation11 + $0x90] sm:$0xff]
        %v1175 = vld [vmem:[#allocation11 + $0x98] sm:$0xff]
        %v1176 = vld [vmem:[#allocation11 + $0xa0] sm:$0xff]
        %v1177 = vld [vmem:[#allocation11 + $0xa8] sm:$0xff]
        %v1178 = vld [vmem:[#allocation11 + $0xb0] sm:$0xff]
        %v1179 = vld [vmem:[#allocation11 + $0xb8] sm:$0xff]
        %v1180 = vld [vmem:[#allocation11 + $0xc0] sm:$0xff]
        %v1181 = vld [vmem:[#allocation11 + $0xc8] sm:$0xff]
        %v1182 = vld [vmem:[#allocation11 + $0xd0] sm:$0xff]
        %v1183 = vld [vmem:[#allocation11 + $0xd8] sm:$0xff]
        %v1184 = vld [vmem:[#allocation11 + $0xe0] sm:$0xff]
        %v1185 = vld [vmem:[#allocation11 + $0xe8] sm:$0xff]
        %v1186 = vld [vmem:[#allocation11 + $0xf0] sm:$0xff]
        %v1187 = vld [vmem:[#allocation11 + $0xf8] sm:$0xff]
        %v1188 = vld [vmem:[#allocation11 + $0x100] sm:$0xff]
        %v1189 = vld [vmem:[#allocation11 + $0x108] sm:$0xff]
        %v1190 = vld [vmem:[#allocation11 + $0x110] sm:$0xff]
        %v1191 = vld [vmem:[#allocation11 + $0x118] sm:$0xff]
        %v1192 = vld [vmem:[#allocation11 + $0x120] sm:$0xff]
        %v1193 = vld [vmem:[#allocation11 + $0x128] sm:$0xff]
        %v1194 = vld [vmem:[#allocation11 + $0x130] sm:$0xff]
        %v1195 = vld [vmem:[#allocation11 + $0x138] sm:$0xff]
        %v1196 = vld [vmem:[#allocation11 + $0x140] sm:$0xff]
        %v1197 = vld [vmem:[#allocation11 + $0x148] sm:$0xff]
        %v1198 = vld [vmem:[#allocation11 + $0x150] sm:$0xff]
        %v1199 = vld [vmem:[#allocation11 + $0x158] sm:$0xff]
        %v1200 = vld [vmem:[#allocation11 + $0x160] sm:$0xff]
        %v1201 = vld [vmem:[#allocation11 + $0x168] sm:$0xff]
        %v1202 = vld [vmem:[#allocation11 + $0x170] sm:$0xff]
        %v1203 = vld [vmem:[#allocation11 + $0x178] sm:$0xff]
        %v1204 = vld [vmem:[#allocation11 + $0x180] sm:$0xff]
        %v1205 = vld [vmem:[#allocation11 + $0x188] sm:$0xff]
        %v1206 = vld [vmem:[#allocation11 + $0x190] sm:$0xff]
        %v1207 = vld [vmem:[#allocation11 + $0x198] sm:$0xff]
        %v1208 = vld [vmem:[#allocation11 + $0x1a0] sm:$0xff]
        %v1209 = vld [vmem:[#allocation11 + $0x1a8] sm:$0xff]
        %v1210 = vld [vmem:[#allocation11 + $0x1b0] sm:$0xff]
        %v1211 = vld [vmem:[#allocation11 + $0x1b8] sm:$0xff]
        %v1212 = vld [vmem:[#allocation11 + $0x1c0] sm:$0xff]
        %v1213 = vld [vmem:[#allocation11 + $0x1c8] sm:$0xff]
        %v1214 = vld [vmem:[#allocation11 + $0x1d0] sm:$0xff]
        %v1215 = vld [vmem:[#allocation11 + $0x1d8] sm:$0xff]
        %v1216 = vld [vmem:[#allocation11 + $0x1e0] sm:$0xff]
        %v1217 = vld [vmem:[#allocation11 + $0x1e8] sm:$0xff]
        %v1218 = vld [vmem:[#allocation11 + $0x1f0] sm:$0xff]
        %v1219 = vld [vmem:[#allocation11 + $0x1f8] sm:$0xff]
        %v1220 = vld [vmem:[#allocation11 + $0x200] sm:$0xff]
        %v1221 = vld [vmem:[#allocation11 + $0x208] sm:$0xff]
        %v1222 = vld [vmem:[#allocation11 + $0x210] sm:$0xff]
        %v1223 = vld [vmem:[#allocation11 + $0x218] sm:$0xff]
        %v1224 = vld [vmem:[#allocation11 + $0x220] sm:$0xff]
        %v1225 = vld [vmem:[#allocation11 + $0x228] sm:$0xff]
        %v1226 = vld [vmem:[#allocation11 + $0x230] sm:$0xff]
        %v1227 = vld [vmem:[#allocation11 + $0x238] sm:$0xff]
        %v1228 = vld [vmem:[#allocation11 + $0x240] sm:$0xff]
        %v1229 = vld [vmem:[#allocation11 + $0x248] sm:$0xff]
        %v1230 = vld [vmem:[#allocation11 + $0x250] sm:$0xff]
        %v1231 = vld [vmem:[#allocation11 + $0x258] sm:$0xff]
        %v1232 = vld [vmem:[#allocation11 + $0x260] sm:$0xff]
        %v1233 = vld [vmem:[#allocation11 + $0x268] sm:$0xff]
        %v1234 = vld [vmem:[#allocation11 + $0x270] sm:$0xff]
        %v1235 = vld [vmem:[#allocation11 + $0x278] sm:$0xff]
        %v1236 = vld [vmem:[#allocation11 + $0x280] sm:$0xff]
        %v1237 = vld [vmem:[#allocation11 + $0x288] sm:$0xff]
        %v1238 = vld [vmem:[#allocation11 + $0x290] sm:$0xff]
        %v1239 = vld [vmem:[#allocation11 + $0x298] sm:$0xff]
        %v1240 = vld [vmem:[#allocation11 + $0x2a0] sm:$0xff]
        %v1241 = vld [vmem:[#allocation11 + $0x2a8] sm:$0xff]
        %v1242 = vld [vmem:[#allocation11 + $0x2b0] sm:$0xff]
        %v1243 = vld [vmem:[#allocation11 + $0x2b8] sm:$0xff]
        %v1244 = vld [vmem:[#allocation11 + $0x2c0] sm:$0xff]
        %v1245 = vld [vmem:[#allocation11 + $0x2c8] sm:$0xff]
        %v1246 = vld [vmem:[#allocation11 + $0x2d0] sm:$0xff]
        %v1247 = vld [vmem:[#allocation11 + $0x2d8] sm:$0xff]
        %v1248 = vld [vmem:[#allocation11 + $0x2e0] sm:$0xff]
        %v1249 = vld [vmem:[#allocation11 + $0x2e8] sm:$0xff]
        %v1250 = vld [vmem:[#allocation11 + $0x2f0] sm:$0xff]
        %v1251 = vld [vmem:[#allocation11 + $0x2f8] sm:$0xff]
        %v1252 = vld [vmem:[#allocation11 + $0x300] sm:$0xff]
        %v1253 = vld [vmem:[#allocation11 + $0x308] sm:$0xff]
        %v1254 = vld [vmem:[#allocation11 + $0x310] sm:$0xff]
        %v1255 = vld [vmem:[#allocation11 + $0x318] sm:$0xff]
        %v1256 = vld [vmem:[#allocation11 + $0x320] sm:$0xff]
        %v1257 = vld [vmem:[#allocation11 + $0x328] sm:$0xff]
        %v1258 = vld [vmem:[#allocation11 + $0x330] sm:$0xff]
        %v1259 = vld [vmem:[#allocation11 + $0x338] sm:$0xff]
        %v1260 = vld [vmem:[#allocation11 + $0x340] sm:$0xff]
        %v1261 = vld [vmem:[#allocation11 + $0x348] sm:$0xff]
        %v1262 = vld [vmem:[#allocation11 + $0x350] sm:$0xff]
        %v1263 = vld [vmem:[#allocation11 + $0x358] sm:$0xff]
        %v1264 = vld [vmem:[#allocation11 + $0x360] sm:$0xff]
        %v1265 = vld [vmem:[#allocation11 + $0x368] sm:$0xff]
        %v1266 = vld [vmem:[#allocation11 + $0x370] sm:$0xff]
        %v1267 = vld [vmem:[#allocation11 + $0x378] sm:$0xff]
        %v1268 = vld [vmem:[#allocation11 + $0x380] sm:$0xff]
        %v1269 = vld [vmem:[#allocation11 + $0x388] sm:$0xff]
        %v1270 = vld [vmem:[#allocation11 + $0x390] sm:$0xff]
        %v1271 = vld [vmem:[#allocation11 + $0x398] sm:$0xff]
        %v1272 = vld [vmem:[#allocation11 + $0x3a0] sm:$0xff]
        %v1273 = vld [vmem:[#allocation11 + $0x3a8] sm:$0xff]
        %v1274 = vld [vmem:[#allocation11 + $0x3b0] sm:$0xff]
        %v1275 = vld [vmem:[#allocation11 + $0x3b8] sm:$0xff]
        %v1276 = vld [vmem:[#allocation11 + $0x3c0] sm:$0xff]
        %v1277 = vld [vmem:[#allocation11 + $0x3c8] sm:$0xff]
        %v1278 = vld [vmem:[#allocation11 + $0x3d0] sm:$0xff]
        %v1279 = vld [vmem:[#allocation11 + $0x3d8] sm:$0xff]
        %v1280 = vld [vmem:[#allocation11 + $0x3e0] sm:$0xff]
        %v1281 = vld [vmem:[#allocation11 + $0x3e8] sm:$0xff]
        %v1282 = vld [vmem:[#allocation11 + $0x3f0] sm:$0xff]
        %v1283 = vld [vmem:[#allocation11 + $0x3f8] sm:$0xff]
        %v1284 = vld [vmem:[#allocation11 + $0x400] sm:$0xff]
        %v1285 = vld [vmem:[#allocation11 + $0x408] sm:$0xff]
        %v1286 = vld [vmem:[#allocation11 + $0x410] sm:$0xff]
        %v1287 = vld [vmem:[#allocation11 + $0x418] sm:$0xff]
        %v1288 = vld [vmem:[#allocation11 + $0x420] sm:$0xff]
        %v1289 = vld [vmem:[#allocation11 + $0x428] sm:$0xff]
        %v1290 = vld [vmem:[#allocation11 + $0x430] sm:$0xff]
        %v1291 = vld [vmem:[#allocation11 + $0x438] sm:$0xff]
        %v1292 = vld [vmem:[#allocation11 + $0x440] sm:$0xff]
        %v1293 = vld [vmem:[#allocation11 + $0x448] sm:$0xff]
        %v1294 = vld [vmem:[#allocation11 + $0x450] sm:$0xff]
        %v1295 = vld [vmem:[#allocation11 + $0x458] sm:$0xff]
        %v1296 = vld [vmem:[#allocation11 + $0x460] sm:$0xff]
        %v1297 = vld [vmem:[#allocation11 + $0x468] sm:$0xff]
        %v1298 = vld [vmem:[#allocation11 + $0x470] sm:$0xff]
        %v1299 = vld [vmem:[#allocation11 + $0x478] sm:$0xff]
        %v1300 = vld [vmem:[#allocation11 + $0x480] sm:$0xff]
        %v1301 = vld [vmem:[#allocation11 + $0x488] sm:$0xff]
        %v1302 = vld [vmem:[#allocation11 + $0x490] sm:$0xff]
        %v1303 = vld [vmem:[#allocation11 + $0x498] sm:$0xff]
        %v1304 = vld [vmem:[#allocation11 + $0x4a0] sm:$0xff]
        %v1305 = vld [vmem:[#allocation11 + $0x4a8] sm:$0xff]
        %v1306 = vld [vmem:[#allocation11 + $0x4b0] sm:$0xff]
        %v1307 = vld [vmem:[#allocation11 + $0x4b8] sm:$0xff]
        %v1308 = vld [vmem:[#allocation11 + $0x4c0] sm:$0xff]
        %v1309 = vld [vmem:[#allocation11 + $0x4c8] sm:$0xff]
        %v1310 = vld [vmem:[#allocation11 + $0x4d0] sm:$0xff]
        %v1311 = vld [vmem:[#allocation11 + $0x4d8] sm:$0xff]
        %v1312 = vld [vmem:[#allocation11 + $0x4e0] sm:$0xff]
        %v1313 = vld [vmem:[#allocation11 + $0x4e8] sm:$0xff]
        %v1314 = vld [vmem:[#allocation11 + $0x4f0] sm:$0xff]
        %v1315 = vld [vmem:[#allocation11 + $0x4f8] sm:$0xff]
        %v1316 = vld [vmem:[#allocation11 + $0x500] sm:$0xff]
        %v1317 = vld [vmem:[#allocation11 + $0x508] sm:$0xff]
        %v1318 = vld [vmem:[#allocation11 + $0x510] sm:$0xff]
        %v1319 = vld [vmem:[#allocation11 + $0x518] sm:$0xff]
        %v1320 = vld [vmem:[#allocation11 + $0x520] sm:$0xff]
        %v1321 = vld [vmem:[#allocation11 + $0x528] sm:$0xff]
        %v1322 = vld [vmem:[#allocation11 + $0x530] sm:$0xff]
        %v1323 = vld [vmem:[#allocation11 + $0x538] sm:$0xff]
        %v1324 = vld [vmem:[#allocation11 + $0x540] sm:$0xff]
        %v1325 = vld [vmem:[#allocation11 + $0x548] sm:$0xff]
        %v1326 = vld [vmem:[#allocation11 + $0x550] sm:$0xff]
        %v1327 = vld [vmem:[#allocation11 + $0x558] sm:$0xff]
        %v1328 = vld [vmem:[#allocation11 + $0x560] sm:$0xff]
        %v1329 = vld [vmem:[#allocation11 + $0x568] sm:$0xff]
        %v1330 = vld [vmem:[#allocation11 + $0x570] sm:$0xff]
        %v1331 = vld [vmem:[#allocation11 + $0x578] sm:$0xff]
        %v1332 = vld [vmem:[#allocation11 + $0x580] sm:$0xff]
        %v1333 = vld [vmem:[#allocation11 + $0x588] sm:$0xff]
        %v1334 = vld [vmem:[#allocation11 + $0x590] sm:$0xff]
        %v1335 = vld [vmem:[#allocation11 + $0x598] sm:$0xff]
        %v1336 = vld [vmem:[#allocation11 + $0x5a0] sm:$0xff]
        %v1337 = vld [vmem:[#allocation11 + $0x5a8] sm:$0xff]
        %v1338 = vld [vmem:[#allocation11 + $0x5b0] sm:$0xff]
        %v1339 = vld [vmem:[#allocation11 + $0x5b8] sm:$0xff]
        %v1340 = vld [vmem:[#allocation11 + $0x5c0] sm:$0xff]
        %v1341 = vld [vmem:[#allocation11 + $0x5c8] sm:$0xff]
        %v1342 = vld [vmem:[#allocation11 + $0x5d0] sm:$0xff]
        %v1343 = vld [vmem:[#allocation11 + $0x5d8] sm:$0xff]
        %v1344 = vld [vmem:[#allocation11 + $0x5e0] sm:$0xff]
        %v1345 = vld [vmem:[#allocation11 + $0x5e8] sm:$0xff]
        %v1346 = vld [vmem:[#allocation11 + $0x5f0] sm:$0xff]
        %v1347 = vld [vmem:[#allocation11 + $0x5f8] sm:$0xff]
        %v1348 = vld [vmem:[#allocation11 + $0x600] sm:$0xff]
        %v1349 = vld [vmem:[#allocation11 + $0x608] sm:$0xff]
        %v1350 = vld [vmem:[#allocation11 + $0x610] sm:$0xff]
        %v1351 = vld [vmem:[#allocation11 + $0x618] sm:$0xff]
        %v1352 = vld [vmem:[#allocation11 + $0x620] sm:$0xff]
        %v1353 = vld [vmem:[#allocation11 + $0x628] sm:$0xff]
        %v1354 = vld [vmem:[#allocation11 + $0x630] sm:$0xff]
        %v1355 = vld [vmem:[#allocation11 + $0x638] sm:$0xff]
        %v1356 = vld [vmem:[#allocation11 + $0x640] sm:$0xff]
        %v1357 = vld [vmem:[#allocation11 + $0x648] sm:$0xff]
        %v1358 = vld [vmem:[#allocation11 + $0x650] sm:$0xff]
        %v1359 = vld [vmem:[#allocation11 + $0x658] sm:$0xff]
        %v1360 = vld [vmem:[#allocation11 + $0x660] sm:$0xff]
        %v1361 = vld [vmem:[#allocation11 + $0x668] sm:$0xff]
        %v1362 = vld [vmem:[#allocation11 + $0x670] sm:$0xff]
        %v1363 = vld [vmem:[#allocation11 + $0x678] sm:$0xff]
        %v1364 = vld [vmem:[#allocation11 + $0x680] sm:$0xff]
        %v1365 = vld [vmem:[#allocation11 + $0x688] sm:$0xff]
        %v1366 = vld [vmem:[#allocation11 + $0x690] sm:$0xff]
        %v1367 = vld [vmem:[#allocation11 + $0x698] sm:$0xff]
        %v1368 = vld [vmem:[#allocation11 + $0x6a0] sm:$0xff]
        %v1369 = vld [vmem:[#allocation11 + $0x6a8] sm:$0xff]
        %v1370 = vld [vmem:[#allocation11 + $0x6b0] sm:$0xff]
        %v1371 = vld [vmem:[#allocation11 + $0x6b8] sm:$0xff]
        %v1372 = vld [vmem:[#allocation11 + $0x6c0] sm:$0xff]
        %v1373 = vld [vmem:[#allocation11 + $0x6c8] sm:$0xff]
        %v1374 = vld [vmem:[#allocation11 + $0x6d0] sm:$0xff]
        %v1375 = vld [vmem:[#allocation11 + $0x6d8] sm:$0xff]
        %v1376 = vld [vmem:[#allocation11 + $0x6e0] sm:$0xff]
        %v1377 = vld [vmem:[#allocation11 + $0x6e8] sm:$0xff]
        %v1378 = vld [vmem:[#allocation11 + $0x6f0] sm:$0xff]
        %v1379 = vld [vmem:[#allocation11 + $0x6f8] sm:$0xff]
        %v1380 = vld [vmem:[#allocation11 + $0x700] sm:$0xff]
        %v1381 = vld [vmem:[#allocation11 + $0x708] sm:$0xff]
        %v1382 = vld [vmem:[#allocation11 + $0x710] sm:$0xff]
        %v1383 = vld [vmem:[#allocation11 + $0x718] sm:$0xff]
        %v1384 = vld [vmem:[#allocation11 + $0x720] sm:$0xff]
        %v1385 = vld [vmem:[#allocation11 + $0x728] sm:$0xff]
        %v1386 = vld [vmem:[#allocation11 + $0x730] sm:$0xff]
        %v1387 = vld [vmem:[#allocation11 + $0x738] sm:$0xff]
        %v1388 = vld [vmem:[#allocation11 + $0x740] sm:$0xff]
        %v1389 = vld [vmem:[#allocation11 + $0x748] sm:$0xff]
        %v1390 = vld [vmem:[#allocation11 + $0x750] sm:$0xff]
        %v1391 = vld [vmem:[#allocation11 + $0x758] sm:$0xff]
        %v1392 = vld [vmem:[#allocation11 + $0x760] sm:$0xff]
        %v1393 = vld [vmem:[#allocation11 + $0x768] sm:$0xff]
        %v1394 = vld [vmem:[#allocation11 + $0x770] sm:$0xff]
        %v1395 = vld [vmem:[#allocation11 + $0x778] sm:$0xff]
        %v1396 = vld [vmem:[#allocation11 + $0x780] sm:$0xff]
        %v1397 = vld [vmem:[#allocation11 + $0x788] sm:$0xff]
        %v1398 = vld [vmem:[#allocation11 + $0x790] sm:$0xff]
        %v1399 = vld [vmem:[#allocation11 + $0x798] sm:$0xff]
        %v1400 = vld [vmem:[#allocation11 + $0x7a0] sm:$0xff]
        %v1401 = vld [vmem:[#allocation11 + $0x7a8] sm:$0xff]
        %v1402 = vld [vmem:[#allocation11 + $0x7b0] sm:$0xff]
        %v1403 = vld [vmem:[#allocation11 + $0x7b8] sm:$0xff]
        %v1404 = vld [vmem:[#allocation11 + $0x7c0] sm:$0xff]
        %v1405 = vld [vmem:[#allocation11 + $0x7c8] sm:$0xff]
        %v1406 = vld [vmem:[#allocation11 + $0x7d0] sm:$0xff]
        %v1407 = vld [vmem:[#allocation11 + $0x7d8] sm:$0xff]
        %v1408 = vld [vmem:[#allocation11 + $0x7e0] sm:$0xff]
        %v1409 = vld [vmem:[#allocation11 + $0x7e8] sm:$0xff]
        %v1410 = vld [vmem:[#allocation11 + $0x7f0] sm:$0xff]
        %v1411 = vld [vmem:[#allocation11 + $0x7f8] sm:$0xff]
        %v1412 = vld [vmem:[#allocation11 + $0x800] sm:$0xff]
        %v1413 = vld [vmem:[#allocation11 + $0x808] sm:$0xff]
        %v1414 = vld [vmem:[#allocation11 + $0x810] sm:$0xff]
        %v1415 = vld [vmem:[#allocation11 + $0x818] sm:$0xff]
        %v1416 = vld [vmem:[#allocation11 + $0x820] sm:$0xff]
        %v1417 = vld [vmem:[#allocation11 + $0x828] sm:$0xff]
        %v1418 = vld [vmem:[#allocation11 + $0x830] sm:$0xff]
        %v1419 = vld [vmem:[#allocation11 + $0x838] sm:$0xff]
        %v1420 = vld [vmem:[#allocation11 + $0x840] sm:$0xff]
        %v1421 = vld [vmem:[#allocation11 + $0x848] sm:$0xff]
        %v1422 = vld [vmem:[#allocation11 + $0x850] sm:$0xff]
        %v1423 = vld [vmem:[#allocation11 + $0x858] sm:$0xff]
        %v1424 = vld [vmem:[#allocation11 + $0x860] sm:$0xff]
        %v1425 = vld [vmem:[#allocation11 + $0x868] sm:$0xff]
        %v1426 = vld [vmem:[#allocation11 + $0x870] sm:$0xff]
        %v1427 = vld [vmem:[#allocation11 + $0x878] sm:$0xff]
        %v1428 = vld [vmem:[#allocation11 + $0x880] sm:$0xff]
        %v1429 = vld [vmem:[#allocation11 + $0x888] sm:$0xff]
        %v1430 = vld [vmem:[#allocation11 + $0x890] sm:$0xff]
        %v1431 = vld [vmem:[#allocation11 + $0x898] sm:$0xff]
        %v1432 = vld [vmem:[#allocation11 + $0x8a0] sm:$0xff]
        %v1433 = vld [vmem:[#allocation11 + $0x8a8] sm:$0xff]
        %v1434 = vld [vmem:[#allocation11 + $0x8b0] sm:$0xff]
        %v1435 = vld [vmem:[#allocation11 + $0x8b8] sm:$0xff]
        %v1436 = vld [vmem:[#allocation11 + $0x8c0] sm:$0xff]
        %v1437 = vld [vmem:[#allocation11 + $0x8c8] sm:$0xff]
        %v1438 = vld [vmem:[#allocation11 + $0x8d0] sm:$0xff]
        %v1439 = vld [vmem:[#allocation11 + $0x8d8] sm:$0xff]
        %v1440 = vld [vmem:[#allocation11 + $0x8e0] sm:$0xff]
        %v1441 = vld [vmem:[#allocation11 + $0x8e8] sm:$0xff]
        %v1442 = vld [vmem:[#allocation11 + $0x8f0] sm:$0xff]
        %v1443 = vld [vmem:[#allocation11 + $0x8f8] sm:$0xff]
        %v1732 = vunpack.c.l.b16 %v1156
        %v1733 = vunpack.c.h.b16 %v1156
        %v1734 = vunpack.c.l.b16 %v1157
        %v1735 = vunpack.c.h.b16 %v1157
        %v1736 = vunpack.c.l.b16 %v1158
        %v1737 = vunpack.c.h.b16 %v1158
        %v1738 = vunpack.c.l.b16 %v1159
        %v1739 = vunpack.c.h.b16 %v1159
        %v1740 = vunpack.c.l.b16 %v1160
        %v1741 = vunpack.c.h.b16 %v1160
        %v1742 = vunpack.c.l.b16 %v1161
        %v1743 = vunpack.c.h.b16 %v1161
        %v1744 = vunpack.c.l.b16 %v1162
        %v1745 = vunpack.c.h.b16 %v1162
        %v1746 = vunpack.c.l.b16 %v1163
        %v1747 = vunpack.c.h.b16 %v1163
        %v1748 = vunpack.c.l.b16 %v1164
        %v1749 = vunpack.c.h.b16 %v1164
        %v1750 = vunpack.c.l.b16 %v1165
        %v1751 = vunpack.c.h.b16 %v1165
        %v1752 = vunpack.c.l.b16 %v1166
        %v1753 = vunpack.c.h.b16 %v1166
        %v1754 = vunpack.c.l.b16 %v1167
        %v1755 = vunpack.c.h.b16 %v1167
        %v1756 = vunpack.c.l.b16 %v1168
        %v1757 = vunpack.c.h.b16 %v1168
        %v1758 = vunpack.c.l.b16 %v1169
        %v1759 = vunpack.c.h.b16 %v1169
        %v1760 = vunpack.c.l.b16 %v1170
        %v1761 = vunpack.c.h.b16 %v1170
        %v1762 = vunpack.c.l.b16 %v1171
        %v1763 = vunpack.c.h.b16 %v1171
        %v1764 = vunpack.c.l.b16 %v1172
        %v1765 = vunpack.c.h.b16 %v1172
        %v1766 = vunpack.c.l.b16 %v1173
        %v1767 = vunpack.c.h.b16 %v1173
        %v1768 = vunpack.c.l.b16 %v1174
        %v1769 = vunpack.c.h.b16 %v1174
        %v1770 = vunpack.c.l.b16 %v1175
        %v1771 = vunpack.c.h.b16 %v1175
        %v1772 = vunpack.c.l.b16 %v1176
        %v1773 = vunpack.c.h.b16 %v1176
        %v1774 = vunpack.c.l.b16 %v1177
        %v1775 = vunpack.c.h.b16 %v1177
        %v1776 = vunpack.c.l.b16 %v1178
        %v1777 = vunpack.c.h.b16 %v1178
        %v1778 = vunpack.c.l.b16 %v1179
        %v1779 = vunpack.c.h.b16 %v1179
        %v1780 = vunpack.c.l.b16 %v1180
        %v1781 = vunpack.c.h.b16 %v1180
        %v1782 = vunpack.c.l.b16 %v1181
        %v1783 = vunpack.c.h.b16 %v1181
        %v1784 = vunpack.c.l.b16 %v1182
        %v1785 = vunpack.c.h.b16 %v1182
        %v1786 = vunpack.c.l.b16 %v1183
        %v1787 = vunpack.c.h.b16 %v1183
        %v1788 = vunpack.c.l.b16 %v1184
        %v1789 = vunpack.c.h.b16 %v1184
        %v1790 = vunpack.c.l.b16 %v1185
        %v1791 = vunpack.c.h.b16 %v1185
        %v1792 = vunpack.c.l.b16 %v1186
        %v1793 = vunpack.c.h.b16 %v1186
        %v1794 = vunpack.c.l.b16 %v1187
        %v1795 = vunpack.c.h.b16 %v1187
        %v1796 = vunpack.c.l.b16 %v1188
        %v1797 = vunpack.c.h.b16 %v1188
        %v1798 = vunpack.c.l.b16 %v1189
        %v1799 = vunpack.c.h.b16 %v1189
        %v1800 = vunpack.c.l.b16 %v1190
        %v1801 = vunpack.c.h.b16 %v1190
        %v1802 = vunpack.c.l.b16 %v1191
        %v1803 = vunpack.c.h.b16 %v1191
        %v1804 = vunpack.c.l.b16 %v1192
        %v1805 = vunpack.c.h.b16 %v1192
        %v1806 = vunpack.c.l.b16 %v1193
        %v1807 = vunpack.c.h.b16 %v1193
        %v1808 = vunpack.c.l.b16 %v1194
        %v1809 = vunpack.c.h.b16 %v1194
        %v1810 = vunpack.c.l.b16 %v1195
        %v1811 = vunpack.c.h.b16 %v1195
        %v1812 = vunpack.c.l.b16 %v1196
        %v1813 = vunpack.c.h.b16 %v1196
        %v1814 = vunpack.c.l.b16 %v1197
        %v1815 = vunpack.c.h.b16 %v1197
        %v1816 = vunpack.c.l.b16 %v1198
        %v1817 = vunpack.c.h.b16 %v1198
        %v1818 = vunpack.c.l.b16 %v1199
        %v1819 = vunpack.c.h.b16 %v1199
        %v1820 = vunpack.c.l.b16 %v1200
        %v1821 = vunpack.c.h.b16 %v1200
        %v1822 = vunpack.c.l.b16 %v1201
        %v1823 = vunpack.c.h.b16 %v1201
        %v1824 = vunpack.c.l.b16 %v1202
        %v1825 = vunpack.c.h.b16 %v1202
        %v1826 = vunpack.c.l.b16 %v1203
        %v1827 = vunpack.c.h.b16 %v1203
        %v1828 = vunpack.c.l.b16 %v1204
        %v1829 = vunpack.c.h.b16 %v1204
        %v1830 = vunpack.c.l.b16 %v1205
        %v1831 = vunpack.c.h.b16 %v1205
        %v1832 = vunpack.c.l.b16 %v1206
        %v1833 = vunpack.c.h.b16 %v1206
        %v1834 = vunpack.c.l.b16 %v1207
        %v1835 = vunpack.c.h.b16 %v1207
        %v1836 = vunpack.c.l.b16 %v1208
        %v1837 = vunpack.c.h.b16 %v1208
        %v1838 = vunpack.c.l.b16 %v1209
        %v1839 = vunpack.c.h.b16 %v1209
        %v1840 = vunpack.c.l.b16 %v1210
        %v1841 = vunpack.c.h.b16 %v1210
        %v1842 = vunpack.c.l.b16 %v1211
        %v1843 = vunpack.c.h.b16 %v1211
        %v1844 = vunpack.c.l.b16 %v1212
        %v1845 = vunpack.c.h.b16 %v1212
        %v1846 = vunpack.c.l.b16 %v1213
        %v1847 = vunpack.c.h.b16 %v1213
        %v1848 = vunpack.c.l.b16 %v1214
        %v1849 = vunpack.c.h.b16 %v1214
        %v1850 = vunpack.c.l.b16 %v1215
        %v1851 = vunpack.c.h.b16 %v1215
        %v1852 = vunpack.c.l.b16 %v1216
        %v1853 = vunpack.c.h.b16 %v1216
        %v1854 = vunpack.c.l.b16 %v1217
        %v1855 = vunpack.c.h.b16 %v1217
        %v1856 = vunpack.c.l.b16 %v1218
        %v1857 = vunpack.c.h.b16 %v1218
        %v1858 = vunpack.c.l.b16 %v1219
        %v1859 = vunpack.c.h.b16 %v1219
        %v1860 = vunpack.c.l.b16 %v1220
        %v1861 = vunpack.c.h.b16 %v1220
        %v1862 = vunpack.c.l.b16 %v1221
        %v1863 = vunpack.c.h.b16 %v1221
        %v1864 = vunpack.c.l.b16 %v1222
        %v1865 = vunpack.c.h.b16 %v1222
        %v1866 = vunpack.c.l.b16 %v1223
        %v1867 = vunpack.c.h.b16 %v1223
        %v1868 = vunpack.c.l.b16 %v1224
        %v1869 = vunpack.c.h.b16 %v1224
        %v1870 = vunpack.c.l.b16 %v1225
        %v1871 = vunpack.c.h.b16 %v1225
        %v1872 = vunpack.c.l.b16 %v1226
        %v1873 = vunpack.c.h.b16 %v1226
        %v1874 = vunpack.c.l.b16 %v1227
        %v1875 = vunpack.c.h.b16 %v1227
        %v1876 = vunpack.c.l.b16 %v1228
        %v1877 = vunpack.c.h.b16 %v1228
        %v1878 = vunpack.c.l.b16 %v1229
        %v1879 = vunpack.c.h.b16 %v1229
        %v1880 = vunpack.c.l.b16 %v1230
        %v1881 = vunpack.c.h.b16 %v1230
        %v1882 = vunpack.c.l.b16 %v1231
        %v1883 = vunpack.c.h.b16 %v1231
        %v1884 = vunpack.c.l.b16 %v1232
        %v1885 = vunpack.c.h.b16 %v1232
        %v1886 = vunpack.c.l.b16 %v1233
        %v1887 = vunpack.c.h.b16 %v1233
        %v1888 = vunpack.c.l.b16 %v1234
        %v1889 = vunpack.c.h.b16 %v1234
        %v1890 = vunpack.c.l.b16 %v1235
        %v1891 = vunpack.c.h.b16 %v1235
        %v1892 = vunpack.c.l.b16 %v1236
        %v1893 = vunpack.c.h.b16 %v1236
        %v1894 = vunpack.c.l.b16 %v1237
        %v1895 = vunpack.c.h.b16 %v1237
        %v1896 = vunpack.c.l.b16 %v1238
        %v1897 = vunpack.c.h.b16 %v1238
        %v1898 = vunpack.c.l.b16 %v1239
        %v1899 = vunpack.c.h.b16 %v1239
        %v1900 = vunpack.c.l.b16 %v1240
        %v1901 = vunpack.c.h.b16 %v1240
        %v1902 = vunpack.c.l.b16 %v1241
        %v1903 = vunpack.c.h.b16 %v1241
        %v1904 = vunpack.c.l.b16 %v1242
        %v1905 = vunpack.c.h.b16 %v1242
        %v1906 = vunpack.c.l.b16 %v1243
        %v1907 = vunpack.c.h.b16 %v1243
        %v1908 = vunpack.c.l.b16 %v1244
        %v1909 = vunpack.c.h.b16 %v1244
        %v1910 = vunpack.c.l.b16 %v1245
        %v1911 = vunpack.c.h.b16 %v1245
        %v1912 = vunpack.c.l.b16 %v1246
        %v1913 = vunpack.c.h.b16 %v1246
        %v1914 = vunpack.c.l.b16 %v1247
        %v1915 = vunpack.c.h.b16 %v1247
        %v1916 = vunpack.c.l.b16 %v1248
        %v1917 = vunpack.c.h.b16 %v1248
        %v1918 = vunpack.c.l.b16 %v1249
        %v1919 = vunpack.c.h.b16 %v1249
        %v1920 = vunpack.c.l.b16 %v1250
        %v1921 = vunpack.c.h.b16 %v1250
        %v1922 = vunpack.c.l.b16 %v1251
        %v1923 = vunpack.c.h.b16 %v1251
        %v1924 = vunpack.c.l.b16 %v1252
        %v1925 = vunpack.c.h.b16 %v1252
        %v1926 = vunpack.c.l.b16 %v1253
        %v1927 = vunpack.c.h.b16 %v1253
        %v1928 = vunpack.c.l.b16 %v1254
        %v1929 = vunpack.c.h.b16 %v1254
        %v1930 = vunpack.c.l.b16 %v1255
        %v1931 = vunpack.c.h.b16 %v1255
        %v1932 = vunpack.c.l.b16 %v1256
        %v1933 = vunpack.c.h.b16 %v1256
        %v1934 = vunpack.c.l.b16 %v1257
        %v1935 = vunpack.c.h.b16 %v1257
        %v1936 = vunpack.c.l.b16 %v1258
        %v1937 = vunpack.c.h.b16 %v1258
        %v1938 = vunpack.c.l.b16 %v1259
        %v1939 = vunpack.c.h.b16 %v1259
        %v1940 = vunpack.c.l.b16 %v1260
        %v1941 = vunpack.c.h.b16 %v1260
        %v1942 = vunpack.c.l.b16 %v1261
        %v1943 = vunpack.c.h.b16 %v1261
        %v1944 = vunpack.c.l.b16 %v1262
        %v1945 = vunpack.c.h.b16 %v1262
        %v1946 = vunpack.c.l.b16 %v1263
        %v1947 = vunpack.c.h.b16 %v1263
        %v1948 = vunpack.c.l.b16 %v1264
        %v1949 = vunpack.c.h.b16 %v1264
        %v1950 = vunpack.c.l.b16 %v1265
        %v1951 = vunpack.c.h.b16 %v1265
        %v1952 = vunpack.c.l.b16 %v1266
        %v1953 = vunpack.c.h.b16 %v1266
        %v1954 = vunpack.c.l.b16 %v1267
        %v1955 = vunpack.c.h.b16 %v1267
        %v1956 = vunpack.c.l.b16 %v1268
        %v1957 = vunpack.c.h.b16 %v1268
        %v1958 = vunpack.c.l.b16 %v1269
        %v1959 = vunpack.c.h.b16 %v1269
        %v1960 = vunpack.c.l.b16 %v1270
        %v1961 = vunpack.c.h.b16 %v1270
        %v1962 = vunpack.c.l.b16 %v1271
        %v1963 = vunpack.c.h.b16 %v1271
        %v1964 = vunpack.c.l.b16 %v1272
        %v1965 = vunpack.c.h.b16 %v1272
        %v1966 = vunpack.c.l.b16 %v1273
        %v1967 = vunpack.c.h.b16 %v1273
        %v1968 = vunpack.c.l.b16 %v1274
        %v1969 = vunpack.c.h.b16 %v1274
        %v1970 = vunpack.c.l.b16 %v1275
        %v1971 = vunpack.c.h.b16 %v1275
        %v1972 = vunpack.c.l.b16 %v1276
        %v1973 = vunpack.c.h.b16 %v1276
        %v1974 = vunpack.c.l.b16 %v1277
        %v1975 = vunpack.c.h.b16 %v1277
        %v1976 = vunpack.c.l.b16 %v1278
        %v1977 = vunpack.c.h.b16 %v1278
        %v1978 = vunpack.c.l.b16 %v1279
        %v1979 = vunpack.c.h.b16 %v1279
        %v1980 = vunpack.c.l.b16 %v1280
        %v1981 = vunpack.c.h.b16 %v1280
        %v1982 = vunpack.c.l.b16 %v1281
        %v1983 = vunpack.c.h.b16 %v1281
        %v1984 = vunpack.c.l.b16 %v1282
        %v1985 = vunpack.c.h.b16 %v1282
        %v1986 = vunpack.c.l.b16 %v1283
        %v1987 = vunpack.c.h.b16 %v1283
        %v1988 = vunpack.c.l.b16 %v1284
        %v1989 = vunpack.c.h.b16 %v1284
        %v1990 = vunpack.c.l.b16 %v1285
        %v1991 = vunpack.c.h.b16 %v1285
        %v1992 = vunpack.c.l.b16 %v1286
        %v1993 = vunpack.c.h.b16 %v1286
        %v1994 = vunpack.c.l.b16 %v1287
        %v1995 = vunpack.c.h.b16 %v1287
        %v1996 = vunpack.c.l.b16 %v1288
        %v1997 = vunpack.c.h.b16 %v1288
        %v1998 = vunpack.c.l.b16 %v1289
        %v1999 = vunpack.c.h.b16 %v1289
        %v2000 = vunpack.c.l.b16 %v1290
        %v2001 = vunpack.c.h.b16 %v1290
        %v2002 = vunpack.c.l.b16 %v1291
        %v2003 = vunpack.c.h.b16 %v1291
        %v2004 = vunpack.c.l.b16 %v1292
        %v2005 = vunpack.c.h.b16 %v1292
        %v2006 = vunpack.c.l.b16 %v1293
        %v2007 = vunpack.c.h.b16 %v1293
        %v2008 = vunpack.c.l.b16 %v1294
        %v2009 = vunpack.c.h.b16 %v1294
        %v2010 = vunpack.c.l.b16 %v1295
        %v2011 = vunpack.c.h.b16 %v1295
        %v2012 = vunpack.c.l.b16 %v1296
        %v2013 = vunpack.c.h.b16 %v1296
        %v2014 = vunpack.c.l.b16 %v1297
        %v2015 = vunpack.c.h.b16 %v1297
        %v2016 = vunpack.c.l.b16 %v1298
        %v2017 = vunpack.c.h.b16 %v1298
        %v2018 = vunpack.c.l.b16 %v1299
        %v2019 = vunpack.c.h.b16 %v1299
        %v2020 = vunpack.c.l.b16 %v1300
        %v2021 = vunpack.c.h.b16 %v1300
        %v2022 = vunpack.c.l.b16 %v1301
        %v2023 = vunpack.c.h.b16 %v1301
        %v2024 = vunpack.c.l.b16 %v1302
        %v2025 = vunpack.c.h.b16 %v1302
        %v2026 = vunpack.c.l.b16 %v1303
        %v2027 = vunpack.c.h.b16 %v1303
        %v2028 = vunpack.c.l.b16 %v1304
        %v2029 = vunpack.c.h.b16 %v1304
        %v2030 = vunpack.c.l.b16 %v1305
        %v2031 = vunpack.c.h.b16 %v1305
        %v2032 = vunpack.c.l.b16 %v1306
        %v2033 = vunpack.c.h.b16 %v1306
        %v2034 = vunpack.c.l.b16 %v1307
        %v2035 = vunpack.c.h.b16 %v1307
        %v2036 = vunpack.c.l.b16 %v1308
        %v2037 = vunpack.c.h.b16 %v1308
        %v2038 = vunpack.c.l.b16 %v1309
        %v2039 = vunpack.c.h.b16 %v1309
        %v2040 = vunpack.c.l.b16 %v1310
        %v2041 = vunpack.c.h.b16 %v1310
        %v2042 = vunpack.c.l.b16 %v1311
        %v2043 = vunpack.c.h.b16 %v1311
        %v2044 = vunpack.c.l.b16 %v1312
        %v2045 = vunpack.c.h.b16 %v1312
        %v2046 = vunpack.c.l.b16 %v1313
        %v2047 = vunpack.c.h.b16 %v1313
        %v2048 = vunpack.c.l.b16 %v1314
        %v2049 = vunpack.c.h.b16 %v1314
        %v2050 = vunpack.c.l.b16 %v1315
        %v2051 = vunpack.c.h.b16 %v1315
        %v2052 = vunpack.c.l.b16 %v1316
        %v2053 = vunpack.c.h.b16 %v1316
        %v2054 = vunpack.c.l.b16 %v1317
        %v2055 = vunpack.c.h.b16 %v1317
        %v2056 = vunpack.c.l.b16 %v1318
        %v2057 = vunpack.c.h.b16 %v1318
        %v2058 = vunpack.c.l.b16 %v1319
        %v2059 = vunpack.c.h.b16 %v1319
        %v2060 = vunpack.c.l.b16 %v1320
        %v2061 = vunpack.c.h.b16 %v1320
        %v2062 = vunpack.c.l.b16 %v1321
        %v2063 = vunpack.c.h.b16 %v1321
        %v2064 = vunpack.c.l.b16 %v1322
        %v2065 = vunpack.c.h.b16 %v1322
        %v2066 = vunpack.c.l.b16 %v1323
        %v2067 = vunpack.c.h.b16 %v1323
        %v2068 = vunpack.c.l.b16 %v1324
        %v2069 = vunpack.c.h.b16 %v1324
        %v2070 = vunpack.c.l.b16 %v1325
        %v2071 = vunpack.c.h.b16 %v1325
        %v2072 = vunpack.c.l.b16 %v1326
        %v2073 = vunpack.c.h.b16 %v1326
        %v2074 = vunpack.c.l.b16 %v1327
        %v2075 = vunpack.c.h.b16 %v1327
        %v2076 = vunpack.c.l.b16 %v1328
        %v2077 = vunpack.c.h.b16 %v1328
        %v2078 = vunpack.c.l.b16 %v1329
        %v2079 = vunpack.c.h.b16 %v1329
        %v2080 = vunpack.c.l.b16 %v1330
        %v2081 = vunpack.c.h.b16 %v1330
        %v2082 = vunpack.c.l.b16 %v1331
        %v2083 = vunpack.c.h.b16 %v1331
        %v2084 = vunpack.c.l.b16 %v1332
        %v2085 = vunpack.c.h.b16 %v1332
        %v2086 = vunpack.c.l.b16 %v1333
        %v2087 = vunpack.c.h.b16 %v1333
        %v2088 = vunpack.c.l.b16 %v1334
        %v2089 = vunpack.c.h.b16 %v1334
        %v2090 = vunpack.c.l.b16 %v1335
        %v2091 = vunpack.c.h.b16 %v1335
        %v2092 = vunpack.c.l.b16 %v1336
        %v2093 = vunpack.c.h.b16 %v1336
        %v2094 = vunpack.c.l.b16 %v1337
        %v2095 = vunpack.c.h.b16 %v1337
        %v2096 = vunpack.c.l.b16 %v1338
        %v2097 = vunpack.c.h.b16 %v1338
        %v2098 = vunpack.c.l.b16 %v1339
        %v2099 = vunpack.c.h.b16 %v1339
        %v2100 = vunpack.c.l.b16 %v1340
        %v2101 = vunpack.c.h.b16 %v1340
        %v2102 = vunpack.c.l.b16 %v1341
        %v2103 = vunpack.c.h.b16 %v1341
        %v2104 = vunpack.c.l.b16 %v1342
        %v2105 = vunpack.c.h.b16 %v1342
        %v2106 = vunpack.c.l.b16 %v1343
        %v2107 = vunpack.c.h.b16 %v1343
        %v2108 = vunpack.c.l.b16 %v1344
        %v2109 = vunpack.c.h.b16 %v1344
        %v2110 = vunpack.c.l.b16 %v1345
        %v2111 = vunpack.c.h.b16 %v1345
        %v2112 = vunpack.c.l.b16 %v1346
        %v2113 = vunpack.c.h.b16 %v1346
        %v2114 = vunpack.c.l.b16 %v1347
        %v2115 = vunpack.c.h.b16 %v1347
        %v2116 = vunpack.c.l.b16 %v1348
        %v2117 = vunpack.c.h.b16 %v1348
        %v2118 = vunpack.c.l.b16 %v1349
        %v2119 = vunpack.c.h.b16 %v1349
        %v2120 = vunpack.c.l.b16 %v1350
        %v2121 = vunpack.c.h.b16 %v1350
        %v2122 = vunpack.c.l.b16 %v1351
        %v2123 = vunpack.c.h.b16 %v1351
        %v2124 = vunpack.c.l.b16 %v1352
        %v2125 = vunpack.c.h.b16 %v1352
        %v2126 = vunpack.c.l.b16 %v1353
        %v2127 = vunpack.c.h.b16 %v1353
        %v2128 = vunpack.c.l.b16 %v1354
        %v2129 = vunpack.c.h.b16 %v1354
        %v2130 = vunpack.c.l.b16 %v1355
        %v2131 = vunpack.c.h.b16 %v1355
        %v2132 = vunpack.c.l.b16 %v1356
        %v2133 = vunpack.c.h.b16 %v1356
        %v2134 = vunpack.c.l.b16 %v1357
        %v2135 = vunpack.c.h.b16 %v1357
        %v2136 = vunpack.c.l.b16 %v1358
        %v2137 = vunpack.c.h.b16 %v1358
        %v2138 = vunpack.c.l.b16 %v1359
        %v2139 = vunpack.c.h.b16 %v1359
        %v2140 = vunpack.c.l.b16 %v1360
        %v2141 = vunpack.c.h.b16 %v1360
        %v2142 = vunpack.c.l.b16 %v1361
        %v2143 = vunpack.c.h.b16 %v1361
        %v2144 = vunpack.c.l.b16 %v1362
        %v2145 = vunpack.c.h.b16 %v1362
        %v2146 = vunpack.c.l.b16 %v1363
        %v2147 = vunpack.c.h.b16 %v1363
        %v2148 = vunpack.c.l.b16 %v1364
        %v2149 = vunpack.c.h.b16 %v1364
        %v2150 = vunpack.c.l.b16 %v1365
        %v2151 = vunpack.c.h.b16 %v1365
        %v2152 = vunpack.c.l.b16 %v1366
        %v2153 = vunpack.c.h.b16 %v1366
        %v2154 = vunpack.c.l.b16 %v1367
        %v2155 = vunpack.c.h.b16 %v1367
        %v2156 = vunpack.c.l.b16 %v1368
        %v2157 = vunpack.c.h.b16 %v1368
        %v2158 = vunpack.c.l.b16 %v1369
        %v2159 = vunpack.c.h.b16 %v1369
        %v2160 = vunpack.c.l.b16 %v1370
        %v2161 = vunpack.c.h.b16 %v1370
        %v2162 = vunpack.c.l.b16 %v1371
        %v2163 = vunpack.c.h.b16 %v1371
        %v2164 = vunpack.c.l.b16 %v1372
        %v2165 = vunpack.c.h.b16 %v1372
        %v2166 = vunpack.c.l.b16 %v1373
        %v2167 = vunpack.c.h.b16 %v1373
        %v2168 = vunpack.c.l.b16 %v1374
        %v2169 = vunpack.c.h.b16 %v1374
        %v2170 = vunpack.c.l.b16 %v1375
        %v2171 = vunpack.c.h.b16 %v1375
        %v2172 = vunpack.c.l.b16 %v1376
        %v2173 = vunpack.c.h.b16 %v1376
        %v2174 = vunpack.c.l.b16 %v1377
        %v2175 = vunpack.c.h.b16 %v1377
        %v2176 = vunpack.c.l.b16 %v1378
        %v2177 = vunpack.c.h.b16 %v1378
        %v2178 = vunpack.c.l.b16 %v1379
        %v2179 = vunpack.c.h.b16 %v1379
        %v2180 = vunpack.c.l.b16 %v1380
        %v2181 = vunpack.c.h.b16 %v1380
        %v2182 = vunpack.c.l.b16 %v1381
        %v2183 = vunpack.c.h.b16 %v1381
        %v2184 = vunpack.c.l.b16 %v1382
        %v2185 = vunpack.c.h.b16 %v1382
        %v2186 = vunpack.c.l.b16 %v1383
        %v2187 = vunpack.c.h.b16 %v1383
        %v2188 = vunpack.c.l.b16 %v1384
        %v2189 = vunpack.c.h.b16 %v1384
        %v2190 = vunpack.c.l.b16 %v1385
        %v2191 = vunpack.c.h.b16 %v1385
        %v2192 = vunpack.c.l.b16 %v1386
        %v2193 = vunpack.c.h.b16 %v1386
        %v2194 = vunpack.c.l.b16 %v1387
        %v2195 = vunpack.c.h.b16 %v1387
        %v2196 = vunpack.c.l.b16 %v1388
        %v2197 = vunpack.c.h.b16 %v1388
        %v2198 = vunpack.c.l.b16 %v1389
        %v2199 = vunpack.c.h.b16 %v1389
        %v2200 = vunpack.c.l.b16 %v1390
        %v2201 = vunpack.c.h.b16 %v1390
        %v2202 = vunpack.c.l.b16 %v1391
        %v2203 = vunpack.c.h.b16 %v1391
        %v2204 = vunpack.c.l.b16 %v1392
        %v2205 = vunpack.c.h.b16 %v1392
        %v2206 = vunpack.c.l.b16 %v1393
        %v2207 = vunpack.c.h.b16 %v1393
        %v2208 = vunpack.c.l.b16 %v1394
        %v2209 = vunpack.c.h.b16 %v1394
        %v2210 = vunpack.c.l.b16 %v1395
        %v2211 = vunpack.c.h.b16 %v1395
        %v2212 = vunpack.c.l.b16 %v1396
        %v2213 = vunpack.c.h.b16 %v1396
        %v2214 = vunpack.c.l.b16 %v1397
        %v2215 = vunpack.c.h.b16 %v1397
        %v2216 = vunpack.c.l.b16 %v1398
        %v2217 = vunpack.c.h.b16 %v1398
        %v2218 = vunpack.c.l.b16 %v1399
        %v2219 = vunpack.c.h.b16 %v1399
        %v2220 = vunpack.c.l.b16 %v1400
        %v2221 = vunpack.c.h.b16 %v1400
        %v2222 = vunpack.c.l.b16 %v1401
        %v2223 = vunpack.c.h.b16 %v1401
        %v2224 = vunpack.c.l.b16 %v1402
        %v2225 = vunpack.c.h.b16 %v1402
        %v2226 = vunpack.c.l.b16 %v1403
        %v2227 = vunpack.c.h.b16 %v1403
        %v2228 = vunpack.c.l.b16 %v1404
        %v2229 = vunpack.c.h.b16 %v1404
        %v2230 = vunpack.c.l.b16 %v1405
        %v2231 = vunpack.c.h.b16 %v1405
        %v2232 = vunpack.c.l.b16 %v1406
        %v2233 = vunpack.c.h.b16 %v1406
        %v2234 = vunpack.c.l.b16 %v1407
        %v2235 = vunpack.c.h.b16 %v1407
        %v2236 = vunpack.c.l.b16 %v1408
        %v2237 = vunpack.c.h.b16 %v1408
        %v2238 = vunpack.c.l.b16 %v1409
        %v2239 = vunpack.c.h.b16 %v1409
        %v2240 = vunpack.c.l.b16 %v1410
        %v2241 = vunpack.c.h.b16 %v1410
        %v2242 = vunpack.c.l.b16 %v1411
        %v2243 = vunpack.c.h.b16 %v1411
        %v2244 = vunpack.c.l.b16 %v1412
        %v2245 = vunpack.c.h.b16 %v1412
        %v2246 = vunpack.c.l.b16 %v1413
        %v2247 = vunpack.c.h.b16 %v1413
        %v2248 = vunpack.c.l.b16 %v1414
        %v2249 = vunpack.c.h.b16 %v1414
        %v2250 = vunpack.c.l.b16 %v1415
        %v2251 = vunpack.c.h.b16 %v1415
        %v2252 = vunpack.c.l.b16 %v1416
        %v2253 = vunpack.c.h.b16 %v1416
        %v2254 = vunpack.c.l.b16 %v1417
        %v2255 = vunpack.c.h.b16 %v1417
        %v2256 = vunpack.c.l.b16 %v1418
        %v2257 = vunpack.c.h.b16 %v1418
        %v2258 = vunpack.c.l.b16 %v1419
        %v2259 = vunpack.c.h.b16 %v1419
        %v2260 = vunpack.c.l.b16 %v1420
        %v2261 = vunpack.c.h.b16 %v1420
        %v2262 = vunpack.c.l.b16 %v1421
        %v2263 = vunpack.c.h.b16 %v1421
        %v2264 = vunpack.c.l.b16 %v1422
        %v2265 = vunpack.c.h.b16 %v1422
        %v2266 = vunpack.c.l.b16 %v1423
        %v2267 = vunpack.c.h.b16 %v1423
        %v2268 = vunpack.c.l.b16 %v1424
        %v2269 = vunpack.c.h.b16 %v1424
        %v2270 = vunpack.c.l.b16 %v1425
        %v2271 = vunpack.c.h.b16 %v1425
        %v2272 = vunpack.c.l.b16 %v1426
        %v2273 = vunpack.c.h.b16 %v1426
        %v2274 = vunpack.c.l.b16 %v1427
        %v2275 = vunpack.c.h.b16 %v1427
        %v2276 = vunpack.c.l.b16 %v1428
        %v2277 = vunpack.c.h.b16 %v1428
        %v2278 = vunpack.c.l.b16 %v1429
        %v2279 = vunpack.c.h.b16 %v1429
        %v2280 = vunpack.c.l.b16 %v1430
        %v2281 = vunpack.c.h.b16 %v1430
        %v2282 = vunpack.c.l.b16 %v1431
        %v2283 = vunpack.c.h.b16 %v1431
        %v2284 = vunpack.c.l.b16 %v1432
        %v2285 = vunpack.c.h.b16 %v1432
        %v2286 = vunpack.c.l.b16 %v1433
        %v2287 = vunpack.c.h.b16 %v1433
        %v2288 = vunpack.c.l.b16 %v1434
        %v2289 = vunpack.c.h.b16 %v1434
        %v2290 = vunpack.c.l.b16 %v1435
        %v2291 = vunpack.c.h.b16 %v1435
        %v2292 = vunpack.c.l.b16 %v1436
        %v2293 = vunpack.c.h.b16 %v1436
        %v2294 = vunpack.c.l.b16 %v1437
        %v2295 = vunpack.c.h.b16 %v1437
        %v2296 = vunpack.c.l.b16 %v1438
        %v2297 = vunpack.c.h.b16 %v1438
        %v2298 = vunpack.c.l.b16 %v1439
        %v2299 = vunpack.c.h.b16 %v1439
        %v2300 = vunpack.c.l.b16 %v1440
        %v2301 = vunpack.c.h.b16 %v1440
        %v2302 = vunpack.c.l.b16 %v1441
        %v2303 = vunpack.c.h.b16 %v1441
        %v2304 = vunpack.c.l.b16 %v1442
        %v2305 = vunpack.c.h.b16 %v1442
        %v2306 = vunpack.c.l.b16 %v1443
        %v2307 = vunpack.c.h.b16 %v1443
        %v2308 = vpack.c.b16 %v1734, %v1732
        %v2309 = vpack.c.b16 %v1735, %v1733
        %v2310 = vpack.c.b16 %v1738, %v1736
        %v2311 = vpack.c.b16 %v1739, %v1737
        %v2312 = vpack.c.b16 %v1742, %v1740
        %v2313 = vpack.c.b16 %v1743, %v1741
        %v2314 = vpack.c.b16 %v1746, %v1744
        %v2315 = vpack.c.b16 %v1747, %v1745
        %v2316 = vpack.c.b16 %v1750, %v1748
        %v2317 = vpack.c.b16 %v1751, %v1749
        %v2318 = vpack.c.b16 %v1754, %v1752
        %v2319 = vpack.c.b16 %v1755, %v1753
        %v2320 = vpack.c.b16 %v1758, %v1756
        %v2321 = vpack.c.b16 %v1759, %v1757
        %v2322 = vpack.c.b16 %v1762, %v1760
        %v2323 = vpack.c.b16 %v1763, %v1761
        %v2324 = vpack.c.b16 %v1766, %v1764
        %v2325 = vpack.c.b16 %v1767, %v1765
        %v2326 = vpack.c.b16 %v1770, %v1768
        %v2327 = vpack.c.b16 %v1771, %v1769
        %v2328 = vpack.c.b16 %v1774, %v1772
        %v2329 = vpack.c.b16 %v1775, %v1773
        %v2330 = vpack.c.b16 %v1778, %v1776
        %v2331 = vpack.c.b16 %v1779, %v1777
        %v2332 = vpack.c.b16 %v1782, %v1780
        %v2333 = vpack.c.b16 %v1783, %v1781
        %v2334 = vpack.c.b16 %v1786, %v1784
        %v2335 = vpack.c.b16 %v1787, %v1785
        %v2336 = vpack.c.b16 %v1790, %v1788
        %v2337 = vpack.c.b16 %v1791, %v1789
        %v2338 = vpack.c.b16 %v1794, %v1792
        %v2339 = vpack.c.b16 %v1795, %v1793
        %v2340 = vpack.c.b16 %v1798, %v1796
        %v2341 = vpack.c.b16 %v1799, %v1797
        %v2342 = vpack.c.b16 %v1802, %v1800
        %v2343 = vpack.c.b16 %v1803, %v1801
        %v2344 = vpack.c.b16 %v1806, %v1804
        %v2345 = vpack.c.b16 %v1807, %v1805
        %v2346 = vpack.c.b16 %v1810, %v1808
        %v2347 = vpack.c.b16 %v1811, %v1809
        %v2348 = vpack.c.b16 %v1814, %v1812
        %v2349 = vpack.c.b16 %v1815, %v1813
        %v2350 = vpack.c.b16 %v1818, %v1816
        %v2351 = vpack.c.b16 %v1819, %v1817
        %v2352 = vpack.c.b16 %v1822, %v1820
        %v2353 = vpack.c.b16 %v1823, %v1821
        %v2354 = vpack.c.b16 %v1826, %v1824
        %v2355 = vpack.c.b16 %v1827, %v1825
        %v2356 = vpack.c.b16 %v1830, %v1828
        %v2357 = vpack.c.b16 %v1831, %v1829
        %v2358 = vpack.c.b16 %v1834, %v1832
        %v2359 = vpack.c.b16 %v1835, %v1833
        %v2360 = vpack.c.b16 %v1838, %v1836
        %v2361 = vpack.c.b16 %v1839, %v1837
        %v2362 = vpack.c.b16 %v1842, %v1840
        %v2363 = vpack.c.b16 %v1843, %v1841
        %v2364 = vpack.c.b16 %v1846, %v1844
        %v2365 = vpack.c.b16 %v1847, %v1845
        %v2366 = vpack.c.b16 %v1850, %v1848
        %v2367 = vpack.c.b16 %v1851, %v1849
        %v2368 = vpack.c.b16 %v1854, %v1852
        %v2369 = vpack.c.b16 %v1855, %v1853
        %v2370 = vpack.c.b16 %v1858, %v1856
        %v2371 = vpack.c.b16 %v1859, %v1857
        %v2372 = vpack.c.b16 %v1862, %v1860
        %v2373 = vpack.c.b16 %v1863, %v1861
        %v2374 = vpack.c.b16 %v1866, %v1864
        %v2375 = vpack.c.b16 %v1867, %v1865
        %v2376 = vpack.c.b16 %v1870, %v1868
        %v2377 = vpack.c.b16 %v1871, %v1869
        %v2378 = vpack.c.b16 %v1874, %v1872
        %v2379 = vpack.c.b16 %v1875, %v1873
        %v2380 = vpack.c.b16 %v1878, %v1876
        %v2381 = vpack.c.b16 %v1879, %v1877
        %v2382 = vpack.c.b16 %v1882, %v1880
        %v2383 = vpack.c.b16 %v1883, %v1881
        %v2384 = vpack.c.b16 %v1886, %v1884
        %v2385 = vpack.c.b16 %v1887, %v1885
        %v2386 = vpack.c.b16 %v1890, %v1888
        %v2387 = vpack.c.b16 %v1891, %v1889
        %v2388 = vpack.c.b16 %v1894, %v1892
        %v2389 = vpack.c.b16 %v1895, %v1893
        %v2390 = vpack.c.b16 %v1898, %v1896
        %v2391 = vpack.c.b16 %v1899, %v1897
        %v2392 = vpack.c.b16 %v1902, %v1900
        %v2393 = vpack.c.b16 %v1903, %v1901
        %v2394 = vpack.c.b16 %v1906, %v1904
        %v2395 = vpack.c.b16 %v1907, %v1905
        %v2396 = vpack.c.b16 %v1910, %v1908
        %v2397 = vpack.c.b16 %v1911, %v1909
        %v2398 = vpack.c.b16 %v1914, %v1912
        %v2399 = vpack.c.b16 %v1915, %v1913
        %v2400 = vpack.c.b16 %v1918, %v1916
        %v2401 = vpack.c.b16 %v1919, %v1917
        %v2402 = vpack.c.b16 %v1922, %v1920
        %v2403 = vpack.c.b16 %v1923, %v1921
        %v2404 = vpack.c.b16 %v1926, %v1924
        %v2405 = vpack.c.b16 %v1927, %v1925
        %v2406 = vpack.c.b16 %v1930, %v1928
        %v2407 = vpack.c.b16 %v1931, %v1929
        %v2408 = vpack.c.b16 %v1934, %v1932
        %v2409 = vpack.c.b16 %v1935, %v1933
        %v2410 = vpack.c.b16 %v1938, %v1936
        %v2411 = vpack.c.b16 %v1939, %v1937
        %v2412 = vpack.c.b16 %v1942, %v1940
        %v2413 = vpack.c.b16 %v1943, %v1941
        %v2414 = vpack.c.b16 %v1946, %v1944
        %v2415 = vpack.c.b16 %v1947, %v1945
        %v2416 = vpack.c.b16 %v1950, %v1948
        %v2417 = vpack.c.b16 %v1951, %v1949
        %v2418 = vpack.c.b16 %v1954, %v1952
        %v2419 = vpack.c.b16 %v1955, %v1953
        %v2420 = vpack.c.b16 %v1958, %v1956
        %v2421 = vpack.c.b16 %v1959, %v1957
        %v2422 = vpack.c.b16 %v1962, %v1960
        %v2423 = vpack.c.b16 %v1963, %v1961
        %v2424 = vpack.c.b16 %v1966, %v1964
        %v2425 = vpack.c.b16 %v1967, %v1965
        %v2426 = vpack.c.b16 %v1970, %v1968
        %v2427 = vpack.c.b16 %v1971, %v1969
        %v2428 = vpack.c.b16 %v1974, %v1972
        %v2429 = vpack.c.b16 %v1975, %v1973
        %v2430 = vpack.c.b16 %v1978, %v1976
        %v2431 = vpack.c.b16 %v1979, %v1977
        %v2432 = vpack.c.b16 %v1982, %v1980
        %v2433 = vpack.c.b16 %v1983, %v1981
        %v2434 = vpack.c.b16 %v1986, %v1984
        %v2435 = vpack.c.b16 %v1987, %v1985
        %v2436 = vpack.c.b16 %v1990, %v1988
        %v2437 = vpack.c.b16 %v1991, %v1989
        %v2438 = vpack.c.b16 %v1994, %v1992
        %v2439 = vpack.c.b16 %v1995, %v1993
        %v2440 = vpack.c.b16 %v1998, %v1996
        %v2441 = vpack.c.b16 %v1999, %v1997
        %v2442 = vpack.c.b16 %v2002, %v2000
        %v2443 = vpack.c.b16 %v2003, %v2001
        %v2444 = vpack.c.b16 %v2006, %v2004
        %v2445 = vpack.c.b16 %v2007, %v2005
        %v2446 = vpack.c.b16 %v2010, %v2008
        %v2447 = vpack.c.b16 %v2011, %v2009
        %v2448 = vpack.c.b16 %v2014, %v2012
        %v2449 = vpack.c.b16 %v2015, %v2013
        %v2450 = vpack.c.b16 %v2018, %v2016
        %v2451 = vpack.c.b16 %v2019, %v2017
        %v2452 = vpack.c.b16 %v2022, %v2020
        %v2453 = vpack.c.b16 %v2023, %v2021
        %v2454 = vpack.c.b16 %v2026, %v2024
        %v2455 = vpack.c.b16 %v2027, %v2025
        %v2456 = vpack.c.b16 %v2030, %v2028
        %v2457 = vpack.c.b16 %v2031, %v2029
        %v2458 = vpack.c.b16 %v2034, %v2032
        %v2459 = vpack.c.b16 %v2035, %v2033
        %v2460 = vpack.c.b16 %v2038, %v2036
        %v2461 = vpack.c.b16 %v2039, %v2037
        %v2462 = vpack.c.b16 %v2042, %v2040
        %v2463 = vpack.c.b16 %v2043, %v2041
        %v2464 = vpack.c.b16 %v2046, %v2044
        %v2465 = vpack.c.b16 %v2047, %v2045
        %v2466 = vpack.c.b16 %v2050, %v2048
        %v2467 = vpack.c.b16 %v2051, %v2049
        %v2468 = vpack.c.b16 %v2054, %v2052
        %v2469 = vpack.c.b16 %v2055, %v2053
        %v2470 = vpack.c.b16 %v2058, %v2056
        %v2471 = vpack.c.b16 %v2059, %v2057
        %v2472 = vpack.c.b16 %v2062, %v2060
        %v2473 = vpack.c.b16 %v2063, %v2061
        %v2474 = vpack.c.b16 %v2066, %v2064
        %v2475 = vpack.c.b16 %v2067, %v2065
        %v2476 = vpack.c.b16 %v2070, %v2068
        %v2477 = vpack.c.b16 %v2071, %v2069
        %v2478 = vpack.c.b16 %v2074, %v2072
        %v2479 = vpack.c.b16 %v2075, %v2073
        %v2480 = vpack.c.b16 %v2078, %v2076
        %v2481 = vpack.c.b16 %v2079, %v2077
        %v2482 = vpack.c.b16 %v2082, %v2080
        %v2483 = vpack.c.b16 %v2083, %v2081
        %v2484 = vpack.c.b16 %v2086, %v2084
        %v2485 = vpack.c.b16 %v2087, %v2085
        %v2486 = vpack.c.b16 %v2090, %v2088
        %v2487 = vpack.c.b16 %v2091, %v2089
        %v2488 = vpack.c.b16 %v2094, %v2092
        %v2489 = vpack.c.b16 %v2095, %v2093
        %v2490 = vpack.c.b16 %v2098, %v2096
        %v2491 = vpack.c.b16 %v2099, %v2097
        %v2492 = vpack.c.b16 %v2102, %v2100
        %v2493 = vpack.c.b16 %v2103, %v2101
        %v2494 = vpack.c.b16 %v2106, %v2104
        %v2495 = vpack.c.b16 %v2107, %v2105
        %v2496 = vpack.c.b16 %v2110, %v2108
        %v2497 = vpack.c.b16 %v2111, %v2109
        %v2498 = vpack.c.b16 %v2114, %v2112
        %v2499 = vpack.c.b16 %v2115, %v2113
        %v2500 = vpack.c.b16 %v2118, %v2116
        %v2501 = vpack.c.b16 %v2119, %v2117
        %v2502 = vpack.c.b16 %v2122, %v2120
        %v2503 = vpack.c.b16 %v2123, %v2121
        %v2504 = vpack.c.b16 %v2126, %v2124
        %v2505 = vpack.c.b16 %v2127, %v2125
        %v2506 = vpack.c.b16 %v2130, %v2128
        %v2507 = vpack.c.b16 %v2131, %v2129
        %v2508 = vpack.c.b16 %v2134, %v2132
        %v2509 = vpack.c.b16 %v2135, %v2133
        %v2510 = vpack.c.b16 %v2138, %v2136
        %v2511 = vpack.c.b16 %v2139, %v2137
        %v2512 = vpack.c.b16 %v2142, %v2140
        %v2513 = vpack.c.b16 %v2143, %v2141
        %v2514 = vpack.c.b16 %v2146, %v2144
        %v2515 = vpack.c.b16 %v2147, %v2145
        %v2516 = vpack.c.b16 %v2150, %v2148
        %v2517 = vpack.c.b16 %v2151, %v2149
        %v2518 = vpack.c.b16 %v2154, %v2152
        %v2519 = vpack.c.b16 %v2155, %v2153
        %v2520 = vpack.c.b16 %v2158, %v2156
        %v2521 = vpack.c.b16 %v2159, %v2157
        %v2522 = vpack.c.b16 %v2162, %v2160
        %v2523 = vpack.c.b16 %v2163, %v2161
        %v2524 = vpack.c.b16 %v2166, %v2164
        %v2525 = vpack.c.b16 %v2167, %v2165
        %v2526 = vpack.c.b16 %v2170, %v2168
        %v2527 = vpack.c.b16 %v2171, %v2169
        %v2528 = vpack.c.b16 %v2174, %v2172
        %v2529 = vpack.c.b16 %v2175, %v2173
        %v2530 = vpack.c.b16 %v2178, %v2176
        %v2531 = vpack.c.b16 %v2179, %v2177
        %v2532 = vpack.c.b16 %v2182, %v2180
        %v2533 = vpack.c.b16 %v2183, %v2181
        %v2534 = vpack.c.b16 %v2186, %v2184
        %v2535 = vpack.c.b16 %v2187, %v2185
        %v2536 = vpack.c.b16 %v2190, %v2188
        %v2537 = vpack.c.b16 %v2191, %v2189
        %v2538 = vpack.c.b16 %v2194, %v2192
        %v2539 = vpack.c.b16 %v2195, %v2193
        %v2540 = vpack.c.b16 %v2198, %v2196
        %v2541 = vpack.c.b16 %v2199, %v2197
        %v2542 = vpack.c.b16 %v2202, %v2200
        %v2543 = vpack.c.b16 %v2203, %v2201
        %v2544 = vpack.c.b16 %v2206, %v2204
        %v2545 = vpack.c.b16 %v2207, %v2205
        %v2546 = vpack.c.b16 %v2210, %v2208
        %v2547 = vpack.c.b16 %v2211, %v2209
        %v2548 = vpack.c.b16 %v2214, %v2212
        %v2549 = vpack.c.b16 %v2215, %v2213
        %v2550 = vpack.c.b16 %v2218, %v2216
        %v2551 = vpack.c.b16 %v2219, %v2217
        %v2552 = vpack.c.b16 %v2222, %v2220
        %v2553 = vpack.c.b16 %v2223, %v2221
        %v2554 = vpack.c.b16 %v2226, %v2224
        %v2555 = vpack.c.b16 %v2227, %v2225
        %v2556 = vpack.c.b16 %v2230, %v2228
        %v2557 = vpack.c.b16 %v2231, %v2229
        %v2558 = vpack.c.b16 %v2234, %v2232
        %v2559 = vpack.c.b16 %v2235, %v2233
        %v2560 = vpack.c.b16 %v2238, %v2236
        %v2561 = vpack.c.b16 %v2239, %v2237
        %v2562 = vpack.c.b16 %v2242, %v2240
        %v2563 = vpack.c.b16 %v2243, %v2241
        %v2564 = vpack.c.b16 %v2246, %v2244
        %v2565 = vpack.c.b16 %v2247, %v2245
        %v2566 = vpack.c.b16 %v2250, %v2248
        %v2567 = vpack.c.b16 %v2251, %v2249
        %v2568 = vpack.c.b16 %v2254, %v2252
        %v2569 = vpack.c.b16 %v2255, %v2253
        %v2570 = vpack.c.b16 %v2258, %v2256
        %v2571 = vpack.c.b16 %v2259, %v2257
        %v2572 = vpack.c.b16 %v2262, %v2260
        %v2573 = vpack.c.b16 %v2263, %v2261
        %v2574 = vpack.c.b16 %v2266, %v2264
        %v2575 = vpack.c.b16 %v2267, %v2265
        %v2576 = vpack.c.b16 %v2270, %v2268
        %v2577 = vpack.c.b16 %v2271, %v2269
        %v2578 = vpack.c.b16 %v2274, %v2272
        %v2579 = vpack.c.b16 %v2275, %v2273
        %v2580 = vpack.c.b16 %v2278, %v2276
        %v2581 = vpack.c.b16 %v2279, %v2277
        %v2582 = vpack.c.b16 %v2282, %v2280
        %v2583 = vpack.c.b16 %v2283, %v2281
        %v2584 = vpack.c.b16 %v2286, %v2284
        %v2585 = vpack.c.b16 %v2287, %v2285
        %v2586 = vpack.c.b16 %v2290, %v2288
        %v2587 = vpack.c.b16 %v2291, %v2289
        %v2588 = vpack.c.b16 %v2294, %v2292
        %v2589 = vpack.c.b16 %v2295, %v2293
        %v2590 = vpack.c.b16 %v2298, %v2296
        %v2591 = vpack.c.b16 %v2299, %v2297
        %v2592 = vpack.c.b16 %v2302, %v2300
        %v2593 = vpack.c.b16 %v2303, %v2301
        %v2594 = vpack.c.b16 %v2306, %v2304
        %v2595 = vpack.c.b16 %v2307, %v2305
        %2884 = vmatprep.subr.bf16.mxu0 %v2309
        %2885 = vmatpush1.bf16.msra.mxu0 %v2308
        %2886 = vmatprep.subr.bf16.mxu0 %v2311
        %2887 = vmatpush1.bf16.msra.mxu0 %v2310
        %2888 = vmatprep.subr.bf16.mxu0 %v2313
        %2889 = vmatpush1.bf16.msra.mxu0 %v2312
        %2890 = vmatprep.subr.bf16.mxu0 %v2315
        %2891 = vmatpush1.bf16.msra.mxu0 %v2314
        %2892 = vmatprep.subr.bf16.mxu0 %v2317
        %2893 = vmatpush1.bf16.msra.mxu0 %v2316
        %2894 = vmatprep.subr.bf16.mxu0 %v2319
        %2895 = vmatpush1.bf16.msra.mxu0 %v2318
        %2896 = vmatprep.subr.bf16.mxu0 %v2321
        %2897 = vmatpush1.bf16.msra.mxu0 %v2320
        %2898 = vmatprep.subr.bf16.mxu0 %v2323
        %2899 = vmatpush1.bf16.msra.mxu0 %v2322
        %2900 = vmatprep.subr.bf16.mxu0 %v2325
        %2901 = vmatpush1.bf16.msra.mxu0 %v2324
        %2902 = vmatprep.subr.bf16.mxu0 %v2327
        %2903 = vmatpush1.bf16.msra.mxu0 %v2326
        %2904 = vmatprep.subr.bf16.mxu0 %v2329
        %2905 = vmatpush1.bf16.msra.mxu0 %v2328
        %2906 = vmatprep.subr.bf16.mxu0 %v2331
        %2907 = vmatpush1.bf16.msra.mxu0 %v2330
        %2908 = vmatprep.subr.bf16.mxu0 %v2333
        %2909 = vmatpush1.bf16.msra.mxu0 %v2332
        %2910 = vmatprep.subr.bf16.mxu0 %v2335
        %2911 = vmatpush1.bf16.msra.mxu0 %v2334
        %2912 = vmatprep.subr.bf16.mxu0 %v2337
        %2913 = vmatpush1.bf16.msra.mxu0 %v2336
        %2914 = vmatprep.subr.bf16.mxu0 %v2339
        %2915 = vmatpush1.bf16.msra.mxu0 %v2338
        %2916 = vmatprep.mubr.bf16.mxu0 %v1139
        %2917 = vmatmul.mubr.bf16.gmra.mrb[0].mxu0 %v1138
        %v2918 = vpop.f32.mrb[0].mxu0
        %v2919 = vadd.f32 0.0, %v2918
        %v2920 = vpop.f32.mrb[0].mxu0
        %v2921 = vadd.f32 0.0, %v2920
        %v2922 = vpop.f32.mrb[0].mxu0
        %v2923 = vadd.f32 0.0, %v2922
        %v2924 = vpop.f32.mrb[0].mxu0
        %v2925 = vadd.f32 0.0, %v2924
        %2926 = vdwg.mxu0
        %2927 = vmatprep.subr.bf16.mxu0 %v2341
        %2928 = vmatpush1.bf16.msra.mxu0 %v2340
        %2929 = vmatprep.subr.bf16.mxu0 %v2343
        %2930 = vmatpush1.bf16.msra.mxu0 %v2342
        %2931 = vmatprep.subr.bf16.mxu0 %v2345
        %2932 = vmatpush1.bf16.msra.mxu0 %v2344
        %2933 = vmatprep.subr.bf16.mxu0 %v2347
        %2934 = vmatpush1.bf16.msra.mxu0 %v2346
        %2935 = vmatprep.subr.bf16.mxu0 %v2349
        %2936 = vmatpush1.bf16.msra.mxu0 %v2348
        %2937 = vmatprep.subr.bf16.mxu0 %v2351
        %2938 = vmatpush1.bf16.msra.mxu0 %v2350
        %2939 = vmatprep.subr.bf16.mxu0 %v2353
        %2940 = vmatpush1.bf16.msra.mxu0 %v2352
        %2941 = vmatprep.subr.bf16.mxu0 %v2355
        %2942 = vmatpush1.bf16.msra.mxu0 %v2354
        %2943 = vmatprep.subr.bf16.mxu0 %v2357
        %2944 = vmatpush1.bf16.msra.mxu0 %v2356
        %2945 = vmatprep.subr.bf16.mxu0 %v2359
        %2946 = vmatpush1.bf16.msra.mxu0 %v2358
        %2947 = vmatprep.subr.bf16.mxu0 %v2361
        %2948 = vmatpush1.bf16.msra.mxu0 %v2360
        %2949 = vmatprep.subr.bf16.mxu0 %v2363
        %2950 = vmatpush1.bf16.msra.mxu0 %v2362
        %2951 = vmatprep.subr.bf16.mxu0 %v2365
        %2952 = vmatpush1.bf16.msra.mxu0 %v2364
        %2953 = vmatprep.subr.bf16.mxu0 %v2367
        %2954 = vmatpush1.bf16.msra.mxu0 %v2366
        %2955 = vmatprep.subr.bf16.mxu0 %v2369
        %2956 = vmatpush1.bf16.msra.mxu0 %v2368
        %2957 = vmatprep.subr.bf16.mxu0 %v2371
        %2958 = vmatpush1.bf16.msra.mxu0 %v2370
        %2959 = vmatprep.mubr.bf16.mxu0 %v1141
        %2960 = vmatmul.mubr.bf16.gmra.mrb[0].mxu0 %v1140
        %v2961 = vpop.f32.mrb[0].mxu0
        %v2962 = vadd.f32 %v2919, %v2961
        %v2963 = vpop.f32.mrb[0].mxu0
        %v2964 = vadd.f32 %v2921, %v2963
        %v2965 = vpop.f32.mrb[0].mxu0
        %v2966 = vadd.f32 %v2923, %v2965
        %v2967 = vpop.f32.mrb[0].mxu0
        %v2968 = vadd.f32 %v2925, %v2967
        %2969 = vdwg.mxu0
        %2970 = vmatprep.subr.bf16.mxu0 %v2373
        %2971 = vmatpush1.bf16.msra.mxu0 %v2372
        %2972 = vmatprep.subr.bf16.mxu0 %v2375
        %2973 = vmatpush1.bf16.msra.mxu0 %v2374
        %2974 = vmatprep.subr.bf16.mxu0 %v2377
        %2975 = vmatpush1.bf16.msra.mxu0 %v2376
        %2976 = vmatprep.subr.bf16.mxu0 %v2379
        %2977 = vmatpush1.bf16.msra.mxu0 %v2378
        %2978 = vmatprep.subr.bf16.mxu0 %v2381
        %2979 = vmatpush1.bf16.msra.mxu0 %v2380
        %2980 = vmatprep.subr.bf16.mxu0 %v2383
        %2981 = vmatpush1.bf16.msra.mxu0 %v2382
        %2982 = vmatprep.subr.bf16.mxu0 %v2385
        %2983 = vmatpush1.bf16.msra.mxu0 %v2384
        %2984 = vmatprep.subr.bf16.mxu0 %v2387
        %2985 = vmatpush1.bf16.msra.mxu0 %v2386
        %2986 = vmatprep.subr.bf16.mxu0 %v2389
        %2987 = vmatpush1.bf16.msra.mxu0 %v2388
        %2988 = vmatprep.subr.bf16.mxu0 %v2391
        %2989 = vmatpush1.bf16.msra.mxu0 %v2390
        %2990 = vmatprep.subr.bf16.mxu0 %v2393
        %2991 = vmatpush1.bf16.msra.mxu0 %v2392
        %2992 = vmatprep.subr.bf16.mxu0 %v2395
        %2993 = vmatpush1.bf16.msra.mxu0 %v2394
        %2994 = vmatprep.subr.bf16.mxu0 %v2397
        %2995 = vmatpush1.bf16.msra.mxu0 %v2396
        %2996 = vmatprep.subr.bf16.mxu0 %v2399
        %2997 = vmatpush1.bf16.msra.mxu0 %v2398
        %2998 = vmatprep.subr.bf16.mxu0 %v2401
        %2999 = vmatpush1.bf16.msra.mxu0 %v2400
        %3000 = vmatprep.subr.bf16.mxu0 %v2403
        %3001 = vmatpush1.bf16.msra.mxu0 %v2402
        %3002 = vmatprep.mubr.bf16.mxu0 %v1143
        %3003 = vmatmul.mubr.bf16.gmra.mrb[0].mxu0 %v1142
        %v3004 = vpop.f32.mrb[0].mxu0
        %v3005 = vadd.f32 %v2962, %v3004
        %v3006 = vpop.f32.mrb[0].mxu0
        %v3007 = vadd.f32 %v2964, %v3006
        %v3008 = vpop.f32.mrb[0].mxu0
        %v3009 = vadd.f32 %v2966, %v3008
        %v3010 = vpop.f32.mrb[0].mxu0
        %v3011 = vadd.f32 %v2968, %v3010
        %3012 = vdwg.mxu0
        %3013 = vmatprep.subr.bf16.mxu0 %v2405
        %3014 = vmatpush1.bf16.msra.mxu0 %v2404
        %3015 = vmatprep.subr.bf16.mxu0 %v2407
        %3016 = vmatpush1.bf16.msra.mxu0 %v2406
        %3017 = vmatprep.subr.bf16.mxu0 %v2409
        %3018 = vmatpush1.bf16.msra.mxu0 %v2408
        %3019 = vmatprep.subr.bf16.mxu0 %v2411
        %3020 = vmatpush1.bf16.msra.mxu0 %v2410
        %3021 = vmatprep.subr.bf16.mxu0 %v2413
        %3022 = vmatpush1.bf16.msra.mxu0 %v2412
        %3023 = vmatprep.subr.bf16.mxu0 %v2415
        %3024 = vmatpush1.bf16.msra.mxu0 %v2414
        %3025 = vmatprep.subr.bf16.mxu0 %v2417
        %3026 = vmatpush1.bf16.msra.mxu0 %v2416
        %3027 = vmatprep.subr.bf16.mxu0 %v2419
        %3028 = vmatpush1.bf16.msra.mxu0 %v2418
        %3029 = vmatprep.subr.bf16.mxu0 %v2421
        %3030 = vmatpush1.bf16.msra.mxu0 %v2420
        %3031 = vmatprep.subr.bf16.mxu0 %v2423
        %3032 = vmatpush1.bf16.msra.mxu0 %v2422
        %3033 = vmatprep.subr.bf16.mxu0 %v2425
        %3034 = vmatpush1.bf16.msra.mxu0 %v2424
        %3035 = vmatprep.subr.bf16.mxu0 %v2427
        %3036 = vmatpush1.bf16.msra.mxu0 %v2426
        %3037 = vmatprep.subr.bf16.mxu0 %v2429
        %3038 = vmatpush1.bf16.msra.mxu0 %v2428
        %3039 = vmatprep.subr.bf16.mxu0 %v2431
        %3040 = vmatpush1.bf16.msra.mxu0 %v2430
        %3041 = vmatprep.subr.bf16.mxu0 %v2433
        %3042 = vmatpush1.bf16.msra.mxu0 %v2432
        %3043 = vmatprep.subr.bf16.mxu0 %v2435
        %3044 = vmatpush1.bf16.msra.mxu0 %v2434
        %3045 = vmatprep.mubr.bf16.mxu0 %v1145
        %3046 = vmatmul.mubr.bf16.gmra.mrb[0].mxu0 %v1144
        %v3047 = vpop.f32.mrb[0].mxu0
        %v3048 = vadd.f32 %v3005, %v3047
        %v3049 = vpop.f32.mrb[0].mxu0
        %v3050 = vadd.f32 %v3007, %v3049
        %v3051 = vpop.f32.mrb[0].mxu0
        %v3052 = vadd.f32 %v3009, %v3051
        %v3053 = vpop.f32.mrb[0].mxu0
        %v3054 = vadd.f32 %v3011, %v3053
        %3055 = vdwg.mxu0
        %3056 = vmatprep.subr.bf16.mxu0 %v2437
        %3057 = vmatpush1.bf16.msra.mxu0 %v2436
        %3058 = vmatprep.subr.bf16.mxu0 %v2439
        %3059 = vmatpush1.bf16.msra.mxu0 %v2438
        %3060 = vmatprep.subr.bf16.mxu0 %v2441
        %3061 = vmatpush1.bf16.msra.mxu0 %v2440
        %3062 = vmatprep.subr.bf16.mxu0 %v2443
        %3063 = vmatpush1.bf16.msra.mxu0 %v2442
        %3064 = vmatprep.subr.bf16.mxu0 %v2445
        %3065 = vmatpush1.bf16.msra.mxu0 %v2444
        %3066 = vmatprep.subr.bf16.mxu0 %v2447
        %3067 = vmatpush1.bf16.msra.mxu0 %v2446
        %3068 = vmatprep.subr.bf16.mxu0 %v2449
        %3069 = vmatpush1.bf16.msra.mxu0 %v2448
        %3070 = vmatprep.subr.bf16.mxu0 %v2451
        %3071 = vmatpush1.bf16.msra.mxu0 %v2450
        %3072 = vmatprep.subr.bf16.mxu0 %v2453
        %3073 = vmatpush1.bf16.msra.mxu0 %v2452
        %3074 = vmatprep.subr.bf16.mxu0 %v2455
        %3075 = vmatpush1.bf16.msra.mxu0 %v2454
        %3076 = vmatprep.subr.bf16.mxu0 %v2457
        %3077 = vmatpush1.bf16.msra.mxu0 %v2456
        %3078 = vmatprep.subr.bf16.mxu0 %v2459
        %3079 = vmatpush1.bf16.msra.mxu0 %v2458
        %3080 = vmatprep.subr.bf16.mxu0 %v2461
        %3081 = vmatpush1.bf16.msra.mxu0 %v2460
        %3082 = vmatprep.subr.bf16.mxu0 %v2463
        %3083 = vmatpush1.bf16.msra.mxu0 %v2462
        %3084 = vmatprep.subr.bf16.mxu0 %v2465
        %3085 = vmatpush1.bf16.msra.mxu0 %v2464
        %3086 = vmatprep.subr.bf16.mxu0 %v2467
        %3087 = vmatpush1.bf16.msra.mxu0 %v2466
        %3088 = vmatprep.mubr.bf16.mxu0 %v1147
        %3089 = vmatmul.mubr.bf16.gmra.mrb[0].mxu0 %v1146
        %v3090 = vpop.f32.mrb[0].mxu0
        %v3091 = vadd.f32 %v3048, %v3090
        %v3092 = vpop.f32.mrb[0].mxu0
        %v3093 = vadd.f32 %v3050, %v3092
        %v3094 = vpop.f32.mrb[0].mxu0
        %v3095 = vadd.f32 %v3052, %v3094
        %v3096 = vpop.f32.mrb[0].mxu0
        %v3097 = vadd.f32 %v3054, %v3096
        %3098 = vdwg.mxu0
        %3099 = vmatprep.subr.bf16.mxu0 %v2469
        %3100 = vmatpush1.bf16.msra.mxu0 %v2468
        %3101 = vmatprep.subr.bf16.mxu0 %v2471
        %3102 = vmatpush1.bf16.msra.mxu0 %v2470
        %3103 = vmatprep.subr.bf16.mxu0 %v2473
        %3104 = vmatpush1.bf16.msra.mxu0 %v2472
        %3105 = vmatprep.subr.bf16.mxu0 %v2475
        %3106 = vmatpush1.bf16.msra.mxu0 %v2474
        %3107 = vmatprep.subr.bf16.mxu0 %v2477
        %3108 = vmatpush1.bf16.msra.mxu0 %v2476
        %3109 = vmatprep.subr.bf16.mxu0 %v2479
        %3110 = vmatpush1.bf16.msra.mxu0 %v2478
        %3111 = vmatprep.subr.bf16.mxu0 %v2481
        %3112 = vmatpush1.bf16.msra.mxu0 %v2480
        %3113 = vmatprep.subr.bf16.mxu0 %v2483
        %3114 = vmatpush1.bf16.msra.mxu0 %v2482
        %3115 = vmatprep.subr.bf16.mxu0 %v2485
        %3116 = vmatpush1.bf16.msra.mxu0 %v2484
        %3117 = vmatprep.subr.bf16.mxu0 %v2487
        %3118 = vmatpush1.bf16.msra.mxu0 %v2486
        %3119 = vmatprep.subr.bf16.mxu0 %v2489
        %3120 = vmatpush1.bf16.msra.mxu0 %v2488
        %3121 = vmatprep.subr.bf16.mxu0 %v2491
        %3122 = vmatpush1.bf16.msra.mxu0 %v2490
        %3123 = vmatprep.subr.bf16.mxu0 %v2493
        %3124 = vmatpush1.bf16.msra.mxu0 %v2492
        %3125 = vmatprep.subr.bf16.mxu0 %v2495
        %3126 = vmatpush1.bf16.msra.mxu0 %v2494
        %3127 = vmatprep.subr.bf16.mxu0 %v2497
        %3128 = vmatpush1.bf16.msra.mxu0 %v2496
        %3129 = vmatprep.subr.bf16.mxu0 %v2499
        %3130 = vmatpush1.bf16.msra.mxu0 %v2498
        %3131 = vmatprep.mubr.bf16.mxu0 %v1149
        %3132 = vmatmul.mubr.bf16.gmra.mrb[0].mxu0 %v1148
        %v3133 = vpop.f32.mrb[0].mxu0
        %v3134 = vadd.f32 %v3091, %v3133
        %v3135 = vpop.f32.mrb[0].mxu0
        %v3136 = vadd.f32 %v3093, %v3135
        %v3137 = vpop.f32.mrb[0].mxu0
        %v3138 = vadd.f32 %v3095, %v3137
        %v3139 = vpop.f32.mrb[0].mxu0
        %v3140 = vadd.f32 %v3097, %v3139
        %3141 = vdwg.mxu0
        %3142 = vmatprep.subr.bf16.mxu0 %v2501
        %3143 = vmatpush1.bf16.msra.mxu0 %v2500
        %3144 = vmatprep.subr.bf16.mxu0 %v2503
        %3145 = vmatpush1.bf16.msra.mxu0 %v2502
        %3146 = vmatprep.subr.bf16.mxu0 %v2505
        %3147 = vmatpush1.bf16.msra.mxu0 %v2504
        %3148 = vmatprep.subr.bf16.mxu0 %v2507
        %3149 = vmatpush1.bf16.msra.mxu0 %v2506
        %3150 = vmatprep.subr.bf16.mxu0 %v2509
        %3151 = vmatpush1.bf16.msra.mxu0 %v2508
        %3152 = vmatprep.subr.bf16.mxu0 %v2511
        %3153 = vmatpush1.bf16.msra.mxu0 %v2510
        %3154 = vmatprep.subr.bf16.mxu0 %v2513
        %3155 = vmatpush1.bf16.msra.mxu0 %v2512
        %3156 = vmatprep.subr.bf16.mxu0 %v2515
        %3157 = vmatpush1.bf16.msra.mxu0 %v2514
        %3158 = vmatprep.subr.bf16.mxu0 %v2517
        %3159 = vmatpush1.bf16.msra.mxu0 %v2516
        %3160 = vmatprep.subr.bf16.mxu0 %v2519
        %3161 = vmatpush1.bf16.msra.mxu0 %v2518
        %3162 = vmatprep.subr.bf16.mxu0 %v2521
        %3163 = vmatpush1.bf16.msra.mxu0 %v2520
        %3164 = vmatprep.subr.bf16.mxu0 %v2523
        %3165 = vmatpush1.bf16.msra.mxu0 %v2522
        %3166 = vmatprep.subr.bf16.mxu0 %v2525
        %3167 = vmatpush1.bf16.msra.mxu0 %v2524
        %3168 = vmatprep.subr.bf16.mxu0 %v2527
        %3169 = vmatpush1.bf16.msra.mxu0 %v2526
        %3170 = vmatprep.subr.bf16.mxu0 %v2529
        %3171 = vmatpush1.bf16.msra.mxu0 %v2528
        %3172 = vmatprep.subr.bf16.mxu0 %v2531
        %3173 = vmatpush1.bf16.msra.mxu0 %v2530
        %3174 = vmatprep.mubr.bf16.mxu0 %v1151
        %3175 = vmatmul.mubr.bf16.gmra.mrb[0].mxu0 %v1150
        %v3176 = vpop.f32.mrb[0].mxu0
        %v3177 = vadd.f32 %v3134, %v3176
        %v3178 = vpop.f32.mrb[0].mxu0
        %v3179 = vadd.f32 %v3136, %v3178
        %v3180 = vpop.f32.mrb[0].mxu0
        %v3181 = vadd.f32 %v3138, %v3180
        %v3182 = vpop.f32.mrb[0].mxu0
        %v3183 = vadd.f32 %v3140, %v3182
        %3184 = vdwg.mxu0
        %3185 = vmatprep.subr.bf16.mxu0 %v2533
        %3186 = vmatpush1.bf16.msra.mxu0 %v2532
        %3187 = vmatprep.subr.bf16.mxu0 %v2535
        %3188 = vmatpush1.bf16.msra.mxu0 %v2534
        %3189 = vmatprep.subr.bf16.mxu0 %v2537
        %3190 = vmatpush1.bf16.msra.mxu0 %v2536
        %3191 = vmatprep.subr.bf16.mxu0 %v2539
        %3192 = vmatpush1.bf16.msra.mxu0 %v2538
        %3193 = vmatprep.subr.bf16.mxu0 %v2541
        %3194 = vmatpush1.bf16.msra.mxu0 %v2540
        %3195 = vmatprep.subr.bf16.mxu0 %v2543
        %3196 = vmatpush1.bf16.msra.mxu0 %v2542
        %3197 = vmatprep.subr.bf16.mxu0 %v2545
        %3198 = vmatpush1.bf16.msra.mxu0 %v2544
        %3199 = vmatprep.subr.bf16.mxu0 %v2547
        %3200 = vmatpush1.bf16.msra.mxu0 %v2546
        %3201 = vmatprep.subr.bf16.mxu0 %v2549
        %3202 = vmatpush1.bf16.msra.mxu0 %v2548
        %3203 = vmatprep.subr.bf16.mxu0 %v2551
        %3204 = vmatpush1.bf16.msra.mxu0 %v2550
        %3205 = vmatprep.subr.bf16.mxu0 %v2553
        %3206 = vmatpush1.bf16.msra.mxu0 %v2552
        %3207 = vmatprep.subr.bf16.mxu0 %v2555
        %3208 = vmatpush1.bf16.msra.mxu0 %v2554
        %3209 = vmatprep.subr.bf16.mxu0 %v2557
        %3210 = vmatpush1.bf16.msra.mxu0 %v2556
        %3211 = vmatprep.subr.bf16.mxu0 %v2559
        %3212 = vmatpush1.bf16.msra.mxu0 %v2558
        %3213 = vmatprep.subr.bf16.mxu0 %v2561
        %3214 = vmatpush1.bf16.msra.mxu0 %v2560
        %3215 = vmatprep.subr.bf16.mxu0 %v2563
        %3216 = vmatpush1.bf16.msra.mxu0 %v2562
        %3217 = vmatprep.mubr.bf16.mxu0 %v1153
        %3218 = vmatmul.mubr.bf16.gmra.mrb[0].mxu0 %v1152
        %v3219 = vpop.f32.mrb[0].mxu0
        %v3220 = vadd.f32 %v3177, %v3219
        %v3221 = vpop.f32.mrb[0].mxu0
        %v3222 = vadd.f32 %v3179, %v3221
        %v3223 = vpop.f32.mrb[0].mxu0
        %v3224 = vadd.f32 %v3181, %v3223
        %v3225 = vpop.f32.mrb[0].mxu0
        %v3226 = vadd.f32 %v3183, %v3225
        %3227 = vdwg.mxu0
        %3228 = vmatprep.subr.bf16.mxu0 %v2565
        %3229 = vmatpush1.bf16.msra.mxu0 %v2564
        %3230 = vmatprep.subr.bf16.mxu0 %v2567
        %3231 = vmatpush1.bf16.msra.mxu0 %v2566
        %3232 = vmatprep.subr.bf16.mxu0 %v2569
        %3233 = vmatpush1.bf16.msra.mxu0 %v2568
        %3234 = vmatprep.subr.bf16.mxu0 %v2571
        %3235 = vmatpush1.bf16.msra.mxu0 %v2570
        %3236 = vmatprep.subr.bf16.mxu0 %v2573
        %3237 = vmatpush1.bf16.msra.mxu0 %v2572
        %3238 = vmatprep.subr.bf16.mxu0 %v2575
        %3239 = vmatpush1.bf16.msra.mxu0 %v2574
        %3240 = vmatprep.subr.bf16.mxu0 %v2577
        %3241 = vmatpush1.bf16.msra.mxu0 %v2576
        %3242 = vmatprep.subr.bf16.mxu0 %v2579
        %3243 = vmatpush1.bf16.msra.mxu0 %v2578
        %3244 = vmatprep.subr.bf16.mxu0 %v2581
        %3245 = vmatpush1.bf16.msra.mxu0 %v2580
        %3246 = vmatprep.subr.bf16.mxu0 %v2583
        %3247 = vmatpush1.bf16.msra.mxu0 %v2582
        %3248 = vmatprep.subr.bf16.mxu0 %v2585
        %3249 = vmatpush1.bf16.msra.mxu0 %v2584
        %3250 = vmatprep.subr.bf16.mxu0 %v2587
        %3251 = vmatpush1.bf16.msra.mxu0 %v2586
        %3252 = vmatprep.subr.bf16.mxu0 %v2589
        %3253 = vmatpush1.bf16.msra.mxu0 %v2588
        %3254 = vmatprep.subr.bf16.mxu0 %v2591
        %3255 = vmatpush1.bf16.msra.mxu0 %v2590
        %3256 = vmatprep.subr.bf16.mxu0 %v2593
        %3257 = vmatpush1.bf16.msra.mxu0 %v2592
        %3258 = vmatprep.subr.bf16.mxu0 %v2595
        %3259 = vmatpush1.bf16.msra.mxu0 %v2594
        %3260 = vmatprep.mubr.bf16.mxu0 %v1155
        %3261 = vmatmul.mubr.bf16.gmra.mrb[0].mxu0 %v1154
        %v3262 = vpop.f32.mrb[0].mxu0
        %v3263 = vadd.f32 %v3220, %v3262
        %v3264 = vpop.f32.mrb[0].mxu0
        %v3265 = vadd.f32 %v3222, %v3264
        %v3266 = vpop.f32.mrb[0].mxu0
        %v3267 = vadd.f32 %v3224, %v3266
        %v3268 = vpop.f32.mrb[0].mxu0
        %v3269 = vadd.f32 %v3226, %v3268
        %3270 = vdwg.mxu0
        %v3271 = vld [vmem:[#allocation12] ss:$4 sm:$0x3]
        %v3273 = vlaneseq
        %v3274 = vshrl.u32 %v3273, 7
        %v3275 = vsub.s32 0, %v3274
        %v3276 = vrot.slane %v3271, %v3275
        %v3277 = vlaneseq
        %v3278 = vshrl.u32 %v3277, 7
        %v3279 = vsub.s32 1, %v3278
        %v3280 = vrot.slane %v3271, %v3279
        %v3283 = vmul.f32 %v3263, %v3276
        %v3284 = vmul.f32 %v3265, %v3280
        %v3285 = vmul.f32 %v3267, %v3276
        %v3286 = vmul.f32 %v3269, %v3280
        %v3287 = vld [vmem:[#allocation14] ss:$4 sm:$0x3]
        %v3289 = vlaneseq
        %v3290 = vshrl.u32 %v3289, 7
        %v3291 = vsub.s32 0, %v3290
        %v3292 = vrot.slane %v3287, %v3291
        %v3293 = vlaneseq
        %v3294 = vshrl.u32 %v3293, 7
        %v3295 = vsub.s32 1, %v3294
        %v3296 = vrot.slane %v3287, %v3295
        %v3299 = vadd.f32 %v3283, %v3292
        %v3300 = vadd.f32 %v3284, %v3296
        %v3301 = vadd.f32 %v3285, %v3292
        %v3302 = vadd.f32 %v3286, %v3296
        %v3303 = vmax.f32 %v3299, 0.0
        %v3304 = vmax.f32 %v3300, 0.0
        %v3305 = vmax.f32 %v3301, 0.0
        %v3306 = vmax.f32 %v3302, 0.0
        %3307 = vst [vmem:[%s375 + $0x10] sm:$0xff] %v3303
        %3308 = vst [vmem:[%s375 + $0x18] sm:$0xff] %v3304
        %3309 = vst [vmem:[%s375 + $0x50] sm:$0xff] %v3305
        %3310 = vst [vmem:[%s375 + $0x58] sm:$0xff] %v3306
        %3315 = vrot.lane.b32.xlu0 %v879, 32
        %v3316 = vpop.permute.xlu0 %3315
        %3317 = vrot.lane.b32.xlu0 %v880, 32
        %v3318 = vpop.permute.xlu0 %3317
        %3319 = vrot.lane.b32.xlu0 %v887, 32
        %v3320 = vpop.permute.xlu0 %3319
        %3321 = vrot.lane.b32.xlu0 %v888, 32
        %v3322 = vpop.permute.xlu0 %3321
        %vm3323 = vcmask 261120
        %v3324 = vsel %vm3323, %v3316, %v3318
        %v3325 = vsel %vm3323, %v3320, %v3322
        %v3330 = vsel %vm3323, 0.0, %v3316
        %v3331 = vsel %vm3323, 0.0, %v3320
        %v3332 = vpack.c.bf16 %v3330, 0.0
        %v3333 = vpack.c.bf16 %v3324, 0.0
        %v3334 = vpack.c.bf16 %v3331, %v3331
        %v3335 = vpack.c.bf16 %v3325, %v3325
        %vm3340 = vcmask 1044480
        %v3341 = vrot.slane %v3332, 3
        %v3342 = vrot.slane %v3334, 3
        %v3343 = vsel %vm3340, %v3341, %v3342
        %v3344 = vrot.slane %v3333, 3
        %v3345 = vrot.slane %v3335, 3
        %v3346 = vsel %vm3340, %v3344, %v3345
        %3349 = vst [vmem:[#allocation2] sm:$0xff] %v3343
        %3350 = vst [vmem:[#allocation2 + $0x8] sm:$0xff] %v3346
        %v3351 = vpack.c.bf16 %v3331, %v3330
        %v3352 = vpack.c.bf16 %v3325, %v3324
        %3353 = vst [vmem:[#allocation2 + $0x30] sm:$0xff] %v3351
        %3354 = vst [vmem:[#allocation2 + $0x38] sm:$0xff] %v3352
        %vm3358 = vcmask 1046528
        %v3359 = vrot.slane %v3351, 1
        %v3360 = vrot.slane %v963, 1
        %v3361 = vsel %vm3358, %v3359, %v3360
        %v3362 = vrot.slane %v3352, 1
        %v3363 = vsel %vm3358, %v3362, %v3360
        %3366 = vst [vmem:[#allocation2 + $0x60] sm:$0xff] %v3361
        %3367 = vst [vmem:[#allocation2 + $0x68] sm:$0xff] %v3363
        %v3368 = vpack.c.bf16 %v879, 0.0
        %v3369 = vpack.c.bf16 %v880, 0.0
        %v3370 = vpack.c.bf16 %v887, %v887
        %v3371 = vpack.c.bf16 %v888, %v888
        %v3376 = vrot.slane %v3368, 3
        %v3377 = vrot.slane %v3370, 3
        %v3378 = vsel %vm3340, %v3376, %v3377
        %v3379 = vrot.slane %v3369, 3
        %v3380 = vrot.slane %v3371, 3
        %v3381 = vsel %vm3340, %v3379, %v3380
        %3384 = vst [vmem:[#allocation2 + $0x10] sm:$0xff] %v3378
        %3385 = vst [vmem:[#allocation2 + $0x18] sm:$0xff] %v3381
        %v3386 = vpack.c.bf16 %v887, %v879
        %v3387 = vpack.c.bf16 %v888, %v880
        %3388 = vst [vmem:[#allocation2 + $0x40] sm:$0xff] %v3386
        %3389 = vst [vmem:[#allocation2 + $0x48] sm:$0xff] %v3387
        %v3392 = vrot.slane %v3386, 1
        %v3393 = vsel %vm3358, %v3392, %v3360
        %v3394 = vrot.slane %v3387, 1
        %v3395 = vsel %vm3358, %v3394, %v3360
        %3398 = vst [vmem:[#allocation2 + $0x70] sm:$0xff] %v3393
        %3399 = vst [vmem:[#allocation2 + $0x78] sm:$0xff] %v3395
        %3400 = vrot.lane.b32.xlu0 %v879, 96
        %v3401 = vpop.permute.xlu0 %3400
        %3402 = vrot.lane.b32.xlu0 %v880, 96
        %v3403 = vpop.permute.xlu0 %3402
        %3404 = vrot.lane.b32.xlu0 %v887, 96
        %v3405 = vpop.permute.xlu0 %3404
        %3406 = vrot.lane.b32.xlu0 %v888, 96
        %v3407 = vpop.permute.xlu0 %3406
        %vm3408 = vcmask 785408
        %v3409 = vsel %vm3408, %v3401, %v3403
        %v3410 = vsel %vm3408, %v3405, %v3407
        %v3415 = vsel %vm3408, %v3403, 0.0
        %v3416 = vsel %vm3408, %v3407, 0.0
        %v3417 = vpack.c.bf16 %v3409, 0.0
        %v3418 = vpack.c.bf16 %v3415, 0.0
        %v3419 = vpack.c.bf16 %v3410, %v3410
        %v3420 = vpack.c.bf16 %v3416, %v3416
        %v3425 = vrot.slane %v3417, 3
        %v3426 = vrot.slane %v3419, 3
        %v3427 = vsel %vm3340, %v3425, %v3426
        %v3428 = vrot.slane %v3418, 3
        %v3429 = vrot.slane %v3420, 3
        %v3430 = vsel %vm3340, %v3428, %v3429
        %3433 = vst [vmem:[#allocation2 + $0x20] sm:$0xff] %v3427
        %3434 = vst [vmem:[#allocation2 + $0x28] sm:$0xff] %v3430
        %v3435 = vpack.c.bf16 %v3410, %v3409
        %v3436 = vpack.c.bf16 %v3416, %v3415
        %3437 = vst [vmem:[#allocation2 + $0x50] sm:$0xff] %v3435
        %3438 = vst [vmem:[#allocation2 + $0x58] sm:$0xff] %v3436
        %v3441 = vrot.slane %v3435, 1
        %v3442 = vsel %vm3358, %v3441, %v3360
        %v3443 = vrot.slane %v3436, 1
        %v3444 = vsel %vm3358, %v3443, %v3360
        %3447 = vst [vmem:[#allocation2 + $0x80] sm:$0xff] %v3442
        %3448 = vst [vmem:[#allocation2 + $0x88] sm:$0xff] %v3444
        %v3449 = vld [vmem:[#allocation2] sm:$0xff]
        %v3450 = vld [vmem:[#allocation2 + $0x8] sm:$0xff]
        %v3451 = vld [vmem:[#allocation2 + $0x10] sm:$0xff]
        %v3452 = vld [vmem:[#allocation2 + $0x18] sm:$0xff]
        %v3453 = vld [vmem:[#allocation2 + $0x20] sm:$0xff]
        %v3454 = vld [vmem:[#allocation2 + $0x28] sm:$0xff]
        %v3455 = vld [vmem:[#allocation2 + $0x30] sm:$0xff]
        %v3456 = vld [vmem:[#allocation2 + $0x38] sm:$0xff]
        %v3457 = vld [vmem:[#allocation2 + $0x40] sm:$0xff]
        %v3458 = vld [vmem:[#allocation2 + $0x48] sm:$0xff]
        %v3459 = vld [vmem:[#allocation2 + $0x50] sm:$0xff]
        %v3460 = vld [vmem:[#allocation2 + $0x58] sm:$0xff]
        %v3461 = vld [vmem:[#allocation2 + $0x60] sm:$0xff]
        %v3462 = vld [vmem:[#allocation2 + $0x68] sm:$0xff]
        %v3463 = vld [vmem:[#allocation2 + $0x70] sm:$0xff]
        %v3464 = vld [vmem:[#allocation2 + $0x78] sm:$0xff]
        %v3465 = vld [vmem:[#allocation2 + $0x80] sm:$0xff]
        %v3466 = vld [vmem:[#allocation2 + $0x88] sm:$0xff]
        %s3467 = scalar_lea.vmem [#allocation11], 2304
        %v3468 = vld [vmem:[%s3467] sm:$0xff]
        %v3469 = vld [vmem:[%s3467 + $0x8] sm:$0xff]
        %v3470 = vld [vmem:[%s3467 + $0x10] sm:$0xff]
        %v3471 = vld [vmem:[%s3467 + $0x18] sm:$0xff]
        %v3472 = vld [vmem:[%s3467 + $0x20] sm:$0xff]
        %v3473 = vld [vmem:[%s3467 + $0x28] sm:$0xff]
        %v3474 = vld [vmem:[%s3467 + $0x30] sm:$0xff]
        %v3475 = vld [vmem:[%s3467 + $0x38] sm:$0xff]
        %v3476 = vld [vmem:[%s3467 + $0x40] sm:$0xff]
        %v3477 = vld [vmem:[%s3467 + $0x48] sm:$0xff]
        %v3478 = vld [vmem:[%s3467 + $0x50] sm:$0xff]
        %v3479 = vld [vmem:[%s3467 + $0x58] sm:$0xff]
        %v3480 = vld [vmem:[%s3467 + $0x60] sm:$0xff]
        %v3481 = vld [vmem:[%s3467 + $0x68] sm:$0xff]
        %v3482 = vld [vmem:[%s3467 + $0x70] sm:$0xff]
        %v3483 = vld [vmem:[%s3467 + $0x78] sm:$0xff]
        %v3484 = vld [vmem:[%s3467 + $0x80] sm:$0xff]
        %v3485 = vld [vmem:[%s3467 + $0x88] sm:$0xff]
        %v3486 = vld [vmem:[%s3467 + $0x90] sm:$0xff]
        %v3487 = vld [vmem:[%s3467 + $0x98] sm:$0xff]
        %v3488 = vld [vmem:[%s3467 + $0xa0] sm:$0xff]
        %v3489 = vld [vmem:[%s3467 + $0xa8] sm:$0xff]
        %v3490 = vld [vmem:[%s3467 + $0xb0] sm:$0xff]
        %v3491 = vld [vmem:[%s3467 + $0xb8] sm:$0xff]
        %v3492 = vld [vmem:[%s3467 + $0xc0] sm:$0xff]
        %v3493 = vld [vmem:[%s3467 + $0xc8] sm:$0xff]
        %v3494 = vld [vmem:[%s3467 + $0xd0] sm:$0xff]
        %v3495 = vld [vmem:[%s3467 + $0xd8] sm:$0xff]
        %v3496 = vld [vmem:[%s3467 + $0xe0] sm:$0xff]
        %v3497 = vld [vmem:[%s3467 + $0xe8] sm:$0xff]
        %v3498 = vld [vmem:[%s3467 + $0xf0] sm:$0xff]
        %v3499 = vld [vmem:[%s3467 + $0xf8] sm:$0xff]
        %v3500 = vld [vmem:[%s3467 + $0x100] sm:$0xff]
        %v3501 = vld [vmem:[%s3467 + $0x108] sm:$0xff]
        %v3502 = vld [vmem:[%s3467 + $0x110] sm:$0xff]
        %v3503 = vld [vmem:[%s3467 + $0x118] sm:$0xff]
        %v3504 = vld [vmem:[%s3467 + $0x120] sm:$0xff]
        %v3505 = vld [vmem:[%s3467 + $0x128] sm:$0xff]
        %v3506 = vld [vmem:[%s3467 + $0x130] sm:$0xff]
        %v3507 = vld [vmem:[%s3467 + $0x138] sm:$0xff]
        %v3508 = vld [vmem:[%s3467 + $0x140] sm:$0xff]
        %v3509 = vld [vmem:[%s3467 + $0x148] sm:$0xff]
        %v3510 = vld [vmem:[%s3467 + $0x150] sm:$0xff]
        %v3511 = vld [vmem:[%s3467 + $0x158] sm:$0xff]
        %v3512 = vld [vmem:[%s3467 + $0x160] sm:$0xff]
        %v3513 = vld [vmem:[%s3467 + $0x168] sm:$0xff]
        %v3514 = vld [vmem:[%s3467 + $0x170] sm:$0xff]
        %v3515 = vld [vmem:[%s3467 + $0x178] sm:$0xff]
        %v3516 = vld [vmem:[%s3467 + $0x180] sm:$0xff]
        %v3517 = vld [vmem:[%s3467 + $0x188] sm:$0xff]
        %v3518 = vld [vmem:[%s3467 + $0x190] sm:$0xff]
        %v3519 = vld [vmem:[%s3467 + $0x198] sm:$0xff]
        %v3520 = vld [vmem:[%s3467 + $0x1a0] sm:$0xff]
        %v3521 = vld [vmem:[%s3467 + $0x1a8] sm:$0xff]
        %v3522 = vld [vmem:[%s3467 + $0x1b0] sm:$0xff]
        %v3523 = vld [vmem:[%s3467 + $0x1b8] sm:$0xff]
        %v3524 = vld [vmem:[%s3467 + $0x1c0] sm:$0xff]
        %v3525 = vld [vmem:[%s3467 + $0x1c8] sm:$0xff]
        %v3526 = vld [vmem:[%s3467 + $0x1d0] sm:$0xff]
        %v3527 = vld [vmem:[%s3467 + $0x1d8] sm:$0xff]
        %v3528 = vld [vmem:[%s3467 + $0x1e0] sm:$0xff]
        %v3529 = vld [vmem:[%s3467 + $0x1e8] sm:$0xff]
        %v3530 = vld [vmem:[%s3467 + $0x1f0] sm:$0xff]
        %v3531 = vld [vmem:[%s3467 + $0x1f8] sm:$0xff]
        %v3532 = vld [vmem:[%s3467 + $0x200] sm:$0xff]
        %v3533 = vld [vmem:[%s3467 + $0x208] sm:$0xff]
        %v3534 = vld [vmem:[%s3467 + $0x210] sm:$0xff]
        %v3535 = vld [vmem:[%s3467 + $0x218] sm:$0xff]
        %v3536 = vld [vmem:[%s3467 + $0x220] sm:$0xff]
        %v3537 = vld [vmem:[%s3467 + $0x228] sm:$0xff]
        %v3538 = vld [vmem:[%s3467 + $0x230] sm:$0xff]
        %v3539 = vld [vmem:[%s3467 + $0x238] sm:$0xff]
        %v3540 = vld [vmem:[%s3467 + $0x240] sm:$0xff]
        %v3541 = vld [vmem:[%s3467 + $0x248] sm:$0xff]
        %v3542 = vld [vmem:[%s3467 + $0x250] sm:$0xff]
        %v3543 = vld [vmem:[%s3467 + $0x258] sm:$0xff]
        %v3544 = vld [vmem:[%s3467 + $0x260] sm:$0xff]
        %v3545 = vld [vmem:[%s3467 + $0x268] sm:$0xff]
        %v3546 = vld [vmem:[%s3467 + $0x270] sm:$0xff]
        %v3547 = vld [vmem:[%s3467 + $0x278] sm:$0xff]
        %v3548 = vld [vmem:[%s3467 + $0x280] sm:$0xff]
        %v3549 = vld [vmem:[%s3467 + $0x288] sm:$0xff]
        %v3550 = vld [vmem:[%s3467 + $0x290] sm:$0xff]
        %v3551 = vld [vmem:[%s3467 + $0x298] sm:$0xff]
        %v3552 = vld [vmem:[%s3467 + $0x2a0] sm:$0xff]
        %v3553 = vld [vmem:[%s3467 + $0x2a8] sm:$0xff]
        %v3554 = vld [vmem:[%s3467 + $0x2b0] sm:$0xff]
        %v3555 = vld [vmem:[%s3467 + $0x2b8] sm:$0xff]
        %v3556 = vld [vmem:[%s3467 + $0x2c0] sm:$0xff]
        %v3557 = vld [vmem:[%s3467 + $0x2c8] sm:$0xff]
        %v3558 = vld [vmem:[%s3467 + $0x2d0] sm:$0xff]
        %v3559 = vld [vmem:[%s3467 + $0x2d8] sm:$0xff]
        %v3560 = vld [vmem:[%s3467 + $0x2e0] sm:$0xff]
        %v3561 = vld [vmem:[%s3467 + $0x2e8] sm:$0xff]
        %v3562 = vld [vmem:[%s3467 + $0x2f0] sm:$0xff]
        %v3563 = vld [vmem:[%s3467 + $0x2f8] sm:$0xff]
        %v3564 = vld [vmem:[%s3467 + $0x300] sm:$0xff]
        %v3565 = vld [vmem:[%s3467 + $0x308] sm:$0xff]
        %v3566 = vld [vmem:[%s3467 + $0x310] sm:$0xff]
        %v3567 = vld [vmem:[%s3467 + $0x318] sm:$0xff]
        %v3568 = vld [vmem:[%s3467 + $0x320] sm:$0xff]
        %v3569 = vld [vmem:[%s3467 + $0x328] sm:$0xff]
        %v3570 = vld [vmem:[%s3467 + $0x330] sm:$0xff]
        %v3571 = vld [vmem:[%s3467 + $0x338] sm:$0xff]
        %v3572 = vld [vmem:[%s3467 + $0x340] sm:$0xff]
        %v3573 = vld [vmem:[%s3467 + $0x348] sm:$0xff]
        %v3574 = vld [vmem:[%s3467 + $0x350] sm:$0xff]
        %v3575 = vld [vmem:[%s3467 + $0x358] sm:$0xff]
        %v3576 = vld [vmem:[%s3467 + $0x360] sm:$0xff]
        %v3577 = vld [vmem:[%s3467 + $0x368] sm:$0xff]
        %v3578 = vld [vmem:[%s3467 + $0x370] sm:$0xff]
        %v3579 = vld [vmem:[%s3467 + $0x378] sm:$0xff]
        %v3580 = vld [vmem:[%s3467 + $0x380] sm:$0xff]
        %v3581 = vld [vmem:[%s3467 + $0x388] sm:$0xff]
        %v3582 = vld [vmem:[%s3467 + $0x390] sm:$0xff]
        %v3583 = vld [vmem:[%s3467 + $0x398] sm:$0xff]
        %v3584 = vld [vmem:[%s3467 + $0x3a0] sm:$0xff]
        %v3585 = vld [vmem:[%s3467 + $0x3a8] sm:$0xff]
        %v3586 = vld [vmem:[%s3467 + $0x3b0] sm:$0xff]
        %v3587 = vld [vmem:[%s3467 + $0x3b8] sm:$0xff]
        %v3588 = vld [vmem:[%s3467 + $0x3c0] sm:$0xff]
        %v3589 = vld [vmem:[%s3467 + $0x3c8] sm:$0xff]
        %v3590 = vld [vmem:[%s3467 + $0x3d0] sm:$0xff]
        %v3591 = vld [vmem:[%s3467 + $0x3d8] sm:$0xff]
        %v3592 = vld [vmem:[%s3467 + $0x3e0] sm:$0xff]
        %v3593 = vld [vmem:[%s3467 + $0x3e8] sm:$0xff]
        %v3594 = vld [vmem:[%s3467 + $0x3f0] sm:$0xff]
        %v3595 = vld [vmem:[%s3467 + $0x3f8] sm:$0xff]
        %v3596 = vld [vmem:[%s3467 + $0x400] sm:$0xff]
        %v3597 = vld [vmem:[%s3467 + $0x408] sm:$0xff]
        %v3598 = vld [vmem:[%s3467 + $0x410] sm:$0xff]
        %v3599 = vld [vmem:[%s3467 + $0x418] sm:$0xff]
        %v3600 = vld [vmem:[%s3467 + $0x420] sm:$0xff]
        %v3601 = vld [vmem:[%s3467 + $0x428] sm:$0xff]
        %v3602 = vld [vmem:[%s3467 + $0x430] sm:$0xff]
        %v3603 = vld [vmem:[%s3467 + $0x438] sm:$0xff]
        %v3604 = vld [vmem:[%s3467 + $0x440] sm:$0xff]
        %v3605 = vld [vmem:[%s3467 + $0x448] sm:$0xff]
        %v3606 = vld [vmem:[%s3467 + $0x450] sm:$0xff]
        %v3607 = vld [vmem:[%s3467 + $0x458] sm:$0xff]
        %v3608 = vld [vmem:[%s3467 + $0x460] sm:$0xff]
        %v3609 = vld [vmem:[%s3467 + $0x468] sm:$0xff]
        %v3610 = vld [vmem:[%s3467 + $0x470] sm:$0xff]
        %v3611 = vld [vmem:[%s3467 + $0x478] sm:$0xff]
        %v3612 = vld [vmem:[%s3467 + $0x480] sm:$0xff]
        %v3613 = vld [vmem:[%s3467 + $0x488] sm:$0xff]
        %v3614 = vld [vmem:[%s3467 + $0x490] sm:$0xff]
        %v3615 = vld [vmem:[%s3467 + $0x498] sm:$0xff]
        %v3616 = vld [vmem:[%s3467 + $0x4a0] sm:$0xff]
        %v3617 = vld [vmem:[%s3467 + $0x4a8] sm:$0xff]
        %v3618 = vld [vmem:[%s3467 + $0x4b0] sm:$0xff]
        %v3619 = vld [vmem:[%s3467 + $0x4b8] sm:$0xff]
        %v3620 = vld [vmem:[%s3467 + $0x4c0] sm:$0xff]
        %v3621 = vld [vmem:[%s3467 + $0x4c8] sm:$0xff]
        %v3622 = vld [vmem:[%s3467 + $0x4d0] sm:$0xff]
        %v3623 = vld [vmem:[%s3467 + $0x4d8] sm:$0xff]
        %v3624 = vld [vmem:[%s3467 + $0x4e0] sm:$0xff]
        %v3625 = vld [vmem:[%s3467 + $0x4e8] sm:$0xff]
        %v3626 = vld [vmem:[%s3467 + $0x4f0] sm:$0xff]
        %v3627 = vld [vmem:[%s3467 + $0x4f8] sm:$0xff]
        %v3628 = vld [vmem:[%s3467 + $0x500] sm:$0xff]
        %v3629 = vld [vmem:[%s3467 + $0x508] sm:$0xff]
        %v3630 = vld [vmem:[%s3467 + $0x510] sm:$0xff]
        %v3631 = vld [vmem:[%s3467 + $0x518] sm:$0xff]
        %v3632 = vld [vmem:[%s3467 + $0x520] sm:$0xff]
        %v3633 = vld [vmem:[%s3467 + $0x528] sm:$0xff]
        %v3634 = vld [vmem:[%s3467 + $0x530] sm:$0xff]
        %v3635 = vld [vmem:[%s3467 + $0x538] sm:$0xff]
        %v3636 = vld [vmem:[%s3467 + $0x540] sm:$0xff]
        %v3637 = vld [vmem:[%s3467 + $0x548] sm:$0xff]
        %v3638 = vld [vmem:[%s3467 + $0x550] sm:$0xff]
        %v3639 = vld [vmem:[%s3467 + $0x558] sm:$0xff]
        %v3640 = vld [vmem:[%s3467 + $0x560] sm:$0xff]
        %v3641 = vld [vmem:[%s3467 + $0x568] sm:$0xff]
        %v3642 = vld [vmem:[%s3467 + $0x570] sm:$0xff]
        %v3643 = vld [vmem:[%s3467 + $0x578] sm:$0xff]
        %v3644 = vld [vmem:[%s3467 + $0x580] sm:$0xff]
        %v3645 = vld [vmem:[%s3467 + $0x588] sm:$0xff]
        %v3646 = vld [vmem:[%s3467 + $0x590] sm:$0xff]
        %v3647 = vld [vmem:[%s3467 + $0x598] sm:$0xff]
        %v3648 = vld [vmem:[%s3467 + $0x5a0] sm:$0xff]
        %v3649 = vld [vmem:[%s3467 + $0x5a8] sm:$0xff]
        %v3650 = vld [vmem:[%s3467 + $0x5b0] sm:$0xff]
        %v3651 = vld [vmem:[%s3467 + $0x5b8] sm:$0xff]
        %v3652 = vld [vmem:[%s3467 + $0x5c0] sm:$0xff]
        %v3653 = vld [vmem:[%s3467 + $0x5c8] sm:$0xff]
        %v3654 = vld [vmem:[%s3467 + $0x5d0] sm:$0xff]
        %v3655 = vld [vmem:[%s3467 + $0x5d8] sm:$0xff]
        %v3656 = vld [vmem:[%s3467 + $0x5e0] sm:$0xff]
        %v3657 = vld [vmem:[%s3467 + $0x5e8] sm:$0xff]
        %v3658 = vld [vmem:[%s3467 + $0x5f0] sm:$0xff]
        %v3659 = vld [vmem:[%s3467 + $0x5f8] sm:$0xff]
        %v3660 = vld [vmem:[%s3467 + $0x600] sm:$0xff]
        %v3661 = vld [vmem:[%s3467 + $0x608] sm:$0xff]
        %v3662 = vld [vmem:[%s3467 + $0x610] sm:$0xff]
        %v3663 = vld [vmem:[%s3467 + $0x618] sm:$0xff]
        %v3664 = vld [vmem:[%s3467 + $0x620] sm:$0xff]
        %v3665 = vld [vmem:[%s3467 + $0x628] sm:$0xff]
        %v3666 = vld [vmem:[%s3467 + $0x630] sm:$0xff]
        %v3667 = vld [vmem:[%s3467 + $0x638] sm:$0xff]
        %v3668 = vld [vmem:[%s3467 + $0x640] sm:$0xff]
        %v3669 = vld [vmem:[%s3467 + $0x648] sm:$0xff]
        %v3670 = vld [vmem:[%s3467 + $0x650] sm:$0xff]
        %v3671 = vld [vmem:[%s3467 + $0x658] sm:$0xff]
        %v3672 = vld [vmem:[%s3467 + $0x660] sm:$0xff]
        %v3673 = vld [vmem:[%s3467 + $0x668] sm:$0xff]
        %v3674 = vld [vmem:[%s3467 + $0x670] sm:$0xff]
        %v3675 = vld [vmem:[%s3467 + $0x678] sm:$0xff]
        %v3676 = vld [vmem:[%s3467 + $0x680] sm:$0xff]
        %v3677 = vld [vmem:[%s3467 + $0x688] sm:$0xff]
        %v3678 = vld [vmem:[%s3467 + $0x690] sm:$0xff]
        %v3679 = vld [vmem:[%s3467 + $0x698] sm:$0xff]
        %v3680 = vld [vmem:[%s3467 + $0x6a0] sm:$0xff]
        %v3681 = vld [vmem:[%s3467 + $0x6a8] sm:$0xff]
        %v3682 = vld [vmem:[%s3467 + $0x6b0] sm:$0xff]
        %v3683 = vld [vmem:[%s3467 + $0x6b8] sm:$0xff]
        %v3684 = vld [vmem:[%s3467 + $0x6c0] sm:$0xff]
        %v3685 = vld [vmem:[%s3467 + $0x6c8] sm:$0xff]
        %v3686 = vld [vmem:[%s3467 + $0x6d0] sm:$0xff]
        %v3687 = vld [vmem:[%s3467 + $0x6d8] sm:$0xff]
        %v3688 = vld [vmem:[%s3467 + $0x6e0] sm:$0xff]
        %v3689 = vld [vmem:[%s3467 + $0x6e8] sm:$0xff]
        %v3690 = vld [vmem:[%s3467 + $0x6f0] sm:$0xff]
        %v3691 = vld [vmem:[%s3467 + $0x6f8] sm:$0xff]
        %v3692 = vld [vmem:[%s3467 + $0x700] sm:$0xff]
        %v3693 = vld [vmem:[%s3467 + $0x708] sm:$0xff]
        %v3694 = vld [vmem:[%s3467 + $0x710] sm:$0xff]
        %v3695 = vld [vmem:[%s3467 + $0x718] sm:$0xff]
        %v3696 = vld [vmem:[%s3467 + $0x720] sm:$0xff]
        %v3697 = vld [vmem:[%s3467 + $0x728] sm:$0xff]
        %v3698 = vld [vmem:[%s3467 + $0x730] sm:$0xff]
        %v3699 = vld [vmem:[%s3467 + $0x738] sm:$0xff]
        %v3700 = vld [vmem:[%s3467 + $0x740] sm:$0xff]
        %v3701 = vld [vmem:[%s3467 + $0x748] sm:$0xff]
        %v3702 = vld [vmem:[%s3467 + $0x750] sm:$0xff]
        %v3703 = vld [vmem:[%s3467 + $0x758] sm:$0xff]
        %v3704 = vld [vmem:[%s3467 + $0x760] sm:$0xff]
        %v3705 = vld [vmem:[%s3467 + $0x768] sm:$0xff]
        %v3706 = vld [vmem:[%s3467 + $0x770] sm:$0xff]
        %v3707 = vld [vmem:[%s3467 + $0x778] sm:$0xff]
        %v3708 = vld [vmem:[%s3467 + $0x780] sm:$0xff]
        %v3709 = vld [vmem:[%s3467 + $0x788] sm:$0xff]
        %v3710 = vld [vmem:[%s3467 + $0x790] sm:$0xff]
        %v3711 = vld [vmem:[%s3467 + $0x798] sm:$0xff]
        %v3712 = vld [vmem:[%s3467 + $0x7a0] sm:$0xff]
        %v3713 = vld [vmem:[%s3467 + $0x7a8] sm:$0xff]
        %v3714 = vld [vmem:[%s3467 + $0x7b0] sm:$0xff]
        %v3715 = vld [vmem:[%s3467 + $0x7b8] sm:$0xff]
        %v3716 = vld [vmem:[%s3467 + $0x7c0] sm:$0xff]
        %v3717 = vld [vmem:[%s3467 + $0x7c8] sm:$0xff]
        %v3718 = vld [vmem:[%s3467 + $0x7d0] sm:$0xff]
        %v3719 = vld [vmem:[%s3467 + $0x7d8] sm:$0xff]
        %v3720 = vld [vmem:[%s3467 + $0x7e0] sm:$0xff]
        %v3721 = vld [vmem:[%s3467 + $0x7e8] sm:$0xff]
        %v3722 = vld [vmem:[%s3467 + $0x7f0] sm:$0xff]
        %v3723 = vld [vmem:[%s3467 + $0x7f8] sm:$0xff]
        %v3724 = vld [vmem:[%s3467 + $0x800] sm:$0xff]
        %v3725 = vld [vmem:[%s3467 + $0x808] sm:$0xff]
        %v3726 = vld [vmem:[%s3467 + $0x810] sm:$0xff]
        %v3727 = vld [vmem:[%s3467 + $0x818] sm:$0xff]
        %v3728 = vld [vmem:[%s3467 + $0x820] sm:$0xff]
        %v3729 = vld [vmem:[%s3467 + $0x828] sm:$0xff]
        %v3730 = vld [vmem:[%s3467 + $0x830] sm:$0xff]
        %v3731 = vld [vmem:[%s3467 + $0x838] sm:$0xff]
        %v3732 = vld [vmem:[%s3467 + $0x840] sm:$0xff]
        %v3733 = vld [vmem:[%s3467 + $0x848] sm:$0xff]
        %v3734 = vld [vmem:[%s3467 + $0x850] sm:$0xff]
        %v3735 = vld [vmem:[%s3467 + $0x858] sm:$0xff]
        %v3736 = vld [vmem:[%s3467 + $0x860] sm:$0xff]
        %v3737 = vld [vmem:[%s3467 + $0x868] sm:$0xff]
        %v3738 = vld [vmem:[%s3467 + $0x870] sm:$0xff]
        %v3739 = vld [vmem:[%s3467 + $0x878] sm:$0xff]
        %v3740 = vld [vmem:[%s3467 + $0x880] sm:$0xff]
        %v3741 = vld [vmem:[%s3467 + $0x888] sm:$0xff]
        %v3742 = vld [vmem:[%s3467 + $0x890] sm:$0xff]
        %v3743 = vld [vmem:[%s3467 + $0x898] sm:$0xff]
        %v3744 = vld [vmem:[%s3467 + $0x8a0] sm:$0xff]
        %v3745 = vld [vmem:[%s3467 + $0x8a8] sm:$0xff]
        %v3746 = vld [vmem:[%s3467 + $0x8b0] sm:$0xff]
        %v3747 = vld [vmem:[%s3467 + $0x8b8] sm:$0xff]
        %v3748 = vld [vmem:[%s3467 + $0x8c0] sm:$0xff]
        %v3749 = vld [vmem:[%s3467 + $0x8c8] sm:$0xff]
        %v3750 = vld [vmem:[%s3467 + $0x8d0] sm:$0xff]
        %v3751 = vld [vmem:[%s3467 + $0x8d8] sm:$0xff]
        %v3752 = vld [vmem:[%s3467 + $0x8e0] sm:$0xff]
        %v3753 = vld [vmem:[%s3467 + $0x8e8] sm:$0xff]
        %v3754 = vld [vmem:[%s3467 + $0x8f0] sm:$0xff]
        %v3755 = vld [vmem:[%s3467 + $0x8f8] sm:$0xff]
        %v4044 = vunpack.c.l.b16 %v3468
        %v4045 = vunpack.c.h.b16 %v3468
        %v4046 = vunpack.c.l.b16 %v3469
        %v4047 = vunpack.c.h.b16 %v3469
        %v4048 = vunpack.c.l.b16 %v3470
        %v4049 = vunpack.c.h.b16 %v3470
        %v4050 = vunpack.c.l.b16 %v3471
        %v4051 = vunpack.c.h.b16 %v3471
        %v4052 = vunpack.c.l.b16 %v3472
        %v4053 = vunpack.c.h.b16 %v3472
        %v4054 = vunpack.c.l.b16 %v3473
        %v4055 = vunpack.c.h.b16 %v3473
        %v4056 = vunpack.c.l.b16 %v3474
        %v4057 = vunpack.c.h.b16 %v3474
        %v4058 = vunpack.c.l.b16 %v3475
        %v4059 = vunpack.c.h.b16 %v3475
        %v4060 = vunpack.c.l.b16 %v3476
        %v4061 = vunpack.c.h.b16 %v3476
        %v4062 = vunpack.c.l.b16 %v3477
        %v4063 = vunpack.c.h.b16 %v3477
        %v4064 = vunpack.c.l.b16 %v3478
        %v4065 = vunpack.c.h.b16 %v3478
        %v4066 = vunpack.c.l.b16 %v3479
        %v4067 = vunpack.c.h.b16 %v3479
        %v4068 = vunpack.c.l.b16 %v3480
        %v4069 = vunpack.c.h.b16 %v3480
        %v4070 = vunpack.c.l.b16 %v3481
        %v4071 = vunpack.c.h.b16 %v3481
        %v4072 = vunpack.c.l.b16 %v3482
        %v4073 = vunpack.c.h.b16 %v3482
        %v4074 = vunpack.c.l.b16 %v3483
        %v4075 = vunpack.c.h.b16 %v3483
        %v4076 = vunpack.c.l.b16 %v3484
        %v4077 = vunpack.c.h.b16 %v3484
        %v4078 = vunpack.c.l.b16 %v3485
        %v4079 = vunpack.c.h.b16 %v3485
        %v4080 = vunpack.c.l.b16 %v3486
        %v4081 = vunpack.c.h.b16 %v3486
        %v4082 = vunpack.c.l.b16 %v3487
        %v4083 = vunpack.c.h.b16 %v3487
        %v4084 = vunpack.c.l.b16 %v3488
        %v4085 = vunpack.c.h.b16 %v3488
        %v4086 = vunpack.c.l.b16 %v3489
        %v4087 = vunpack.c.h.b16 %v3489
        %v4088 = vunpack.c.l.b16 %v3490
        %v4089 = vunpack.c.h.b16 %v3490
        %v4090 = vunpack.c.l.b16 %v3491
        %v4091 = vunpack.c.h.b16 %v3491
        %v4092 = vunpack.c.l.b16 %v3492
        %v4093 = vunpack.c.h.b16 %v3492
        %v4094 = vunpack.c.l.b16 %v3493
        %v4095 = vunpack.c.h.b16 %v3493
        %v4096 = vunpack.c.l.b16 %v3494
        %v4097 = vunpack.c.h.b16 %v3494
        %v4098 = vunpack.c.l.b16 %v3495
        %v4099 = vunpack.c.h.b16 %v3495
        %v4100 = vunpack.c.l.b16 %v3496
        %v4101 = vunpack.c.h.b16 %v3496
        %v4102 = vunpack.c.l.b16 %v3497
        %v4103 = vunpack.c.h.b16 %v3497
        %v4104 = vunpack.c.l.b16 %v3498
        %v4105 = vunpack.c.h.b16 %v3498
        %v4106 = vunpack.c.l.b16 %v3499
        %v4107 = vunpack.c.h.b16 %v3499
        %v4108 = vunpack.c.l.b16 %v3500
        %v4109 = vunpack.c.h.b16 %v3500
        %v4110 = vunpack.c.l.b16 %v3501
        %v4111 = vunpack.c.h.b16 %v3501
        %v4112 = vunpack.c.l.b16 %v3502
        %v4113 = vunpack.c.h.b16 %v3502
        %v4114 = vunpack.c.l.b16 %v3503
        %v4115 = vunpack.c.h.b16 %v3503
        %v4116 = vunpack.c.l.b16 %v3504
        %v4117 = vunpack.c.h.b16 %v3504
        %v4118 = vunpack.c.l.b16 %v3505
        %v4119 = vunpack.c.h.b16 %v3505
        %v4120 = vunpack.c.l.b16 %v3506
        %v4121 = vunpack.c.h.b16 %v3506
        %v4122 = vunpack.c.l.b16 %v3507
        %v4123 = vunpack.c.h.b16 %v3507
        %v4124 = vunpack.c.l.b16 %v3508
        %v4125 = vunpack.c.h.b16 %v3508
        %v4126 = vunpack.c.l.b16 %v3509
        %v4127 = vunpack.c.h.b16 %v3509
        %v4128 = vunpack.c.l.b16 %v3510
        %v4129 = vunpack.c.h.b16 %v3510
        %v4130 = vunpack.c.l.b16 %v3511
        %v4131 = vunpack.c.h.b16 %v3511
        %v4132 = vunpack.c.l.b16 %v3512
        %v4133 = vunpack.c.h.b16 %v3512
        %v4134 = vunpack.c.l.b16 %v3513
        %v4135 = vunpack.c.h.b16 %v3513
        %v4136 = vunpack.c.l.b16 %v3514
        %v4137 = vunpack.c.h.b16 %v3514
        %v4138 = vunpack.c.l.b16 %v3515
        %v4139 = vunpack.c.h.b16 %v3515
        %v4140 = vunpack.c.l.b16 %v3516
        %v4141 = vunpack.c.h.b16 %v3516
        %v4142 = vunpack.c.l.b16 %v3517
        %v4143 = vunpack.c.h.b16 %v3517
        %v4144 = vunpack.c.l.b16 %v3518
        %v4145 = vunpack.c.h.b16 %v3518
        %v4146 = vunpack.c.l.b16 %v3519
        %v4147 = vunpack.c.h.b16 %v3519
        %v4148 = vunpack.c.l.b16 %v3520
        %v4149 = vunpack.c.h.b16 %v3520
        %v4150 = vunpack.c.l.b16 %v3521
        %v4151 = vunpack.c.h.b16 %v3521
        %v4152 = vunpack.c.l.b16 %v3522
        %v4153 = vunpack.c.h.b16 %v3522
        %v4154 = vunpack.c.l.b16 %v3523
        %v4155 = vunpack.c.h.b16 %v3523
        %v4156 = vunpack.c.l.b16 %v3524
        %v4157 = vunpack.c.h.b16 %v3524
        %v4158 = vunpack.c.l.b16 %v3525
        %v4159 = vunpack.c.h.b16 %v3525
        %v4160 = vunpack.c.l.b16 %v3526
        %v4161 = vunpack.c.h.b16 %v3526
        %v4162 = vunpack.c.l.b16 %v3527
        %v4163 = vunpack.c.h.b16 %v3527
        %v4164 = vunpack.c.l.b16 %v3528
        %v4165 = vunpack.c.h.b16 %v3528
        %v4166 = vunpack.c.l.b16 %v3529
        %v4167 = vunpack.c.h.b16 %v3529
        %v4168 = vunpack.c.l.b16 %v3530
        %v4169 = vunpack.c.h.b16 %v3530
        %v4170 = vunpack.c.l.b16 %v3531
        %v4171 = vunpack.c.h.b16 %v3531
        %v4172 = vunpack.c.l.b16 %v3532
        %v4173 = vunpack.c.h.b16 %v3532
        %v4174 = vunpack.c.l.b16 %v3533
        %v4175 = vunpack.c.h.b16 %v3533
        %v4176 = vunpack.c.l.b16 %v3534
        %v4177 = vunpack.c.h.b16 %v3534
        %v4178 = vunpack.c.l.b16 %v3535
        %v4179 = vunpack.c.h.b16 %v3535
        %v4180 = vunpack.c.l.b16 %v3536
        %v4181 = vunpack.c.h.b16 %v3536
        %v4182 = vunpack.c.l.b16 %v3537
        %v4183 = vunpack.c.h.b16 %v3537
        %v4184 = vunpack.c.l.b16 %v3538
        %v4185 = vunpack.c.h.b16 %v3538
        %v4186 = vunpack.c.l.b16 %v3539
        %v4187 = vunpack.c.h.b16 %v3539
        %v4188 = vunpack.c.l.b16 %v3540
        %v4189 = vunpack.c.h.b16 %v3540
        %v4190 = vunpack.c.l.b16 %v3541
        %v4191 = vunpack.c.h.b16 %v3541
        %v4192 = vunpack.c.l.b16 %v3542
        %v4193 = vunpack.c.h.b16 %v3542
        %v4194 = vunpack.c.l.b16 %v3543
        %v4195 = vunpack.c.h.b16 %v3543
        %v4196 = vunpack.c.l.b16 %v3544
        %v4197 = vunpack.c.h.b16 %v3544
        %v4198 = vunpack.c.l.b16 %v3545
        %v4199 = vunpack.c.h.b16 %v3545
        %v4200 = vunpack.c.l.b16 %v3546
        %v4201 = vunpack.c.h.b16 %v3546
        %v4202 = vunpack.c.l.b16 %v3547
        %v4203 = vunpack.c.h.b16 %v3547
        %v4204 = vunpack.c.l.b16 %v3548
        %v4205 = vunpack.c.h.b16 %v3548
        %v4206 = vunpack.c.l.b16 %v3549
        %v4207 = vunpack.c.h.b16 %v3549
        %v4208 = vunpack.c.l.b16 %v3550
        %v4209 = vunpack.c.h.b16 %v3550
        %v4210 = vunpack.c.l.b16 %v3551
        %v4211 = vunpack.c.h.b16 %v3551
        %v4212 = vunpack.c.l.b16 %v3552
        %v4213 = vunpack.c.h.b16 %v3552
        %v4214 = vunpack.c.l.b16 %v3553
        %v4215 = vunpack.c.h.b16 %v3553
        %v4216 = vunpack.c.l.b16 %v3554
        %v4217 = vunpack.c.h.b16 %v3554
        %v4218 = vunpack.c.l.b16 %v3555
        %v4219 = vunpack.c.h.b16 %v3555
        %v4220 = vunpack.c.l.b16 %v3556
        %v4221 = vunpack.c.h.b16 %v3556
        %v4222 = vunpack.c.l.b16 %v3557
        %v4223 = vunpack.c.h.b16 %v3557
        %v4224 = vunpack.c.l.b16 %v3558
        %v4225 = vunpack.c.h.b16 %v3558
        %v4226 = vunpack.c.l.b16 %v3559
        %v4227 = vunpack.c.h.b16 %v3559
        %v4228 = vunpack.c.l.b16 %v3560
        %v4229 = vunpack.c.h.b16 %v3560
        %v4230 = vunpack.c.l.b16 %v3561
        %v4231 = vunpack.c.h.b16 %v3561
        %v4232 = vunpack.c.l.b16 %v3562
        %v4233 = vunpack.c.h.b16 %v3562
        %v4234 = vunpack.c.l.b16 %v3563
        %v4235 = vunpack.c.h.b16 %v3563
        %v4236 = vunpack.c.l.b16 %v3564
        %v4237 = vunpack.c.h.b16 %v3564
        %v4238 = vunpack.c.l.b16 %v3565
        %v4239 = vunpack.c.h.b16 %v3565
        %v4240 = vunpack.c.l.b16 %v3566
        %v4241 = vunpack.c.h.b16 %v3566
        %v4242 = vunpack.c.l.b16 %v3567
        %v4243 = vunpack.c.h.b16 %v3567
        %v4244 = vunpack.c.l.b16 %v3568
        %v4245 = vunpack.c.h.b16 %v3568
        %v4246 = vunpack.c.l.b16 %v3569
        %v4247 = vunpack.c.h.b16 %v3569
        %v4248 = vunpack.c.l.b16 %v3570
        %v4249 = vunpack.c.h.b16 %v3570
        %v4250 = vunpack.c.l.b16 %v3571
        %v4251 = vunpack.c.h.b16 %v3571
        %v4252 = vunpack.c.l.b16 %v3572
        %v4253 = vunpack.c.h.b16 %v3572
        %v4254 = vunpack.c.l.b16 %v3573
        %v4255 = vunpack.c.h.b16 %v3573
        %v4256 = vunpack.c.l.b16 %v3574
        %v4257 = vunpack.c.h.b16 %v3574
        %v4258 = vunpack.c.l.b16 %v3575
        %v4259 = vunpack.c.h.b16 %v3575
        %v4260 = vunpack.c.l.b16 %v3576
        %v4261 = vunpack.c.h.b16 %v3576
        %v4262 = vunpack.c.l.b16 %v3577
        %v4263 = vunpack.c.h.b16 %v3577
        %v4264 = vunpack.c.l.b16 %v3578
        %v4265 = vunpack.c.h.b16 %v3578
        %v4266 = vunpack.c.l.b16 %v3579
        %v4267 = vunpack.c.h.b16 %v3579
        %v4268 = vunpack.c.l.b16 %v3580
        %v4269 = vunpack.c.h.b16 %v3580
        %v4270 = vunpack.c.l.b16 %v3581
        %v4271 = vunpack.c.h.b16 %v3581
        %v4272 = vunpack.c.l.b16 %v3582
        %v4273 = vunpack.c.h.b16 %v3582
        %v4274 = vunpack.c.l.b16 %v3583
        %v4275 = vunpack.c.h.b16 %v3583
        %v4276 = vunpack.c.l.b16 %v3584
        %v4277 = vunpack.c.h.b16 %v3584
        %v4278 = vunpack.c.l.b16 %v3585
        %v4279 = vunpack.c.h.b16 %v3585
        %v4280 = vunpack.c.l.b16 %v3586
        %v4281 = vunpack.c.h.b16 %v3586
        %v4282 = vunpack.c.l.b16 %v3587
        %v4283 = vunpack.c.h.b16 %v3587
        %v4284 = vunpack.c.l.b16 %v3588
        %v4285 = vunpack.c.h.b16 %v3588
        %v4286 = vunpack.c.l.b16 %v3589
        %v4287 = vunpack.c.h.b16 %v3589
        %v4288 = vunpack.c.l.b16 %v3590
        %v4289 = vunpack.c.h.b16 %v3590
        %v4290 = vunpack.c.l.b16 %v3591
        %v4291 = vunpack.c.h.b16 %v3591
        %v4292 = vunpack.c.l.b16 %v3592
        %v4293 = vunpack.c.h.b16 %v3592
        %v4294 = vunpack.c.l.b16 %v3593
        %v4295 = vunpack.c.h.b16 %v3593
        %v4296 = vunpack.c.l.b16 %v3594
        %v4297 = vunpack.c.h.b16 %v3594
        %v4298 = vunpack.c.l.b16 %v3595
        %v4299 = vunpack.c.h.b16 %v3595
        %v4300 = vunpack.c.l.b16 %v3596
        %v4301 = vunpack.c.h.b16 %v3596
        %v4302 = vunpack.c.l.b16 %v3597
        %v4303 = vunpack.c.h.b16 %v3597
        %v4304 = vunpack.c.l.b16 %v3598
        %v4305 = vunpack.c.h.b16 %v3598
        %v4306 = vunpack.c.l.b16 %v3599
        %v4307 = vunpack.c.h.b16 %v3599
        %v4308 = vunpack.c.l.b16 %v3600
        %v4309 = vunpack.c.h.b16 %v3600
        %v4310 = vunpack.c.l.b16 %v3601
        %v4311 = vunpack.c.h.b16 %v3601
        %v4312 = vunpack.c.l.b16 %v3602
        %v4313 = vunpack.c.h.b16 %v3602
        %v4314 = vunpack.c.l.b16 %v3603
        %v4315 = vunpack.c.h.b16 %v3603
        %v4316 = vunpack.c.l.b16 %v3604
        %v4317 = vunpack.c.h.b16 %v3604
        %v4318 = vunpack.c.l.b16 %v3605
        %v4319 = vunpack.c.h.b16 %v3605
        %v4320 = vunpack.c.l.b16 %v3606
        %v4321 = vunpack.c.h.b16 %v3606
        %v4322 = vunpack.c.l.b16 %v3607
        %v4323 = vunpack.c.h.b16 %v3607
        %v4324 = vunpack.c.l.b16 %v3608
        %v4325 = vunpack.c.h.b16 %v3608
        %v4326 = vunpack.c.l.b16 %v3609
        %v4327 = vunpack.c.h.b16 %v3609
        %v4328 = vunpack.c.l.b16 %v3610
        %v4329 = vunpack.c.h.b16 %v3610
        %v4330 = vunpack.c.l.b16 %v3611
        %v4331 = vunpack.c.h.b16 %v3611
        %v4332 = vunpack.c.l.b16 %v3612
        %v4333 = vunpack.c.h.b16 %v3612
        %v4334 = vunpack.c.l.b16 %v3613
        %v4335 = vunpack.c.h.b16 %v3613
        %v4336 = vunpack.c.l.b16 %v3614
        %v4337 = vunpack.c.h.b16 %v3614
        %v4338 = vunpack.c.l.b16 %v3615
        %v4339 = vunpack.c.h.b16 %v3615
        %v4340 = vunpack.c.l.b16 %v3616
        %v4341 = vunpack.c.h.b16 %v3616
        %v4342 = vunpack.c.l.b16 %v3617
        %v4343 = vunpack.c.h.b16 %v3617
        %v4344 = vunpack.c.l.b16 %v3618
        %v4345 = vunpack.c.h.b16 %v3618
        %v4346 = vunpack.c.l.b16 %v3619
        %v4347 = vunpack.c.h.b16 %v3619
        %v4348 = vunpack.c.l.b16 %v3620
        %v4349 = vunpack.c.h.b16 %v3620
        %v4350 = vunpack.c.l.b16 %v3621
        %v4351 = vunpack.c.h.b16 %v3621
        %v4352 = vunpack.c.l.b16 %v3622
        %v4353 = vunpack.c.h.b16 %v3622
        %v4354 = vunpack.c.l.b16 %v3623
        %v4355 = vunpack.c.h.b16 %v3623
        %v4356 = vunpack.c.l.b16 %v3624
        %v4357 = vunpack.c.h.b16 %v3624
        %v4358 = vunpack.c.l.b16 %v3625
        %v4359 = vunpack.c.h.b16 %v3625
        %v4360 = vunpack.c.l.b16 %v3626
        %v4361 = vunpack.c.h.b16 %v3626
        %v4362 = vunpack.c.l.b16 %v3627
        %v4363 = vunpack.c.h.b16 %v3627
        %v4364 = vunpack.c.l.b16 %v3628
        %v4365 = vunpack.c.h.b16 %v3628
        %v4366 = vunpack.c.l.b16 %v3629
        %v4367 = vunpack.c.h.b16 %v3629
        %v4368 = vunpack.c.l.b16 %v3630
        %v4369 = vunpack.c.h.b16 %v3630
        %v4370 = vunpack.c.l.b16 %v3631
        %v4371 = vunpack.c.h.b16 %v3631
        %v4372 = vunpack.c.l.b16 %v3632
        %v4373 = vunpack.c.h.b16 %v3632
        %v4374 = vunpack.c.l.b16 %v3633
        %v4375 = vunpack.c.h.b16 %v3633
        %v4376 = vunpack.c.l.b16 %v3634
        %v4377 = vunpack.c.h.b16 %v3634
        %v4378 = vunpack.c.l.b16 %v3635
        %v4379 = vunpack.c.h.b16 %v3635
        %v4380 = vunpack.c.l.b16 %v3636
        %v4381 = vunpack.c.h.b16 %v3636
        %v4382 = vunpack.c.l.b16 %v3637
        %v4383 = vunpack.c.h.b16 %v3637
        %v4384 = vunpack.c.l.b16 %v3638
        %v4385 = vunpack.c.h.b16 %v3638
        %v4386 = vunpack.c.l.b16 %v3639
        %v4387 = vunpack.c.h.b16 %v3639
        %v4388 = vunpack.c.l.b16 %v3640
        %v4389 = vunpack.c.h.b16 %v3640
        %v4390 = vunpack.c.l.b16 %v3641
        %v4391 = vunpack.c.h.b16 %v3641
        %v4392 = vunpack.c.l.b16 %v3642
        %v4393 = vunpack.c.h.b16 %v3642
        %v4394 = vunpack.c.l.b16 %v3643
        %v4395 = vunpack.c.h.b16 %v3643
        %v4396 = vunpack.c.l.b16 %v3644
        %v4397 = vunpack.c.h.b16 %v3644
        %v4398 = vunpack.c.l.b16 %v3645
        %v4399 = vunpack.c.h.b16 %v3645
        %v4400 = vunpack.c.l.b16 %v3646
        %v4401 = vunpack.c.h.b16 %v3646
        %v4402 = vunpack.c.l.b16 %v3647
        %v4403 = vunpack.c.h.b16 %v3647
        %v4404 = vunpack.c.l.b16 %v3648
        %v4405 = vunpack.c.h.b16 %v3648
        %v4406 = vunpack.c.l.b16 %v3649
        %v4407 = vunpack.c.h.b16 %v3649
        %v4408 = vunpack.c.l.b16 %v3650
        %v4409 = vunpack.c.h.b16 %v3650
        %v4410 = vunpack.c.l.b16 %v3651
        %v4411 = vunpack.c.h.b16 %v3651
        %v4412 = vunpack.c.l.b16 %v3652
        %v4413 = vunpack.c.h.b16 %v3652
        %v4414 = vunpack.c.l.b16 %v3653
        %v4415 = vunpack.c.h.b16 %v3653
        %v4416 = vunpack.c.l.b16 %v3654
        %v4417 = vunpack.c.h.b16 %v3654
        %v4418 = vunpack.c.l.b16 %v3655
        %v4419 = vunpack.c.h.b16 %v3655
        %v4420 = vunpack.c.l.b16 %v3656
        %v4421 = vunpack.c.h.b16 %v3656
        %v4422 = vunpack.c.l.b16 %v3657
        %v4423 = vunpack.c.h.b16 %v3657
        %v4424 = vunpack.c.l.b16 %v3658
        %v4425 = vunpack.c.h.b16 %v3658
        %v4426 = vunpack.c.l.b16 %v3659
        %v4427 = vunpack.c.h.b16 %v3659
        %v4428 = vunpack.c.l.b16 %v3660
        %v4429 = vunpack.c.h.b16 %v3660
        %v4430 = vunpack.c.l.b16 %v3661
        %v4431 = vunpack.c.h.b16 %v3661
        %v4432 = vunpack.c.l.b16 %v3662
        %v4433 = vunpack.c.h.b16 %v3662
        %v4434 = vunpack.c.l.b16 %v3663
        %v4435 = vunpack.c.h.b16 %v3663
        %v4436 = vunpack.c.l.b16 %v3664
        %v4437 = vunpack.c.h.b16 %v3664
        %v4438 = vunpack.c.l.b16 %v3665
        %v4439 = vunpack.c.h.b16 %v3665
        %v4440 = vunpack.c.l.b16 %v3666
        %v4441 = vunpack.c.h.b16 %v3666
        %v4442 = vunpack.c.l.b16 %v3667
        %v4443 = vunpack.c.h.b16 %v3667
        %v4444 = vunpack.c.l.b16 %v3668
        %v4445 = vunpack.c.h.b16 %v3668
        %v4446 = vunpack.c.l.b16 %v3669
        %v4447 = vunpack.c.h.b16 %v3669
        %v4448 = vunpack.c.l.b16 %v3670
        %v4449 = vunpack.c.h.b16 %v3670
        %v4450 = vunpack.c.l.b16 %v3671
        %v4451 = vunpack.c.h.b16 %v3671
        %v4452 = vunpack.c.l.b16 %v3672
        %v4453 = vunpack.c.h.b16 %v3672
        %v4454 = vunpack.c.l.b16 %v3673
        %v4455 = vunpack.c.h.b16 %v3673
        %v4456 = vunpack.c.l.b16 %v3674
        %v4457 = vunpack.c.h.b16 %v3674
        %v4458 = vunpack.c.l.b16 %v3675
        %v4459 = vunpack.c.h.b16 %v3675
        %v4460 = vunpack.c.l.b16 %v3676
        %v4461 = vunpack.c.h.b16 %v3676
        %v4462 = vunpack.c.l.b16 %v3677
        %v4463 = vunpack.c.h.b16 %v3677
        %v4464 = vunpack.c.l.b16 %v3678
        %v4465 = vunpack.c.h.b16 %v3678
        %v4466 = vunpack.c.l.b16 %v3679
        %v4467 = vunpack.c.h.b16 %v3679
        %v4468 = vunpack.c.l.b16 %v3680
        %v4469 = vunpack.c.h.b16 %v3680
        %v4470 = vunpack.c.l.b16 %v3681
        %v4471 = vunpack.c.h.b16 %v3681
        %v4472 = vunpack.c.l.b16 %v3682
        %v4473 = vunpack.c.h.b16 %v3682
        %v4474 = vunpack.c.l.b16 %v3683
        %v4475 = vunpack.c.h.b16 %v3683
        %v4476 = vunpack.c.l.b16 %v3684
        %v4477 = vunpack.c.h.b16 %v3684
        %v4478 = vunpack.c.l.b16 %v3685
        %v4479 = vunpack.c.h.b16 %v3685
        %v4480 = vunpack.c.l.b16 %v3686
        %v4481 = vunpack.c.h.b16 %v3686
        %v4482 = vunpack.c.l.b16 %v3687
        %v4483 = vunpack.c.h.b16 %v3687
        %v4484 = vunpack.c.l.b16 %v3688
        %v4485 = vunpack.c.h.b16 %v3688
        %v4486 = vunpack.c.l.b16 %v3689
        %v4487 = vunpack.c.h.b16 %v3689
        %v4488 = vunpack.c.l.b16 %v3690
        %v4489 = vunpack.c.h.b16 %v3690
        %v4490 = vunpack.c.l.b16 %v3691
        %v4491 = vunpack.c.h.b16 %v3691
        %v4492 = vunpack.c.l.b16 %v3692
        %v4493 = vunpack.c.h.b16 %v3692
        %v4494 = vunpack.c.l.b16 %v3693
        %v4495 = vunpack.c.h.b16 %v3693
        %v4496 = vunpack.c.l.b16 %v3694
        %v4497 = vunpack.c.h.b16 %v3694
        %v4498 = vunpack.c.l.b16 %v3695
        %v4499 = vunpack.c.h.b16 %v3695
        %v4500 = vunpack.c.l.b16 %v3696
        %v4501 = vunpack.c.h.b16 %v3696
        %v4502 = vunpack.c.l.b16 %v3697
        %v4503 = vunpack.c.h.b16 %v3697
        %v4504 = vunpack.c.l.b16 %v3698
        %v4505 = vunpack.c.h.b16 %v3698
        %v4506 = vunpack.c.l.b16 %v3699
        %v4507 = vunpack.c.h.b16 %v3699
        %v4508 = vunpack.c.l.b16 %v3700
        %v4509 = vunpack.c.h.b16 %v3700
        %v4510 = vunpack.c.l.b16 %v3701
        %v4511 = vunpack.c.h.b16 %v3701
        %v4512 = vunpack.c.l.b16 %v3702
        %v4513 = vunpack.c.h.b16 %v3702
        %v4514 = vunpack.c.l.b16 %v3703
        %v4515 = vunpack.c.h.b16 %v3703
        %v4516 = vunpack.c.l.b16 %v3704
        %v4517 = vunpack.c.h.b16 %v3704
        %v4518 = vunpack.c.l.b16 %v3705
        %v4519 = vunpack.c.h.b16 %v3705
        %v4520 = vunpack.c.l.b16 %v3706
        %v4521 = vunpack.c.h.b16 %v3706
        %v4522 = vunpack.c.l.b16 %v3707
        %v4523 = vunpack.c.h.b16 %v3707
        %v4524 = vunpack.c.l.b16 %v3708
        %v4525 = vunpack.c.h.b16 %v3708
        %v4526 = vunpack.c.l.b16 %v3709
        %v4527 = vunpack.c.h.b16 %v3709
        %v4528 = vunpack.c.l.b16 %v3710
        %v4529 = vunpack.c.h.b16 %v3710
        %v4530 = vunpack.c.l.b16 %v3711
        %v4531 = vunpack.c.h.b16 %v3711
        %v4532 = vunpack.c.l.b16 %v3712
        %v4533 = vunpack.c.h.b16 %v3712
        %v4534 = vunpack.c.l.b16 %v3713
        %v4535 = vunpack.c.h.b16 %v3713
        %v4536 = vunpack.c.l.b16 %v3714
        %v4537 = vunpack.c.h.b16 %v3714
        %v4538 = vunpack.c.l.b16 %v3715
        %v4539 = vunpack.c.h.b16 %v3715
        %v4540 = vunpack.c.l.b16 %v3716
        %v4541 = vunpack.c.h.b16 %v3716
        %v4542 = vunpack.c.l.b16 %v3717
        %v4543 = vunpack.c.h.b16 %v3717
        %v4544 = vunpack.c.l.b16 %v3718
        %v4545 = vunpack.c.h.b16 %v3718
        %v4546 = vunpack.c.l.b16 %v3719
        %v4547 = vunpack.c.h.b16 %v3719
        %v4548 = vunpack.c.l.b16 %v3720
        %v4549 = vunpack.c.h.b16 %v3720
        %v4550 = vunpack.c.l.b16 %v3721
        %v4551 = vunpack.c.h.b16 %v3721
        %v4552 = vunpack.c.l.b16 %v3722
        %v4553 = vunpack.c.h.b16 %v3722
        %v4554 = vunpack.c.l.b16 %v3723
        %v4555 = vunpack.c.h.b16 %v3723
        %v4556 = vunpack.c.l.b16 %v3724
        %v4557 = vunpack.c.h.b16 %v3724
        %v4558 = vunpack.c.l.b16 %v3725
        %v4559 = vunpack.c.h.b16 %v3725
        %v4560 = vunpack.c.l.b16 %v3726
        %v4561 = vunpack.c.h.b16 %v3726
        %v4562 = vunpack.c.l.b16 %v3727
        %v4563 = vunpack.c.h.b16 %v3727
        %v4564 = vunpack.c.l.b16 %v3728
        %v4565 = vunpack.c.h.b16 %v3728
        %v4566 = vunpack.c.l.b16 %v3729
        %v4567 = vunpack.c.h.b16 %v3729
        %v4568 = vunpack.c.l.b16 %v3730
        %v4569 = vunpack.c.h.b16 %v3730
        %v4570 = vunpack.c.l.b16 %v3731
        %v4571 = vunpack.c.h.b16 %v3731
        %v4572 = vunpack.c.l.b16 %v3732
        %v4573 = vunpack.c.h.b16 %v3732
        %v4574 = vunpack.c.l.b16 %v3733
        %v4575 = vunpack.c.h.b16 %v3733
        %v4576 = vunpack.c.l.b16 %v3734
        %v4577 = vunpack.c.h.b16 %v3734
        %v4578 = vunpack.c.l.b16 %v3735
        %v4579 = vunpack.c.h.b16 %v3735
        %v4580 = vunpack.c.l.b16 %v3736
        %v4581 = vunpack.c.h.b16 %v3736
        %v4582 = vunpack.c.l.b16 %v3737
        %v4583 = vunpack.c.h.b16 %v3737
        %v4584 = vunpack.c.l.b16 %v3738
        %v4585 = vunpack.c.h.b16 %v3738
        %v4586 = vunpack.c.l.b16 %v3739
        %v4587 = vunpack.c.h.b16 %v3739
        %v4588 = vunpack.c.l.b16 %v3740
        %v4589 = vunpack.c.h.b16 %v3740
        %v4590 = vunpack.c.l.b16 %v3741
        %v4591 = vunpack.c.h.b16 %v3741
        %v4592 = vunpack.c.l.b16 %v3742
        %v4593 = vunpack.c.h.b16 %v3742
        %v4594 = vunpack.c.l.b16 %v3743
        %v4595 = vunpack.c.h.b16 %v3743
        %v4596 = vunpack.c.l.b16 %v3744
        %v4597 = vunpack.c.h.b16 %v3744
        %v4598 = vunpack.c.l.b16 %v3745
        %v4599 = vunpack.c.h.b16 %v3745
        %v4600 = vunpack.c.l.b16 %v3746
        %v4601 = vunpack.c.h.b16 %v3746
        %v4602 = vunpack.c.l.b16 %v3747
        %v4603 = vunpack.c.h.b16 %v3747
        %v4604 = vunpack.c.l.b16 %v3748
        %v4605 = vunpack.c.h.b16 %v3748
        %v4606 = vunpack.c.l.b16 %v3749
        %v4607 = vunpack.c.h.b16 %v3749
        %v4608 = vunpack.c.l.b16 %v3750
        %v4609 = vunpack.c.h.b16 %v3750
        %v4610 = vunpack.c.l.b16 %v3751
        %v4611 = vunpack.c.h.b16 %v3751
        %v4612 = vunpack.c.l.b16 %v3752
        %v4613 = vunpack.c.h.b16 %v3752
        %v4614 = vunpack.c.l.b16 %v3753
        %v4615 = vunpack.c.h.b16 %v3753
        %v4616 = vunpack.c.l.b16 %v3754
        %v4617 = vunpack.c.h.b16 %v3754
        %v4618 = vunpack.c.l.b16 %v3755
        %v4619 = vunpack.c.h.b16 %v3755
        %v4620 = vpack.c.b16 %v4046, %v4044
        %v4621 = vpack.c.b16 %v4047, %v4045
        %v4622 = vpack.c.b16 %v4050, %v4048
        %v4623 = vpack.c.b16 %v4051, %v4049
        %v4624 = vpack.c.b16 %v4054, %v4052
        %v4625 = vpack.c.b16 %v4055, %v4053
        %v4626 = vpack.c.b16 %v4058, %v4056
        %v4627 = vpack.c.b16 %v4059, %v4057
        %v4628 = vpack.c.b16 %v4062, %v4060
        %v4629 = vpack.c.b16 %v4063, %v4061
        %v4630 = vpack.c.b16 %v4066, %v4064
        %v4631 = vpack.c.b16 %v4067, %v4065
        %v4632 = vpack.c.b16 %v4070, %v4068
        %v4633 = vpack.c.b16 %v4071, %v4069
        %v4634 = vpack.c.b16 %v4074, %v4072
        %v4635 = vpack.c.b16 %v4075, %v4073
        %v4636 = vpack.c.b16 %v4078, %v4076
        %v4637 = vpack.c.b16 %v4079, %v4077
        %v4638 = vpack.c.b16 %v4082, %v4080
        %v4639 = vpack.c.b16 %v4083, %v4081
        %v4640 = vpack.c.b16 %v4086, %v4084
        %v4641 = vpack.c.b16 %v4087, %v4085
        %v4642 = vpack.c.b16 %v4090, %v4088
        %v4643 = vpack.c.b16 %v4091, %v4089
        %v4644 = vpack.c.b16 %v4094, %v4092
        %v4645 = vpack.c.b16 %v4095, %v4093
        %v4646 = vpack.c.b16 %v4098, %v4096
        %v4647 = vpack.c.b16 %v4099, %v4097
        %v4648 = vpack.c.b16 %v4102, %v4100
        %v4649 = vpack.c.b16 %v4103, %v4101
        %v4650 = vpack.c.b16 %v4106, %v4104
        %v4651 = vpack.c.b16 %v4107, %v4105
        %v4652 = vpack.c.b16 %v4110, %v4108
        %v4653 = vpack.c.b16 %v4111, %v4109
        %v4654 = vpack.c.b16 %v4114, %v4112
        %v4655 = vpack.c.b16 %v4115, %v4113
        %v4656 = vpack.c.b16 %v4118, %v4116
        %v4657 = vpack.c.b16 %v4119, %v4117
        %v4658 = vpack.c.b16 %v4122, %v4120
        %v4659 = vpack.c.b16 %v4123, %v4121
        %v4660 = vpack.c.b16 %v4126, %v4124
        %v4661 = vpack.c.b16 %v4127, %v4125
        %v4662 = vpack.c.b16 %v4130, %v4128
        %v4663 = vpack.c.b16 %v4131, %v4129
        %v4664 = vpack.c.b16 %v4134, %v4132
        %v4665 = vpack.c.b16 %v4135, %v4133
        %v4666 = vpack.c.b16 %v4138, %v4136
        %v4667 = vpack.c.b16 %v4139, %v4137
        %v4668 = vpack.c.b16 %v4142, %v4140
        %v4669 = vpack.c.b16 %v4143, %v4141
        %v4670 = vpack.c.b16 %v4146, %v4144
        %v4671 = vpack.c.b16 %v4147, %v4145
        %v4672 = vpack.c.b16 %v4150, %v4148
        %v4673 = vpack.c.b16 %v4151, %v4149
        %v4674 = vpack.c.b16 %v4154, %v4152
        %v4675 = vpack.c.b16 %v4155, %v4153
        %v4676 = vpack.c.b16 %v4158, %v4156
        %v4677 = vpack.c.b16 %v4159, %v4157
        %v4678 = vpack.c.b16 %v4162, %v4160
        %v4679 = vpack.c.b16 %v4163, %v4161
        %v4680 = vpack.c.b16 %v4166, %v4164
        %v4681 = vpack.c.b16 %v4167, %v4165
        %v4682 = vpack.c.b16 %v4170, %v4168
        %v4683 = vpack.c.b16 %v4171, %v4169
        %v4684 = vpack.c.b16 %v4174, %v4172
        %v4685 = vpack.c.b16 %v4175, %v4173
        %v4686 = vpack.c.b16 %v4178, %v4176
        %v4687 = vpack.c.b16 %v4179, %v4177
        %v4688 = vpack.c.b16 %v4182, %v4180
        %v4689 = vpack.c.b16 %v4183, %v4181
        %v4690 = vpack.c.b16 %v4186, %v4184
        %v4691 = vpack.c.b16 %v4187, %v4185
        %v4692 = vpack.c.b16 %v4190, %v4188
        %v4693 = vpack.c.b16 %v4191, %v4189
        %v4694 = vpack.c.b16 %v4194, %v4192
        %v4695 = vpack.c.b16 %v4195, %v4193
        %v4696 = vpack.c.b16 %v4198, %v4196
        %v4697 = vpack.c.b16 %v4199, %v4197
        %v4698 = vpack.c.b16 %v4202, %v4200
        %v4699 = vpack.c.b16 %v4203, %v4201
        %v4700 = vpack.c.b16 %v4206, %v4204
        %v4701 = vpack.c.b16 %v4207, %v4205
        %v4702 = vpack.c.b16 %v4210, %v4208
        %v4703 = vpack.c.b16 %v4211, %v4209
        %v4704 = vpack.c.b16 %v4214, %v4212
        %v4705 = vpack.c.b16 %v4215, %v4213
        %v4706 = vpack.c.b16 %v4218, %v4216
        %v4707 = vpack.c.b16 %v4219, %v4217
        %v4708 = vpack.c.b16 %v4222, %v4220
        %v4709 = vpack.c.b16 %v4223, %v4221
        %v4710 = vpack.c.b16 %v4226, %v4224
        %v4711 = vpack.c.b16 %v4227, %v4225
        %v4712 = vpack.c.b16 %v4230, %v4228
        %v4713 = vpack.c.b16 %v4231, %v4229
        %v4714 = vpack.c.b16 %v4234, %v4232
        %v4715 = vpack.c.b16 %v4235, %v4233
        %v4716 = vpack.c.b16 %v4238, %v4236
        %v4717 = vpack.c.b16 %v4239, %v4237
        %v4718 = vpack.c.b16 %v4242, %v4240
        %v4719 = vpack.c.b16 %v4243, %v4241
        %v4720 = vpack.c.b16 %v4246, %v4244
        %v4721 = vpack.c.b16 %v4247, %v4245
        %v4722 = vpack.c.b16 %v4250, %v4248
        %v4723 = vpack.c.b16 %v4251, %v4249
        %v4724 = vpack.c.b16 %v4254, %v4252
        %v4725 = vpack.c.b16 %v4255, %v4253
        %v4726 = vpack.c.b16 %v4258, %v4256
        %v4727 = vpack.c.b16 %v4259, %v4257
        %v4728 = vpack.c.b16 %v4262, %v4260
        %v4729 = vpack.c.b16 %v4263, %v4261
        %v4730 = vpack.c.b16 %v4266, %v4264
        %v4731 = vpack.c.b16 %v4267, %v4265
        %v4732 = vpack.c.b16 %v4270, %v4268
        %v4733 = vpack.c.b16 %v4271, %v4269
        %v4734 = vpack.c.b16 %v4274, %v4272
        %v4735 = vpack.c.b16 %v4275, %v4273
        %v4736 = vpack.c.b16 %v4278, %v4276
        %v4737 = vpack.c.b16 %v4279, %v4277
        %v4738 = vpack.c.b16 %v4282, %v4280
        %v4739 = vpack.c.b16 %v4283, %v4281
        %v4740 = vpack.c.b16 %v4286, %v4284
        %v4741 = vpack.c.b16 %v4287, %v4285
        %v4742 = vpack.c.b16 %v4290, %v4288
        %v4743 = vpack.c.b16 %v4291, %v4289
        %v4744 = vpack.c.b16 %v4294, %v4292
        %v4745 = vpack.c.b16 %v4295, %v4293
        %v4746 = vpack.c.b16 %v4298, %v4296
        %v4747 = vpack.c.b16 %v4299, %v4297
        %v4748 = vpack.c.b16 %v4302, %v4300
        %v4749 = vpack.c.b16 %v4303, %v4301
        %v4750 = vpack.c.b16 %v4306, %v4304
        %v4751 = vpack.c.b16 %v4307, %v4305
        %v4752 = vpack.c.b16 %v4310, %v4308
        %v4753 = vpack.c.b16 %v4311, %v4309
        %v4754 = vpack.c.b16 %v4314, %v4312
        %v4755 = vpack.c.b16 %v4315, %v4313
        %v4756 = vpack.c.b16 %v4318, %v4316
        %v4757 = vpack.c.b16 %v4319, %v4317
        %v4758 = vpack.c.b16 %v4322, %v4320
        %v4759 = vpack.c.b16 %v4323, %v4321
        %v4760 = vpack.c.b16 %v4326, %v4324
        %v4761 = vpack.c.b16 %v4327, %v4325
        %v4762 = vpack.c.b16 %v4330, %v4328
        %v4763 = vpack.c.b16 %v4331, %v4329
        %v4764 = vpack.c.b16 %v4334, %v4332
        %v4765 = vpack.c.b16 %v4335, %v4333
        %v4766 = vpack.c.b16 %v4338, %v4336
        %v4767 = vpack.c.b16 %v4339, %v4337
        %v4768 = vpack.c.b16 %v4342, %v4340
        %v4769 = vpack.c.b16 %v4343, %v4341
        %v4770 = vpack.c.b16 %v4346, %v4344
        %v4771 = vpack.c.b16 %v4347, %v4345
        %v4772 = vpack.c.b16 %v4350, %v4348
        %v4773 = vpack.c.b16 %v4351, %v4349
        %v4774 = vpack.c.b16 %v4354, %v4352
        %v4775 = vpack.c.b16 %v4355, %v4353
        %v4776 = vpack.c.b16 %v4358, %v4356
        %v4777 = vpack.c.b16 %v4359, %v4357
        %v4778 = vpack.c.b16 %v4362, %v4360
        %v4779 = vpack.c.b16 %v4363, %v4361
        %v4780 = vpack.c.b16 %v4366, %v4364
        %v4781 = vpack.c.b16 %v4367, %v4365
        %v4782 = vpack.c.b16 %v4370, %v4368
        %v4783 = vpack.c.b16 %v4371, %v4369
        %v4784 = vpack.c.b16 %v4374, %v4372
        %v4785 = vpack.c.b16 %v4375, %v4373
        %v4786 = vpack.c.b16 %v4378, %v4376
        %v4787 = vpack.c.b16 %v4379, %v4377
        %v4788 = vpack.c.b16 %v4382, %v4380
        %v4789 = vpack.c.b16 %v4383, %v4381
        %v4790 = vpack.c.b16 %v4386, %v4384
        %v4791 = vpack.c.b16 %v4387, %v4385
        %v4792 = vpack.c.b16 %v4390, %v4388
        %v4793 = vpack.c.b16 %v4391, %v4389
        %v4794 = vpack.c.b16 %v4394, %v4392
        %v4795 = vpack.c.b16 %v4395, %v4393
        %v4796 = vpack.c.b16 %v4398, %v4396
        %v4797 = vpack.c.b16 %v4399, %v4397
        %v4798 = vpack.c.b16 %v4402, %v4400
        %v4799 = vpack.c.b16 %v4403, %v4401
        %v4800 = vpack.c.b16 %v4406, %v4404
        %v4801 = vpack.c.b16 %v4407, %v4405
        %v4802 = vpack.c.b16 %v4410, %v4408
        %v4803 = vpack.c.b16 %v4411, %v4409
        %v4804 = vpack.c.b16 %v4414, %v4412
        %v4805 = vpack.c.b16 %v4415, %v4413
        %v4806 = vpack.c.b16 %v4418, %v4416
        %v4807 = vpack.c.b16 %v4419, %v4417
        %v4808 = vpack.c.b16 %v4422, %v4420
        %v4809 = vpack.c.b16 %v4423, %v4421
        %v4810 = vpack.c.b16 %v4426, %v4424
        %v4811 = vpack.c.b16 %v4427, %v4425
        %v4812 = vpack.c.b16 %v4430, %v4428
        %v4813 = vpack.c.b16 %v4431, %v4429
        %v4814 = vpack.c.b16 %v4434, %v4432
        %v4815 = vpack.c.b16 %v4435, %v4433
        %v4816 = vpack.c.b16 %v4438, %v4436
        %v4817 = vpack.c.b16 %v4439, %v4437
        %v4818 = vpack.c.b16 %v4442, %v4440
        %v4819 = vpack.c.b16 %v4443, %v4441
        %v4820 = vpack.c.b16 %v4446, %v4444
        %v4821 = vpack.c.b16 %v4447, %v4445
        %v4822 = vpack.c.b16 %v4450, %v4448
        %v4823 = vpack.c.b16 %v4451, %v4449
        %v4824 = vpack.c.b16 %v4454, %v4452
        %v4825 = vpack.c.b16 %v4455, %v4453
        %v4826 = vpack.c.b16 %v4458, %v4456
        %v4827 = vpack.c.b16 %v4459, %v4457
        %v4828 = vpack.c.b16 %v4462, %v4460
        %v4829 = vpack.c.b16 %v4463, %v4461
        %v4830 = vpack.c.b16 %v4466, %v4464
        %v4831 = vpack.c.b16 %v4467, %v4465
        %v4832 = vpack.c.b16 %v4470, %v4468
        %v4833 = vpack.c.b16 %v4471, %v4469
        %v4834 = vpack.c.b16 %v4474, %v4472
        %v4835 = vpack.c.b16 %v4475, %v4473
        %v4836 = vpack.c.b16 %v4478, %v4476
        %v4837 = vpack.c.b16 %v4479, %v4477
        %v4838 = vpack.c.b16 %v4482, %v4480
        %v4839 = vpack.c.b16 %v4483, %v4481
        %v4840 = vpack.c.b16 %v4486, %v4484
        %v4841 = vpack.c.b16 %v4487, %v4485
        %v4842 = vpack.c.b16 %v4490, %v4488
        %v4843 = vpack.c.b16 %v4491, %v4489
        %v4844 = vpack.c.b16 %v4494, %v4492
        %v4845 = vpack.c.b16 %v4495, %v4493
        %v4846 = vpack.c.b16 %v4498, %v4496
        %v4847 = vpack.c.b16 %v4499, %v4497
        %v4848 = vpack.c.b16 %v4502, %v4500
        %v4849 = vpack.c.b16 %v4503, %v4501
        %v4850 = vpack.c.b16 %v4506, %v4504
        %v4851 = vpack.c.b16 %v4507, %v4505
        %v4852 = vpack.c.b16 %v4510, %v4508
        %v4853 = vpack.c.b16 %v4511, %v4509
        %v4854 = vpack.c.b16 %v4514, %v4512
        %v4855 = vpack.c.b16 %v4515, %v4513
        %v4856 = vpack.c.b16 %v4518, %v4516
        %v4857 = vpack.c.b16 %v4519, %v4517
        %v4858 = vpack.c.b16 %v4522, %v4520
        %v4859 = vpack.c.b16 %v4523, %v4521
        %v4860 = vpack.c.b16 %v4526, %v4524
        %v4861 = vpack.c.b16 %v4527, %v4525
        %v4862 = vpack.c.b16 %v4530, %v4528
        %v4863 = vpack.c.b16 %v4531, %v4529
        %v4864 = vpack.c.b16 %v4534, %v4532
        %v4865 = vpack.c.b16 %v4535, %v4533
        %v4866 = vpack.c.b16 %v4538, %v4536
        %v4867 = vpack.c.b16 %v4539, %v4537
        %v4868 = vpack.c.b16 %v4542, %v4540
        %v4869 = vpack.c.b16 %v4543, %v4541
        %v4870 = vpack.c.b16 %v4546, %v4544
        %v4871 = vpack.c.b16 %v4547, %v4545
        %v4872 = vpack.c.b16 %v4550, %v4548
        %v4873 = vpack.c.b16 %v4551, %v4549
        %v4874 = vpack.c.b16 %v4554, %v4552
        %v4875 = vpack.c.b16 %v4555, %v4553
        %v4876 = vpack.c.b16 %v4558, %v4556
        %v4877 = vpack.c.b16 %v4559, %v4557
        %v4878 = vpack.c.b16 %v4562, %v4560
        %v4879 = vpack.c.b16 %v4563, %v4561
        %v4880 = vpack.c.b16 %v4566, %v4564
        %v4881 = vpack.c.b16 %v4567, %v4565
        %v4882 = vpack.c.b16 %v4570, %v4568
        %v4883 = vpack.c.b16 %v4571, %v4569
        %v4884 = vpack.c.b16 %v4574, %v4572
        %v4885 = vpack.c.b16 %v4575, %v4573
        %v4886 = vpack.c.b16 %v4578, %v4576
        %v4887 = vpack.c.b16 %v4579, %v4577
        %v4888 = vpack.c.b16 %v4582, %v4580
        %v4889 = vpack.c.b16 %v4583, %v4581
        %v4890 = vpack.c.b16 %v4586, %v4584
        %v4891 = vpack.c.b16 %v4587, %v4585
        %v4892 = vpack.c.b16 %v4590, %v4588
        %v4893 = vpack.c.b16 %v4591, %v4589
        %v4894 = vpack.c.b16 %v4594, %v4592
        %v4895 = vpack.c.b16 %v4595, %v4593
        %v4896 = vpack.c.b16 %v4598, %v4596
        %v4897 = vpack.c.b16 %v4599, %v4597
        %v4898 = vpack.c.b16 %v4602, %v4600
        %v4899 = vpack.c.b16 %v4603, %v4601
        %v4900 = vpack.c.b16 %v4606, %v4604
        %v4901 = vpack.c.b16 %v4607, %v4605
        %v4902 = vpack.c.b16 %v4610, %v4608
        %v4903 = vpack.c.b16 %v4611, %v4609
        %v4904 = vpack.c.b16 %v4614, %v4612
        %v4905 = vpack.c.b16 %v4615, %v4613
        %v4906 = vpack.c.b16 %v4618, %v4616
        %v4907 = vpack.c.b16 %v4619, %v4617
        %5196 = vmatprep.subr.bf16.mxu0 %v4621
        %5197 = vmatpush1.bf16.msra.mxu0 %v4620
        %5198 = vmatprep.subr.bf16.mxu0 %v4623
        %5199 = vmatpush1.bf16.msra.mxu0 %v4622
        %5200 = vmatprep.subr.bf16.mxu0 %v4625
        %5201 = vmatpush1.bf16.msra.mxu0 %v4624
        %5202 = vmatprep.subr.bf16.mxu0 %v4627
        %5203 = vmatpush1.bf16.msra.mxu0 %v4626
        %5204 = vmatprep.subr.bf16.mxu0 %v4629
        %5205 = vmatpush1.bf16.msra.mxu0 %v4628
        %5206 = vmatprep.subr.bf16.mxu0 %v4631
        %5207 = vmatpush1.bf16.msra.mxu0 %v4630
        %5208 = vmatprep.subr.bf16.mxu0 %v4633
        %5209 = vmatpush1.bf16.msra.mxu0 %v4632
        %5210 = vmatprep.subr.bf16.mxu0 %v4635
        %5211 = vmatpush1.bf16.msra.mxu0 %v4634
        %5212 = vmatprep.subr.bf16.mxu0 %v4637
        %5213 = vmatpush1.bf16.msra.mxu0 %v4636
        %5214 = vmatprep.subr.bf16.mxu0 %v4639
        %5215 = vmatpush1.bf16.msra.mxu0 %v4638
        %5216 = vmatprep.subr.bf16.mxu0 %v4641
        %5217 = vmatpush1.bf16.msra.mxu0 %v4640
        %5218 = vmatprep.subr.bf16.mxu0 %v4643
        %5219 = vmatpush1.bf16.msra.mxu0 %v4642
        %5220 = vmatprep.subr.bf16.mxu0 %v4645
        %5221 = vmatpush1.bf16.msra.mxu0 %v4644
        %5222 = vmatprep.subr.bf16.mxu0 %v4647
        %5223 = vmatpush1.bf16.msra.mxu0 %v4646
        %5224 = vmatprep.subr.bf16.mxu0 %v4649
        %5225 = vmatpush1.bf16.msra.mxu0 %v4648
        %5226 = vmatprep.subr.bf16.mxu0 %v4651
        %5227 = vmatpush1.bf16.msra.mxu0 %v4650
        %5228 = vmatprep.mubr.bf16.mxu0 %v3450
        %5229 = vmatmul.mubr.bf16.gmra.mrb[0].mxu0 %v3449
        %v5230 = vpop.f32.mrb[0].mxu0
        %v5231 = vadd.f32 0.0, %v5230
        %v5232 = vpop.f32.mrb[0].mxu0
        %v5233 = vadd.f32 0.0, %v5232
        %v5234 = vpop.f32.mrb[0].mxu0
        %v5235 = vadd.f32 0.0, %v5234
        %v5236 = vpop.f32.mrb[0].mxu0
        %v5237 = vadd.f32 0.0, %v5236
        %5238 = vdwg.mxu0
        %5239 = vmatprep.subr.bf16.mxu0 %v4653
        %5240 = vmatpush1.bf16.msra.mxu0 %v4652
        %5241 = vmatprep.subr.bf16.mxu0 %v4655
        %5242 = vmatpush1.bf16.msra.mxu0 %v4654
        %5243 = vmatprep.subr.bf16.mxu0 %v4657
        %5244 = vmatpush1.bf16.msra.mxu0 %v4656
        %5245 = vmatprep.subr.bf16.mxu0 %v4659
        %5246 = vmatpush1.bf16.msra.mxu0 %v4658
        %5247 = vmatprep.subr.bf16.mxu0 %v4661
        %5248 = vmatpush1.bf16.msra.mxu0 %v4660
        %5249 = vmatprep.subr.bf16.mxu0 %v4663
        %5250 = vmatpush1.bf16.msra.mxu0 %v4662
        %5251 = vmatprep.subr.bf16.mxu0 %v4665
        %5252 = vmatpush1.bf16.msra.mxu0 %v4664
        %5253 = vmatprep.subr.bf16.mxu0 %v4667
        %5254 = vmatpush1.bf16.msra.mxu0 %v4666
        %5255 = vmatprep.subr.bf16.mxu0 %v4669
        %5256 = vmatpush1.bf16.msra.mxu0 %v4668
        %5257 = vmatprep.subr.bf16.mxu0 %v4671
        %5258 = vmatpush1.bf16.msra.mxu0 %v4670
        %5259 = vmatprep.subr.bf16.mxu0 %v4673
        %5260 = vmatpush1.bf16.msra.mxu0 %v4672
        %5261 = vmatprep.subr.bf16.mxu0 %v4675
        %5262 = vmatpush1.bf16.msra.mxu0 %v4674
        %5263 = vmatprep.subr.bf16.mxu0 %v4677
        %5264 = vmatpush1.bf16.msra.mxu0 %v4676
        %5265 = vmatprep.subr.bf16.mxu0 %v4679
        %5266 = vmatpush1.bf16.msra.mxu0 %v4678
        %5267 = vmatprep.subr.bf16.mxu0 %v4681
        %5268 = vmatpush1.bf16.msra.mxu0 %v4680
        %5269 = vmatprep.subr.bf16.mxu0 %v4683
        %5270 = vmatpush1.bf16.msra.mxu0 %v4682
        %5271 = vmatprep.mubr.bf16.mxu0 %v3452
        %5272 = vmatmul.mubr.bf16.gmra.mrb[0].mxu0 %v3451
        %v5273 = vpop.f32.mrb[0].mxu0
        %v5274 = vadd.f32 %v5231, %v5273
        %v5275 = vpop.f32.mrb[0].mxu0
        %v5276 = vadd.f32 %v5233, %v5275
        %v5277 = vpop.f32.mrb[0].mxu0
        %v5278 = vadd.f32 %v5235, %v5277
        %v5279 = vpop.f32.mrb[0].mxu0
        %v5280 = vadd.f32 %v5237, %v5279
        %5281 = vdwg.mxu0
        %5282 = vmatprep.subr.bf16.mxu0 %v4685
        %5283 = vmatpush1.bf16.msra.mxu0 %v4684
        %5284 = vmatprep.subr.bf16.mxu0 %v4687
        %5285 = vmatpush1.bf16.msra.mxu0 %v4686
        %5286 = vmatprep.subr.bf16.mxu0 %v4689
        %5287 = vmatpush1.bf16.msra.mxu0 %v4688
        %5288 = vmatprep.subr.bf16.mxu0 %v4691
        %5289 = vmatpush1.bf16.msra.mxu0 %v4690
        %5290 = vmatprep.subr.bf16.mxu0 %v4693
        %5291 = vmatpush1.bf16.msra.mxu0 %v4692
        %5292 = vmatprep.subr.bf16.mxu0 %v4695
        %5293 = vmatpush1.bf16.msra.mxu0 %v4694
        %5294 = vmatprep.subr.bf16.mxu0 %v4697
        %5295 = vmatpush1.bf16.msra.mxu0 %v4696
        %5296 = vmatprep.subr.bf16.mxu0 %v4699
        %5297 = vmatpush1.bf16.msra.mxu0 %v4698
        %5298 = vmatprep.subr.bf16.mxu0 %v4701
        %5299 = vmatpush1.bf16.msra.mxu0 %v4700
        %5300 = vmatprep.subr.bf16.mxu0 %v4703
        %5301 = vmatpush1.bf16.msra.mxu0 %v4702
        %5302 = vmatprep.subr.bf16.mxu0 %v4705
        %5303 = vmatpush1.bf16.msra.mxu0 %v4704
        %5304 = vmatprep.subr.bf16.mxu0 %v4707
        %5305 = vmatpush1.bf16.msra.mxu0 %v4706
        %5306 = vmatprep.subr.bf16.mxu0 %v4709
        %5307 = vmatpush1.bf16.msra.mxu0 %v4708
        %5308 = vmatprep.subr.bf16.mxu0 %v4711
        %5309 = vmatpush1.bf16.msra.mxu0 %v4710
        %5310 = vmatprep.subr.bf16.mxu0 %v4713
        %5311 = vmatpush1.bf16.msra.mxu0 %v4712
        %5312 = vmatprep.subr.bf16.mxu0 %v4715
        %5313 = vmatpush1.bf16.msra.mxu0 %v4714
        %5314 = vmatprep.mubr.bf16.mxu0 %v3454
        %5315 = vmatmul.mubr.bf16.gmra.mrb[0].mxu0 %v3453
        %v5316 = vpop.f32.mrb[0].mxu0
        %v5317 = vadd.f32 %v5274, %v5316
        %v5318 = vpop.f32.mrb[0].mxu0
        %v5319 = vadd.f32 %v5276, %v5318
        %v5320 = vpop.f32.mrb[0].mxu0
        %v5321 = vadd.f32 %v5278, %v5320
        %v5322 = vpop.f32.mrb[0].mxu0
        %v5323 = vadd.f32 %v5280, %v5322
        %5324 = vdwg.mxu0
        %5325 = vmatprep.subr.bf16.mxu0 %v4717
        %5326 = vmatpush1.bf16.msra.mxu0 %v4716
        %5327 = vmatprep.subr.bf16.mxu0 %v4719
        %5328 = vmatpush1.bf16.msra.mxu0 %v4718
        %5329 = vmatprep.subr.bf16.mxu0 %v4721
        %5330 = vmatpush1.bf16.msra.mxu0 %v4720
        %5331 = vmatprep.subr.bf16.mxu0 %v4723
        %5332 = vmatpush1.bf16.msra.mxu0 %v4722
        %5333 = vmatprep.subr.bf16.mxu0 %v4725
        %5334 = vmatpush1.bf16.msra.mxu0 %v4724
        %5335 = vmatprep.subr.bf16.mxu0 %v4727
        %5336 = vmatpush1.bf16.msra.mxu0 %v4726
        %5337 = vmatprep.subr.bf16.mxu0 %v4729
        %5338 = vmatpush1.bf16.msra.mxu0 %v4728
        %5339 = vmatprep.subr.bf16.mxu0 %v4731
        %5340 = vmatpush1.bf16.msra.mxu0 %v4730
        %5341 = vmatprep.subr.bf16.mxu0 %v4733
        %5342 = vmatpush1.bf16.msra.mxu0 %v4732
        %5343 = vmatprep.subr.bf16.mxu0 %v4735
        %5344 = vmatpush1.bf16.msra.mxu0 %v4734
        %5345 = vmatprep.subr.bf16.mxu0 %v4737
        %5346 = vmatpush1.bf16.msra.mxu0 %v4736
        %5347 = vmatprep.subr.bf16.mxu0 %v4739
        %5348 = vmatpush1.bf16.msra.mxu0 %v4738
        %5349 = vmatprep.subr.bf16.mxu0 %v4741
        %5350 = vmatpush1.bf16.msra.mxu0 %v4740
        %5351 = vmatprep.subr.bf16.mxu0 %v4743
        %5352 = vmatpush1.bf16.msra.mxu0 %v4742
        %5353 = vmatprep.subr.bf16.mxu0 %v4745
        %5354 = vmatpush1.bf16.msra.mxu0 %v4744
        %5355 = vmatprep.subr.bf16.mxu0 %v4747
        %5356 = vmatpush1.bf16.msra.mxu0 %v4746
        %5357 = vmatprep.mubr.bf16.mxu0 %v3456
        %5358 = vmatmul.mubr.bf16.gmra.mrb[0].mxu0 %v3455
        %v5359 = vpop.f32.mrb[0].mxu0
        %v5360 = vadd.f32 %v5317, %v5359
        %v5361 = vpop.f32.mrb[0].mxu0
        %v5362 = vadd.f32 %v5319, %v5361
        %v5363 = vpop.f32.mrb[0].mxu0
        %v5364 = vadd.f32 %v5321, %v5363
        %v5365 = vpop.f32.mrb[0].mxu0
        %v5366 = vadd.f32 %v5323, %v5365
        %5367 = vdwg.mxu0
        %5368 = vmatprep.subr.bf16.mxu0 %v4749
        %5369 = vmatpush1.bf16.msra.mxu0 %v4748
        %5370 = vmatprep.subr.bf16.mxu0 %v4751
        %5371 = vmatpush1.bf16.msra.mxu0 %v4750
        %5372 = vmatprep.subr.bf16.mxu0 %v4753
        %5373 = vmatpush1.bf16.msra.mxu0 %v4752
        %5374 = vmatprep.subr.bf16.mxu0 %v4755
        %5375 = vmatpush1.bf16.msra.mxu0 %v4754
        %5376 = vmatprep.subr.bf16.mxu0 %v4757
        %5377 = vmatpush1.bf16.msra.mxu0 %v4756
        %5378 = vmatprep.subr.bf16.mxu0 %v4759
        %5379 = vmatpush1.bf16.msra.mxu0 %v4758
        %5380 = vmatprep.subr.bf16.mxu0 %v4761
        %5381 = vmatpush1.bf16.msra.mxu0 %v4760
        %5382 = vmatprep.subr.bf16.mxu0 %v4763
        %5383 = vmatpush1.bf16.msra.mxu0 %v4762
        %5384 = vmatprep.subr.bf16.mxu0 %v4765
        %5385 = vmatpush1.bf16.msra.mxu0 %v4764
        %5386 = vmatprep.subr.bf16.mxu0 %v4767
        %5387 = vmatpush1.bf16.msra.mxu0 %v4766
        %5388 = vmatprep.subr.bf16.mxu0 %v4769
        %5389 = vmatpush1.bf16.msra.mxu0 %v4768
        %5390 = vmatprep.subr.bf16.mxu0 %v4771
        %5391 = vmatpush1.bf16.msra.mxu0 %v4770
        %5392 = vmatprep.subr.bf16.mxu0 %v4773
        %5393 = vmatpush1.bf16.msra.mxu0 %v4772
        %5394 = vmatprep.subr.bf16.mxu0 %v4775
        %5395 = vmatpush1.bf16.msra.mxu0 %v4774
        %5396 = vmatprep.subr.bf16.mxu0 %v4777
        %5397 = vmatpush1.bf16.msra.mxu0 %v4776
        %5398 = vmatprep.subr.bf16.mxu0 %v4779
        %5399 = vmatpush1.bf16.msra.mxu0 %v4778
        %5400 = vmatprep.mubr.bf16.mxu0 %v3458
        %5401 = vmatmul.mubr.bf16.gmra.mrb[0].mxu0 %v3457
        %v5402 = vpop.f32.mrb[0].mxu0
        %v5403 = vadd.f32 %v5360, %v5402
        %v5404 = vpop.f32.mrb[0].mxu0
        %v5405 = vadd.f32 %v5362, %v5404
        %v5406 = vpop.f32.mrb[0].mxu0
        %v5407 = vadd.f32 %v5364, %v5406
        %v5408 = vpop.f32.mrb[0].mxu0
        %v5409 = vadd.f32 %v5366, %v5408
        %5410 = vdwg.mxu0
        %5411 = vmatprep.subr.bf16.mxu0 %v4781
        %5412 = vmatpush1.bf16.msra.mxu0 %v4780
        %5413 = vmatprep.subr.bf16.mxu0 %v4783
        %5414 = vmatpush1.bf16.msra.mxu0 %v4782
        %5415 = vmatprep.subr.bf16.mxu0 %v4785
        %5416 = vmatpush1.bf16.msra.mxu0 %v4784
        %5417 = vmatprep.subr.bf16.mxu0 %v4787
        %5418 = vmatpush1.bf16.msra.mxu0 %v4786
        %5419 = vmatprep.subr.bf16.mxu0 %v4789
        %5420 = vmatpush1.bf16.msra.mxu0 %v4788
        %5421 = vmatprep.subr.bf16.mxu0 %v4791
        %5422 = vmatpush1.bf16.msra.mxu0 %v4790
        %5423 = vmatprep.subr.bf16.mxu0 %v4793
        %5424 = vmatpush1.bf16.msra.mxu0 %v4792
        %5425 = vmatprep.subr.bf16.mxu0 %v4795
        %5426 = vmatpush1.bf16.msra.mxu0 %v4794
        %5427 = vmatprep.subr.bf16.mxu0 %v4797
        %5428 = vmatpush1.bf16.msra.mxu0 %v4796
        %5429 = vmatprep.subr.bf16.mxu0 %v4799
        %5430 = vmatpush1.bf16.msra.mxu0 %v4798
        %5431 = vmatprep.subr.bf16.mxu0 %v4801
        %5432 = vmatpush1.bf16.msra.mxu0 %v4800
        %5433 = vmatprep.subr.bf16.mxu0 %v4803
        %5434 = vmatpush1.bf16.msra.mxu0 %v4802
        %5435 = vmatprep.subr.bf16.mxu0 %v4805
        %5436 = vmatpush1.bf16.msra.mxu0 %v4804
        %5437 = vmatprep.subr.bf16.mxu0 %v4807
        %5438 = vmatpush1.bf16.msra.mxu0 %v4806
        %5439 = vmatprep.subr.bf16.mxu0 %v4809
        %5440 = vmatpush1.bf16.msra.mxu0 %v4808
        %5441 = vmatprep.subr.bf16.mxu0 %v4811
        %5442 = vmatpush1.bf16.msra.mxu0 %v4810
        %5443 = vmatprep.mubr.bf16.mxu0 %v3460
        %5444 = vmatmul.mubr.bf16.gmra.mrb[0].mxu0 %v3459
        %v5445 = vpop.f32.mrb[0].mxu0
        %v5446 = vadd.f32 %v5403, %v5445
        %v5447 = vpop.f32.mrb[0].mxu0
        %v5448 = vadd.f32 %v5405, %v5447
        %v5449 = vpop.f32.mrb[0].mxu0
        %v5450 = vadd.f32 %v5407, %v5449
        %v5451 = vpop.f32.mrb[0].mxu0
        %v5452 = vadd.f32 %v5409, %v5451
        %5453 = vdwg.mxu0
        %5454 = vmatprep.subr.bf16.mxu0 %v4813
        %5455 = vmatpush1.bf16.msra.mxu0 %v4812
        %5456 = vmatprep.subr.bf16.mxu0 %v4815
        %5457 = vmatpush1.bf16.msra.mxu0 %v4814
        %5458 = vmatprep.subr.bf16.mxu0 %v4817
        %5459 = vmatpush1.bf16.msra.mxu0 %v4816
        %5460 = vmatprep.subr.bf16.mxu0 %v4819
        %5461 = vmatpush1.bf16.msra.mxu0 %v4818
        %5462 = vmatprep.subr.bf16.mxu0 %v4821
        %5463 = vmatpush1.bf16.msra.mxu0 %v4820
        %5464 = vmatprep.subr.bf16.mxu0 %v4823
        %5465 = vmatpush1.bf16.msra.mxu0 %v4822
        %5466 = vmatprep.subr.bf16.mxu0 %v4825
        %5467 = vmatpush1.bf16.msra.mxu0 %v4824
        %5468 = vmatprep.subr.bf16.mxu0 %v4827
        %5469 = vmatpush1.bf16.msra.mxu0 %v4826
        %5470 = vmatprep.subr.bf16.mxu0 %v4829
        %5471 = vmatpush1.bf16.msra.mxu0 %v4828
        %5472 = vmatprep.subr.bf16.mxu0 %v4831
        %5473 = vmatpush1.bf16.msra.mxu0 %v4830
        %5474 = vmatprep.subr.bf16.mxu0 %v4833
        %5475 = vmatpush1.bf16.msra.mxu0 %v4832
        %5476 = vmatprep.subr.bf16.mxu0 %v4835
        %5477 = vmatpush1.bf16.msra.mxu0 %v4834
        %5478 = vmatprep.subr.bf16.mxu0 %v4837
        %5479 = vmatpush1.bf16.msra.mxu0 %v4836
        %5480 = vmatprep.subr.bf16.mxu0 %v4839
        %5481 = vmatpush1.bf16.msra.mxu0 %v4838
        %5482 = vmatprep.subr.bf16.mxu0 %v4841
        %5483 = vmatpush1.bf16.msra.mxu0 %v4840
        %5484 = vmatprep.subr.bf16.mxu0 %v4843
        %5485 = vmatpush1.bf16.msra.mxu0 %v4842
        %5486 = vmatprep.mubr.bf16.mxu0 %v3462
        %5487 = vmatmul.mubr.bf16.gmra.mrb[0].mxu0 %v3461
        %v5488 = vpop.f32.mrb[0].mxu0
        %v5489 = vadd.f32 %v5446, %v5488
        %v5490 = vpop.f32.mrb[0].mxu0
        %v5491 = vadd.f32 %v5448, %v5490
        %v5492 = vpop.f32.mrb[0].mxu0
        %v5493 = vadd.f32 %v5450, %v5492
        %v5494 = vpop.f32.mrb[0].mxu0
        %v5495 = vadd.f32 %v5452, %v5494
        %5496 = vdwg.mxu0
        %5497 = vmatprep.subr.bf16.mxu0 %v4845
        %5498 = vmatpush1.bf16.msra.mxu0 %v4844
        %5499 = vmatprep.subr.bf16.mxu0 %v4847
        %5500 = vmatpush1.bf16.msra.mxu0 %v4846
        %5501 = vmatprep.subr.bf16.mxu0 %v4849
        %5502 = vmatpush1.bf16.msra.mxu0 %v4848
        %5503 = vmatprep.subr.bf16.mxu0 %v4851
        %5504 = vmatpush1.bf16.msra.mxu0 %v4850
        %5505 = vmatprep.subr.bf16.mxu0 %v4853
        %5506 = vmatpush1.bf16.msra.mxu0 %v4852
        %5507 = vmatprep.subr.bf16.mxu0 %v4855
        %5508 = vmatpush1.bf16.msra.mxu0 %v4854
        %5509 = vmatprep.subr.bf16.mxu0 %v4857
        %5510 = vmatpush1.bf16.msra.mxu0 %v4856
        %5511 = vmatprep.subr.bf16.mxu0 %v4859
        %5512 = vmatpush1.bf16.msra.mxu0 %v4858
        %5513 = vmatprep.subr.bf16.mxu0 %v4861
        %5514 = vmatpush1.bf16.msra.mxu0 %v4860
        %5515 = vmatprep.subr.bf16.mxu0 %v4863
        %5516 = vmatpush1.bf16.msra.mxu0 %v4862
        %5517 = vmatprep.subr.bf16.mxu0 %v4865
        %5518 = vmatpush1.bf16.msra.mxu0 %v4864
        %5519 = vmatprep.subr.bf16.mxu0 %v4867
        %5520 = vmatpush1.bf16.msra.mxu0 %v4866
        %5521 = vmatprep.subr.bf16.mxu0 %v4869
        %5522 = vmatpush1.bf16.msra.mxu0 %v4868
        %5523 = vmatprep.subr.bf16.mxu0 %v4871
        %5524 = vmatpush1.bf16.msra.mxu0 %v4870
        %5525 = vmatprep.subr.bf16.mxu0 %v4873
        %5526 = vmatpush1.bf16.msra.mxu0 %v4872
        %5527 = vmatprep.subr.bf16.mxu0 %v4875
        %5528 = vmatpush1.bf16.msra.mxu0 %v4874
        %5529 = vmatprep.mubr.bf16.mxu0 %v3464
        %5530 = vmatmul.mubr.bf16.gmra.mrb[0].mxu0 %v3463
        %v5531 = vpop.f32.mrb[0].mxu0
        %v5532 = vadd.f32 %v5489, %v5531
        %v5533 = vpop.f32.mrb[0].mxu0
        %v5534 = vadd.f32 %v5491, %v5533
        %v5535 = vpop.f32.mrb[0].mxu0
        %v5536 = vadd.f32 %v5493, %v5535
        %v5537 = vpop.f32.mrb[0].mxu0
        %v5538 = vadd.f32 %v5495, %v5537
        %5539 = vdwg.mxu0
        %5540 = vmatprep.subr.bf16.mxu0 %v4877
        %5541 = vmatpush1.bf16.msra.mxu0 %v4876
        %5542 = vmatprep.subr.bf16.mxu0 %v4879
        %5543 = vmatpush1.bf16.msra.mxu0 %v4878
        %5544 = vmatprep.subr.bf16.mxu0 %v4881
        %5545 = vmatpush1.bf16.msra.mxu0 %v4880
        %5546 = vmatprep.subr.bf16.mxu0 %v4883
        %5547 = vmatpush1.bf16.msra.mxu0 %v4882
        %5548 = vmatprep.subr.bf16.mxu0 %v4885
        %5549 = vmatpush1.bf16.msra.mxu0 %v4884
        %5550 = vmatprep.subr.bf16.mxu0 %v4887
        %5551 = vmatpush1.bf16.msra.mxu0 %v4886
        %5552 = vmatprep.subr.bf16.mxu0 %v4889
        %5553 = vmatpush1.bf16.msra.mxu0 %v4888
        %5554 = vmatprep.subr.bf16.mxu0 %v4891
        %5555 = vmatpush1.bf16.msra.mxu0 %v4890
        %5556 = vmatprep.subr.bf16.mxu0 %v4893
        %5557 = vmatpush1.bf16.msra.mxu0 %v4892
        %5558 = vmatprep.subr.bf16.mxu0 %v4895
        %5559 = vmatpush1.bf16.msra.mxu0 %v4894
        %5560 = vmatprep.subr.bf16.mxu0 %v4897
        %5561 = vmatpush1.bf16.msra.mxu0 %v4896
        %5562 = vmatprep.subr.bf16.mxu0 %v4899
        %5563 = vmatpush1.bf16.msra.mxu0 %v4898
        %5564 = vmatprep.subr.bf16.mxu0 %v4901
        %5565 = vmatpush1.bf16.msra.mxu0 %v4900
        %5566 = vmatprep.subr.bf16.mxu0 %v4903
        %5567 = vmatpush1.bf16.msra.mxu0 %v4902
        %5568 = vmatprep.subr.bf16.mxu0 %v4905
        %5569 = vmatpush1.bf16.msra.mxu0 %v4904
        %5570 = vmatprep.subr.bf16.mxu0 %v4907
        %5571 = vmatpush1.bf16.msra.mxu0 %v4906
        %5572 = vmatprep.mubr.bf16.mxu0 %v3466
        %5573 = vmatmul.mubr.bf16.gmra.mrb[0].mxu0 %v3465
        %v5574 = vpop.f32.mrb[0].mxu0
        %v5575 = vadd.f32 %v5532, %v5574
        %v5576 = vpop.f32.mrb[0].mxu0
        %v5577 = vadd.f32 %v5534, %v5576
        %v5578 = vpop.f32.mrb[0].mxu0
        %v5579 = vadd.f32 %v5536, %v5578
        %v5580 = vpop.f32.mrb[0].mxu0
        %v5581 = vadd.f32 %v5538, %v5580
        %5582 = vdwg.mxu0
        %s5583 = scalar_lea.vmem [#allocation12], 1
        %v5584 = vld [vmem:[%s5583] ss:$4 sm:$0x3]
        %v5586 = vlaneseq
        %v5587 = vshrl.u32 %v5586, 7
        %v5588 = vsub.s32 0, %v5587
        %v5589 = vrot.slane %v5584, %v5588
        %v5590 = vlaneseq
        %v5591 = vshrl.u32 %v5590, 7
        %v5592 = vsub.s32 1, %v5591
        %v5593 = vrot.slane %v5584, %v5592
        %v5596 = vmul.f32 %v5575, %v5589
        %v5597 = vmul.f32 %v5577, %v5593
        %v5598 = vmul.f32 %v5579, %v5589
        %v5599 = vmul.f32 %v5581, %v5593
        %s5600 = scalar_lea.vmem [#allocation14], 1
        %v5601 = vld [vmem:[%s5600] ss:$4 sm:$0x3]
        %v5603 = vlaneseq
        %v5604 = vshrl.u32 %v5603, 7
        %v5605 = vsub.s32 0, %v5604
        %v5606 = vrot.slane %v5601, %v5605
        %v5607 = vlaneseq
        %v5608 = vshrl.u32 %v5607, 7
        %v5609 = vsub.s32 1, %v5608
        %v5610 = vrot.slane %v5601, %v5609
        %v5613 = vadd.f32 %v5596, %v5606
        %v5614 = vadd.f32 %v5597, %v5610
        %v5615 = vadd.f32 %v5598, %v5606
        %v5616 = vadd.f32 %v5599, %v5610
        %v5617 = vmax.f32 %v5613, 0.0
        %v5618 = vmax.f32 %v5614, 0.0
        %v5619 = vmax.f32 %v5615, 0.0
        %v5620 = vmax.f32 %v5616, 0.0
        %5621 = vst [vmem:[%s375 + $0x20] sm:$0xff] %v5617
        %5622 = vst [vmem:[%s375 + $0x28] sm:$0xff] %v5618
        %5623 = vst [vmem:[%s375 + $0x60] sm:$0xff] %v5619
        %5624 = vst [vmem:[%s375 + $0x68] sm:$0xff] %v5620
        %5629 = vrot.lane.b32.xlu0 %v881, 48
        %v5630 = vpop.permute.xlu0 %5629
        %5631 = vrot.lane.b32.xlu0 %v882, 48
        %v5632 = vpop.permute.xlu0 %5631
        %5633 = vrot.lane.b32.xlu0 %v889, 48
        %v5634 = vpop.permute.xlu0 %5633
        %5635 = vrot.lane.b32.xlu0 %v890, 48
        %v5636 = vpop.permute.xlu0 %5635
        %vm5637 = vcmask 392192
        %v5638 = vsel %vm5637, %v5630, %v5632
        %v5639 = vsel %vm5637, %v5634, %v5636
        %v5644 = vsel %vm5637, 0.0, %v5630
        %v5645 = vsel %vm5637, 0.0, %v5634
        %v5646 = vpack.c.bf16 %v5644, 0.0
        %v5647 = vpack.c.bf16 %v5638, 0.0
        %v5648 = vpack.c.bf16 %v5645, %v5645
        %v5649 = vpack.c.bf16 %v5639, %v5639
        %vm5650 = vsmask.f32 5376
        %v5652 = vshrl.u32 %v5646, 16
        %v5654 = vrot.slane %v5652, 2
        %v5655 = vshll.u32 %v5646, 16
        %v5657 = vrot.slane %v5655, 3
        %v5658 = vor.u32 %v5654, %v5657
        %v5660 = vshrl.u32 %v5648, 16
        %v5662 = vrot.slane %v5660, 2
        %v5663 = vshll.u32 %v5648, 16
        %v5665 = vrot.slane %v5663, 3
        %v5666 = vor.u32 %v5662, %v5665
        %v5667 = vsel %vm5650, %v5658, %v5666
        %v5669 = vshrl.u32 %v5647, 16
        %v5671 = vrot.slane %v5669, 2
        %v5672 = vshll.u32 %v5647, 16
        %v5674 = vrot.slane %v5672, 3
        %v5675 = vor.u32 %v5671, %v5674
        %v5677 = vshrl.u32 %v5649, 16
        %v5679 = vrot.slane %v5677, 2
        %v5680 = vshll.u32 %v5649, 16
        %v5682 = vrot.slane %v5680, 3
        %v5683 = vor.u32 %v5679, %v5682
        %v5684 = vsel %vm5650, %v5675, %v5683
        %5687 = vst [vmem:[#allocation2] sm:$0xff] %v5667
        %5688 = vst [vmem:[#allocation2 + $0x8] sm:$0xff] %v5684
        %v5689 = vpack.c.bf16 %v5645, %v5644
        %v5690 = vpack.c.bf16 %v5639, %v5638
        %5691 = vst [vmem:[#allocation2 + $0x30] sm:$0xff] %v5689
        %5692 = vst [vmem:[#allocation2 + $0x38] sm:$0xff] %v5690
        %vm5693 = vsmask.f32 6400
        %v5695 = vshrl.u32 %v5689, 16
        %v5697 = vrot.slane %v5695, 1
        %v5698 = vshll.u32 %v5689, 16
        %v5700 = vrot.slane %v5698, 2
        %v5701 = vor.u32 %v5697, %v5700
        %v5702 = vshrl.u32 %v963, 16
        %v5704 = vrot.slane %v5702, 1
        %v5705 = vrot.slane %v973, 2
        %v5706 = vor.u32 %v5704, %v5705
        %v5707 = vsel %vm5693, %v5701, %v5706
        %v5709 = vshrl.u32 %v5690, 16
        %v5711 = vrot.slane %v5709, 1
        %v5712 = vshll.u32 %v5690, 16
        %v5714 = vrot.slane %v5712, 2
        %v5715 = vor.u32 %v5711, %v5714
        %v5716 = vsel %vm5693, %v5715, %v5706
        %5719 = vst [vmem:[#allocation2 + $0x60] sm:$0xff] %v5707
        %5720 = vst [vmem:[#allocation2 + $0x68] sm:$0xff] %v5716
        %v5721 = vpack.c.bf16 %v881, 0.0
        %v5722 = vpack.c.bf16 %v882, 0.0
        %v5723 = vpack.c.bf16 %v889, %v889
        %v5724 = vpack.c.bf16 %v890, %v890
        %v5726 = vshrl.u32 %v5721, 16
        %v5728 = vrot.slane %v5726, 2
        %v5729 = vshll.u32 %v5721, 16
        %v5731 = vrot.slane %v5729, 3
        %v5732 = vor.u32 %v5728, %v5731
        %v5734 = vshrl.u32 %v5723, 16
        %v5736 = vrot.slane %v5734, 2
        %v5737 = vshll.u32 %v5723, 16
        %v5739 = vrot.slane %v5737, 3
        %v5740 = vor.u32 %v5736, %v5739
        %v5741 = vsel %vm5650, %v5732, %v5740
        %v5743 = vshrl.u32 %v5722, 16
        %v5745 = vrot.slane %v5743, 2
        %v5746 = vshll.u32 %v5722, 16
        %v5748 = vrot.slane %v5746, 3
        %v5749 = vor.u32 %v5745, %v5748
        %v5751 = vshrl.u32 %v5724, 16
        %v5753 = vrot.slane %v5751, 2
        %v5754 = vshll.u32 %v5724, 16
        %v5756 = vrot.slane %v5754, 3
        %v5757 = vor.u32 %v5753, %v5756
        %v5758 = vsel %vm5650, %v5749, %v5757
        %5761 = vst [vmem:[#allocation2 + $0x10] sm:$0xff] %v5741
        %5762 = vst [vmem:[#allocation2 + $0x18] sm:$0xff] %v5758
        %v5763 = vpack.c.bf16 %v889, %v881
        %v5764 = vpack.c.bf16 %v890, %v882
        %5765 = vst [vmem:[#allocation2 + $0x40] sm:$0xff] %v5763
        %5766 = vst [vmem:[#allocation2 + $0x48] sm:$0xff] %v5764
        %v5768 = vshrl.u32 %v5763, 16
        %v5770 = vrot.slane %v5768, 1
        %v5771 = vshll.u32 %v5763, 16
        %v5773 = vrot.slane %v5771, 2
        %v5774 = vor.u32 %v5770, %v5773
        %v5775 = vsel %vm5693, %v5774, %v5706
        %v5777 = vshrl.u32 %v5764, 16
        %v5779 = vrot.slane %v5777, 1
        %v5780 = vshll.u32 %v5764, 16
        %v5782 = vrot.slane %v5780, 2
        %v5783 = vor.u32 %v5779, %v5782
        %v5784 = vsel %vm5693, %v5783, %v5706
        %5787 = vst [vmem:[#allocation2 + $0x70] sm:$0xff] %v5775
        %5788 = vst [vmem:[#allocation2 + $0x78] sm:$0xff] %v5784
        %5789 = vrot.lane.b32.xlu0 %v881, 80
        %v5790 = vpop.permute.xlu0 %5789
        %5791 = vrot.lane.b32.xlu0 %v882, 80
        %v5792 = vpop.permute.xlu0 %5791
        %5793 = vrot.lane.b32.xlu0 %v889, 80
        %v5794 = vpop.permute.xlu0 %5793
        %5795 = vrot.lane.b32.xlu0 %v890, 80
        %v5796 = vpop.permute.xlu0 %5795
        %vm5797 = vcmask 654336
        %v5798 = vsel %vm5797, %v5790, %v5792
        %v5799 = vsel %vm5797, %v5794, %v5796
        %v5804 = vsel %vm5797, %v5792, 0.0
        %v5805 = vsel %vm5797, %v5796, 0.0
        %v5806 = vpack.c.bf16 %v5798, 0.0
        %v5807 = vpack.c.bf16 %v5804, 0.0
        %v5808 = vpack.c.bf16 %v5799, %v5799
        %v5809 = vpack.c.bf16 %v5805, %v5805
        %v5811 = vshrl.u32 %v5806, 16
        %v5813 = vrot.slane %v5811, 2
        %v5814 = vshll.u32 %v5806, 16
        %v5816 = vrot.slane %v5814, 3
        %v5817 = vor.u32 %v5813, %v5816
        %v5819 = vshrl.u32 %v5808, 16
        %v5821 = vrot.slane %v5819, 2
        %v5822 = vshll.u32 %v5808, 16
        %v5824 = vrot.slane %v5822, 3
        %v5825 = vor.u32 %v5821, %v5824
        %v5826 = vsel %vm5650, %v5817, %v5825
        %v5828 = vshrl.u32 %v5807, 16
        %v5830 = vrot.slane %v5828, 2
        %v5831 = vshll.u32 %v5807, 16
        %v5833 = vrot.slane %v5831, 3
        %v5834 = vor.u32 %v5830, %v5833
        %v5836 = vshrl.u32 %v5809, 16
        %v5838 = vrot.slane %v5836, 2
        %v5839 = vshll.u32 %v5809, 16
        %v5841 = vrot.slane %v5839, 3
        %v5842 = vor.u32 %v5838, %v5841
        %v5843 = vsel %vm5650, %v5834, %v5842
        %5846 = vst [vmem:[#allocation2 + $0x20] sm:$0xff] %v5826
        %5847 = vst [vmem:[#allocation2 + $0x28] sm:$0xff] %v5843
        %v5848 = vpack.c.bf16 %v5799, %v5798
        %v5849 = vpack.c.bf16 %v5805, %v5804
        %5850 = vst [vmem:[#allocation2 + $0x50] sm:$0xff] %v5848
        %5851 = vst [vmem:[#allocation2 + $0x58] sm:$0xff] %v5849
        %v5853 = vshrl.u32 %v5848, 16
        %v5855 = vrot.slane %v5853, 1
        %v5856 = vshll.u32 %v5848, 16
        %v5858 = vrot.slane %v5856, 2
        %v5859 = vor.u32 %v5855, %v5858
        %v5860 = vsel %vm5693, %v5859, %v5706
        %v5862 = vshrl.u32 %v5849, 16
        %v5864 = vrot.slane %v5862, 1
        %v5865 = vshll.u32 %v5849, 16
        %v5867 = vrot.slane %v5865, 2
        %v5868 = vor.u32 %v5864, %v5867
        %v5869 = vsel %vm5693, %v5868, %v5706
        %5872 = vst [vmem:[#allocation2 + $0x80] sm:$0xff] %v5860
        %5873 = vst [vmem:[#allocation2 + $0x88] sm:$0xff] %v5869
        %v5874 = vld [vmem:[#allocation2] sm:$0xff]
        %v5875 = vld [vmem:[#allocation2 + $0x8] sm:$0xff]
        %v5876 = vld [vmem:[#allocation2 + $0x10] sm:$0xff]
        %v5877 = vld [vmem:[#allocation2 + $0x18] sm:$0xff]
        %v5878 = vld [vmem:[#allocation2 + $0x20] sm:$0xff]
        %v5879 = vld [vmem:[#allocation2 + $0x28] sm:$0xff]
        %v5880 = vld [vmem:[#allocation2 + $0x30] sm:$0xff]
        %v5881 = vld [vmem:[#allocation2 + $0x38] sm:$0xff]
        %v5882 = vld [vmem:[#allocation2 + $0x40] sm:$0xff]
        %v5883 = vld [vmem:[#allocation2 + $0x48] sm:$0xff]
        %v5884 = vld [vmem:[#allocation2 + $0x50] sm:$0xff]
        %v5885 = vld [vmem:[#allocation2 + $0x58] sm:$0xff]
        %v5886 = vld [vmem:[#allocation2 + $0x60] sm:$0xff]
        %v5887 = vld [vmem:[#allocation2 + $0x68] sm:$0xff]
        %v5888 = vld [vmem:[#allocation2 + $0x70] sm:$0xff]
        %v5889 = vld [vmem:[#allocation2 + $0x78] sm:$0xff]
        %v5890 = vld [vmem:[#allocation2 + $0x80] sm:$0xff]
        %v5891 = vld [vmem:[#allocation2 + $0x88] sm:$0xff]
        %s5892 = scalar_lea.vmem [#allocation11], 4608
        %v5893 = vld [vmem:[%s5892] sm:$0xff]
        %v5894 = vld [vmem:[%s5892 + $0x8] sm:$0xff]
        %v5895 = vld [vmem:[%s5892 + $0x10] sm:$0xff]
        %v5896 = vld [vmem:[%s5892 + $0x18] sm:$0xff]
        %v5897 = vld [vmem:[%s5892 + $0x20] sm:$0xff]
        %v5898 = vld [vmem:[%s5892 + $0x28] sm:$0xff]
        %v5899 = vld [vmem:[%s5892 + $0x30] sm:$0xff]
        %v5900 = vld [vmem:[%s5892 + $0x38] sm:$0xff]
        %v5901 = vld [vmem:[%s5892 + $0x40] sm:$0xff]
        %v5902 = vld [vmem:[%s5892 + $0x48] sm:$0xff]
        %v5903 = vld [vmem:[%s5892 + $0x50] sm:$0xff]
        %v5904 = vld [vmem:[%s5892 + $0x58] sm:$0xff]
        %v5905 = vld [vmem:[%s5892 + $0x60] sm:$0xff]
        %v5906 = vld [vmem:[%s5892 + $0x68] sm:$0xff]
        %v5907 = vld [vmem:[%s5892 + $0x70] sm:$0xff]
        %v5908 = vld [vmem:[%s5892 + $0x78] sm:$0xff]
        %v5909 = vld [vmem:[%s5892 + $0x80] sm:$0xff]
        %v5910 = vld [vmem:[%s5892 + $0x88] sm:$0xff]
        %v5911 = vld [vmem:[%s5892 + $0x90] sm:$0xff]
        %v5912 = vld [vmem:[%s5892 + $0x98] sm:$0xff]
        %v5913 = vld [vmem:[%s5892 + $0xa0] sm:$0xff]
        %v5914 = vld [vmem:[%s5892 + $0xa8] sm:$0xff]
        %v5915 = vld [vmem:[%s5892 + $0xb0] sm:$0xff]
        %v5916 = vld [vmem:[%s5892 + $0xb8] sm:$0xff]
        %v5917 = vld [vmem:[%s5892 + $0xc0] sm:$0xff]
        %v5918 = vld [vmem:[%s5892 + $0xc8] sm:$0xff]
        %v5919 = vld [vmem:[%s5892 + $0xd0] sm:$0xff]
        %v5920 = vld [vmem:[%s5892 + $0xd8] sm:$0xff]
        %v5921 = vld [vmem:[%s5892 + $0xe0] sm:$0xff]
        %v5922 = vld [vmem:[%s5892 + $0xe8] sm:$0xff]
        %v5923 = vld [vmem:[%s5892 + $0xf0] sm:$0xff]
        %v5924 = vld [vmem:[%s5892 + $0xf8] sm:$0xff]
        %v5925 = vld [vmem:[%s5892 + $0x100] sm:$0xff]
        %v5926 = vld [vmem:[%s5892 + $0x108] sm:$0xff]
        %v5927 = vld [vmem:[%s5892 + $0x110] sm:$0xff]
        %v5928 = vld [vmem:[%s5892 + $0x118] sm:$0xff]
        %v5929 = vld [vmem:[%s5892 + $0x120] sm:$0xff]
        %v5930 = vld [vmem:[%s5892 + $0x128] sm:$0xff]
        %v5931 = vld [vmem:[%s5892 + $0x130] sm:$0xff]
        %v5932 = vld [vmem:[%s5892 + $0x138] sm:$0xff]
        %v5933 = vld [vmem:[%s5892 + $0x140] sm:$0xff]
        %v5934 = vld [vmem:[%s5892 + $0x148] sm:$0xff]
        %v5935 = vld [vmem:[%s5892 + $0x150] sm:$0xff]
        %v5936 = vld [vmem:[%s5892 + $0x158] sm:$0xff]
        %v5937 = vld [vmem:[%s5892 + $0x160] sm:$0xff]
        %v5938 = vld [vmem:[%s5892 + $0x168] sm:$0xff]
        %v5939 = vld [vmem:[%s5892 + $0x170] sm:$0xff]
        %v5940 = vld [vmem:[%s5892 + $0x178] sm:$0xff]
        %v5941 = vld [vmem:[%s5892 + $0x180] sm:$0xff]
        %v5942 = vld [vmem:[%s5892 + $0x188] sm:$0xff]
        %v5943 = vld [vmem:[%s5892 + $0x190] sm:$0xff]
        %v5944 = vld [vmem:[%s5892 + $0x198] sm:$0xff]
        %v5945 = vld [vmem:[%s5892 + $0x1a0] sm:$0xff]
        %v5946 = vld [vmem:[%s5892 + $0x1a8] sm:$0xff]
        %v5947 = vld [vmem:[%s5892 + $0x1b0] sm:$0xff]
        %v5948 = vld [vmem:[%s5892 + $0x1b8] sm:$0xff]
        %v5949 = vld [vmem:[%s5892 + $0x1c0] sm:$0xff]
        %v5950 = vld [vmem:[%s5892 + $0x1c8] sm:$0xff]
        %v5951 = vld [vmem:[%s5892 + $0x1d0] sm:$0xff]
        %v5952 = vld [vmem:[%s5892 + $0x1d8] sm:$0xff]
        %v5953 = vld [vmem:[%s5892 + $0x1e0] sm:$0xff]
        %v5954 = vld [vmem:[%s5892 + $0x1e8] sm:$0xff]
        %v5955 = vld [vmem:[%s5892 + $0x1f0] sm:$0xff]
        %v5956 = vld [vmem:[%s5892 + $0x1f8] sm:$0xff]
        %v5957 = vld [vmem:[%s5892 + $0x200] sm:$0xff]
        %v5958 = vld [vmem:[%s5892 + $0x208] sm:$0xff]
        %v5959 = vld [vmem:[%s5892 + $0x210] sm:$0xff]
        %v5960 = vld [vmem:[%s5892 + $0x218] sm:$0xff]
        %v5961 = vld [vmem:[%s5892 + $0x220] sm:$0xff]
        %v5962 = vld [vmem:[%s5892 + $0x228] sm:$0xff]
        %v5963 = vld [vmem:[%s5892 + $0x230] sm:$0xff]
        %v5964 = vld [vmem:[%s5892 + $0x238] sm:$0xff]
        %v5965 = vld [vmem:[%s5892 + $0x240] sm:$0xff]
        %v5966 = vld [vmem:[%s5892 + $0x248] sm:$0xff]
        %v5967 = vld [vmem:[%s5892 + $0x250] sm:$0xff]
        %v5968 = vld [vmem:[%s5892 + $0x258] sm:$0xff]
        %v5969 = vld [vmem:[%s5892 + $0x260] sm:$0xff]
        %v5970 = vld [vmem:[%s5892 + $0x268] sm:$0xff]
        %v5971 = vld [vmem:[%s5892 + $0x270] sm:$0xff]
        %v5972 = vld [vmem:[%s5892 + $0x278] sm:$0xff]
        %v5973 = vld [vmem:[%s5892 + $0x280] sm:$0xff]
        %v5974 = vld [vmem:[%s5892 + $0x288] sm:$0xff]
        %v5975 = vld [vmem:[%s5892 + $0x290] sm:$0xff]
        %v5976 = vld [vmem:[%s5892 + $0x298] sm:$0xff]
        %v5977 = vld [vmem:[%s5892 + $0x2a0] sm:$0xff]
        %v5978 = vld [vmem:[%s5892 + $0x2a8] sm:$0xff]
        %v5979 = vld [vmem:[%s5892 + $0x2b0] sm:$0xff]
        %v5980 = vld [vmem:[%s5892 + $0x2b8] sm:$0xff]
        %v5981 = vld [vmem:[%s5892 + $0x2c0] sm:$0xff]
        %v5982 = vld [vmem:[%s5892 + $0x2c8] sm:$0xff]
        %v5983 = vld [vmem:[%s5892 + $0x2d0] sm:$0xff]
        %v5984 = vld [vmem:[%s5892 + $0x2d8] sm:$0xff]
        %v5985 = vld [vmem:[%s5892 + $0x2e0] sm:$0xff]
        %v5986 = vld [vmem:[%s5892 + $0x2e8] sm:$0xff]
        %v5987 = vld [vmem:[%s5892 + $0x2f0] sm:$0xff]
        %v5988 = vld [vmem:[%s5892 + $0x2f8] sm:$0xff]
        %v5989 = vld [vmem:[%s5892 + $0x300] sm:$0xff]
        %v5990 = vld [vmem:[%s5892 + $0x308] sm:$0xff]
        %v5991 = vld [vmem:[%s5892 + $0x310] sm:$0xff]
        %v5992 = vld [vmem:[%s5892 + $0x318] sm:$0xff]
        %v5993 = vld [vmem:[%s5892 + $0x320] sm:$0xff]
        %v5994 = vld [vmem:[%s5892 + $0x328] sm:$0xff]
        %v5995 = vld [vmem:[%s5892 + $0x330] sm:$0xff]
        %v5996 = vld [vmem:[%s5892 + $0x338] sm:$0xff]
        %v5997 = vld [vmem:[%s5892 + $0x340] sm:$0xff]
        %v5998 = vld [vmem:[%s5892 + $0x348] sm:$0xff]
        %v5999 = vld [vmem:[%s5892 + $0x350] sm:$0xff]
        %v6000 = vld [vmem:[%s5892 + $0x358] sm:$0xff]
        %v6001 = vld [vmem:[%s5892 + $0x360] sm:$0xff]
        %v6002 = vld [vmem:[%s5892 + $0x368] sm:$0xff]
        %v6003 = vld [vmem:[%s5892 + $0x370] sm:$0xff]
        %v6004 = vld [vmem:[%s5892 + $0x378] sm:$0xff]
        %v6005 = vld [vmem:[%s5892 + $0x380] sm:$0xff]
        %v6006 = vld [vmem:[%s5892 + $0x388] sm:$0xff]
        %v6007 = vld [vmem:[%s5892 + $0x390] sm:$0xff]
        %v6008 = vld [vmem:[%s5892 + $0x398] sm:$0xff]
        %v6009 = vld [vmem:[%s5892 + $0x3a0] sm:$0xff]
        %v6010 = vld [vmem:[%s5892 + $0x3a8] sm:$0xff]
        %v6011 = vld [vmem:[%s5892 + $0x3b0] sm:$0xff]
        %v6012 = vld [vmem:[%s5892 + $0x3b8] sm:$0xff]
        %v6013 = vld [vmem:[%s5892 + $0x3c0] sm:$0xff]
        %v6014 = vld [vmem:[%s5892 + $0x3c8] sm:$0xff]
        %v6015 = vld [vmem:[%s5892 + $0x3d0] sm:$0xff]
        %v6016 = vld [vmem:[%s5892 + $0x3d8] sm:$0xff]
        %v6017 = vld [vmem:[%s5892 + $0x3e0] sm:$0xff]
        %v6018 = vld [vmem:[%s5892 + $0x3e8] sm:$0xff]
        %v6019 = vld [vmem:[%s5892 + $0x3f0] sm:$0xff]
        %v6020 = vld [vmem:[%s5892 + $0x3f8] sm:$0xff]
        %v6021 = vld [vmem:[%s5892 + $0x400] sm:$0xff]
        %v6022 = vld [vmem:[%s5892 + $0x408] sm:$0xff]
        %v6023 = vld [vmem:[%s5892 + $0x410] sm:$0xff]
        %v6024 = vld [vmem:[%s5892 + $0x418] sm:$0xff]
        %v6025 = vld [vmem:[%s5892 + $0x420] sm:$0xff]
        %v6026 = vld [vmem:[%s5892 + $0x428] sm:$0xff]
        %v6027 = vld [vmem:[%s5892 + $0x430] sm:$0xff]
        %v6028 = vld [vmem:[%s5892 + $0x438] sm:$0xff]
        %v6029 = vld [vmem:[%s5892 + $0x440] sm:$0xff]
        %v6030 = vld [vmem:[%s5892 + $0x448] sm:$0xff]
        %v6031 = vld [vmem:[%s5892 + $0x450] sm:$0xff]
        %v6032 = vld [vmem:[%s5892 + $0x458] sm:$0xff]
        %v6033 = vld [vmem:[%s5892 + $0x460] sm:$0xff]
        %v6034 = vld [vmem:[%s5892 + $0x468] sm:$0xff]
        %v6035 = vld [vmem:[%s5892 + $0x470] sm:$0xff]
        %v6036 = vld [vmem:[%s5892 + $0x478] sm:$0xff]
        %v6037 = vld [vmem:[%s5892 + $0x480] sm:$0xff]
        %v6038 = vld [vmem:[%s5892 + $0x488] sm:$0xff]
        %v6039 = vld [vmem:[%s5892 + $0x490] sm:$0xff]
        %v6040 = vld [vmem:[%s5892 + $0x498] sm:$0xff]
        %v6041 = vld [vmem:[%s5892 + $0x4a0] sm:$0xff]
        %v6042 = vld [vmem:[%s5892 + $0x4a8] sm:$0xff]
        %v6043 = vld [vmem:[%s5892 + $0x4b0] sm:$0xff]
        %v6044 = vld [vmem:[%s5892 + $0x4b8] sm:$0xff]
        %v6045 = vld [vmem:[%s5892 + $0x4c0] sm:$0xff]
        %v6046 = vld [vmem:[%s5892 + $0x4c8] sm:$0xff]
        %v6047 = vld [vmem:[%s5892 + $0x4d0] sm:$0xff]
        %v6048 = vld [vmem:[%s5892 + $0x4d8] sm:$0xff]
        %v6049 = vld [vmem:[%s5892 + $0x4e0] sm:$0xff]
        %v6050 = vld [vmem:[%s5892 + $0x4e8] sm:$0xff]
        %v6051 = vld [vmem:[%s5892 + $0x4f0] sm:$0xff]
        %v6052 = vld [vmem:[%s5892 + $0x4f8] sm:$0xff]
        %v6053 = vld [vmem:[%s5892 + $0x500] sm:$0xff]
        %v6054 = vld [vmem:[%s5892 + $0x508] sm:$0xff]
        %v6055 = vld [vmem:[%s5892 + $0x510] sm:$0xff]
        %v6056 = vld [vmem:[%s5892 + $0x518] sm:$0xff]
        %v6057 = vld [vmem:[%s5892 + $0x520] sm:$0xff]
        %v6058 = vld [vmem:[%s5892 + $0x528] sm:$0xff]
        %v6059 = vld [vmem:[%s5892 + $0x530] sm:$0xff]
        %v6060 = vld [vmem:[%s5892 + $0x538] sm:$0xff]
        %v6061 = vld [vmem:[%s5892 + $0x540] sm:$0xff]
        %v6062 = vld [vmem:[%s5892 + $0x548] sm:$0xff]
        %v6063 = vld [vmem:[%s5892 + $0x550] sm:$0xff]
        %v6064 = vld [vmem:[%s5892 + $0x558] sm:$0xff]
        %v6065 = vld [vmem:[%s5892 + $0x560] sm:$0xff]
        %v6066 = vld [vmem:[%s5892 + $0x568] sm:$0xff]
        %v6067 = vld [vmem:[%s5892 + $0x570] sm:$0xff]
        %v6068 = vld [vmem:[%s5892 + $0x578] sm:$0xff]
        %v6069 = vld [vmem:[%s5892 + $0x580] sm:$0xff]
        %v6070 = vld [vmem:[%s5892 + $0x588] sm:$0xff]
        %v6071 = vld [vmem:[%s5892 + $0x590] sm:$0xff]
        %v6072 = vld [vmem:[%s5892 + $0x598] sm:$0xff]
        %v6073 = vld [vmem:[%s5892 + $0x5a0] sm:$0xff]
        %v6074 = vld [vmem:[%s5892 + $0x5a8] sm:$0xff]
        %v6075 = vld [vmem:[%s5892 + $0x5b0] sm:$0xff]
        %v6076 = vld [vmem:[%s5892 + $0x5b8] sm:$0xff]
        %v6077 = vld [vmem:[%s5892 + $0x5c0] sm:$0xff]
        %v6078 = vld [vmem:[%s5892 + $0x5c8] sm:$0xff]
        %v6079 = vld [vmem:[%s5892 + $0x5d0] sm:$0xff]
        %v6080 = vld [vmem:[%s5892 + $0x5d8] sm:$0xff]
        %v6081 = vld [vmem:[%s5892 + $0x5e0] sm:$0xff]
        %v6082 = vld [vmem:[%s5892 + $0x5e8] sm:$0xff]
        %v6083 = vld [vmem:[%s5892 + $0x5f0] sm:$0xff]
        %v6084 = vld [vmem:[%s5892 + $0x5f8] sm:$0xff]
        %v6085 = vld [vmem:[%s5892 + $0x600] sm:$0xff]
        %v6086 = vld [vmem:[%s5892 + $0x608] sm:$0xff]
        %v6087 = vld [vmem:[%s5892 + $0x610] sm:$0xff]
        %v6088 = vld [vmem:[%s5892 + $0x618] sm:$0xff]
        %v6089 = vld [vmem:[%s5892 + $0x620] sm:$0xff]
        %v6090 = vld [vmem:[%s5892 + $0x628] sm:$0xff]
        %v6091 = vld [vmem:[%s5892 + $0x630] sm:$0xff]
        %v6092 = vld [vmem:[%s5892 + $0x638] sm:$0xff]
        %v6093 = vld [vmem:[%s5892 + $0x640] sm:$0xff]
        %v6094 = vld [vmem:[%s5892 + $0x648] sm:$0xff]
        %v6095 = vld [vmem:[%s5892 + $0x650] sm:$0xff]
        %v6096 = vld [vmem:[%s5892 + $0x658] sm:$0xff]
        %v6097 = vld [vmem:[%s5892 + $0x660] sm:$0xff]
        %v6098 = vld [vmem:[%s5892 + $0x668] sm:$0xff]
        %v6099 = vld [vmem:[%s5892 + $0x670] sm:$0xff]
        %v6100 = vld [vmem:[%s5892 + $0x678] sm:$0xff]
        %v6101 = vld [vmem:[%s5892 + $0x680] sm:$0xff]
        %v6102 = vld [vmem:[%s5892 + $0x688] sm:$0xff]
        %v6103 = vld [vmem:[%s5892 + $0x690] sm:$0xff]
        %v6104 = vld [vmem:[%s5892 + $0x698] sm:$0xff]
        %v6105 = vld [vmem:[%s5892 + $0x6a0] sm:$0xff]
        %v6106 = vld [vmem:[%s5892 + $0x6a8] sm:$0xff]
        %v6107 = vld [vmem:[%s5892 + $0x6b0] sm:$0xff]
        %v6108 = vld [vmem:[%s5892 + $0x6b8] sm:$0xff]
        %v6109 = vld [vmem:[%s5892 + $0x6c0] sm:$0xff]
        %v6110 = vld [vmem:[%s5892 + $0x6c8] sm:$0xff]
        %v6111 = vld [vmem:[%s5892 + $0x6d0] sm:$0xff]
        %v6112 = vld [vmem:[%s5892 + $0x6d8] sm:$0xff]
        %v6113 = vld [vmem:[%s5892 + $0x6e0] sm:$0xff]
        %v6114 = vld [vmem:[%s5892 + $0x6e8] sm:$0xff]
        %v6115 = vld [vmem:[%s5892 + $0x6f0] sm:$0xff]
        %v6116 = vld [vmem:[%s5892 + $0x6f8] sm:$0xff]
        %v6117 = vld [vmem:[%s5892 + $0x700] sm:$0xff]
        %v6118 = vld [vmem:[%s5892 + $0x708] sm:$0xff]
        %v6119 = vld [vmem:[%s5892 + $0x710] sm:$0xff]
        %v6120 = vld [vmem:[%s5892 + $0x718] sm:$0xff]
        %v6121 = vld [vmem:[%s5892 + $0x720] sm:$0xff]
        %v6122 = vld [vmem:[%s5892 + $0x728] sm:$0xff]
        %v6123 = vld [vmem:[%s5892 + $0x730] sm:$0xff]
        %v6124 = vld [vmem:[%s5892 + $0x738] sm:$0xff]
        %v6125 = vld [vmem:[%s5892 + $0x740] sm:$0xff]
        %v6126 = vld [vmem:[%s5892 + $0x748] sm:$0xff]
        %v6127 = vld [vmem:[%s5892 + $0x750] sm:$0xff]
        %v6128 = vld [vmem:[%s5892 + $0x758] sm:$0xff]
        %v6129 = vld [vmem:[%s5892 + $0x760] sm:$0xff]
        %v6130 = vld [vmem:[%s5892 + $0x768] sm:$0xff]
        %v6131 = vld [vmem:[%s5892 + $0x770] sm:$0xff]
        %v6132 = vld [vmem:[%s5892 + $0x778] sm:$0xff]
        %v6133 = vld [vmem:[%s5892 + $0x780] sm:$0xff]
        %v6134 = vld [vmem:[%s5892 + $0x788] sm:$0xff]
        %v6135 = vld [vmem:[%s5892 + $0x790] sm:$0xff]
        %v6136 = vld [vmem:[%s5892 + $0x798] sm:$0xff]
        %v6137 = vld [vmem:[%s5892 + $0x7a0] sm:$0xff]
        %v6138 = vld [vmem:[%s5892 + $0x7a8] sm:$0xff]
        %v6139 = vld [vmem:[%s5892 + $0x7b0] sm:$0xff]
        %v6140 = vld [vmem:[%s5892 + $0x7b8] sm:$0xff]
        %v6141 = vld [vmem:[%s5892 + $0x7c0] sm:$0xff]
        %v6142 = vld [vmem:[%s5892 + $0x7c8] sm:$0xff]
        %v6143 = vld [vmem:[%s5892 + $0x7d0] sm:$0xff]
        %v6144 = vld [vmem:[%s5892 + $0x7d8] sm:$0xff]
        %v6145 = vld [vmem:[%s5892 + $0x7e0] sm:$0xff]
        %v6146 = vld [vmem:[%s5892 + $0x7e8] sm:$0xff]
        %v6147 = vld [vmem:[%s5892 + $0x7f0] sm:$0xff]
        %v6148 = vld [vmem:[%s5892 + $0x7f8] sm:$0xff]
        %v6149 = vld [vmem:[%s5892 + $0x800] sm:$0xff]
        %v6150 = vld [vmem:[%s5892 + $0x808] sm:$0xff]
        %v6151 = vld [vmem:[%s5892 + $0x810] sm:$0xff]
        %v6152 = vld [vmem:[%s5892 + $0x818] sm:$0xff]
        %v6153 = vld [vmem:[%s5892 + $0x820] sm:$0xff]
        %v6154 = vld [vmem:[%s5892 + $0x828] sm:$0xff]
        %v6155 = vld [vmem:[%s5892 + $0x830] sm:$0xff]
        %v6156 = vld [vmem:[%s5892 + $0x838] sm:$0xff]
        %v6157 = vld [vmem:[%s5892 + $0x840] sm:$0xff]
        %v6158 = vld [vmem:[%s5892 + $0x848] sm:$0xff]
        %v6159 = vld [vmem:[%s5892 + $0x850] sm:$0xff]
        %v6160 = vld [vmem:[%s5892 + $0x858] sm:$0xff]
        %v6161 = vld [vmem:[%s5892 + $0x860] sm:$0xff]
        %v6162 = vld [vmem:[%s5892 + $0x868] sm:$0xff]
        %v6163 = vld [vmem:[%s5892 + $0x870] sm:$0xff]
        %v6164 = vld [vmem:[%s5892 + $0x878] sm:$0xff]
        %v6165 = vld [vmem:[%s5892 + $0x880] sm:$0xff]
        %v6166 = vld [vmem:[%s5892 + $0x888] sm:$0xff]
        %v6167 = vld [vmem:[%s5892 + $0x890] sm:$0xff]
        %v6168 = vld [vmem:[%s5892 + $0x898] sm:$0xff]
        %v6169 = vld [vmem:[%s5892 + $0x8a0] sm:$0xff]
        %v6170 = vld [vmem:[%s5892 + $0x8a8] sm:$0xff]
        %v6171 = vld [vmem:[%s5892 + $0x8b0] sm:$0xff]
        %v6172 = vld [vmem:[%s5892 + $0x8b8] sm:$0xff]
        %v6173 = vld [vmem:[%s5892 + $0x8c0] sm:$0xff]
        %v6174 = vld [vmem:[%s5892 + $0x8c8] sm:$0xff]
        %v6175 = vld [vmem:[%s5892 + $0x8d0] sm:$0xff]
        %v6176 = vld [vmem:[%s5892 + $0x8d8] sm:$0xff]
        %v6177 = vld [vmem:[%s5892 + $0x8e0] sm:$0xff]
        %v6178 = vld [vmem:[%s5892 + $0x8e8] sm:$0xff]
        %v6179 = vld [vmem:[%s5892 + $0x8f0] sm:$0xff]
        %v6180 = vld [vmem:[%s5892 + $0x8f8] sm:$0xff]
        %v6469 = vunpack.c.l.b16 %v5893
        %v6470 = vunpack.c.h.b16 %v5893
        %v6471 = vunpack.c.l.b16 %v5894
        %v6472 = vunpack.c.h.b16 %v5894
        %v6473 = vunpack.c.l.b16 %v5895
        %v6474 = vunpack.c.h.b16 %v5895
        %v6475 = vunpack.c.l.b16 %v5896
        %v6476 = vunpack.c.h.b16 %v5896
        %v6477 = vunpack.c.l.b16 %v5897
        %v6478 = vunpack.c.h.b16 %v5897
        %v6479 = vunpack.c.l.b16 %v5898
        %v6480 = vunpack.c.h.b16 %v5898
        %v6481 = vunpack.c.l.b16 %v5899
        %v6482 = vunpack.c.h.b16 %v5899
        %v6483 = vunpack.c.l.b16 %v5900
        %v6484 = vunpack.c.h.b16 %v5900
        %v6485 = vunpack.c.l.b16 %v5901
        %v6486 = vunpack.c.h.b16 %v5901
        %v6487 = vunpack.c.l.b16 %v5902
        %v6488 = vunpack.c.h.b16 %v5902
        %v6489 = vunpack.c.l.b16 %v5903
        %v6490 = vunpack.c.h.b16 %v5903
        %v6491 = vunpack.c.l.b16 %v5904
        %v6492 = vunpack.c.h.b16 %v5904
        %v6493 = vunpack.c.l.b16 %v5905
        %v6494 = vunpack.c.h.b16 %v5905
        %v6495 = vunpack.c.l.b16 %v5906
        %v6496 = vunpack.c.h.b16 %v5906
        %v6497 = vunpack.c.l.b16 %v5907
        %v6498 = vunpack.c.h.b16 %v5907
        %v6499 = vunpack.c.l.b16 %v5908
        %v6500 = vunpack.c.h.b16 %v5908
        %v6501 = vunpack.c.l.b16 %v5909
        %v6502 = vunpack.c.h.b16 %v5909
        %v6503 = vunpack.c.l.b16 %v5910
        %v6504 = vunpack.c.h.b16 %v5910
        %v6505 = vunpack.c.l.b16 %v5911
        %v6506 = vunpack.c.h.b16 %v5911
        %v6507 = vunpack.c.l.b16 %v5912
        %v6508 = vunpack.c.h.b16 %v5912
        %v6509 = vunpack.c.l.b16 %v5913
        %v6510 = vunpack.c.h.b16 %v5913
        %v6511 = vunpack.c.l.b16 %v5914
        %v6512 = vunpack.c.h.b16 %v5914
        %v6513 = vunpack.c.l.b16 %v5915
        %v6514 = vunpack.c.h.b16 %v5915
        %v6515 = vunpack.c.l.b16 %v5916
        %v6516 = vunpack.c.h.b16 %v5916
        %v6517 = vunpack.c.l.b16 %v5917
        %v6518 = vunpack.c.h.b16 %v5917
        %v6519 = vunpack.c.l.b16 %v5918
        %v6520 = vunpack.c.h.b16 %v5918
        %v6521 = vunpack.c.l.b16 %v5919
        %v6522 = vunpack.c.h.b16 %v5919
        %v6523 = vunpack.c.l.b16 %v5920
        %v6524 = vunpack.c.h.b16 %v5920
        %v6525 = vunpack.c.l.b16 %v5921
        %v6526 = vunpack.c.h.b16 %v5921
        %v6527 = vunpack.c.l.b16 %v5922
        %v6528 = vunpack.c.h.b16 %v5922
        %v6529 = vunpack.c.l.b16 %v5923
        %v6530 = vunpack.c.h.b16 %v5923
        %v6531 = vunpack.c.l.b16 %v5924
        %v6532 = vunpack.c.h.b16 %v5924
        %v6533 = vunpack.c.l.b16 %v5925
        %v6534 = vunpack.c.h.b16 %v5925
        %v6535 = vunpack.c.l.b16 %v5926
        %v6536 = vunpack.c.h.b16 %v5926
        %v6537 = vunpack.c.l.b16 %v5927
        %v6538 = vunpack.c.h.b16 %v5927
        %v6539 = vunpack.c.l.b16 %v5928
        %v6540 = vunpack.c.h.b16 %v5928
        %v6541 = vunpack.c.l.b16 %v5929
        %v6542 = vunpack.c.h.b16 %v5929
        %v6543 = vunpack.c.l.b16 %v5930
        %v6544 = vunpack.c.h.b16 %v5930
        %v6545 = vunpack.c.l.b16 %v5931
        %v6546 = vunpack.c.h.b16 %v5931
        %v6547 = vunpack.c.l.b16 %v5932
        %v6548 = vunpack.c.h.b16 %v5932
        %v6549 = vunpack.c.l.b16 %v5933
        %v6550 = vunpack.c.h.b16 %v5933
        %v6551 = vunpack.c.l.b16 %v5934
        %v6552 = vunpack.c.h.b16 %v5934
        %v6553 = vunpack.c.l.b16 %v5935
        %v6554 = vunpack.c.h.b16 %v5935
        %v6555 = vunpack.c.l.b16 %v5936
        %v6556 = vunpack.c.h.b16 %v5936
        %v6557 = vunpack.c.l.b16 %v5937
        %v6558 = vunpack.c.h.b16 %v5937
        %v6559 = vunpack.c.l.b16 %v5938
        %v6560 = vunpack.c.h.b16 %v5938
        %v6561 = vunpack.c.l.b16 %v5939
        %v6562 = vunpack.c.h.b16 %v5939
        %v6563 = vunpack.c.l.b16 %v5940
        %v6564 = vunpack.c.h.b16 %v5940
        %v6565 = vunpack.c.l.b16 %v5941
        %v6566 = vunpack.c.h.b16 %v5941
        %v6567 = vunpack.c.l.b16 %v5942
        %v6568 = vunpack.c.h.b16 %v5942
        %v6569 = vunpack.c.l.b16 %v5943
        %v6570 = vunpack.c.h.b16 %v5943
        %v6571 = vunpack.c.l.b16 %v5944
        %v6572 = vunpack.c.h.b16 %v5944
        %v6573 = vunpack.c.l.b16 %v5945
        %v6574 = vunpack.c.h.b16 %v5945
        %v6575 = vunpack.c.l.b16 %v5946
        %v6576 = vunpack.c.h.b16 %v5946
        %v6577 = vunpack.c.l.b16 %v5947
        %v6578 = vunpack.c.h.b16 %v5947
        %v6579 = vunpack.c.l.b16 %v5948
        %v6580 = vunpack.c.h.b16 %v5948
        %v6581 = vunpack.c.l.b16 %v5949
        %v6582 = vunpack.c.h.b16 %v5949
        %v6583 = vunpack.c.l.b16 %v5950
        %v6584 = vunpack.c.h.b16 %v5950
        %v6585 = vunpack.c.l.b16 %v5951
        %v6586 = vunpack.c.h.b16 %v5951
        %v6587 = vunpack.c.l.b16 %v5952
        %v6588 = vunpack.c.h.b16 %v5952
        %v6589 = vunpack.c.l.b16 %v5953
        %v6590 = vunpack.c.h.b16 %v5953
        %v6591 = vunpack.c.l.b16 %v5954
        %v6592 = vunpack.c.h.b16 %v5954
        %v6593 = vunpack.c.l.b16 %v5955
        %v6594 = vunpack.c.h.b16 %v5955
        %v6595 = vunpack.c.l.b16 %v5956
        %v6596 = vunpack.c.h.b16 %v5956
        %v6597 = vunpack.c.l.b16 %v5957
        %v6598 = vunpack.c.h.b16 %v5957
        %v6599 = vunpack.c.l.b16 %v5958
        %v6600 = vunpack.c.h.b16 %v5958
        %v6601 = vunpack.c.l.b16 %v5959
        %v6602 = vunpack.c.h.b16 %v5959
        %v6603 = vunpack.c.l.b16 %v5960
        %v6604 = vunpack.c.h.b16 %v5960
        %v6605 = vunpack.c.l.b16 %v5961
        %v6606 = vunpack.c.h.b16 %v5961
        %v6607 = vunpack.c.l.b16 %v5962
        %v6608 = vunpack.c.h.b16 %v5962
        %v6609 = vunpack.c.l.b16 %v5963
        %v6610 = vunpack.c.h.b16 %v5963
        %v6611 = vunpack.c.l.b16 %v5964
        %v6612 = vunpack.c.h.b16 %v5964
        %v6613 = vunpack.c.l.b16 %v5965
        %v6614 = vunpack.c.h.b16 %v5965
        %v6615 = vunpack.c.l.b16 %v5966
        %v6616 = vunpack.c.h.b16 %v5966
        %v6617 = vunpack.c.l.b16 %v5967
        %v6618 = vunpack.c.h.b16 %v5967
        %v6619 = vunpack.c.l.b16 %v5968
        %v6620 = vunpack.c.h.b16 %v5968
        %v6621 = vunpack.c.l.b16 %v5969
        %v6622 = vunpack.c.h.b16 %v5969
        %v6623 = vunpack.c.l.b16 %v5970
        %v6624 = vunpack.c.h.b16 %v5970
        %v6625 = vunpack.c.l.b16 %v5971
        %v6626 = vunpack.c.h.b16 %v5971
        %v6627 = vunpack.c.l.b16 %v5972
        %v6628 = vunpack.c.h.b16 %v5972
        %v6629 = vunpack.c.l.b16 %v5973
        %v6630 = vunpack.c.h.b16 %v5973
        %v6631 = vunpack.c.l.b16 %v5974
        %v6632 = vunpack.c.h.b16 %v5974
        %v6633 = vunpack.c.l.b16 %v5975
        %v6634 = vunpack.c.h.b16 %v5975
        %v6635 = vunpack.c.l.b16 %v5976
        %v6636 = vunpack.c.h.b16 %v5976
        %v6637 = vunpack.c.l.b16 %v5977
        %v6638 = vunpack.c.h.b16 %v5977
        %v6639 = vunpack.c.l.b16 %v5978
        %v6640 = vunpack.c.h.b16 %v5978
        %v6641 = vunpack.c.l.b16 %v5979
        %v6642 = vunpack.c.h.b16 %v5979
        %v6643 = vunpack.c.l.b16 %v5980
        %v6644 = vunpack.c.h.b16 %v5980
        %v6645 = vunpack.c.l.b16 %v5981
        %v6646 = vunpack.c.h.b16 %v5981
        %v6647 = vunpack.c.l.b16 %v5982
        %v6648 = vunpack.c.h.b16 %v5982
        %v6649 = vunpack.c.l.b16 %v5983
        %v6650 = vunpack.c.h.b16 %v5983
        %v6651 = vunpack.c.l.b16 %v5984
        %v6652 = vunpack.c.h.b16 %v5984
        %v6653 = vunpack.c.l.b16 %v5985
        %v6654 = vunpack.c.h.b16 %v5985
        %v6655 = vunpack.c.l.b16 %v5986
        %v6656 = vunpack.c.h.b16 %v5986
        %v6657 = vunpack.c.l.b16 %v5987
        %v6658 = vunpack.c.h.b16 %v5987
        %v6659 = vunpack.c.l.b16 %v5988
        %v6660 = vunpack.c.h.b16 %v5988
        %v6661 = vunpack.c.l.b16 %v5989
        %v6662 = vunpack.c.h.b16 %v5989
        %v6663 = vunpack.c.l.b16 %v5990
        %v6664 = vunpack.c.h.b16 %v5990
        %v6665 = vunpack.c.l.b16 %v5991
        %v6666 = vunpack.c.h.b16 %v5991
        %v6667 = vunpack.c.l.b16 %v5992
        %v6668 = vunpack.c.h.b16 %v5992
        %v6669 = vunpack.c.l.b16 %v5993
        %v6670 = vunpack.c.h.b16 %v5993
        %v6671 = vunpack.c.l.b16 %v5994
        %v6672 = vunpack.c.h.b16 %v5994
        %v6673 = vunpack.c.l.b16 %v5995
        %v6674 = vunpack.c.h.b16 %v5995
        %v6675 = vunpack.c.l.b16 %v5996
        %v6676 = vunpack.c.h.b16 %v5996
        %v6677 = vunpack.c.l.b16 %v5997
        %v6678 = vunpack.c.h.b16 %v5997
        %v6679 = vunpack.c.l.b16 %v5998
        %v6680 = vunpack.c.h.b16 %v5998
        %v6681 = vunpack.c.l.b16 %v5999
        %v6682 = vunpack.c.h.b16 %v5999
        %v6683 = vunpack.c.l.b16 %v6000
        %v6684 = vunpack.c.h.b16 %v6000
        %v6685 = vunpack.c.l.b16 %v6001
        %v6686 = vunpack.c.h.b16 %v6001
        %v6687 = vunpack.c.l.b16 %v6002
        %v6688 = vunpack.c.h.b16 %v6002
        %v6689 = vunpack.c.l.b16 %v6003
        %v6690 = vunpack.c.h.b16 %v6003
        %v6691 = vunpack.c.l.b16 %v6004
        %v6692 = vunpack.c.h.b16 %v6004
        %v6693 = vunpack.c.l.b16 %v6005
        %v6694 = vunpack.c.h.b16 %v6005
        %v6695 = vunpack.c.l.b16 %v6006
        %v6696 = vunpack.c.h.b16 %v6006
        %v6697 = vunpack.c.l.b16 %v6007
        %v6698 = vunpack.c.h.b16 %v6007
        %v6699 = vunpack.c.l.b16 %v6008
        %v6700 = vunpack.c.h.b16 %v6008
        %v6701 = vunpack.c.l.b16 %v6009
        %v6702 = vunpack.c.h.b16 %v6009
        %v6703 = vunpack.c.l.b16 %v6010
        %v6704 = vunpack.c.h.b16 %v6010
        %v6705 = vunpack.c.l.b16 %v6011
        %v6706 = vunpack.c.h.b16 %v6011
        %v6707 = vunpack.c.l.b16 %v6012
        %v6708 = vunpack.c.h.b16 %v6012
        %v6709 = vunpack.c.l.b16 %v6013
        %v6710 = vunpack.c.h.b16 %v6013
        %v6711 = vunpack.c.l.b16 %v6014
        %v6712 = vunpack.c.h.b16 %v6014
        %v6713 = vunpack.c.l.b16 %v6015
        %v6714 = vunpack.c.h.b16 %v6015
        %v6715 = vunpack.c.l.b16 %v6016
        %v6716 = vunpack.c.h.b16 %v6016
        %v6717 = vunpack.c.l.b16 %v6017
        %v6718 = vunpack.c.h.b16 %v6017
        %v6719 = vunpack.c.l.b16 %v6018
        %v6720 = vunpack.c.h.b16 %v6018
        %v6721 = vunpack.c.l.b16 %v6019
        %v6722 = vunpack.c.h.b16 %v6019
        %v6723 = vunpack.c.l.b16 %v6020
        %v6724 = vunpack.c.h.b16 %v6020
        %v6725 = vunpack.c.l.b16 %v6021
        %v6726 = vunpack.c.h.b16 %v6021
        %v6727 = vunpack.c.l.b16 %v6022
        %v6728 = vunpack.c.h.b16 %v6022
        %v6729 = vunpack.c.l.b16 %v6023
        %v6730 = vunpack.c.h.b16 %v6023
        %v6731 = vunpack.c.l.b16 %v6024
        %v6732 = vunpack.c.h.b16 %v6024
        %v6733 = vunpack.c.l.b16 %v6025
        %v6734 = vunpack.c.h.b16 %v6025
        %v6735 = vunpack.c.l.b16 %v6026
        %v6736 = vunpack.c.h.b16 %v6026
        %v6737 = vunpack.c.l.b16 %v6027
        %v6738 = vunpack.c.h.b16 %v6027
        %v6739 = vunpack.c.l.b16 %v6028
        %v6740 = vunpack.c.h.b16 %v6028
        %v6741 = vunpack.c.l.b16 %v6029
        %v6742 = vunpack.c.h.b16 %v6029
        %v6743 = vunpack.c.l.b16 %v6030
        %v6744 = vunpack.c.h.b16 %v6030
        %v6745 = vunpack.c.l.b16 %v6031
        %v6746 = vunpack.c.h.b16 %v6031
        %v6747 = vunpack.c.l.b16 %v6032
        %v6748 = vunpack.c.h.b16 %v6032
        %v6749 = vunpack.c.l.b16 %v6033
        %v6750 = vunpack.c.h.b16 %v6033
        %v6751 = vunpack.c.l.b16 %v6034
        %v6752 = vunpack.c.h.b16 %v6034
        %v6753 = vunpack.c.l.b16 %v6035
        %v6754 = vunpack.c.h.b16 %v6035
        %v6755 = vunpack.c.l.b16 %v6036
        %v6756 = vunpack.c.h.b16 %v6036
        %v6757 = vunpack.c.l.b16 %v6037
        %v6758 = vunpack.c.h.b16 %v6037
        %v6759 = vunpack.c.l.b16 %v6038
        %v6760 = vunpack.c.h.b16 %v6038
        %v6761 = vunpack.c.l.b16 %v6039
        %v6762 = vunpack.c.h.b16 %v6039
        %v6763 = vunpack.c.l.b16 %v6040
        %v6764 = vunpack.c.h.b16 %v6040
        %v6765 = vunpack.c.l.b16 %v6041
        %v6766 = vunpack.c.h.b16 %v6041
        %v6767 = vunpack.c.l.b16 %v6042
        %v6768 = vunpack.c.h.b16 %v6042
        %v6769 = vunpack.c.l.b16 %v6043
        %v6770 = vunpack.c.h.b16 %v6043
        %v6771 = vunpack.c.l.b16 %v6044
        %v6772 = vunpack.c.h.b16 %v6044
        %v6773 = vunpack.c.l.b16 %v6045
        %v6774 = vunpack.c.h.b16 %v6045
        %v6775 = vunpack.c.l.b16 %v6046
        %v6776 = vunpack.c.h.b16 %v6046
        %v6777 = vunpack.c.l.b16 %v6047
        %v6778 = vunpack.c.h.b16 %v6047
        %v6779 = vunpack.c.l.b16 %v6048
        %v6780 = vunpack.c.h.b16 %v6048
        %v6781 = vunpack.c.l.b16 %v6049
        %v6782 = vunpack.c.h.b16 %v6049
        %v6783 = vunpack.c.l.b16 %v6050
        %v6784 = vunpack.c.h.b16 %v6050
        %v6785 = vunpack.c.l.b16 %v6051
        %v6786 = vunpack.c.h.b16 %v6051
        %v6787 = vunpack.c.l.b16 %v6052
        %v6788 = vunpack.c.h.b16 %v6052
        %v6789 = vunpack.c.l.b16 %v6053
        %v6790 = vunpack.c.h.b16 %v6053
        %v6791 = vunpack.c.l.b16 %v6054
        %v6792 = vunpack.c.h.b16 %v6054
        %v6793 = vunpack.c.l.b16 %v6055
        %v6794 = vunpack.c.h.b16 %v6055
        %v6795 = vunpack.c.l.b16 %v6056
        %v6796 = vunpack.c.h.b16 %v6056
        %v6797 = vunpack.c.l.b16 %v6057
        %v6798 = vunpack.c.h.b16 %v6057
        %v6799 = vunpack.c.l.b16 %v6058
        %v6800 = vunpack.c.h.b16 %v6058
        %v6801 = vunpack.c.l.b16 %v6059
        %v6802 = vunpack.c.h.b16 %v6059
        %v6803 = vunpack.c.l.b16 %v6060
        %v6804 = vunpack.c.h.b16 %v6060
        %v6805 = vunpack.c.l.b16 %v6061
        %v6806 = vunpack.c.h.b16 %v6061
        %v6807 = vunpack.c.l.b16 %v6062
        %v6808 = vunpack.c.h.b16 %v6062
        %v6809 = vunpack.c.l.b16 %v6063
        %v6810 = vunpack.c.h.b16 %v6063
        %v6811 = vunpack.c.l.b16 %v6064
        %v6812 = vunpack.c.h.b16 %v6064
        %v6813 = vunpack.c.l.b16 %v6065
        %v6814 = vunpack.c.h.b16 %v6065
        %v6815 = vunpack.c.l.b16 %v6066
        %v6816 = vunpack.c.h.b16 %v6066
        %v6817 = vunpack.c.l.b16 %v6067
        %v6818 = vunpack.c.h.b16 %v6067
        %v6819 = vunpack.c.l.b16 %v6068
        %v6820 = vunpack.c.h.b16 %v6068
        %v6821 = vunpack.c.l.b16 %v6069
        %v6822 = vunpack.c.h.b16 %v6069
        %v6823 = vunpack.c.l.b16 %v6070
        %v6824 = vunpack.c.h.b16 %v6070
        %v6825 = vunpack.c.l.b16 %v6071
        %v6826 = vunpack.c.h.b16 %v6071
        %v6827 = vunpack.c.l.b16 %v6072
        %v6828 = vunpack.c.h.b16 %v6072
        %v6829 = vunpack.c.l.b16 %v6073
        %v6830 = vunpack.c.h.b16 %v6073
        %v6831 = vunpack.c.l.b16 %v6074
        %v6832 = vunpack.c.h.b16 %v6074
        %v6833 = vunpack.c.l.b16 %v6075
        %v6834 = vunpack.c.h.b16 %v6075
        %v6835 = vunpack.c.l.b16 %v6076
        %v6836 = vunpack.c.h.b16 %v6076
        %v6837 = vunpack.c.l.b16 %v6077
        %v6838 = vunpack.c.h.b16 %v6077
        %v6839 = vunpack.c.l.b16 %v6078
        %v6840 = vunpack.c.h.b16 %v6078
        %v6841 = vunpack.c.l.b16 %v6079
        %v6842 = vunpack.c.h.b16 %v6079
        %v6843 = vunpack.c.l.b16 %v6080
        %v6844 = vunpack.c.h.b16 %v6080
        %v6845 = vunpack.c.l.b16 %v6081
        %v6846 = vunpack.c.h.b16 %v6081
        %v6847 = vunpack.c.l.b16 %v6082
        %v6848 = vunpack.c.h.b16 %v6082
        %v6849 = vunpack.c.l.b16 %v6083
        %v6850 = vunpack.c.h.b16 %v6083
        %v6851 = vunpack.c.l.b16 %v6084
        %v6852 = vunpack.c.h.b16 %v6084
        %v6853 = vunpack.c.l.b16 %v6085
        %v6854 = vunpack.c.h.b16 %v6085
        %v6855 = vunpack.c.l.b16 %v6086
        %v6856 = vunpack.c.h.b16 %v6086
        %v6857 = vunpack.c.l.b16 %v6087
        %v6858 = vunpack.c.h.b16 %v6087
        %v6859 = vunpack.c.l.b16 %v6088
        %v6860 = vunpack.c.h.b16 %v6088
        %v6861 = vunpack.c.l.b16 %v6089
        %v6862 = vunpack.c.h.b16 %v6089
        %v6863 = vunpack.c.l.b16 %v6090
        %v6864 = vunpack.c.h.b16 %v6090
        %v6865 = vunpack.c.l.b16 %v6091
        %v6866 = vunpack.c.h.b16 %v6091
        %v6867 = vunpack.c.l.b16 %v6092
        %v6868 = vunpack.c.h.b16 %v6092
        %v6869 = vunpack.c.l.b16 %v6093
        %v6870 = vunpack.c.h.b16 %v6093
        %v6871 = vunpack.c.l.b16 %v6094
        %v6872 = vunpack.c.h.b16 %v6094
        %v6873 = vunpack.c.l.b16 %v6095
        %v6874 = vunpack.c.h.b16 %v6095
        %v6875 = vunpack.c.l.b16 %v6096
        %v6876 = vunpack.c.h.b16 %v6096
        %v6877 = vunpack.c.l.b16 %v6097
        %v6878 = vunpack.c.h.b16 %v6097
        %v6879 = vunpack.c.l.b16 %v6098
        %v6880 = vunpack.c.h.b16 %v6098
        %v6881 = vunpack.c.l.b16 %v6099
        %v6882 = vunpack.c.h.b16 %v6099
        %v6883 = vunpack.c.l.b16 %v6100
        %v6884 = vunpack.c.h.b16 %v6100
        %v6885 = vunpack.c.l.b16 %v6101
        %v6886 = vunpack.c.h.b16 %v6101
        %v6887 = vunpack.c.l.b16 %v6102
        %v6888 = vunpack.c.h.b16 %v6102
        %v6889 = vunpack.c.l.b16 %v6103
        %v6890 = vunpack.c.h.b16 %v6103
        %v6891 = vunpack.c.l.b16 %v6104
        %v6892 = vunpack.c.h.b16 %v6104
        %v6893 = vunpack.c.l.b16 %v6105
        %v6894 = vunpack.c.h.b16 %v6105
        %v6895 = vunpack.c.l.b16 %v6106
        %v6896 = vunpack.c.h.b16 %v6106
        %v6897 = vunpack.c.l.b16 %v6107
        %v6898 = vunpack.c.h.b16 %v6107
        %v6899 = vunpack.c.l.b16 %v6108
        %v6900 = vunpack.c.h.b16 %v6108
        %v6901 = vunpack.c.l.b16 %v6109
        %v6902 = vunpack.c.h.b16 %v6109
        %v6903 = vunpack.c.l.b16 %v6110
        %v6904 = vunpack.c.h.b16 %v6110
        %v6905 = vunpack.c.l.b16 %v6111
        %v6906 = vunpack.c.h.b16 %v6111
        %v6907 = vunpack.c.l.b16 %v6112
        %v6908 = vunpack.c.h.b16 %v6112
        %v6909 = vunpack.c.l.b16 %v6113
        %v6910 = vunpack.c.h.b16 %v6113
        %v6911 = vunpack.c.l.b16 %v6114
        %v6912 = vunpack.c.h.b16 %v6114
        %v6913 = vunpack.c.l.b16 %v6115
        %v6914 = vunpack.c.h.b16 %v6115
        %v6915 = vunpack.c.l.b16 %v6116
        %v6916 = vunpack.c.h.b16 %v6116
        %v6917 = vunpack.c.l.b16 %v6117
        %v6918 = vunpack.c.h.b16 %v6117
        %v6919 = vunpack.c.l.b16 %v6118
        %v6920 = vunpack.c.h.b16 %v6118
        %v6921 = vunpack.c.l.b16 %v6119
        %v6922 = vunpack.c.h.b16 %v6119
        %v6923 = vunpack.c.l.b16 %v6120
        %v6924 = vunpack.c.h.b16 %v6120
        %v6925 = vunpack.c.l.b16 %v6121
        %v6926 = vunpack.c.h.b16 %v6121
        %v6927 = vunpack.c.l.b16 %v6122
        %v6928 = vunpack.c.h.b16 %v6122
        %v6929 = vunpack.c.l.b16 %v6123
        %v6930 = vunpack.c.h.b16 %v6123
        %v6931 = vunpack.c.l.b16 %v6124
        %v6932 = vunpack.c.h.b16 %v6124
        %v6933 = vunpack.c.l.b16 %v6125
        %v6934 = vunpack.c.h.b16 %v6125
        %v6935 = vunpack.c.l.b16 %v6126
        %v6936 = vunpack.c.h.b16 %v6126
        %v6937 = vunpack.c.l.b16 %v6127
        %v6938 = vunpack.c.h.b16 %v6127
        %v6939 = vunpack.c.l.b16 %v6128
        %v6940 = vunpack.c.h.b16 %v6128
        %v6941 = vunpack.c.l.b16 %v6129
        %v6942 = vunpack.c.h.b16 %v6129
        %v6943 = vunpack.c.l.b16 %v6130
        %v6944 = vunpack.c.h.b16 %v6130
        %v6945 = vunpack.c.l.b16 %v6131
        %v6946 = vunpack.c.h.b16 %v6131
        %v6947 = vunpack.c.l.b16 %v6132
        %v6948 = vunpack.c.h.b16 %v6132
        %v6949 = vunpack.c.l.b16 %v6133
        %v6950 = vunpack.c.h.b16 %v6133
        %v6951 = vunpack.c.l.b16 %v6134
        %v6952 = vunpack.c.h.b16 %v6134
        %v6953 = vunpack.c.l.b16 %v6135
        %v6954 = vunpack.c.h.b16 %v6135
        %v6955 = vunpack.c.l.b16 %v6136
        %v6956 = vunpack.c.h.b16 %v6136
        %v6957 = vunpack.c.l.b16 %v6137
        %v6958 = vunpack.c.h.b16 %v6137
        %v6959 = vunpack.c.l.b16 %v6138
        %v6960 = vunpack.c.h.b16 %v6138
        %v6961 = vunpack.c.l.b16 %v6139
        %v6962 = vunpack.c.h.b16 %v6139
        %v6963 = vunpack.c.l.b16 %v6140
        %v6964 = vunpack.c.h.b16 %v6140
        %v6965 = vunpack.c.l.b16 %v6141
        %v6966 = vunpack.c.h.b16 %v6141
        %v6967 = vunpack.c.l.b16 %v6142
        %v6968 = vunpack.c.h.b16 %v6142
        %v6969 = vunpack.c.l.b16 %v6143
        %v6970 = vunpack.c.h.b16 %v6143
        %v6971 = vunpack.c.l.b16 %v6144
        %v6972 = vunpack.c.h.b16 %v6144
        %v6973 = vunpack.c.l.b16 %v6145
        %v6974 = vunpack.c.h.b16 %v6145
        %v6975 = vunpack.c.l.b16 %v6146
        %v6976 = vunpack.c.h.b16 %v6146
        %v6977 = vunpack.c.l.b16 %v6147
        %v6978 = vunpack.c.h.b16 %v6147
        %v6979 = vunpack.c.l.b16 %v6148
        %v6980 = vunpack.c.h.b16 %v6148
        %v6981 = vunpack.c.l.b16 %v6149
        %v6982 = vunpack.c.h.b16 %v6149
        %v6983 = vunpack.c.l.b16 %v6150
        %v6984 = vunpack.c.h.b16 %v6150
        %v6985 = vunpack.c.l.b16 %v6151
        %v6986 = vunpack.c.h.b16 %v6151
        %v6987 = vunpack.c.l.b16 %v6152
        %v6988 = vunpack.c.h.b16 %v6152
        %v6989 = vunpack.c.l.b16 %v6153
        %v6990 = vunpack.c.h.b16 %v6153
        %v6991 = vunpack.c.l.b16 %v6154
        %v6992 = vunpack.c.h.b16 %v6154
        %v6993 = vunpack.c.l.b16 %v6155
        %v6994 = vunpack.c.h.b16 %v6155
        %v6995 = vunpack.c.l.b16 %v6156
        %v6996 = vunpack.c.h.b16 %v6156
        %v6997 = vunpack.c.l.b16 %v6157
        %v6998 = vunpack.c.h.b16 %v6157
        %v6999 = vunpack.c.l.b16 %v6158
        %v7000 = vunpack.c.h.b16 %v6158
        %v7001 = vunpack.c.l.b16 %v6159
        %v7002 = vunpack.c.h.b16 %v6159
        %v7003 = vunpack.c.l.b16 %v6160
        %v7004 = vunpack.c.h.b16 %v6160
        %v7005 = vunpack.c.l.b16 %v6161
        %v7006 = vunpack.c.h.b16 %v6161
        %v7007 = vunpack.c.l.b16 %v6162
        %v7008 = vunpack.c.h.b16 %v6162
        %v7009 = vunpack.c.l.b16 %v6163
        %v7010 = vunpack.c.h.b16 %v6163
        %v7011 = vunpack.c.l.b16 %v6164
        %v7012 = vunpack.c.h.b16 %v6164
        %v7013 = vunpack.c.l.b16 %v6165
        %v7014 = vunpack.c.h.b16 %v6165
        %v7015 = vunpack.c.l.b16 %v6166
        %v7016 = vunpack.c.h.b16 %v6166
        %v7017 = vunpack.c.l.b16 %v6167
        %v7018 = vunpack.c.h.b16 %v6167
        %v7019 = vunpack.c.l.b16 %v6168
        %v7020 = vunpack.c.h.b16 %v6168
        %v7021 = vunpack.c.l.b16 %v6169
        %v7022 = vunpack.c.h.b16 %v6169
        %v7023 = vunpack.c.l.b16 %v6170
        %v7024 = vunpack.c.h.b16 %v6170
        %v7025 = vunpack.c.l.b16 %v6171
        %v7026 = vunpack.c.h.b16 %v6171
        %v7027 = vunpack.c.l.b16 %v6172
        %v7028 = vunpack.c.h.b16 %v6172
        %v7029 = vunpack.c.l.b16 %v6173
        %v7030 = vunpack.c.h.b16 %v6173
        %v7031 = vunpack.c.l.b16 %v6174
        %v7032 = vunpack.c.h.b16 %v6174
        %v7033 = vunpack.c.l.b16 %v6175
        %v7034 = vunpack.c.h.b16 %v6175
        %v7035 = vunpack.c.l.b16 %v6176
        %v7036 = vunpack.c.h.b16 %v6176
        %v7037 = vunpack.c.l.b16 %v6177
        %v7038 = vunpack.c.h.b16 %v6177
        %v7039 = vunpack.c.l.b16 %v6178
        %v7040 = vunpack.c.h.b16 %v6178
        %v7041 = vunpack.c.l.b16 %v6179
        %v7042 = vunpack.c.h.b16 %v6179
        %v7043 = vunpack.c.l.b16 %v6180
        %v7044 = vunpack.c.h.b16 %v6180
        %v7045 = vpack.c.b16 %v6471, %v6469
        %v7046 = vpack.c.b16 %v6472, %v6470
        %v7047 = vpack.c.b16 %v6475, %v6473
        %v7048 = vpack.c.b16 %v6476, %v6474
        %v7049 = vpack.c.b16 %v6479, %v6477
        %v7050 = vpack.c.b16 %v6480, %v6478
        %v7051 = vpack.c.b16 %v6483, %v6481
        %v7052 = vpack.c.b16 %v6484, %v6482
        %v7053 = vpack.c.b16 %v6487, %v6485
        %v7054 = vpack.c.b16 %v6488, %v6486
        %v7055 = vpack.c.b16 %v6491, %v6489
        %v7056 = vpack.c.b16 %v6492, %v6490
        %v7057 = vpack.c.b16 %v6495, %v6493
        %v7058 = vpack.c.b16 %v6496, %v6494
        %v7059 = vpack.c.b16 %v6499, %v6497
        %v7060 = vpack.c.b16 %v6500, %v6498
        %v7061 = vpack.c.b16 %v6503, %v6501
        %v7062 = vpack.c.b16 %v6504, %v6502
        %v7063 = vpack.c.b16 %v6507, %v6505
        %v7064 = vpack.c.b16 %v6508, %v6506
        %v7065 = vpack.c.b16 %v6511, %v6509
        %v7066 = vpack.c.b16 %v6512, %v6510
        %v7067 = vpack.c.b16 %v6515, %v6513
        %v7068 = vpack.c.b16 %v6516, %v6514
        %v7069 = vpack.c.b16 %v6519, %v6517
        %v7070 = vpack.c.b16 %v6520, %v6518
        %v7071 = vpack.c.b16 %v6523, %v6521
        %v7072 = vpack.c.b16 %v6524, %v6522
        %v7073 = vpack.c.b16 %v6527, %v6525
        %v7074 = vpack.c.b16 %v6528, %v6526
        %v7075 = vpack.c.b16 %v6531, %v6529
        %v7076 = vpack.c.b16 %v6532, %v6530
        %v7077 = vpack.c.b16 %v6535, %v6533
        %v7078 = vpack.c.b16 %v6536, %v6534
        %v7079 = vpack.c.b16 %v6539, %v6537
        %v7080 = vpack.c.b16 %v6540, %v6538
        %v7081 = vpack.c.b16 %v6543, %v6541
        %v7082 = vpack.c.b16 %v6544, %v6542
        %v7083 = vpack.c.b16 %v6547, %v6545
        %v7084 = vpack.c.b16 %v6548, %v6546
        %v7085 = vpack.c.b16 %v6551, %v6549
        %v7086 = vpack.c.b16 %v6552, %v6550
        %v7087 = vpack.c.b16 %v6555, %v6553
        %v7088 = vpack.c.b16 %v6556, %v6554
        %v7089 = vpack.c.b16 %v6559, %v6557
        %v7090 = vpack.c.b16 %v6560, %v6558
        %v7091 = vpack.c.b16 %v6563, %v6561
        %v7092 = vpack.c.b16 %v6564, %v6562
        %v7093 = vpack.c.b16 %v6567, %v6565
        %v7094 = vpack.c.b16 %v6568, %v6566
        %v7095 = vpack.c.b16 %v6571, %v6569
        %v7096 = vpack.c.b16 %v6572, %v6570
        %v7097 = vpack.c.b16 %v6575, %v6573
        %v7098 = vpack.c.b16 %v6576, %v6574
        %v7099 = vpack.c.b16 %v6579, %v6577
        %v7100 = vpack.c.b16 %v6580, %v6578
        %v7101 = vpack.c.b16 %v6583, %v6581
        %v7102 = vpack.c.b16 %v6584, %v6582
        %v7103 = vpack.c.b16 %v6587, %v6585
        %v7104 = vpack.c.b16 %v6588, %v6586
        %v7105 = vpack.c.b16 %v6591, %v6589
        %v7106 = vpack.c.b16 %v6592, %v6590
        %v7107 = vpack.c.b16 %v6595, %v6593
        %v7108 = vpack.c.b16 %v6596, %v6594
        %v7109 = vpack.c.b16 %v6599, %v6597
        %v7110 = vpack.c.b16 %v6600, %v6598
        %v7111 = vpack.c.b16 %v6603, %v6601
        %v7112 = vpack.c.b16 %v6604, %v6602
        %v7113 = vpack.c.b16 %v6607, %v6605
        %v7114 = vpack.c.b16 %v6608, %v6606
        %v7115 = vpack.c.b16 %v6611, %v6609
        %v7116 = vpack.c.b16 %v6612, %v6610
        %v7117 = vpack.c.b16 %v6615, %v6613
        %v7118 = vpack.c.b16 %v6616, %v6614
        %v7119 = vpack.c.b16 %v6619, %v6617
        %v7120 = vpack.c.b16 %v6620, %v6618
        %v7121 = vpack.c.b16 %v6623, %v6621
        %v7122 = vpack.c.b16 %v6624, %v6622
        %v7123 = vpack.c.b16 %v6627, %v6625
        %v7124 = vpack.c.b16 %v6628, %v6626
        %v7125 = vpack.c.b16 %v6631, %v6629
        %v7126 = vpack.c.b16 %v6632, %v6630
        %v7127 = vpack.c.b16 %v6635, %v6633
        %v7128 = vpack.c.b16 %v6636, %v6634
        %v7129 = vpack.c.b16 %v6639, %v6637
        %v7130 = vpack.c.b16 %v6640, %v6638
        %v7131 = vpack.c.b16 %v6643, %v6641
        %v7132 = vpack.c.b16 %v6644, %v6642
        %v7133 = vpack.c.b16 %v6647, %v6645
        %v7134 = vpack.c.b16 %v6648, %v6646
        %v7135 = vpack.c.b16 %v6651, %v6649
        %v7136 = vpack.c.b16 %v6652, %v6650
        %v7137 = vpack.c.b16 %v6655, %v6653
        %v7138 = vpack.c.b16 %v6656, %v6654
        %v7139 = vpack.c.b16 %v6659, %v6657
        %v7140 = vpack.c.b16 %v6660, %v6658
        %v7141 = vpack.c.b16 %v6663, %v6661
        %v7142 = vpack.c.b16 %v6664, %v6662
        %v7143 = vpack.c.b16 %v6667, %v6665
        %v7144 = vpack.c.b16 %v6668, %v6666
        %v7145 = vpack.c.b16 %v6671, %v6669
        %v7146 = vpack.c.b16 %v6672, %v6670
        %v7147 = vpack.c.b16 %v6675, %v6673
        %v7148 = vpack.c.b16 %v6676, %v6674
        %v7149 = vpack.c.b16 %v6679, %v6677
        %v7150 = vpack.c.b16 %v6680, %v6678
        %v7151 = vpack.c.b16 %v6683, %v6681
        %v7152 = vpack.c.b16 %v6684, %v6682
        %v7153 = vpack.c.b16 %v6687, %v6685
        %v7154 = vpack.c.b16 %v6688, %v6686
        %v7155 = vpack.c.b16 %v6691, %v6689
        %v7156 = vpack.c.b16 %v6692, %v6690
        %v7157 = vpack.c.b16 %v6695, %v6693
        %v7158 = vpack.c.b16 %v6696, %v6694
        %v7159 = vpack.c.b16 %v6699, %v6697
        %v7160 = vpack.c.b16 %v6700, %v6698
        %v7161 = vpack.c.b16 %v6703, %v6701
        %v7162 = vpack.c.b16 %v6704, %v6702
        %v7163 = vpack.c.b16 %v6707, %v6705
        %v7164 = vpack.c.b16 %v6708, %v6706
        %v7165 = vpack.c.b16 %v6711, %v6709
        %v7166 = vpack.c.b16 %v6712, %v6710
        %v7167 = vpack.c.b16 %v6715, %v6713
        %v7168 = vpack.c.b16 %v6716, %v6714
        %v7169 = vpack.c.b16 %v6719, %v6717
        %v7170 = vpack.c.b16 %v6720, %v6718
        %v7171 = vpack.c.b16 %v6723, %v6721
        %v7172 = vpack.c.b16 %v6724, %v6722
        %v7173 = vpack.c.b16 %v6727, %v6725
        %v7174 = vpack.c.b16 %v6728, %v6726
        %v7175 = vpack.c.b16 %v6731, %v6729
        %v7176 = vpack.c.b16 %v6732, %v6730
        %v7177 = vpack.c.b16 %v6735, %v6733
        %v7178 = vpack.c.b16 %v6736, %v6734
        %v7179 = vpack.c.b16 %v6739, %v6737
        %v7180 = vpack.c.b16 %v6740, %v6738
        %v7181 = vpack.c.b16 %v6743, %v6741
        %v7182 = vpack.c.b16 %v6744, %v6742
        %v7183 = vpack.c.b16 %v6747, %v6745
        %v7184 = vpack.c.b16 %v6748, %v6746
        %v7185 = vpack.c.b16 %v6751, %v6749
        %v7186 = vpack.c.b16 %v6752, %v6750
        %v7187 = vpack.c.b16 %v6755, %v6753
        %v7188 = vpack.c.b16 %v6756, %v6754
        %v7189 = vpack.c.b16 %v6759, %v6757
        %v7190 = vpack.c.b16 %v6760, %v6758
        %v7191 = vpack.c.b16 %v6763, %v6761
        %v7192 = vpack.c.b16 %v6764, %v6762
        %v7193 = vpack.c.b16 %v6767, %v6765
        %v7194 = vpack.c.b16 %v6768, %v6766
        %v7195 = vpack.c.b16 %v6771, %v6769
        %v7196 = vpack.c.b16 %v6772, %v6770
        %v7197 = vpack.c.b16 %v6775, %v6773
        %v7198 = vpack.c.b16 %v6776, %v6774
        %v7199 = vpack.c.b16 %v6779, %v6777
        %v7200 = vpack.c.b16 %v6780, %v6778
        %v7201 = vpack.c.b16 %v6783, %v6781
        %v7202 = vpack.c.b16 %v6784, %v6782
        %v7203 = vpack.c.b16 %v6787, %v6785
        %v7204 = vpack.c.b16 %v6788, %v6786
        %v7205 = vpack.c.b16 %v6791, %v6789
        %v7206 = vpack.c.b16 %v6792, %v6790
        %v7207 = vpack.c.b16 %v6795, %v6793
        %v7208 = vpack.c.b16 %v6796, %v6794
        %v7209 = vpack.c.b16 %v6799, %v6797
        %v7210 = vpack.c.b16 %v6800, %v6798
        %v7211 = vpack.c.b16 %v6803, %v6801
        %v7212 = vpack.c.b16 %v6804, %v6802
        %v7213 = vpack.c.b16 %v6807, %v6805
        %v7214 = vpack.c.b16 %v6808, %v6806
        %v7215 = vpack.c.b16 %v6811, %v6809
        %v7216 = vpack.c.b16 %v6812, %v6810
        %v7217 = vpack.c.b16 %v6815, %v6813
        %v7218 = vpack.c.b16 %v6816, %v6814
        %v7219 = vpack.c.b16 %v6819, %v6817
        %v7220 = vpack.c.b16 %v6820, %v6818
        %v7221 = vpack.c.b16 %v6823, %v6821
        %v7222 = vpack.c.b16 %v6824, %v6822
        %v7223 = vpack.c.b16 %v6827, %v6825
        %v7224 = vpack.c.b16 %v6828, %v6826
        %v7225 = vpack.c.b16 %v6831, %v6829
        %v7226 = vpack.c.b16 %v6832, %v6830
        %v7227 = vpack.c.b16 %v6835, %v6833
        %v7228 = vpack.c.b16 %v6836, %v6834
        %v7229 = vpack.c.b16 %v6839, %v6837
        %v7230 = vpack.c.b16 %v6840, %v6838
        %v7231 = vpack.c.b16 %v6843, %v6841
        %v7232 = vpack.c.b16 %v6844, %v6842
        %v7233 = vpack.c.b16 %v6847, %v6845
        %v7234 = vpack.c.b16 %v6848, %v6846
        %v7235 = vpack.c.b16 %v6851, %v6849
        %v7236 = vpack.c.b16 %v6852, %v6850
        %v7237 = vpack.c.b16 %v6855, %v6853
        %v7238 = vpack.c.b16 %v6856, %v6854
        %v7239 = vpack.c.b16 %v6859, %v6857
        %v7240 = vpack.c.b16 %v6860, %v6858
        %v7241 = vpack.c.b16 %v6863, %v6861
        %v7242 = vpack.c.b16 %v6864, %v6862
        %v7243 = vpack.c.b16 %v6867, %v6865
        %v7244 = vpack.c.b16 %v6868, %v6866
        %v7245 = vpack.c.b16 %v6871, %v6869
        %v7246 = vpack.c.b16 %v6872, %v6870
        %v7247 = vpack.c.b16 %v6875, %v6873
        %v7248 = vpack.c.b16 %v6876, %v6874
        %v7249 = vpack.c.b16 %v6879, %v6877
        %v7250 = vpack.c.b16 %v6880, %v6878
        %v7251 = vpack.c.b16 %v6883, %v6881
        %v7252 = vpack.c.b16 %v6884, %v6882
        %v7253 = vpack.c.b16 %v6887, %v6885
        %v7254 = vpack.c.b16 %v6888, %v6886
        %v7255 = vpack.c.b16 %v6891, %v6889
        %v7256 = vpack.c.b16 %v6892, %v6890
        %v7257 = vpack.c.b16 %v6895, %v6893
        %v7258 = vpack.c.b16 %v6896, %v6894
        %v7259 = vpack.c.b16 %v6899, %v6897
        %v7260 = vpack.c.b16 %v6900, %v6898
        %v7261 = vpack.c.b16 %v6903, %v6901
        %v7262 = vpack.c.b16 %v6904, %v6902
        %v7263 = vpack.c.b16 %v6907, %v6905
        %v7264 = vpack.c.b16 %v6908, %v6906
        %v7265 = vpack.c.b16 %v6911, %v6909
        %v7266 = vpack.c.b16 %v6912, %v6910
        %v7267 = vpack.c.b16 %v6915, %v6913
        %v7268 = vpack.c.b16 %v6916, %v6914
        %v7269 = vpack.c.b16 %v6919, %v6917
        %v7270 = vpack.c.b16 %v6920, %v6918
        %v7271 = vpack.c.b16 %v6923, %v6921
        %v7272 = vpack.c.b16 %v6924, %v6922
        %v7273 = vpack.c.b16 %v6927, %v6925
        %v7274 = vpack.c.b16 %v6928, %v6926
        %v7275 = vpack.c.b16 %v6931, %v6929
        %v7276 = vpack.c.b16 %v6932, %v6930
        %v7277 = vpack.c.b16 %v6935, %v6933
        %v7278 = vpack.c.b16 %v6936, %v6934
        %v7279 = vpack.c.b16 %v6939, %v6937
        %v7280 = vpack.c.b16 %v6940, %v6938
        %v7281 = vpack.c.b16 %v6943, %v6941
        %v7282 = vpack.c.b16 %v6944, %v6942
        %v7283 = vpack.c.b16 %v6947, %v6945
        %v7284 = vpack.c.b16 %v6948, %v6946
        %v7285 = vpack.c.b16 %v6951, %v6949
        %v7286 = vpack.c.b16 %v6952, %v6950
        %v7287 = vpack.c.b16 %v6955, %v6953
        %v7288 = vpack.c.b16 %v6956, %v6954
        %v7289 = vpack.c.b16 %v6959, %v6957
        %v7290 = vpack.c.b16 %v6960, %v6958
        %v7291 = vpack.c.b16 %v6963, %v6961
        %v7292 = vpack.c.b16 %v6964, %v6962
        %v7293 = vpack.c.b16 %v6967, %v6965
        %v7294 = vpack.c.b16 %v6968, %v6966
        %v7295 = vpack.c.b16 %v6971, %v6969
        %v7296 = vpack.c.b16 %v6972, %v6970
        %v7297 = vpack.c.b16 %v6975, %v6973
        %v7298 = vpack.c.b16 %v6976, %v6974
        %v7299 = vpack.c.b16 %v6979, %v6977
        %v7300 = vpack.c.b16 %v6980, %v6978
        %v7301 = vpack.c.b16 %v6983, %v6981
        %v7302 = vpack.c.b16 %v6984, %v6982
        %v7303 = vpack.c.b16 %v6987, %v6985
        %v7304 = vpack.c.b16 %v6988, %v6986
        %v7305 = vpack.c.b16 %v6991, %v6989
        %v7306 = vpack.c.b16 %v6992, %v6990
        %v7307 = vpack.c.b16 %v6995, %v6993
        %v7308 = vpack.c.b16 %v6996, %v6994
        %v7309 = vpack.c.b16 %v6999, %v6997
        %v7310 = vpack.c.b16 %v7000, %v6998
        %v7311 = vpack.c.b16 %v7003, %v7001
        %v7312 = vpack.c.b16 %v7004, %v7002
        %v7313 = vpack.c.b16 %v7007, %v7005
        %v7314 = vpack.c.b16 %v7008, %v7006
        %v7315 = vpack.c.b16 %v7011, %v7009
        %v7316 = vpack.c.b16 %v7012, %v7010
        %v7317 = vpack.c.b16 %v7015, %v7013
        %v7318 = vpack.c.b16 %v7016, %v7014
        %v7319 = vpack.c.b16 %v7019, %v7017
        %v7320 = vpack.c.b16 %v7020, %v7018
        %v7321 = vpack.c.b16 %v7023, %v7021
        %v7322 = vpack.c.b16 %v7024, %v7022
        %v7323 = vpack.c.b16 %v7027, %v7025
        %v7324 = vpack.c.b16 %v7028, %v7026
        %v7325 = vpack.c.b16 %v7031, %v7029
        %v7326 = vpack.c.b16 %v7032, %v7030
        %v7327 = vpack.c.b16 %v7035, %v7033
        %v7328 = vpack.c.b16 %v7036, %v7034
        %v7329 = vpack.c.b16 %v7039, %v7037
        %v7330 = vpack.c.b16 %v7040, %v7038
        %v7331 = vpack.c.b16 %v7043, %v7041
        %v7332 = vpack.c.b16 %v7044, %v7042
        %7621 = vmatprep.subr.bf16.mxu0 %v7046
        %7622 = vmatpush1.bf16.msra.mxu0 %v7045
        %7623 = vmatprep.subr.bf16.mxu0 %v7048
        %7624 = vmatpush1.bf16.msra.mxu0 %v7047
        %7625 = vmatprep.subr.bf16.mxu0 %v7050
        %7626 = vmatpush1.bf16.msra.mxu0 %v7049
        %7627 = vmatprep.subr.bf16.mxu0 %v7052
        %7628 = vmatpush1.bf16.msra.mxu0 %v7051
        %7629 = vmatprep.subr.bf16.mxu0 %v7054
        %7630 = vmatpush1.bf16.msra.mxu0 %v7053
        %7631 = vmatprep.subr.bf16.mxu0 %v7056
        %7632 = vmatpush1.bf16.msra.mxu0 %v7055
        %7633 = vmatprep.subr.bf16.mxu0 %v7058
        %7634 = vmatpush1.bf16.msra.mxu0 %v7057
        %7635 = vmatprep.subr.bf16.mxu0 %v7060
        %7636 = vmatpush1.bf16.msra.mxu0 %v7059
        %7637 = vmatprep.subr.bf16.mxu0 %v7062
        %7638 = vmatpush1.bf16.msra.mxu0 %v7061
        %7639 = vmatprep.subr.bf16.mxu0 %v7064
        %7640 = vmatpush1.bf16.msra.mxu0 %v7063
        %7641 = vmatprep.subr.bf16.mxu0 %v7066
        %7642 = vmatpush1.bf16.msra.mxu0 %v7065
        %7643 = vmatprep.subr.bf16.mxu0 %v7068
        %7644 = vmatpush1.bf16.msra.mxu0 %v7067
        %7645 = vmatprep.subr.bf16.mxu0 %v7070
        %7646 = vmatpush1.bf16.msra.mxu0 %v7069
        %7647 = vmatprep.subr.bf16.mxu0 %v7072
        %7648 = vmatpush1.bf16.msra.mxu0 %v7071
        %7649 = vmatprep.subr.bf16.mxu0 %v7074
        %7650 = vmatpush1.bf16.msra.mxu0 %v7073
        %7651 = vmatprep.subr.bf16.mxu0 %v7076
        %7652 = vmatpush1.bf16.msra.mxu0 %v7075
        %7653 = vmatprep.mubr.bf16.mxu0 %v5875
        %7654 = vmatmul.mubr.bf16.gmra.mrb[0].mxu0 %v5874
        %v7655 = vpop.f32.mrb[0].mxu0
        %v7656 = vadd.f32 0.0, %v7655
        %v7657 = vpop.f32.mrb[0].mxu0
        %v7658 = vadd.f32 0.0, %v7657
        %v7659 = vpop.f32.mrb[0].mxu0
        %v7660 = vadd.f32 0.0, %v7659
        %v7661 = vpop.f32.mrb[0].mxu0
        %v7662 = vadd.f32 0.0, %v7661
        %7663 = vdwg.mxu0
        %7664 = vmatprep.subr.bf16.mxu0 %v7078
        %7665 = vmatpush1.bf16.msra.mxu0 %v7077
        %7666 = vmatprep.subr.bf16.mxu0 %v7080
        %7667 = vmatpush1.bf16.msra.mxu0 %v7079
        %7668 = vmatprep.subr.bf16.mxu0 %v7082
        %7669 = vmatpush1.bf16.msra.mxu0 %v7081
        %7670 = vmatprep.subr.bf16.mxu0 %v7084
        %7671 = vmatpush1.bf16.msra.mxu0 %v7083
        %7672 = vmatprep.subr.bf16.mxu0 %v7086
        %7673 = vmatpush1.bf16.msra.mxu0 %v7085
        %7674 = vmatprep.subr.bf16.mxu0 %v7088
        %7675 = vmatpush1.bf16.msra.mxu0 %v7087
        %7676 = vmatprep.subr.bf16.mxu0 %v7090
        %7677 = vmatpush1.bf16.msra.mxu0 %v7089
        %7678 = vmatprep.subr.bf16.mxu0 %v7092
        %7679 = vmatpush1.bf16.msra.mxu0 %v7091
        %7680 = vmatprep.subr.bf16.mxu0 %v7094
        %7681 = vmatpush1.bf16.msra.mxu0 %v7093
        %7682 = vmatprep.subr.bf16.mxu0 %v7096
        %7683 = vmatpush1.bf16.msra.mxu0 %v7095
        %7684 = vmatprep.subr.bf16.mxu0 %v7098
        %7685 = vmatpush1.bf16.msra.mxu0 %v7097
        %7686 = vmatprep.subr.bf16.mxu0 %v7100
        %7687 = vmatpush1.bf16.msra.mxu0 %v7099
        %7688 = vmatprep.subr.bf16.mxu0 %v7102
        %7689 = vmatpush1.bf16.msra.mxu0 %v7101
        %7690 = vmatprep.subr.bf16.mxu0 %v7104
        %7691 = vmatpush1.bf16.msra.mxu0 %v7103
        %7692 = vmatprep.subr.bf16.mxu0 %v7106
        %7693 = vmatpush1.bf16.msra.mxu0 %v7105
        %7694 = vmatprep.subr.bf16.mxu0 %v7108
        %7695 = vmatpush1.bf16.msra.mxu0 %v7107
        %7696 = vmatprep.mubr.bf16.mxu0 %v5877
        %7697 = vmatmul.mubr.bf16.gmra.mrb[0].mxu0 %v5876
        %v7698 = vpop.f32.mrb[0].mxu0
        %v7699 = vadd.f32 %v7656, %v7698
        %v7700 = vpop.f32.mrb[0].mxu0
        %v7701 = vadd.f32 %v7658, %v7700
        %v7702 = vpop.f32.mrb[0].mxu0
        %v7703 = vadd.f32 %v7660, %v7702
        %v7704 = vpop.f32.mrb[0].mxu0
        %v7705 = vadd.f32 %v7662, %v7704
        %7706 = vdwg.mxu0
        %7707 = vmatprep.subr.bf16.mxu0 %v7110
        %7708 = vmatpush1.bf16.msra.mxu0 %v7109
        %7709 = vmatprep.subr.bf16.mxu0 %v7112
        %7710 = vmatpush1.bf16.msra.mxu0 %v7111
        %7711 = vmatprep.subr.bf16.mxu0 %v7114
        %7712 = vmatpush1.bf16.msra.mxu0 %v7113
        %7713 = vmatprep.subr.bf16.mxu0 %v7116
        %7714 = vmatpush1.bf16.msra.mxu0 %v7115
        %7715 = vmatprep.subr.bf16.mxu0 %v7118
        %7716 = vmatpush1.bf16.msra.mxu0 %v7117
        %7717 = vmatprep.subr.bf16.mxu0 %v7120
        %7718 = vmatpush1.bf16.msra.mxu0 %v7119
        %7719 = vmatprep.subr.bf16.mxu0 %v7122
        %7720 = vmatpush1.bf16.msra.mxu0 %v7121
        %7721 = vmatprep.subr.bf16.mxu0 %v7124
        %7722 = vmatpush1.bf16.msra.mxu0 %v7123
        %7723 = vmatprep.subr.bf16.mxu0 %v7126
        %7724 = vmatpush1.bf16.msra.mxu0 %v7125
        %7725 = vmatprep.subr.bf16.mxu0 %v7128
        %7726 = vmatpush1.bf16.msra.mxu0 %v7127
        %7727 = vmatprep.subr.bf16.mxu0 %v7130
        %7728 = vmatpush1.bf16.msra.mxu0 %v7129
        %7729 = vmatprep.subr.bf16.mxu0 %v7132
        %7730 = vmatpush1.bf16.msra.mxu0 %v7131
        %7731 = vmatprep.subr.bf16.mxu0 %v7134
        %7732 = vmatpush1.bf16.msra.mxu0 %v7133
        %7733 = vmatprep.subr.bf16.mxu0 %v7136
        %7734 = vmatpush1.bf16.msra.mxu0 %v7135
        %7735 = vmatprep.subr.bf16.mxu0 %v7138
        %7736 = vmatpush1.bf16.msra.mxu0 %v7137
        %7737 = vmatprep.subr.bf16.mxu0 %v7140
        %7738 = vmatpush1.bf16.msra.mxu0 %v7139
        %7739 = vmatprep.mubr.bf16.mxu0 %v5879
        %7740 = vmatmul.mubr.bf16.gmra.mrb[0].mxu0 %v5878
        %v7741 = vpop.f32.mrb[0].mxu0
        %v7742 = vadd.f32 %v7699, %v7741
        %v7743 = vpop.f32.mrb[0].mxu0
        %v7744 = vadd.f32 %v7701, %v7743
        %v7745 = vpop.f32.mrb[0].mxu0
        %v7746 = vadd.f32 %v7703, %v7745
        %v7747 = vpop.f32.mrb[0].mxu0
        %v7748 = vadd.f32 %v7705, %v7747
        %7749 = vdwg.mxu0
        %7750 = vmatprep.subr.bf16.mxu0 %v7142
        %7751 = vmatpush1.bf16.msra.mxu0 %v7141
        %7752 = vmatprep.subr.bf16.mxu0 %v7144
        %7753 = vmatpush1.bf16.msra.mxu0 %v7143
        %7754 = vmatprep.subr.bf16.mxu0 %v7146
        %7755 = vmatpush1.bf16.msra.mxu0 %v7145
        %7756 = vmatprep.subr.bf16.mxu0 %v7148
        %7757 = vmatpush1.bf16.msra.mxu0 %v7147
        %7758 = vmatprep.subr.bf16.mxu0 %v7150
        %7759 = vmatpush1.bf16.msra.mxu0 %v7149
        %7760 = vmatprep.subr.bf16.mxu0 %v7152
        %7761 = vmatpush1.bf16.msra.mxu0 %v7151
        %7762 = vmatprep.subr.bf16.mxu0 %v7154
        %7763 = vmatpush1.bf16.msra.mxu0 %v7153
        %7764 = vmatprep.subr.bf16.mxu0 %v7156
        %7765 = vmatpush1.bf16.msra.mxu0 %v7155
        %7766 = vmatprep.subr.bf16.mxu0 %v7158
        %7767 = vmatpush1.bf16.msra.mxu0 %v7157
        %7768 = vmatprep.subr.bf16.mxu0 %v7160
        %7769 = vmatpush1.bf16.msra.mxu0 %v7159
        %7770 = vmatprep.subr.bf16.mxu0 %v7162
        %7771 = vmatpush1.bf16.msra.mxu0 %v7161
        %7772 = vmatprep.subr.bf16.mxu0 %v7164
        %7773 = vmatpush1.bf16.msra.mxu0 %v7163
        %7774 = vmatprep.subr.bf16.mxu0 %v7166
        %7775 = vmatpush1.bf16.msra.mxu0 %v7165
        %7776 = vmatprep.subr.bf16.mxu0 %v7168
        %7777 = vmatpush1.bf16.msra.mxu0 %v7167
        %7778 = vmatprep.subr.bf16.mxu0 %v7170
        %7779 = vmatpush1.bf16.msra.mxu0 %v7169
        %7780 = vmatprep.subr.bf16.mxu0 %v7172
        %7781 = vmatpush1.bf16.msra.mxu0 %v7171
        %7782 = vmatprep.mubr.bf16.mxu0 %v5881
        %7783 = vmatmul.mubr.bf16.gmra.mrb[0].mxu0 %v5880
        %v7784 = vpop.f32.mrb[0].mxu0
        %v7785 = vadd.f32 %v7742, %v7784
        %v7786 = vpop.f32.mrb[0].mxu0
        %v7787 = vadd.f32 %v7744, %v7786
        %v7788 = vpop.f32.mrb[0].mxu0
        %v7789 = vadd.f32 %v7746, %v7788
        %v7790 = vpop.f32.mrb[0].mxu0
        %v7791 = vadd.f32 %v7748, %v7790
        %7792 = vdwg.mxu0
        %7793 = vmatprep.subr.bf16.mxu0 %v7174
        %7794 = vmatpush1.bf16.msra.mxu0 %v7173
        %7795 = vmatprep.subr.bf16.mxu0 %v7176
        %7796 = vmatpush1.bf16.msra.mxu0 %v7175
        %7797 = vmatprep.subr.bf16.mxu0 %v7178
        %7798 = vmatpush1.bf16.msra.mxu0 %v7177
        %7799 = vmatprep.subr.bf16.mxu0 %v7180
        %7800 = vmatpush1.bf16.msra.mxu0 %v7179
        %7801 = vmatprep.subr.bf16.mxu0 %v7182
        %7802 = vmatpush1.bf16.msra.mxu0 %v7181
        %7803 = vmatprep.subr.bf16.mxu0 %v7184
        %7804 = vmatpush1.bf16.msra.mxu0 %v7183
        %7805 = vmatprep.subr.bf16.mxu0 %v7186
        %7806 = vmatpush1.bf16.msra.mxu0 %v7185
        %7807 = vmatprep.subr.bf16.mxu0 %v7188
        %7808 = vmatpush1.bf16.msra.mxu0 %v7187
        %7809 = vmatprep.subr.bf16.mxu0 %v7190
        %7810 = vmatpush1.bf16.msra.mxu0 %v7189
        %7811 = vmatprep.subr.bf16.mxu0 %v7192
        %7812 = vmatpush1.bf16.msra.mxu0 %v7191
        %7813 = vmatprep.subr.bf16.mxu0 %v7194
        %7814 = vmatpush1.bf16.msra.mxu0 %v7193
        %7815 = vmatprep.subr.bf16.mxu0 %v7196
        %7816 = vmatpush1.bf16.msra.mxu0 %v7195
        %7817 = vmatprep.subr.bf16.mxu0 %v7198
        %7818 = vmatpush1.bf16.msra.mxu0 %v7197
        %7819 = vmatprep.subr.bf16.mxu0 %v7200
        %7820 = vmatpush1.bf16.msra.mxu0 %v7199
        %7821 = vmatprep.subr.bf16.mxu0 %v7202
        %7822 = vmatpush1.bf16.msra.mxu0 %v7201
        %7823 = vmatprep.subr.bf16.mxu0 %v7204
        %7824 = vmatpush1.bf16.msra.mxu0 %v7203
        %7825 = vmatprep.mubr.bf16.mxu0 %v5883
        %7826 = vmatmul.mubr.bf16.gmra.mrb[0].mxu0 %v5882
        %v7827 = vpop.f32.mrb[0].mxu0
        %v7828 = vadd.f32 %v7785, %v7827
        %v7829 = vpop.f32.mrb[0].mxu0
        %v7830 = vadd.f32 %v7787, %v7829
        %v7831 = vpop.f32.mrb[0].mxu0
        %v7832 = vadd.f32 %v7789, %v7831
        %v7833 = vpop.f32.mrb[0].mxu0
        %v7834 = vadd.f32 %v7791, %v7833
        %7835 = vdwg.mxu0
        %7836 = vmatprep.subr.bf16.mxu0 %v7206
        %7837 = vmatpush1.bf16.msra.mxu0 %v7205
        %7838 = vmatprep.subr.bf16.mxu0 %v7208
        %7839 = vmatpush1.bf16.msra.mxu0 %v7207
        %7840 = vmatprep.subr.bf16.mxu0 %v7210
        %7841 = vmatpush1.bf16.msra.mxu0 %v7209
        %7842 = vmatprep.subr.bf16.mxu0 %v7212
        %7843 = vmatpush1.bf16.msra.mxu0 %v7211
        %7844 = vmatprep.subr.bf16.mxu0 %v7214
        %7845 = vmatpush1.bf16.msra.mxu0 %v7213
        %7846 = vmatprep.subr.bf16.mxu0 %v7216
        %7847 = vmatpush1.bf16.msra.mxu0 %v7215
        %7848 = vmatprep.subr.bf16.mxu0 %v7218
        %7849 = vmatpush1.bf16.msra.mxu0 %v7217
        %7850 = vmatprep.subr.bf16.mxu0 %v7220
        %7851 = vmatpush1.bf16.msra.mxu0 %v7219
        %7852 = vmatprep.subr.bf16.mxu0 %v7222
        %7853 = vmatpush1.bf16.msra.mxu0 %v7221
        %7854 = vmatprep.subr.bf16.mxu0 %v7224
        %7855 = vmatpush1.bf16.msra.mxu0 %v7223
        %7856 = vmatprep.subr.bf16.mxu0 %v7226
        %7857 = vmatpush1.bf16.msra.mxu0 %v7225
        %7858 = vmatprep.subr.bf16.mxu0 %v7228
        %7859 = vmatpush1.bf16.msra.mxu0 %v7227
        %7860 = vmatprep.subr.bf16.mxu0 %v7230
        %7861 = vmatpush1.bf16.msra.mxu0 %v7229
        %7862 = vmatprep.subr.bf16.mxu0 %v7232
        %7863 = vmatpush1.bf16.msra.mxu0 %v7231
        %7864 = vmatprep.subr.bf16.mxu0 %v7234
        %7865 = vmatpush1.bf16.msra.mxu0 %v7233
        %7866 = vmatprep.subr.bf16.mxu0 %v7236
        %7867 = vmatpush1.bf16.msra.mxu0 %v7235
        %7868 = vmatprep.mubr.bf16.mxu0 %v5885
        %7869 = vmatmul.mubr.bf16.gmra.mrb[0].mxu0 %v5884
        %v7870 = vpop.f32.mrb[0].mxu0
        %v7871 = vadd.f32 %v7828, %v7870
        %v7872 = vpop.f32.mrb[0].mxu0
        %v7873 = vadd.f32 %v7830, %v7872
        %v7874 = vpop.f32.mrb[0].mxu0
        %v7875 = vadd.f32 %v7832, %v7874
        %v7876 = vpop.f32.mrb[0].mxu0
        %v7877 = vadd.f32 %v7834, %v7876
        %7878 = vdwg.mxu0
        %7879 = vmatprep.subr.bf16.mxu0 %v7238
        %7880 = vmatpush1.bf16.msra.mxu0 %v7237
        %7881 = vmatprep.subr.bf16.mxu0 %v7240
        %7882 = vmatpush1.bf16.msra.mxu0 %v7239
        %7883 = vmatprep.subr.bf16.mxu0 %v7242
        %7884 = vmatpush1.bf16.msra.mxu0 %v7241
        %7885 = vmatprep.subr.bf16.mxu0 %v7244
        %7886 = vmatpush1.bf16.msra.mxu0 %v7243
        %7887 = vmatprep.subr.bf16.mxu0 %v7246
        %7888 = vmatpush1.bf16.msra.mxu0 %v7245
        %7889 = vmatprep.subr.bf16.mxu0 %v7248
        %7890 = vmatpush1.bf16.msra.mxu0 %v7247
        %7891 = vmatprep.subr.bf16.mxu0 %v7250
        %7892 = vmatpush1.bf16.msra.mxu0 %v7249
        %7893 = vmatprep.subr.bf16.mxu0 %v7252
        %7894 = vmatpush1.bf16.msra.mxu0 %v7251
        %7895 = vmatprep.subr.bf16.mxu0 %v7254
        %7896 = vmatpush1.bf16.msra.mxu0 %v7253
        %7897 = vmatprep.subr.bf16.mxu0 %v7256
        %7898 = vmatpush1.bf16.msra.mxu0 %v7255
        %7899 = vmatprep.subr.bf16.mxu0 %v7258
        %7900 = vmatpush1.bf16.msra.mxu0 %v7257
        %7901 = vmatprep.subr.bf16.mxu0 %v7260
        %7902 = vmatpush1.bf16.msra.mxu0 %v7259
        %7903 = vmatprep.subr.bf16.mxu0 %v7262
        %7904 = vmatpush1.bf16.msra.mxu0 %v7261
        %7905 = vmatprep.subr.bf16.mxu0 %v7264
        %7906 = vmatpush1.bf16.msra.mxu0 %v7263
        %7907 = vmatprep.subr.bf16.mxu0 %v7266
        %7908 = vmatpush1.bf16.msra.mxu0 %v7265
        %7909 = vmatprep.subr.bf16.mxu0 %v7268
        %7910 = vmatpush1.bf16.msra.mxu0 %v7267
        %7911 = vmatprep.mubr.bf16.mxu0 %v5887
        %7912 = vmatmul.mubr.bf16.gmra.mrb[0].mxu0 %v5886
        %v7913 = vpop.f32.mrb[0].mxu0
        %v7914 = vadd.f32 %v7871, %v7913
        %v7915 = vpop.f32.mrb[0].mxu0
        %v7916 = vadd.f32 %v7873, %v7915
        %v7917 = vpop.f32.mrb[0].mxu0
        %v7918 = vadd.f32 %v7875, %v7917
        %v7919 = vpop.f32.mrb[0].mxu0
        %v7920 = vadd.f32 %v7877, %v7919
        %7921 = vdwg.mxu0
        %7922 = vmatprep.subr.bf16.mxu0 %v7270
        %7923 = vmatpush1.bf16.msra.mxu0 %v7269
        %7924 = vmatprep.subr.bf16.mxu0 %v7272
        %7925 = vmatpush1.bf16.msra.mxu0 %v7271
        %7926 = vmatprep.subr.bf16.mxu0 %v7274
        %7927 = vmatpush1.bf16.msra.mxu0 %v7273
        %7928 = vmatprep.subr.bf16.mxu0 %v7276
        %7929 = vmatpush1.bf16.msra.mxu0 %v7275
        %7930 = vmatprep.subr.bf16.mxu0 %v7278
        %7931 = vmatpush1.bf16.msra.mxu0 %v7277
        %7932 = vmatprep.subr.bf16.mxu0 %v7280
        %7933 = vmatpush1.bf16.msra.mxu0 %v7279
        %7934 = vmatprep.subr.bf16.mxu0 %v7282
        %7935 = vmatpush1.bf16.msra.mxu0 %v7281
        %7936 = vmatprep.subr.bf16.mxu0 %v7284
        %7937 = vmatpush1.bf16.msra.mxu0 %v7283
        %7938 = vmatprep.subr.bf16.mxu0 %v7286
        %7939 = vmatpush1.bf16.msra.mxu0 %v7285
        %7940 = vmatprep.subr.bf16.mxu0 %v7288
        %7941 = vmatpush1.bf16.msra.mxu0 %v7287
        %7942 = vmatprep.subr.bf16.mxu0 %v7290
        %7943 = vmatpush1.bf16.msra.mxu0 %v7289
        %7944 = vmatprep.subr.bf16.mxu0 %v7292
        %7945 = vmatpush1.bf16.msra.mxu0 %v7291
        %7946 = vmatprep.subr.bf16.mxu0 %v7294
        %7947 = vmatpush1.bf16.msra.mxu0 %v7293
        %7948 = vmatprep.subr.bf16.mxu0 %v7296
        %7949 = vmatpush1.bf16.msra.mxu0 %v7295
        %7950 = vmatprep.subr.bf16.mxu0 %v7298
        %7951 = vmatpush1.bf16.msra.mxu0 %v7297
        %7952 = vmatprep.subr.bf16.mxu0 %v7300
        %7953 = vmatpush1.bf16.msra.mxu0 %v7299
        %7954 = vmatprep.mubr.bf16.mxu0 %v5889
        %7955 = vmatmul.mubr.bf16.gmra.mrb[0].mxu0 %v5888
        %v7956 = vpop.f32.mrb[0].mxu0
        %v7957 = vadd.f32 %v7914, %v7956
        %v7958 = vpop.f32.mrb[0].mxu0
        %v7959 = vadd.f32 %v7916, %v7958
        %v7960 = vpop.f32.mrb[0].mxu0
        %v7961 = vadd.f32 %v7918, %v7960
        %v7962 = vpop.f32.mrb[0].mxu0
        %v7963 = vadd.f32 %v7920, %v7962
        %7964 = vdwg.mxu0
        %7965 = vmatprep.subr.bf16.mxu0 %v7302
        %7966 = vmatpush1.bf16.msra.mxu0 %v7301
        %7967 = vmatprep.subr.bf16.mxu0 %v7304
        %7968 = vmatpush1.bf16.msra.mxu0 %v7303
        %7969 = vmatprep.subr.bf16.mxu0 %v7306
        %7970 = vmatpush1.bf16.msra.mxu0 %v7305
        %7971 = vmatprep.subr.bf16.mxu0 %v7308
        %7972 = vmatpush1.bf16.msra.mxu0 %v7307
        %7973 = vmatprep.subr.bf16.mxu0 %v7310
        %7974 = vmatpush1.bf16.msra.mxu0 %v7309
        %7975 = vmatprep.subr.bf16.mxu0 %v7312
        %7976 = vmatpush1.bf16.msra.mxu0 %v7311
        %7977 = vmatprep.subr.bf16.mxu0 %v7314
        %7978 = vmatpush1.bf16.msra.mxu0 %v7313
        %7979 = vmatprep.subr.bf16.mxu0 %v7316
        %7980 = vmatpush1.bf16.msra.mxu0 %v7315
        %7981 = vmatprep.subr.bf16.mxu0 %v7318
        %7982 = vmatpush1.bf16.msra.mxu0 %v7317
        %7983 = vmatprep.subr.bf16.mxu0 %v7320
        %7984 = vmatpush1.bf16.msra.mxu0 %v7319
        %7985 = vmatprep.subr.bf16.mxu0 %v7322
        %7986 = vmatpush1.bf16.msra.mxu0 %v7321
        %7987 = vmatprep.subr.bf16.mxu0 %v7324
        %7988 = vmatpush1.bf16.msra.mxu0 %v7323
        %7989 = vmatprep.subr.bf16.mxu0 %v7326
        %7990 = vmatpush1.bf16.msra.mxu0 %v7325
        %7991 = vmatprep.subr.bf16.mxu0 %v7328
        %7992 = vmatpush1.bf16.msra.mxu0 %v7327
        %7993 = vmatprep.subr.bf16.mxu0 %v7330
        %7994 = vmatpush1.bf16.msra.mxu0 %v7329
        %7995 = vmatprep.subr.bf16.mxu0 %v7332
        %7996 = vmatpush1.bf16.msra.mxu0 %v7331
        %7997 = vmatprep.mubr.bf16.mxu0 %v5891
        %7998 = vmatmul.mubr.bf16.gmra.mrb[0].mxu0 %v5890
        %v7999 = vpop.f32.mrb[0].mxu0
        %v8000 = vadd.f32 %v7957, %v7999
        %v8001 = vpop.f32.mrb[0].mxu0
        %v8002 = vadd.f32 %v7959, %v8001
        %v8003 = vpop.f32.mrb[0].mxu0
        %v8004 = vadd.f32 %v7961, %v8003
        %v8005 = vpop.f32.mrb[0].mxu0
        %v8006 = vadd.f32 %v7963, %v8005
        %8007 = vdwg.mxu0
        %s8008 = scalar_lea.vmem [#allocation12], 2
        %v8009 = vld [vmem:[%s8008] ss:$4 sm:$0x3]
        %v8011 = vlaneseq
        %v8012 = vshrl.u32 %v8011, 7
        %v8013 = vsub.s32 0, %v8012
        %v8014 = vrot.slane %v8009, %v8013
        %v8015 = vlaneseq
        %v8016 = vshrl.u32 %v8015, 7
        %v8017 = vsub.s32 1, %v8016
        %v8018 = vrot.slane %v8009, %v8017
        %v8021 = vmul.f32 %v8000, %v8014
        %v8022 = vmul.f32 %v8002, %v8018
        %v8023 = vmul.f32 %v8004, %v8014
        %v8024 = vmul.f32 %v8006, %v8018
        %s8025 = scalar_lea.vmem [#allocation14], 2
        %v8026 = vld [vmem:[%s8025] ss:$4 sm:$0x3]
        %v8028 = vlaneseq
        %v8029 = vshrl.u32 %v8028, 7
        %v8030 = vsub.s32 0, %v8029
        %v8031 = vrot.slane %v8026, %v8030
        %v8032 = vlaneseq
        %v8033 = vshrl.u32 %v8032, 7
        %v8034 = vsub.s32 1, %v8033
        %v8035 = vrot.slane %v8026, %v8034
        %v8038 = vadd.f32 %v8021, %v8031
        %v8039 = vadd.f32 %v8022, %v8035
        %v8040 = vadd.f32 %v8023, %v8031
        %v8041 = vadd.f32 %v8024, %v8035
        %v8042 = vmax.f32 %v8038, 0.0
        %v8043 = vmax.f32 %v8039, 0.0
        %v8044 = vmax.f32 %v8040, 0.0
        %v8045 = vmax.f32 %v8041, 0.0
        %8046 = vst [vmem:[%s375 + $0x30] sm:$0xff] %v8042
        %8047 = vst [vmem:[%s375 + $0x38] sm:$0xff] %v8043
        %8048 = vst [vmem:[%s375 + $0x70] sm:$0xff] %v8044
        %8049 = vst [vmem:[%s375 + $0x78] sm:$0xff] %v8045
        %s8050 = sand.u32 %s187, 1
        %s8051 = scalar_lea.sflag [#allocation5], %s8050
        %s8052 = sand.u32 %s187, 1
        %s8053 = smul.addr %s8052, 128
        %s8054 = scalar_lea.vmem [#allocation15], %s8053
        // Predicated region
        $region77: #{tpu_custom_call.1} parent=47 // pred_check
          %p8055 = pneg %p197
        $region78: #{tpu_custom_call.1} parent=47 // pred_check_branch
          %8057 = sbr.rel (%p8055) target = $region80
        $region79: #{tpu_custom_call.1} parent=47 // pred_region
          %s8058 = smul.u32 2, %s27
          %s8060 = ssub.s32 2048, 2048
          %8061 = vsyncadd %s8051, %s8060
          %s8062 = smul.addr %s8058, 8
          %s8063 = smul.addr %s8062, 128
          %s8064 = scalar_lea.hbm %s7, %s8063
          %s8065 = sshll.u32 %s8054, 4
          %s8066 = int_to_ptr.vmem [resolvable:$true] %s8065
          %8071 = dma.vmem_to_hbm [thread:$0]  %s8066, 2048, %s8064, %s8051, 1024, 1024, 64
        $region80: #{tpu_custom_call.1} parent=47 // pred_fallthru
          _
      $region48: #{tpu_custom_call.1} parent=5 // pred_fallthru
        _
      %p8072 = scmp.le.s32.totalorder 2, %s22
      // Predicated region
      $region81: #{tpu_custom_call.1} parent=5 // pred_check
        %p8073 = pneg %p8072
      $region82: #{tpu_custom_call.1} parent=5 // pred_check_branch
        %8075 = sbr.rel (%p8073) target = $region84
      $region83: #{tpu_custom_call.1} parent=5 // pred_region
        %s8076 = ssub.s32 %s22, 2
        // Predicated region
        $region85: #{tpu_custom_call.1} parent=83 // pred_check
          %p8077 = pneg %p203
        $region86: #{tpu_custom_call.1} parent=83 // pred_check_branch
          %8079 = sbr.rel (%p8077) target = $region88
        $region87: #{tpu_custom_call.1} parent=83 // pred_region
          %s8080 = sand.u32 %s188, 1
          %s8081 = scalar_lea.sflag [#allocation5], %s8080
          %s8082 = sand.u32 %s188, 1
          %s8083 = smul.addr %s8082, 128
          %s8084 = scalar_lea.vmem [#allocation15], %s8083
          %8085 = dma.done %s8081, 2048
        $region88: #{tpu_custom_call.1} parent=83 // pred_fallthru
          _
      $region84: #{tpu_custom_call.1} parent=5 // pred_fallthru
        _
    $region6: #{tpu_custom_call.1} parent=1 // loop_footer
      %s26 = sadd.s32 1, %s22
    $region7: #{tpu_custom_call.1} parent=1 // loop_footer_branch
      %21 = sbr.rel target = $region3
    $region8: #{tpu_custom_call.1} parent=1 // loop_exit
      _
    %8086 = vsyncpa [#allocation4], 1
    %s8087 = scalar_lea.sflag [#allocation4], 1
    %8088 = vsyncpa %s8087, 1
    %8089 = vsyncpa [#allocation7], 1
    %8090 = vsyncpa [#allocation10], 1
    %8091 = vsyncpa [#allocation13], 1
    %8092 = vsyncpa [#allocation5], 1
    %s8093 = scalar_lea.sflag [#allocation5], 1
    %8094 = vsyncpa %s8093, 1

</llo_original>
